<compile_context>
chip_gen: v7x
topology: tpu7x:2x2x1
jax: 0.10.0
libtpu: 0.0.40
codegen_flags: <defaults>
</compile_context>

<pallas_src>
import functools

import jax
import jax.numpy as jnp
from jax.experimental import pallas as pl
from jax.experimental.pallas import tpu as pltpu

LANE = 128
VMEM_LIMIT_BYTES = 32 * 1024 * 1024      # fits every generation's physical VMEM
TILE_VMEM_BUDGET = 20 * 1024 * 1024      # headroom under the scoped limit


# ----------------------------------------------------------------------------
# Pallas kernels
# ----------------------------------------------------------------------------
def _conv_bn_act_kernel(p_ref, w_ref, b_ref, o_ref, *, slope):
    """out = LeakyReLU(patches @ W_bnfolded + shift); slope==1.0 -> identity."""
    acc = jnp.dot(p_ref[...], w_ref[...], preferred_element_type=jnp.float32)
    y = acc + b_ref[...]
    y = jnp.where(y > 0, y, slope * y)
    o_ref[...] = y.astype(o_ref.dtype)


def _tail_kernel(p5_ref, w5_ref, b5_ref, w6_ref, b6_ref, hw_ref, hb_ref,
                 code_ref, head_ref, *, n_batch, n_taps, slope5):
    """Fused conv5(+BN+LReLU) -> conv6(+BN) -> Linear -> LeakyReLU -> Sigmoid.

    p5 rows are spatial-major / batch-minor (row = s * n_batch + n), so conv6
    (a k x k valid conv over conv5's k x k output) is the sum over the taps s
    of  y5[s*n_batch:(s+1)*n_batch, :] @ W6[s]  — plain contiguous slices, no
    reshape, no HBM round trip.  Padded weight columns / rows are zero, so the
    padded lanes stay exactly zero through the whole chain.
    """
    # conv5 + BN + LeakyReLU (f32 accumulate / epilogue).
    y5 = jnp.dot(p5_ref[...], w5_ref[...], preferred_element_type=jnp.float32)
    y5 = y5 + b5_ref[...]
    y5 = jnp.where(y5 > 0, y5, slope5 * y5)            # (n_taps*n_batch, Cp5)

    # conv6 (k x k valid conv == sum over the spatial taps) + BN, no activation.
    cp6 = w6_ref.shape[-1]
    z6 = jnp.zeros((n_batch, cp6), jnp.float32)
    for s in range(n_taps):
        z6 = z6 + jnp.dot(y5[s * n_batch:(s + 1) * n_batch, :], w6_ref[s],
                          preferred_element_type=jnp.float32)
    z6 = z6 + b6_ref[...]
    code_ref[...] = z6.astype(code_ref.dtype)

    # Linear -> LeakyReLU (torch default slope 0.01) -> Sigmoid.
    z = jnp.dot(z6, hw_ref[...], preferred_element_type=jnp.float32)
    z = z + hb_ref[...]
    z = jnp.where(z > 0, z, 0.01 * z)
    head_ref[...] = pl.reciprocal(1.0 + jnp.exp(-z),
                                  approx=True).astype(head_ref.dtype)


# ----------------------------------------------------------------------------
# Helpers
# ----------------------------------------------------------------------------
def _round_up(x, n):
    return ((x + n - 1) // n) * n


def _pad_axis(x, target, axis):
    pad = target - x.shape[axis]
    if pad <= 0:
        return x
    widths = [(0, 0)] * x.ndim
    widths[axis] = (0, pad)
    return jnp.pad(x, widths)


def _pick_tile(m, k, cp, out_bytes):
    """Largest divisor-of-M tile that fits the VMEM budget; when M allows,
    keep >= 2 grid steps so the 'parallel' axis can feed both v7x cores."""
    def fits(t):
        need = (2 * t * k * 2          # double-buffered bf16 LHS
                + 2 * k * cp * 2       # double-buffered bf16 weights
                + 2 * cp * 4           # shift
                + 2 * t * cp * out_bytes)
        return need <= TILE_VMEM_BUDGET

    if m <= 64:
        return m
    best = 0
    for t in range(8, min(m // 2, 2048) + 1, 8):
        if m % t == 0 and fits(t):
            best = t
    return best if best else m


def im2col_nhwc(x, k, stride, pad):
    """x: (N,H,W,C) -> (N,Ho,Wo,k*k*C) patches, (kh,kw,c) feature ordering."""
    N, H, W, C = x.shape
    xp = jnp.pad(x, ((0, 0), (pad, pad), (pad, pad), (0, 0))) if pad else x
    Ho = (H + 2 * pad - k) // stride + 1
    Wo = (W + 2 * pad - k) // stride + 1
    cols = []
    for kh in range(k):
        for kw in range(k):
            cols.append(
                xp[:, kh:kh + (Ho - 1) * stride + 1:stride,
                      kw:kw + (Wo - 1) * stride + 1:stride, :])
    return jnp.concatenate(cols, axis=-1), Ho, Wo


# ----------------------------------------------------------------------------
# Pallas wrappers
# ----------------------------------------------------------------------------
def matmul_shift_act(patches, weight, shift, slope, out_dtype):
    """out[M, Cp] = LeakyReLU(patches[M,K] @ weight[K,Cp] + shift[1,Cp])."""
    M, K = patches.shape
    Cp = weight.shape[1]                       # multiple of 128 (lane dense)
    tm = _pick_tile(M, K, Cp, jnp.dtype(out_dtype).itemsize)
    kernel = functools.partial(_conv_bn_act_kernel, slope=slope)
    return pl.pallas_call(
        kernel,
        out_shape=jax.ShapeDtypeStruct((M, Cp), out_dtype),
        grid_spec=pltpu.PrefetchScalarGridSpec(
            num_scalar_prefetch=0,
            grid=(M // tm,),
            in_specs=[
                pl.BlockSpec((tm, K), lambda i: (i, 0)),
                pl.BlockSpec((K, Cp), lambda i: (0, 0)),
                pl.BlockSpec((1, Cp), lambda i: (0, 0)),
            ],
            out_specs=pl.BlockSpec((tm, Cp), lambda i: (i, 0)),
        ),
        compiler_params=pltpu.CompilerParams(
            dimension_semantics=("parallel",),
            vmem_limit_bytes=VMEM_LIMIT_BYTES),
    )(patches, weight, shift)


def conv_bn_lrelu(h, layer, out_dtype):
    """h: NHWC -> NHWC after conv + (folded BN) + LeakyReLU, one kernel."""
    N = h.shape[0]
    h = _pad_axis(h, layer["cin_pad"], axis=-1)        # lane-dense K
    p4d, Ho, Wo = im2col_nhwc(h, layer["k"], layer["stride"], layer["pad"])
    patches = p4d.reshape(N * Ho * Wo, p4d.shape[-1])
    out = matmul_shift_act(patches, layer["w"], layer["shift"],
                           layer["slope"], out_dtype)
    return out[:, :layer["cout"]].reshape(N, Ho, Wo, layer["cout"])


def tail_conv_head(h, layer5, layer6, head):
    """Fused conv5(+BN+LReLU) + conv6(+BN, no act) + Linear/LReLU/Sigmoid."""
    N = h.shape[0]
    h = _pad_axis(h, layer5["cin_pad"], axis=-1)
    p4d, Ho, Wo = im2col_nhwc(h, layer5["k"], layer5["stride"], layer5["pad"])
    K5 = p4d.shape[-1]
    n_taps = Ho * Wo
    # conv6 is a k6 x k6 valid conv over conv5's Ho x Wo output (the geometry
    # the PyTorch module relies on for its final squeezes).
    assert Ho == layer6["k"] and Wo == layer6["k"]
    assert layer6["stride"] == 1 and layer6["pad"] == 0
    # Spatial-major / batch-minor rows -> conv6 taps are contiguous row pairs.
    p5 = jnp.transpose(p4d, (1, 2, 0, 3)).reshape(n_taps * N, K5)

    Cp5 = layer5["w"].shape[1]
    Cp6 = layer6["w"].shape[-1]
    kernel = functools.partial(_tail_kernel, n_batch=N, n_taps=n_taps,
                               slope5=layer5["slope"])
    code, head_out = pl.pallas_call(
        kernel,
        out_shape=(jax.ShapeDtypeStruct((N, Cp6), jnp.float32),
                   jax.ShapeDtypeStruct((N, LANE), jnp.float32)),
        grid_spec=pltpu.PrefetchScalarGridSpec(
            num_scalar_prefetch=0,
            grid=(1,),
            in_specs=[
                pl.BlockSpec((n_taps * N, K5), lambda i: (0, 0)),
                pl.BlockSpec((K5, Cp5), lambda i: (0, 0)),
                pl.BlockSpec((1, Cp5), lambda i: (0, 0)),
                pl.BlockSpec((n_taps, Cp5, Cp6), lambda i: (0, 0, 0)),
                pl.BlockSpec((1, Cp6), lambda i: (0, 0)),
                pl.BlockSpec((Cp6, LANE), lambda i: (0, 0)),
                pl.BlockSpec((1, LANE), lambda i: (0, 0)),
            ],
            out_specs=[
                pl.BlockSpec((N, Cp6), lambda i: (0, 0)),
                pl.BlockSpec((N, LANE), lambda i: (0, 0)),
            ],
        ),
        compiler_params=pltpu.CompilerParams(
            dimension_semantics=("arbitrary",),
            vmem_limit_bytes=VMEM_LIMIT_BYTES),
    )(p5, layer5["w"], layer5["shift"], layer6["w"], layer6["shift"],
      head["w"], head["b"])

    dis_code = code[:, :layer6["cout"]]                # (N, fm_dim*4) f32
    output = head_out[:, 0]                            # (N,) in (0, 1)
    return dis_code, output


# ----------------------------------------------------------------------------
# Deterministic parameter construction (synthetic, DCGAN-style init) with all
# kernel-ready weight prep hoisted out of the traced forward.
# ----------------------------------------------------------------------------
def init_params(key, in_channels, fm_dim):
    eps = 1e-5
    layer_cfg = [
        # (Cin, Cout, k, stride, pad, has_bn, slope_after)
        (in_channels, fm_dim,      4, 2, 1, False, 0.2),
        (fm_dim,      fm_dim * 2,  4, 2, 1, True,  0.2),
        (fm_dim * 2,  fm_dim * 4,  4, 2, 1, True,  0.2),
        (fm_dim * 4,  fm_dim * 8,  4, 2, 1, True,  0.2),
        (fm_dim * 8,  fm_dim * 8,  4, 2, 1, True,  0.2),
        (fm_dim * 8,  fm_dim * 4,  4, 1, 0, True,  1.0),   # BN, no activation
    ]
    keys = jax.random.split(key, len(layer_cfg) + 1)
    raw = []
    for (cin, cout, k, s, p, has_bn, slope), lk in zip(layer_cfg, keys[:-1]):
        kw_, kg, kb, km, kv = jax.random.split(lk, 5)
        w = 0.02 * jax.random.normal(kw_, (cout, cin, k, k), jnp.float32)
        if has_bn:
            gamma = 1.0 + 0.1 * jax.random.normal(kg, (cout,), jnp.float32)
            beta = 0.1 * jax.random.normal(kb, (cout,), jnp.float32)
            rmean = 0.05 * jax.random.normal(km, (cout,), jnp.float32)
            rvar = 1.0 + 0.1 * jax.random.uniform(kv, (cout,), jnp.float32)
            scale = gamma / jnp.sqrt(rvar + eps)
            shift = beta - rmean * scale
        else:
            scale = jnp.ones((cout,), jnp.float32)
            shift = jnp.zeros((cout,), jnp.float32)
        raw.append(dict(w=w, scale=scale, shift=shift, cin=cin, cout=cout,
                        k=k, stride=s, pad=p, slope=slope))

    # Conv1..conv5: (kh,kw,ci) rows (ci zero-padded to a multiple of 8 so K is
    # lane-dense), BN scale folded, Cout padded to x128, bf16.
    convs = []
    for layer in raw[:-1]:
        cin_pad = _round_up(layer["cin"], 8)
        k = layer["k"]
        wt = jnp.transpose(layer["w"], (2, 3, 1, 0))          # (kh, kw, ci, co)
        wt = jnp.pad(wt, ((0, 0), (0, 0), (0, cin_pad - layer["cin"]), (0, 0)))
        wt = wt.reshape(k * k * cin_pad, layer["cout"]) * layer["scale"][None, :]
        cp = _round_up(layer["cout"], LANE)
        wt = _pad_axis(wt, cp, axis=1).astype(jnp.bfloat16)
        sh = _pad_axis(layer["shift"].reshape(1, -1), cp, axis=1)
        convs.append(dict(w=wt, shift=sh.astype(jnp.float32),
                          cin_pad=cin_pad, cout=layer["cout"], k=k,
                          stride=layer["stride"], pad=layer["pad"],
                          slope=layer["slope"]))

    # Conv6 (last conv): stored per spatial tap, (taps, Cp5, Cp6), f32.
    l6 = raw[-1]
    cp5 = convs[-1]["w"].shape[1]
    k6 = l6["k"]
    cp6 = _round_up(l6["cout"], LANE)
    wt6 = jnp.transpose(l6["w"], (2, 3, 1, 0)).reshape(k6 * k6, l6["cin"],
                                                       l6["cout"])
    wt6 = wt6 * l6["scale"][None, None, :]
    wt6 = jnp.pad(wt6, ((0, 0), (0, cp5 - l6["cin"]), (0, cp6 - l6["cout"])))
    sh6 = _pad_axis(l6["shift"].reshape(1, -1), cp6, axis=1)
    last = dict(w=wt6.astype(jnp.float32), shift=sh6.astype(jnp.float32),
                cout=l6["cout"], k=k6, stride=l6["stride"], pad=l6["pad"])

    # Linear head (fm_dim*4 -> 1), bias included, padded to lane-dense shapes.
    khw, khb = jax.random.split(keys[-1])
    d = fm_dim * 4
    lin_w = 0.02 * jax.random.normal(khw, (d, 1), jnp.float32)
    lin_b = 0.02 * jax.random.normal(khb, (1,), jnp.float32)
    hw = jnp.pad(lin_w, ((0, cp6 - d), (0, LANE - 1))).astype(jnp.float32)
    hb = jnp.pad(lin_b.reshape(1, 1), ((0, 0), (0, LANE - 1))).astype(jnp.float32)
    head = dict(w=hw, b=hb)

    return dict(convs=convs, last=last, head=head)


# ----------------------------------------------------------------------------
# Forward pass matching Discriminator.forward
# ----------------------------------------------------------------------------
def discriminator_forward(params, x_nchw):
    # NCHW -> NHWC at the module boundary; bf16 activations between layers.
    h = jnp.transpose(x_nchw, (0, 2, 3, 1)).astype(jnp.bfloat16)
    convs = params["convs"]
    for layer in convs[:-1]:                 # conv1..conv4, one kernel each
        h = conv_bn_lrelu(h, layer, jnp.bfloat16)
    # conv5 + conv6(+BN) + Linear/LeakyReLU/Sigmoid: one fused kernel.
    return tail_conv_head(h, convs[-1], params["last"], params["head"])


if __name__ == "__main__":
    in_channels, fm_dim = 3, 8
    # 128x128 input: five stride-2 convs -> 4x4, then the 4x4 valid conv -> 1x1,
    # exactly as the PyTorch module requires for its final squeezes.
    N, H, W = 2, 128, 128

    key = jax.random.PRNGKey(0)
    k_in, k_par = jax.random.split(key)
    x = jax.random.normal(k_in, (N, in_channels, H, W), jnp.float32)
    params = init_params(k_par, in_channels, fm_dim)

    fwd = jax.jit(lambda inp: discriminator_forward(params, inp))
    dis_code, output = fwd(x)
    jax.block_until_ready((dis_code, output))

    assert dis_code.shape == (N, fm_dim * 4), dis_code.shape
    assert output.shape == (N,), output.shape
    assert bool(jnp.all(jnp.isfinite(dis_code)))
    assert bool(jnp.all(jnp.isfinite(output)))
    assert bool(jnp.all((output >= 0.0) & (output <= 1.0)))  # sigmoid range
    print("KERNEL_OK")
</pallas_src>

<mosaic_0001>
module attributes {stable_mosaic.version = 11 : i64} {
  func.func @_conv_bn_act_kernel(%arg0: i32, %arg1: memref<2048x128xbf16, #tpu.memory_space<vmem>>, %arg2: memref<128x128xbf16, #tpu.memory_space<vmem>>, %arg3: memref<1x128xf32, #tpu.memory_space<vmem>>, %arg4: memref<2048x128xbf16, #tpu.memory_space<vmem>>) attributes {dimension_semantics = [#tpu.dimension_semantics<parallel>], iteration_bounds = array<i64: 4>, scalar_prefetch = 0 : i64, scratch_operands = 0 : i64, tpu.core_type = #tpu.core_type<tc>, window_params = [{transform_indices = @transform_0, window_bounds = array<i64: 2048, 128>}, {pipeline_mode = #tpu.pipeline_mode<synchronous>, transform_indices = @transform_1, window_bounds = array<i64: 128, 128>}, {pipeline_mode = #tpu.pipeline_mode<synchronous>, transform_indices = @transform_2, window_bounds = array<i64: 1, 128>}, {transform_indices = @transform_3, window_bounds = array<i64: 2048, 128>}]} {
    %c0 = arith.constant 0 : index
    %c0_0 = arith.constant 0 : index
    %0 = vector.load %arg1[%c0, %c0_0] : memref<2048x128xbf16, #tpu.memory_space<vmem>>, vector<2048x128xbf16>
    %c0_1 = arith.constant 0 : index
    %c0_2 = arith.constant 0 : index
    %1 = vector.load %arg2[%c0_1, %c0_2] : memref<128x128xbf16, #tpu.memory_space<vmem>>, vector<128x128xbf16>
    %cst = arith.constant dense<0.000000e+00> : vector<2048x128xf32>
    %2 = tpu.matmul %0, %1, %cst {dimension_numbers = #tpu.dot_dimension_numbers<[1], [0], [0], [1], [0, 0, 1, 1], [], []>} : vector<2048x128xbf16>, vector<128x128xbf16>, vector<2048x128xf32> -> vector<2048x128xf32>
    %c0_3 = arith.constant 0 : index
    %c0_4 = arith.constant 0 : index
    %3 = vector.load %arg3[%c0_3, %c0_4] : memref<1x128xf32, #tpu.memory_space<vmem>>, vector<1x128xf32>
    %4 = vector.broadcast %3 : vector<1x128xf32> to vector<2048x128xf32>
    %5 = arith.addf %2, %4 : vector<2048x128xf32>
    %cst_5 = arith.constant 0.000000e+00 : f32
    %6 = vector.broadcast %cst_5 : f32 to vector<2048x128xf32>
    %7 = arith.cmpf ogt, %5, %6 : vector<2048x128xf32>
    %cst_6 = arith.constant 2.000000e-01 : f32
    %8 = vector.broadcast %cst_6 : f32 to vector<2048x128xf32>
    %9 = arith.mulf %8, %5 : vector<2048x128xf32>
    %10 = arith.select %7, %5, %9 : vector<2048x128xi1>, vector<2048x128xf32>
    %11 = arith.truncf %10 : vector<2048x128xf32> to vector<2048x128xbf16>
    %c0_7 = arith.constant 0 : index
    %c0_8 = arith.constant 0 : index
    %12 = vector.load %arg4[%c0_7, %c0_8] : memref<2048x128xbf16, #tpu.memory_space<vmem>>, vector<2048x128xbf16>
    tpu.vector_store %arg4[%c0_7, %c0_8], %11 {strides = array<i32>} : memref<2048x128xbf16, #tpu.memory_space<vmem>>, vector<2048x128xbf16>,
    return
  }
  func.func @transform_0(%arg0: i32) -> (i32, i32) {
    %c0_i32 = arith.constant 0 : i32
    %c0_i32_0 = arith.constant 0 : i32
    return %arg0, %c0_i32 : i32, i32
  }
  func.func @transform_1(%arg0: i32) -> (i32, i32) {
    %c0_i32 = arith.constant 0 : i32
    %c0_i32_0 = arith.constant 0 : i32
    %c0_i32_1 = arith.constant 0 : i32
    return %c0_i32, %c0_i32_0 : i32, i32
  }
  func.func @transform_2(%arg0: i32) -> (i32, i32) {
    %c0_i32 = arith.constant 0 : i32
    %c0_i32_0 = arith.constant 0 : i32
    %c0_i32_1 = arith.constant 0 : i32
    return %c0_i32, %c0_i32_0 : i32, i32
  }
  func.func @transform_3(%arg0: i32) -> (i32, i32) {
    %c0_i32 = arith.constant 0 : i32
    %c0_i32_0 = arith.constant 0 : i32
    return %arg0, %c0_i32 : i32, i32
  }
}

module attributes {stable_mosaic.version = 11 : i64} {
  func.func @_conv_bn_act_kernel(%arg0: i32, %arg1: memref<1024x128xbf16, #tpu.memory_space<vmem>>, %arg2: memref<128x128xbf16, #tpu.memory_space<vmem>>, %arg3: memref<1x128xf32, #tpu.memory_space<vmem>>, %arg4: memref<1024x128xbf16, #tpu.memory_space<vmem>>) attributes {dimension_semantics = [#tpu.dimension_semantics<parallel>], iteration_bounds = array<i64: 2>, scalar_prefetch = 0 : i64, scratch_operands = 0 : i64, tpu.core_type = #tpu.core_type<tc>, window_params = [{transform_indices = @transform_0, window_bounds = array<i64: 1024, 128>}, {pipeline_mode = #tpu.pipeline_mode<synchronous>, transform_indices = @transform_1, window_bounds = array<i64: 128, 128>}, {pipeline_mode = #tpu.pipeline_mode<synchronous>, transform_indices = @transform_2, window_bounds = array<i64: 1, 128>}, {transform_indices = @transform_3, window_bounds = array<i64: 1024, 128>}]} {
    %c0 = arith.constant 0 : index
    %c0_0 = arith.constant 0 : index
    %0 = vector.load %arg1[%c0, %c0_0] : memref<1024x128xbf16, #tpu.memory_space<vmem>>, vector<1024x128xbf16>
    %c0_1 = arith.constant 0 : index
    %c0_2 = arith.constant 0 : index
    %1 = vector.load %arg2[%c0_1, %c0_2] : memref<128x128xbf16, #tpu.memory_space<vmem>>, vector<128x128xbf16>
    %cst = arith.constant dense<0.000000e+00> : vector<1024x128xf32>
    %2 = tpu.matmul %0, %1, %cst {dimension_numbers = #tpu.dot_dimension_numbers<[1], [0], [0], [1], [0, 0, 1, 1], [], []>} : vector<1024x128xbf16>, vector<128x128xbf16>, vector<1024x128xf32> -> vector<1024x128xf32>
    %c0_3 = arith.constant 0 : index
    %c0_4 = arith.constant 0 : index
    %3 = vector.load %arg3[%c0_3, %c0_4] : memref<1x128xf32, #tpu.memory_space<vmem>>, vector<1x128xf32>
    %4 = vector.broadcast %3 : vector<1x128xf32> to vector<1024x128xf32>
    %5 = arith.addf %2, %4 : vector<1024x128xf32>
    %cst_5 = arith.constant 0.000000e+00 : f32
    %6 = vector.broadcast %cst_5 : f32 to vector<1024x128xf32>
    %7 = arith.cmpf ogt, %5, %6 : vector<1024x128xf32>
    %cst_6 = arith.constant 2.000000e-01 : f32
    %8 = vector.broadcast %cst_6 : f32 to vector<1024x128xf32>
    %9 = arith.mulf %8, %5 : vector<1024x128xf32>
    %10 = arith.select %7, %5, %9 : vector<1024x128xi1>, vector<1024x128xf32>
    %11 = arith.truncf %10 : vector<1024x128xf32> to vector<1024x128xbf16>
    %c0_7 = arith.constant 0 : index
    %c0_8 = arith.constant 0 : index
    %12 = vector.load %arg4[%c0_7, %c0_8] : memref<1024x128xbf16, #tpu.memory_space<vmem>>, vector<1024x128xbf16>
    tpu.vector_store %arg4[%c0_7, %c0_8], %11 {strides = array<i32>} : memref<1024x128xbf16, #tpu.memory_space<vmem>>, vector<1024x128xbf16>,
    return
  }
  func.func @transform_0(%arg0: i32) -> (i32, i32) {
    %c0_i32 = arith.constant 0 : i32
    %c0_i32_0 = arith.constant 0 : i32
    return %arg0, %c0_i32 : i32, i32
  }
  func.func @transform_1(%arg0: i32) -> (i32, i32) {
    %c0_i32 = arith.constant 0 : i32
    %c0_i32_0 = arith.constant 0 : i32
    %c0_i32_1 = arith.constant 0 : i32
    return %c0_i32, %c0_i32_0 : i32, i32
  }
  func.func @transform_2(%arg0: i32) -> (i32, i32) {
    %c0_i32 = arith.constant 0 : i32
    %c0_i32_0 = arith.constant 0 : i32
    %c0_i32_1 = arith.constant 0 : i32
    return %c0_i32, %c0_i32_0 : i32, i32
  }
  func.func @transform_3(%arg0: i32) -> (i32, i32) {
    %c0_i32 = arith.constant 0 : i32
    %c0_i32_0 = arith.constant 0 : i32
    return %arg0, %c0_i32 : i32, i32
  }
}

module attributes {stable_mosaic.version = 11 : i64} {
  func.func @_conv_bn_act_kernel(%arg0: i32, %arg1: memref<256x256xbf16, #tpu.memory_space<vmem>>, %arg2: memref<256x128xbf16, #tpu.memory_space<vmem>>, %arg3: memref<1x128xf32, #tpu.memory_space<vmem>>, %arg4: memref<256x128xbf16, #tpu.memory_space<vmem>>) attributes {dimension_semantics = [#tpu.dimension_semantics<parallel>], iteration_bounds = array<i64: 2>, scalar_prefetch = 0 : i64, scratch_operands = 0 : i64, tpu.core_type = #tpu.core_type<tc>, window_params = [{transform_indices = @transform_0, window_bounds = array<i64: 256, 256>}, {pipeline_mode = #tpu.pipeline_mode<synchronous>, transform_indices = @transform_1, window_bounds = array<i64: 256, 128>}, {pipeline_mode = #tpu.pipeline_mode<synchronous>, transform_indices = @transform_2, window_bounds = array<i64: 1, 128>}, {transform_indices = @transform_3, window_bounds = array<i64: 256, 128>}]} {
    %c0 = arith.constant 0 : index
    %c0_0 = arith.constant 0 : index
    %0 = vector.load %arg1[%c0, %c0_0] : memref<256x256xbf16, #tpu.memory_space<vmem>>, vector<256x256xbf16>
    %c0_1 = arith.constant 0 : index
    %c0_2 = arith.constant 0 : index
    %1 = vector.load %arg2[%c0_1, %c0_2] : memref<256x128xbf16, #tpu.memory_space<vmem>>, vector<256x128xbf16>
    %cst = arith.constant dense<0.000000e+00> : vector<256x128xf32>
    %2 = tpu.matmul %0, %1, %cst {dimension_numbers = #tpu.dot_dimension_numbers<[1], [0], [0], [1], [0, 0, 1, 1], [], []>} : vector<256x256xbf16>, vector<256x128xbf16>, vector<256x128xf32> -> vector<256x128xf32>
    %c0_3 = arith.constant 0 : index
    %c0_4 = arith.constant 0 : index
    %3 = vector.load %arg3[%c0_3, %c0_4] : memref<1x128xf32, #tpu.memory_space<vmem>>, vector<1x128xf32>
    %4 = vector.broadcast %3 : vector<1x128xf32> to vector<256x128xf32>
    %5 = arith.addf %2, %4 : vector<256x128xf32>
    %cst_5 = arith.constant 0.000000e+00 : f32
    %6 = vector.broadcast %cst_5 : f32 to vector<256x128xf32>
    %7 = arith.cmpf ogt, %5, %6 : vector<256x128xf32>
    %cst_6 = arith.constant 2.000000e-01 : f32
    %8 = vector.broadcast %cst_6 : f32 to vector<256x128xf32>
    %9 = arith.mulf %8, %5 : vector<256x128xf32>
    %10 = arith.select %7, %5, %9 : vector<256x128xi1>, vector<256x128xf32>
    %11 = arith.truncf %10 : vector<256x128xf32> to vector<256x128xbf16>
    %c0_7 = arith.constant 0 : index
    %c0_8 = arith.constant 0 : index
    %12 = vector.load %arg4[%c0_7, %c0_8] : memref<256x128xbf16, #tpu.memory_space<vmem>>, vector<256x128xbf16>
    tpu.vector_store %arg4[%c0_7, %c0_8], %11 {strides = array<i32>} : memref<256x128xbf16, #tpu.memory_space<vmem>>, vector<256x128xbf16>,
    return
  }
  func.func @transform_0(%arg0: i32) -> (i32, i32) {
    %c0_i32 = arith.constant 0 : i32
    %c0_i32_0 = arith.constant 0 : i32
    return %arg0, %c0_i32 : i32, i32
  }
  func.func @transform_1(%arg0: i32) -> (i32, i32) {
    %c0_i32 = arith.constant 0 : i32
    %c0_i32_0 = arith.constant 0 : i32
    %c0_i32_1 = arith.constant 0 : i32
    return %c0_i32, %c0_i32_0 : i32, i32
  }
  func.func @transform_2(%arg0: i32) -> (i32, i32) {
    %c0_i32 = arith.constant 0 : i32
    %c0_i32_0 = arith.constant 0 : i32
    %c0_i32_1 = arith.constant 0 : i32
    return %c0_i32, %c0_i32_0 : i32, i32
  }
  func.func @transform_3(%arg0: i32) -> (i32, i32) {
    %c0_i32 = arith.constant 0 : i32
    %c0_i32_0 = arith.constant 0 : i32
    return %arg0, %c0_i32 : i32, i32
  }
}

module attributes {stable_mosaic.version = 11 : i64} {
  func.func @_conv_bn_act_kernel(%arg0: i32, %arg1: memref<64x512xbf16, #tpu.memory_space<vmem>>, %arg2: memref<512x128xbf16, #tpu.memory_space<vmem>>, %arg3: memref<1x128xf32, #tpu.memory_space<vmem>>, %arg4: memref<64x128xbf16, #tpu.memory_space<vmem>>) attributes {dimension_semantics = [#tpu.dimension_semantics<parallel>], iteration_bounds = array<i64: 2>, scalar_prefetch = 0 : i64, scratch_operands = 0 : i64, tpu.core_type = #tpu.core_type<tc>, window_params = [{transform_indices = @transform_0, window_bounds = array<i64: 64, 512>}, {pipeline_mode = #tpu.pipeline_mode<synchronous>, transform_indices = @transform_1, window_bounds = array<i64: 512, 128>}, {pipeline_mode = #tpu.pipeline_mode<synchronous>, transform_indices = @transform_2, window_bounds = array<i64: 1, 128>}, {transform_indices = @transform_3, window_bounds = array<i64: 64, 128>}]} {
    %c0 = arith.constant 0 : index
    %c0_0 = arith.constant 0 : index
    %0 = vector.load %arg1[%c0, %c0_0] : memref<64x512xbf16, #tpu.memory_space<vmem>>, vector<64x512xbf16>
    %c0_1 = arith.constant 0 : index
    %c0_2 = arith.constant 0 : index
    %1 = vector.load %arg2[%c0_1, %c0_2] : memref<512x128xbf16, #tpu.memory_space<vmem>>, vector<512x128xbf16>
    %cst = arith.constant dense<0.000000e+00> : vector<64x128xf32>
    %2 = tpu.matmul %0, %1, %cst {dimension_numbers = #tpu.dot_dimension_numbers<[1], [0], [0], [1], [0, 0, 1, 1], [], []>} : vector<64x512xbf16>, vector<512x128xbf16>, vector<64x128xf32> -> vector<64x128xf32>
    %c0_3 = arith.constant 0 : index
    %c0_4 = arith.constant 0 : index
    %3 = vector.load %arg3[%c0_3, %c0_4] : memref<1x128xf32, #tpu.memory_space<vmem>>, vector<1x128xf32>
    %4 = vector.broadcast %3 : vector<1x128xf32> to vector<64x128xf32>
    %5 = arith.addf %2, %4 : vector<64x128xf32>
    %cst_5 = arith.constant 0.000000e+00 : f32
    %6 = vector.broadcast %cst_5 : f32 to vector<64x128xf32>
    %7 = arith.cmpf ogt, %5, %6 : vector<64x128xf32>
    %cst_6 = arith.constant 2.000000e-01 : f32
    %8 = vector.broadcast %cst_6 : f32 to vector<64x128xf32>
    %9 = arith.mulf %8, %5 : vector<64x128xf32>
    %10 = arith.select %7, %5, %9 : vector<64x128xi1>, vector<64x128xf32>
    %11 = arith.truncf %10 : vector<64x128xf32> to vector<64x128xbf16>
    %c0_7 = arith.constant 0 : index
    %c0_8 = arith.constant 0 : index
    %12 = vector.load %arg4[%c0_7, %c0_8] : memref<64x128xbf16, #tpu.memory_space<vmem>>, vector<64x128xbf16>
    tpu.vector_store %arg4[%c0_7, %c0_8], %11 {strides = array<i32>} : memref<64x128xbf16, #tpu.memory_space<vmem>>, vector<64x128xbf16>,
    return
  }
  func.func @transform_0(%arg0: i32) -> (i32, i32) {
    %c0_i32 = arith.constant 0 : i32
    %c0_i32_0 = arith.constant 0 : i32
    return %arg0, %c0_i32 : i32, i32
  }
  func.func @transform_1(%arg0: i32) -> (i32, i32) {
    %c0_i32 = arith.constant 0 : i32
    %c0_i32_0 = arith.constant 0 : i32
    %c0_i32_1 = arith.constant 0 : i32
    return %c0_i32, %c0_i32_0 : i32, i32
  }
  func.func @transform_2(%arg0: i32) -> (i32, i32) {
    %c0_i32 = arith.constant 0 : i32
    %c0_i32_0 = arith.constant 0 : i32
    %c0_i32_1 = arith.constant 0 : i32
    return %c0_i32, %c0_i32_0 : i32, i32
  }
  func.func @transform_3(%arg0: i32) -> (i32, i32) {
    %c0_i32 = arith.constant 0 : i32
    %c0_i32_0 = arith.constant 0 : i32
    return %arg0, %c0_i32 : i32, i32
  }
}

module attributes {stable_mosaic.version = 11 : i64} {
  func.func @_tail_kernel(%arg0: i32, %arg1: memref<32x1024xbf16, #tpu.memory_space<vmem>>, %arg2: memref<1024x128xbf16, #tpu.memory_space<vmem>>, %arg3: memref<1x128xf32, #tpu.memory_space<vmem>>, %arg4: memref<16x128x128xf32, #tpu.memory_space<vmem>>, %arg5: memref<1x128xf32, #tpu.memory_space<vmem>>, %arg6: memref<128x128xf32, #tpu.memory_space<vmem>>, %arg7: memref<1x128xf32, #tpu.memory_space<vmem>>, %arg8: memref<2x128xf32, #tpu.memory_space<vmem>>, %arg9: memref<2x128xf32, #tpu.memory_space<vmem>>) attributes {dimension_semantics = [#tpu.dimension_semantics<arbitrary>], iteration_bounds = array<i64: 1>, scalar_prefetch = 0 : i64, scratch_operands = 0 : i64, tpu.core_type = #tpu.core_type<tc>, window_params = [{pipeline_mode = #tpu.pipeline_mode<synchronous>, transform_indices = @transform_0, window_bounds = array<i64: 32, 1024>}, {pipeline_mode = #tpu.pipeline_mode<synchronous>, transform_indices = @transform_1, window_bounds = array<i64: 1024, 128>}, {pipeline_mode = #tpu.pipeline_mode<synchronous>, transform_indices = @transform_2, window_bounds = array<i64: 1, 128>}, {pipeline_mode = #tpu.pipeline_mode<synchronous>, transform_indices = @transform_3, window_bounds = array<i64: 16, 128, 128>}, {pipeline_mode = #tpu.pipeline_mode<synchronous>, transform_indices = @transform_4, window_bounds = array<i64: 1, 128>}, {pipeline_mode = #tpu.pipeline_mode<synchronous>, transform_indices = @transform_5, window_bounds = array<i64: 128, 128>}, {pipeline_mode = #tpu.pipeline_mode<synchronous>, transform_indices = @transform_6, window_bounds = array<i64: 1, 128>}, {pipeline_mode = #tpu.pipeline_mode<synchronous>, transform_indices = @transform_7, window_bounds = array<i64: 2, 128>}, {pipeline_mode = #tpu.pipeline_mode<synchronous>, transform_indices = @transform_8, window_bounds = array<i64: 2, 128>}]} {
    %c0 = arith.constant 0 : index
    %c0_0 = arith.constant 0 : index
    %0 = vector.load %arg1[%c0, %c0_0] : memref<32x1024xbf16, #tpu.memory_space<vmem>>, vector<32x1024xbf16>
    %c0_1 = arith.constant 0 : index
    %c0_2 = arith.constant 0 : index
    %1 = vector.load %arg2[%c0_1, %c0_2] : memref<1024x128xbf16, #tpu.memory_space<vmem>>, vector<1024x128xbf16>
    %cst = arith.constant dense<0.000000e+00> : vector<32x128xf32>
    %2 = tpu.matmul %0, %1, %cst {dimension_numbers = #tpu.dot_dimension_numbers<[1], [0], [0], [1], [0, 0, 1, 1], [], []>} : vector<32x1024xbf16>, vector<1024x128xbf16>, vector<32x128xf32> -> vector<32x128xf32>
    %c0_3 = arith.constant 0 : index
    %c0_4 = arith.constant 0 : index
    %3 = vector.load %arg3[%c0_3, %c0_4] : memref<1x128xf32, #tpu.memory_space<vmem>>, vector<1x128xf32>
    %4 = vector.broadcast %3 : vector<1x128xf32> to vector<32x128xf32>
    %5 = arith.addf %2, %4 : vector<32x128xf32>
    %cst_5 = arith.constant 0.000000e+00 : f32
    %6 = vector.broadcast %cst_5 : f32 to vector<32x128xf32>
    %7 = arith.cmpf ogt, %5, %6 : vector<32x128xf32>
    %cst_6 = arith.constant 2.000000e-01 : f32
    %8 = vector.broadcast %cst_6 : f32 to vector<32x128xf32>
    %9 = arith.mulf %8, %5 : vector<32x128xf32>
    %10 = arith.select %7, %5, %9 : vector<32x128xi1>, vector<32x128xf32>
    %cst_7 = arith.constant 0.000000e+00 : f32
    %11 = vector.broadcast %cst_7 : f32 to vector<2x128xf32>
    %12 = vector.extract_strided_slice %10 {offsets = [0, 0], sizes = [2, 128], strides = [1, 1]} : vector<32x128xf32> to vector<2x128xf32>
    %c0_8 = arith.constant 0 : index
    %c0_9 = arith.constant 0 : index
    %c0_10 = arith.constant 0 : index
    %13 = vector.load %arg4[%c0_8, %c0_9, %c0_10] : memref<16x128x128xf32, #tpu.memory_space<vmem>>, vector<1x128x128xf32>
    %14 = vector.shape_cast %13 : vector<1x128x128xf32> to vector<128x128xf32>
    %cst_11 = arith.constant dense<0.000000e+00> : vector<2x128xf32>
    %15 = tpu.matmul %12, %14, %cst_11 {dimension_numbers = #tpu.dot_dimension_numbers<[1], [0], [0], [1], [0, 0, 1, 1], [], []>} : vector<2x128xf32>, vector<128x128xf32>, vector<2x128xf32> -> vector<2x128xf32>
    %16 = arith.addf %11, %15 : vector<2x128xf32>
    %17 = vector.extract_strided_slice %10 {offsets = [2, 0], sizes = [2, 128], strides = [1, 1]} : vector<32x128xf32> to vector<2x128xf32>
    %c1 = arith.constant 1 : index
    %c0_12 = arith.constant 0 : index
    %c0_13 = arith.constant 0 : index
    %18 = vector.load %arg4[%c1, %c0_12, %c0_13] : memref<16x128x128xf32, #tpu.memory_space<vmem>>, vector<1x128x128xf32>
    %19 = vector.shape_cast %18 : vector<1x128x128xf32> to vector<128x128xf32>
    %cst_14 = arith.constant dense<0.000000e+00> : vector<2x128xf32>
    %20 = tpu.matmul %17, %19, %cst_14 {dimension_numbers = #tpu.dot_dimension_numbers<[1], [0], [0], [1], [0, 0, 1, 1], [], []>} : vector<2x128xf32>, vector<128x128xf32>, vector<2x128xf32> -> vector<2x128xf32>
    %21 = arith.addf %16, %20 : vector<2x128xf32>
    %22 = vector.extract_strided_slice %10 {offsets = [4, 0], sizes = [2, 128], strides = [1, 1]} : vector<32x128xf32> to vector<2x128xf32>
    %c2 = arith.constant 2 : index
    %c0_15 = arith.constant 0 : index
    %c0_16 = arith.constant 0 : index
    %23 = vector.load %arg4[%c2, %c0_15, %c0_16] : memref<16x128x128xf32, #tpu.memory_space<vmem>>, vector<1x128x128xf32>
    %24 = vector.shape_cast %23 : vector<1x128x128xf32> to vector<128x128xf32>
    %cst_17 = arith.constant dense<0.000000e+00> : vector<2x128xf32>
    %25 = tpu.matmul %22, %24, %cst_17 {dimension_numbers = #tpu.dot_dimension_numbers<[1], [0], [0], [1], [0, 0, 1, 1], [], []>} : vector<2x128xf32>, vector<128x128xf32>, vector<2x128xf32> -> vector<2x128xf32>
    %26 = arith.addf %21, %25 : vector<2x128xf32>
    %27 = vector.extract_strided_slice %10 {offsets = [6, 0], sizes = [2, 128], strides = [1, 1]} : vector<32x128xf32> to vector<2x128xf32>
    %c3 = arith.constant 3 : index
    %c0_18 = arith.constant 0 : index
    %c0_19 = arith.constant 0 : index
    %28 = vector.load %arg4[%c3, %c0_18, %c0_19] : memref<16x128x128xf32, #tpu.memory_space<vmem>>, vector<1x128x128xf32>
    %29 = vector.shape_cast %28 : vector<1x128x128xf32> to vector<128x128xf32>
    %cst_20 = arith.constant dense<0.000000e+00> : vector<2x128xf32>
    %30 = tpu.matmul %27, %29, %cst_20 {dimension_numbers = #tpu.dot_dimension_numbers<[1], [0], [0], [1], [0, 0, 1, 1], [], []>} : vector<2x128xf32>, vector<128x128xf32>, vector<2x128xf32> -> vector<2x128xf32>
    %31 = arith.addf %26, %30 : vector<2x128xf32>
    %32 = vector.extract_strided_slice %10 {offsets = [8, 0], sizes = [2, 128], strides = [1, 1]} : vector<32x128xf32> to vector<2x128xf32>
    %c4 = arith.constant 4 : index
    %c0_21 = arith.constant 0 : index
    %c0_22 = arith.constant 0 : index
    %33 = vector.load %arg4[%c4, %c0_21, %c0_22] : memref<16x128x128xf32, #tpu.memory_space<vmem>>, vector<1x128x128xf32>
    %34 = vector.shape_cast %33 : vector<1x128x128xf32> to vector<128x128xf32>
    %cst_23 = arith.constant dense<0.000000e+00> : vector<2x128xf32>
    %35 = tpu.matmul %32, %34, %cst_23 {dimension_numbers = #tpu.dot_dimension_numbers<[1], [0], [0], [1], [0, 0, 1, 1], [], []>} : vector<2x128xf32>, vector<128x128xf32>, vector<2x128xf32> -> vector<2x128xf32>
    %36 = arith.addf %31, %35 : vector<2x128xf32>
    %37 = vector.extract_strided_slice %10 {offsets = [10, 0], sizes = [2, 128], strides = [1, 1]} : vector<32x128xf32> to vector<2x128xf32>
    %c5 = arith.constant 5 : index
    %c0_24 = arith.constant 0 : index
    %c0_25 = arith.constant 0 : index
    %38 = vector.load %arg4[%c5, %c0_24, %c0_25] : memref<16x128x128xf32, #tpu.memory_space<vmem>>, vector<1x128x128xf32>
    %39 = vector.shape_cast %38 : vector<1x128x128xf32> to vector<128x128xf32>
    %cst_26 = arith.constant dense<0.000000e+00> : vector<2x128xf32>
    %40 = tpu.matmul %37, %39, %cst_26 {dimension_numbers = #tpu.dot_dimension_numbers<[1], [0], [0], [1], [0, 0, 1, 1], [], []>} : vector<2x128xf32>, vector<128x128xf32>, vector<2x128xf32> -> vector<2x128xf32>
    %41 = arith.addf %36, %40 : vector<2x128xf32>
    %42 = vector.extract_strided_slice %10 {offsets = [12, 0], sizes = [2, 128], strides = [1, 1]} : vector<32x128xf32> to vector<2x128xf32>
    %c6 = arith.constant 6 : index
    %c0_27 = arith.constant 0 : index
    %c0_28 = arith.constant 0 : index
    %43 = vector.load %arg4[%c6, %c0_27, %c0_28] : memref<16x128x128xf32, #tpu.memory_space<vmem>>, vector<1x128x128xf32>
    %44 = vector.shape_cast %43 : vector<1x128x128xf32> to vector<128x128xf32>
    %cst_29 = arith.constant dense<0.000000e+00> : vector<2x128xf32>
    %45 = tpu.matmul %42, %44, %cst_29 {dimension_numbers = #tpu.dot_dimension_numbers<[1], [0], [0], [1], [0, 0, 1, 1], [], []>} : vector<2x128xf32>, vector<128x128xf32>, vector<2x128xf32> -> vector<2x128xf32>
    %46 = arith.addf %41, %45 : vector<2x128xf32>
    %47 = vector.extract_strided_slice %10 {offsets = [14, 0], sizes = [2, 128], strides = [1, 1]} : vector<32x128xf32> to vector<2x128xf32>
    %c7 = arith.constant 7 : index
    %c0_30 = arith.constant 0 : index
    %c0_31 = arith.constant 0 : index
    %48 = vector.load %arg4[%c7, %c0_30, %c0_31] : memref<16x128x128xf32, #tpu.memory_space<vmem>>, vector<1x128x128xf32>
    %49 = vector.shape_cast %48 : vector<1x128x128xf32> to vector<128x128xf32>
    %cst_32 = arith.constant dense<0.000000e+00> : vector<2x128xf32>
    %50 = tpu.matmul %47, %49, %cst_32 {dimension_numbers = #tpu.dot_dimension_numbers<[1], [0], [0], [1], [0, 0, 1, 1], [], []>} : vector<2x128xf32>, vector<128x128xf32>, vector<2x128xf32> -> vector<2x128xf32>
    %51 = arith.addf %46, %50 : vector<2x128xf32>
    %52 = vector.extract_strided_slice %10 {offsets = [16, 0], sizes = [2, 128], strides = [1, 1]} : vector<32x128xf32> to vector<2x128xf32>
    %c8 = arith.constant 8 : index
    %c0_33 = arith.constant 0 : index
    %c0_34 = arith.constant 0 : index
    %53 = vector.load %arg4[%c8, %c0_33, %c0_34] : memref<16x128x128xf32, #tpu.memory_space<vmem>>, vector<1x128x128xf32>
    %54 = vector.shape_cast %53 : vector<1x128x128xf32> to vector<128x128xf32>
    %cst_35 = arith.constant dense<0.000000e+00> : vector<2x128xf32>
    %55 = tpu.matmul %52, %54, %cst_35 {dimension_numbers = #tpu.dot_dimension_numbers<[1], [0], [0], [1], [0, 0, 1, 1], [], []>} : vector<2x128xf32>, vector<128x128xf32>, vector<2x128xf32> -> vector<2x128xf32>
    %56 = arith.addf %51, %55 : vector<2x128xf32>
    %57 = vector.extract_strided_slice %10 {offsets = [18, 0], sizes = [2, 128], strides = [1, 1]} : vector<32x128xf32> to vector<2x128xf32>
    %c9 = arith.constant 9 : index
    %c0_36 = arith.constant 0 : index
    %c0_37 = arith.constant 0 : index
    %58 = vector.load %arg4[%c9, %c0_36, %c0_37] : memref<16x128x128xf32, #tpu.memory_space<vmem>>, vector<1x128x128xf32>
    %59 = vector.shape_cast %58 : vector<1x128x128xf32> to vector<128x128xf32>
    %cst_38 = arith.constant dense<0.000000e+00> : vector<2x128xf32>
    %60 = tpu.matmul %57, %59, %cst_38 {dimension_numbers = #tpu.dot_dimension_numbers<[1], [0], [0], [1], [0, 0, 1, 1], [], []>} : vector<2x128xf32>, vector<128x128xf32>, vector<2x128xf32> -> vector<2x128xf32>
    %61 = arith.addf %56, %60 : vector<2x128xf32>
    %62 = vector.extract_strided_slice %10 {offsets = [20, 0], sizes = [2, 128], strides = [1, 1]} : vector<32x128xf32> to vector<2x128xf32>
    %c10 = arith.constant 10 : index
    %c0_39 = arith.constant 0 : index
    %c0_40 = arith.constant 0 : index
    %63 = vector.load %arg4[%c10, %c0_39, %c0_40] : memref<16x128x128xf32, #tpu.memory_space<vmem>>, vector<1x128x128xf32>
    %64 = vector.shape_cast %63 : vector<1x128x128xf32> to vector<128x128xf32>
    %cst_41 = arith.constant dense<0.000000e+00> : vector<2x128xf32>
    %65 = tpu.matmul %62, %64, %cst_41 {dimension_numbers = #tpu.dot_dimension_numbers<[1], [0], [0], [1], [0, 0, 1, 1], [], []>} : vector<2x128xf32>, vector<128x128xf32>, vector<2x128xf32> -> vector<2x128xf32>
    %66 = arith.addf %61, %65 : vector<2x128xf32>
    %67 = vector.extract_strided_slice %10 {offsets = [22, 0], sizes = [2, 128], strides = [1, 1]} : vector<32x128xf32> to vector<2x128xf32>
    %c11 = arith.constant 11 : index
    %c0_42 = arith.constant 0 : index
    %c0_43 = arith.constant 0 : index
    %68 = vector.load %arg4[%c11, %c0_42, %c0_43] : memref<16x128x128xf32, #tpu.memory_space<vmem>>, vector<1x128x128xf32>
    %69 = vector.shape_cast %68 : vector<1x128x128xf32> to vector<128x128xf32>
    %cst_44 = arith.constant dense<0.000000e+00> : vector<2x128xf32>
    %70 = tpu.matmul %67, %69, %cst_44 {dimension_numbers = #tpu.dot_dimension_numbers<[1], [0], [0], [1], [0, 0, 1, 1], [], []>} : vector<2x128xf32>, vector<128x128xf32>, vector<2x128xf32> -> vector<2x128xf32>
    %71 = arith.addf %66, %70 : vector<2x128xf32>
    %72 = vector.extract_strided_slice %10 {offsets = [24, 0], sizes = [2, 128], strides = [1, 1]} : vector<32x128xf32> to vector<2x128xf32>
    %c12 = arith.constant 12 : index
    %c0_45 = arith.constant 0 : index
    %c0_46 = arith.constant 0 : index
    %73 = vector.load %arg4[%c12, %c0_45, %c0_46] : memref<16x128x128xf32, #tpu.memory_space<vmem>>, vector<1x128x128xf32>
    %74 = vector.shape_cast %73 : vector<1x128x128xf32> to vector<128x128xf32>
    %cst_47 = arith.constant dense<0.000000e+00> : vector<2x128xf32>
    %75 = tpu.matmul %72, %74, %cst_47 {dimension_numbers = #tpu.dot_dimension_numbers<[1], [0], [0], [1], [0, 0, 1, 1], [], []>} : vector<2x128xf32>, vector<128x128xf32>, vector<2x128xf32> -> vector<2x128xf32>
    %76 = arith.addf %71, %75 : vector<2x128xf32>
    %77 = vector.extract_strided_slice %10 {offsets = [26, 0], sizes = [2, 128], strides = [1, 1]} : vector<32x128xf32> to vector<2x128xf32>
    %c13 = arith.constant 13 : index
    %c0_48 = arith.constant 0 : index
    %c0_49 = arith.constant 0 : index
    %78 = vector.load %arg4[%c13, %c0_48, %c0_49] : memref<16x128x128xf32, #tpu.memory_space<vmem>>, vector<1x128x128xf32>
    %79 = vector.shape_cast %78 : vector<1x128x128xf32> to vector<128x128xf32>
    %cst_50 = arith.constant dense<0.000000e+00> : vector<2x128xf32>
    %80 = tpu.matmul %77, %79, %cst_50 {dimension_numbers = #tpu.dot_dimension_numbers<[1], [0], [0], [1], [0, 0, 1, 1], [], []>} : vector<2x128xf32>, vector<128x128xf32>, vector<2x128xf32> -> vector<2x128xf32>
    %81 = arith.addf %76, %80 : vector<2x128xf32>
    %82 = vector.extract_strided_slice %10 {offsets = [28, 0], sizes = [2, 128], strides = [1, 1]} : vector<32x128xf32> to vector<2x128xf32>
    %c14 = arith.constant 14 : index
    %c0_51 = arith.constant 0 : index
    %c0_52 = arith.constant 0 : index
    %83 = vector.load %arg4[%c14, %c0_51, %c0_52] : memref<16x128x128xf32, #tpu.memory_space<vmem>>, vector<1x128x128xf32>
    %84 = vector.shape_cast %83 : vector<1x128x128xf32> to vector<128x128xf32>
    %cst_53 = arith.constant dense<0.000000e+00> : vector<2x128xf32>
    %85 = tpu.matmul %82, %84, %cst_53 {dimension_numbers = #tpu.dot_dimension_numbers<[1], [0], [0], [1], [0, 0, 1, 1], [], []>} : vector<2x128xf32>, vector<128x128xf32>, vector<2x128xf32> -> vector<2x128xf32>
    %86 = arith.addf %81, %85 : vector<2x128xf32>
    %87 = vector.extract_strided_slice %10 {offsets = [30, 0], sizes = [2, 128], strides = [1, 1]} : vector<32x128xf32> to vector<2x128xf32>
    %c15 = arith.constant 15 : index
    %c0_54 = arith.constant 0 : index
    %c0_55 = arith.constant 0 : index
    %88 = vector.load %arg4[%c15, %c0_54, %c0_55] : memref<16x128x128xf32, #tpu.memory_space<vmem>>, vector<1x128x128xf32>
    %89 = vector.shape_cast %88 : vector<1x128x128xf32> to vector<128x128xf32>
    %cst_56 = arith.constant dense<0.000000e+00> : vector<2x128xf32>
    %90 = tpu.matmul %87, %89, %cst_56 {dimension_numbers = #tpu.dot_dimension_numbers<[1], [0], [0], [1], [0, 0, 1, 1], [], []>} : vector<2x128xf32>, vector<128x128xf32>, vector<2x128xf32> -> vector<2x128xf32>
    %91 = arith.addf %86, %90 : vector<2x128xf32>
    %c0_57 = arith.constant 0 : index
    %c0_58 = arith.constant 0 : index
    %92 = vector.load %arg5[%c0_57, %c0_58] : memref<1x128xf32, #tpu.memory_space<vmem>>, vector<1x128xf32>
    %93 = vector.broadcast %92 : vector<1x128xf32> to vector<2x128xf32>
    %94 = arith.addf %91, %93 : vector<2x128xf32>
    %c0_59 = arith.constant 0 : index
    %c0_60 = arith.constant 0 : index
    %95 = vector.load %arg8[%c0_59, %c0_60] : memref<2x128xf32, #tpu.memory_space<vmem>>, vector<2x128xf32>
    tpu.vector_store %arg8[%c0_59, %c0_60], %94 {strides = array<i32>} : memref<2x128xf32, #tpu.memory_space<vmem>>, vector<2x128xf32>,
    %c0_61 = arith.constant 0 : index
    %c0_62 = arith.constant 0 : index
    %96 = vector.load %arg6[%c0_61, %c0_62] : memref<128x128xf32, #tpu.memory_space<vmem>>, vector<128x128xf32>
    %cst_63 = arith.constant dense<0.000000e+00> : vector<2x128xf32>
    %97 = tpu.matmul %94, %96, %cst_63 {dimension_numbers = #tpu.dot_dimension_numbers<[1], [0], [0], [1], [0, 0, 1, 1], [], []>} : vector<2x128xf32>, vector<128x128xf32>, vector<2x128xf32> -> vector<2x128xf32>
    %c0_64 = arith.constant 0 : index
    %c0_65 = arith.constant 0 : index
    %98 = vector.load %arg7[%c0_64, %c0_65] : memref<1x128xf32, #tpu.memory_space<vmem>>, vector<1x128xf32>
    %99 = vector.broadcast %98 : vector<1x128xf32> to vector<2x128xf32>
    %100 = arith.addf %97, %99 : vector<2x128xf32>
    %cst_66 = arith.constant 0.000000e+00 : f32
    %101 = vector.broadcast %cst_66 : f32 to vector<2x128xf32>
    %102 = arith.cmpf ogt, %100, %101 : vector<2x128xf32>
    %cst_67 = arith.constant 0.00999999977 : f32
    %103 = vector.broadcast %cst_67 : f32 to vector<2x128xf32>
    %104 = arith.mulf %103, %100 : vector<2x128xf32>
    %105 = arith.select %102, %100, %104 : vector<2x128xi1>, vector<2x128xf32>
    %cst_68 = arith.constant 0.000000e+00 : f32
    %106 = vector.broadcast %cst_68 : f32 to vector<2x128xf32>
    %107 = arith.subf %106, %105 : vector<2x128xf32>
    %108 = math.exp %107 : vector<2x128xf32>
    %cst_69 = arith.constant 1.000000e+00 : f32
    %109 = vector.broadcast %cst_69 : f32 to vector<2x128xf32>
    %110 = arith.addf %109, %108 : vector<2x128xf32>
    %111 = tpu.reciprocal %110 {approx = true} : vector<2x128xf32> -> vector<2x128xf32>
    %c0_70 = arith.constant 0 : index
    %c0_71 = arith.constant 0 : index
    %112 = vector.load %arg9[%c0_70, %c0_71] : memref<2x128xf32, #tpu.memory_space<vmem>>, vector<2x128xf32>
    tpu.vector_store %arg9[%c0_70, %c0_71], %111 {strides = array<i32>} : memref<2x128xf32, #tpu.memory_space<vmem>>, vector<2x128xf32>,
    return
  }
  func.func @transform_0(%arg0: i32) -> (i32, i32) {
    %c0_i32 = arith.constant 0 : i32
    %c0_i32_0 = arith.constant 0 : i32
    %c0_i32_1 = arith.constant 0 : i32
    return %c0_i32, %c0_i32_0 : i32, i32
  }
  func.func @transform_1(%arg0: i32) -> (i32, i32) {
    %c0_i32 = arith.constant 0 : i32
    %c0_i32_0 = arith.constant 0 : i32
    %c0_i32_1 = arith.constant 0 : i32
    return %c0_i32, %c0_i32_0 : i32, i32
  }
  func.func @transform_2(%arg0: i32) -> (i32, i32) {
    %c0_i32 = arith.constant 0 : i32
    %c0_i32_0 = arith.constant 0 : i32
    %c0_i32_1 = arith.constant 0 : i32
    return %c0_i32, %c0_i32_0 : i32, i32
  }
  func.func @transform_3(%arg0: i32) -> (i32, i32, i32) {
    %c0_i32 = arith.constant 0 : i32
    %c0_i32_0 = arith.constant 0 : i32
    %c0_i32_1 = arith.constant 0 : i32
    %c0_i32_2 = arith.constant 0 : i32
    return %c0_i32, %c0_i32_0, %c0_i32_1 : i32, i32, i32
  }
  func.func @transform_4(%arg0: i32) -> (i32, i32) {
    %c0_i32 = arith.constant 0 : i32
    %c0_i32_0 = arith.constant 0 : i32
    %c0_i32_1 = arith.constant 0 : i32
    return %c0_i32, %c0_i32_0 : i32, i32
  }
  func.func @transform_5(%arg0: i32) -> (i32, i32) {
    %c0_i32 = arith.constant 0 : i32
    %c0_i32_0 = arith.constant 0 : i32
    %c0_i32_1 = arith.constant 0 : i32
    return %c0_i32, %c0_i32_0 : i32, i32
  }
  func.func @transform_6(%arg0: i32) -> (i32, i32) {
    %c0_i32 = arith.constant 0 : i32
    %c0_i32_0 = arith.constant 0 : i32
    %c0_i32_1 = arith.constant 0 : i32
    return %c0_i32, %c0_i32_0 : i32, i32
  }
  func.func @transform_7(%arg0: i32) -> (i32, i32) {
    %c0_i32 = arith.constant 0 : i32
    %c0_i32_0 = arith.constant 0 : i32
    %c0_i32_1 = arith.constant 0 : i32
    return %c0_i32, %c0_i32_0 : i32, i32
  }
  func.func @transform_8(%arg0: i32) -> (i32, i32) {
    %c0_i32 = arith.constant 0 : i32
    %c0_i32_0 = arith.constant 0 : i32
    %c0_i32_1 = arith.constant 0 : i32
    return %c0_i32, %c0_i32_0 : i32, i32
  }
}

</mosaic_0001>

<llo_original>
// kernel: _lambda_.5
$region0: #{_lambda_.5}
  #allocation0 [shape = 'u32[]', space=smem, size = 0x4, offset = 0x4, fixed_abs, tag = 'smem constant byte address 0x4 - core index']
  #allocation1 [shape = 'u32[144,128]{1,0:T(1,128)}', space=vmem, size = 0x12000, scoped, tag = 'internal scratch']
  %s0 = inlined_call_operand.vmem [shape: bf16[8192,128], index: 0, kind: input, shape index: {}]
  %s1 = inlined_call_operand.vmem [shape: bf16[128,128], index: 1, kind: input, shape index: {}]
  %s2 = inlined_call_operand.vmem [shape: f32[1,128], index: 2, kind: input, shape index: {}]
  %s3 = inlined_call_operand.vmem [shape: bf16[8192,128], index: 3, kind: output, shape index: {}]
  %s4 = sld [smem:[#allocation0]]
  $region45: #{_lambda_.5} parent=0
    _
  %s6 = ssub.s32 1, %s4
  %s7 = scalar_select 0, %s6, %s4
  loop: start=0, step=1, limit=6
  $region2: #{_lambda_.5} parent=0 // loop_pre_header
    _
  $region3: #{_lambda_.5} parent=0 // loop_header
    %s9 = sphi 0, %s13
    %p10 = scmp.ge.s32.totalorder %s9, 6
    %s19 = sphi 0, %s21
    %s22 = sphi 0, %s19
    %s23 = sphi 0, %s22
    %s39 = sphi 0, %s23
    %s43 = sphi 0, %s43
    %s45 = sphi 0, %s43
    %s46 = sphi 0, %s45
    %s60 = sphi 0, %s46
    %s64 = sphi 0, %s64
    %s66 = sphi 0, %s64
    %s67 = sphi 0, %s66
    %s81 = sphi 0, %s67
    %s87 = sphi 0, %s89
    %s90 = sphi 0, %s87
    %s91 = sphi 0, %s90
    %s107 = sphi 0, %s91
  $region4: #{_lambda_.5} parent=0 // loop_header_branch
    %12 = sbr.rel (%p10) target = $region8
  $region5: #{_lambda_.5} parent=0 // loop_body
    %s14 = ssub.s32 %s9, 1
    %s15 = ssub.s32 %s9, 2
    %s16 = sadd.s32 %s9, 1
    %s17 = ssub.s32 %s9, %s16
    %p18 = scmp.eq.s32.totalorder %s17, 0
    %s20 = sadd.s32 %s19, 1
    %s21 = scalar_select %p18, %s19, %s20
    %p24 = pneg %p18
    %p25 = scmp.eq.s32.totalorder %s9, 3
    %p26 = por %p24, %p25
    %p27 = scmp.ne.s32.totalorder %s19, %s22
    %p28 = scmp.eq.s32.totalorder %s9, 0
    %p29 = por %p27, %p28
    %p30 = scmp.ne.s32.totalorder %s19, %s22
    %p31 = scmp.eq.s32.totalorder %s14, 3
    %p32 = por %p30, %p31
    %p33 = scmp.ne.s32.totalorder %s22, %s23
    %p34 = scmp.eq.s32.totalorder %s14, 0
    %p35 = por %p33, %p34
    %p36 = scmp.ne.s32.totalorder %s22, %s23
    %p37 = scmp.eq.s32.totalorder %s15, 3
    %p38 = por %p36, %p37
    %p40 = scmp.ne.s32.totalorder %s23, %s39
    %p41 = scmp.eq.s32.totalorder %s15, 0
    %p42 = por %p40, %p41
    %s44 = sadd.s32 %s43, 1
    %p47 = scmp.eq.s32.totalorder %s9, 3
    %p48 = scmp.ne.s32.totalorder %s43, %s45
    %p49 = scmp.eq.s32.totalorder %s9, 0
    %p50 = por %p48, %p49
    %p51 = scmp.ne.s32.totalorder %s43, %s45
    %p52 = scmp.eq.s32.totalorder %s14, 3
    %p53 = por %p51, %p52
    %p54 = scmp.ne.s32.totalorder %s45, %s46
    %p55 = scmp.eq.s32.totalorder %s14, 0
    %p56 = por %p54, %p55
    %p57 = scmp.ne.s32.totalorder %s45, %s46
    %p58 = scmp.eq.s32.totalorder %s15, 3
    %p59 = por %p57, %p58
    %p61 = scmp.ne.s32.totalorder %s46, %s60
    %p62 = scmp.eq.s32.totalorder %s15, 0
    %p63 = por %p61, %p62
    %s65 = sadd.s32 %s64, 1
    %p68 = scmp.eq.s32.totalorder %s9, 3
    %p69 = scmp.ne.s32.totalorder %s64, %s66
    %p70 = scmp.eq.s32.totalorder %s9, 0
    %p71 = por %p69, %p70
    %p72 = scmp.ne.s32.totalorder %s64, %s66
    %p73 = scmp.eq.s32.totalorder %s14, 3
    %p74 = por %p72, %p73
    %p75 = scmp.ne.s32.totalorder %s66, %s67
    %p76 = scmp.eq.s32.totalorder %s14, 0
    %p77 = por %p75, %p76
    %p78 = scmp.ne.s32.totalorder %s66, %s67
    %p79 = scmp.eq.s32.totalorder %s15, 3
    %p80 = por %p78, %p79
    %p82 = scmp.ne.s32.totalorder %s67, %s81
    %p83 = scmp.eq.s32.totalorder %s15, 0
    %p84 = por %p82, %p83
    %s85 = ssub.s32 %s9, %s16
    %p86 = scmp.eq.s32.totalorder %s85, 0
    %s88 = sadd.s32 %s87, 1
    %s89 = scalar_select %p86, %s87, %s88
    %p92 = pneg %p86
    %p93 = scmp.eq.s32.totalorder %s9, 3
    %p94 = por %p92, %p93
    %p95 = scmp.ne.s32.totalorder %s87, %s90
    %p96 = scmp.eq.s32.totalorder %s9, 0
    %p97 = por %p95, %p96
    %p98 = scmp.ne.s32.totalorder %s87, %s90
    %p99 = scmp.eq.s32.totalorder %s14, 3
    %p100 = por %p98, %p99
    %p101 = scmp.ne.s32.totalorder %s90, %s91
    %p102 = scmp.eq.s32.totalorder %s14, 0
    %p103 = por %p101, %p102
    %p104 = scmp.ne.s32.totalorder %s90, %s91
    %p105 = scmp.eq.s32.totalorder %s15, 3
    %p106 = por %p104, %p105
    %p108 = scmp.ne.s32.totalorder %s91, %s107
    %p109 = scmp.eq.s32.totalorder %s15, 0
    %p110 = por %p108, %p109
    %p111 = scmp.le.s32.totalorder 1, %s9
    %p112 = scmp.lt.s32.totalorder %s9, 5
    %p113 = pnand %p111, %p112
    %p114 = pneg %p113
    // Predicated region
    $region9: #{_lambda_.5} parent=5 // pred_check
      _
    $region10: #{_lambda_.5} parent=5 // pred_check_branch
      %116 = sbr.rel (%p113) target = $region12
    $region11: #{_lambda_.5} parent=5 // pred_region
      %s117 = ssub.s32 %s9, 1
      // Predicated region
      $region13: #{_lambda_.5} parent=11 // pred_check
        %p118 = pneg %p56
      $region14: #{_lambda_.5} parent=11 // pred_check_branch
        %120 = sbr.rel (%p118) target = $region16
      $region15: #{_lambda_.5} parent=11 // pred_region
        _
      $region16: #{_lambda_.5} parent=11 // pred_fallthru
        _
      // Predicated region
      $region17: #{_lambda_.5} parent=11 // pred_check
        %p121 = pneg %p77
      $region18: #{_lambda_.5} parent=11 // pred_check_branch
        %123 = sbr.rel (%p121) target = $region20
      $region19: #{_lambda_.5} parent=11 // pred_region
        _
      $region20: #{_lambda_.5} parent=11 // pred_fallthru
        _
    $region12: #{_lambda_.5} parent=5 // pred_fallthru
      _
    %p124 = scmp.lt.s32.totalorder %s9, 4
    // Predicated region
    $region21: #{_lambda_.5} parent=5 // pred_check
      %p125 = pneg %p124
    $region22: #{_lambda_.5} parent=5 // pred_check_branch
      %127 = sbr.rel (%p125) target = $region24
    $region23: #{_lambda_.5} parent=5 // pred_region
      // Predicated region
      $region25: #{_lambda_.5} parent=23 // pred_check
        %p128 = pneg %p29
      $region26: #{_lambda_.5} parent=23 // pred_check_branch
        %130 = sbr.rel (%p128) target = $region28
      $region27: #{_lambda_.5} parent=23 // pred_region
        %s131 = smul.u32 256, %s9
        %p132 = scmp.lt.s32.totalorder %s131, 1023
        %s133 = scalar_select %p132, %s131, 1023
        %s134 = smul.addr %s133, 4
        %s135 = scalar_lea.vmem %s0, %s134
        %s136 = smul.u32 256, %s9
      $region28: #{_lambda_.5} parent=23 // pred_fallthru
        _
    $region24: #{_lambda_.5} parent=5 // pred_fallthru
      _
    %p137 = scmp.le.s32.totalorder 1, %s9
    %p138 = scmp.lt.s32.totalorder %s9, 5
    %p139 = pnand %p137, %p138
    %p140 = pneg %p139
    // Predicated region
    $region29: #{_lambda_.5} parent=5 // pred_check
      _
    $region30: #{_lambda_.5} parent=5 // pred_check_branch
      %142 = sbr.rel (%p139) target = $region32
    $region31: #{_lambda_.5} parent=5 // pred_region
      %s143 = ssub.s32 %s9, 1
      %s144 = smul.u32 256, %s14
      %p145 = scmp.lt.s32.totalorder %s144, 1023
      %s146 = scalar_select %p145, %s144, 1023
      %s147 = smul.addr %s146, 4
      %s148 = scalar_lea.vmem %s0, %s147
      %p149 = pneg %p35
      %p150 = pneg %p32
      %p151 = pneg %p56
      %p152 = pneg %p53
      %p153 = pneg %p77
      %p154 = pneg %p74
      %p155 = pneg %p103
      %p156 = pneg %p100
      %s157 = smul.u32 256, %s14
      %p158 = scmp.lt.s32.totalorder %s157, 1023
      %s159 = scalar_select %p158, %s157, 1023
      %s160 = smul.addr %s159, 4
      %s161 = scalar_lea.vmem %s3, %s160
      %s162 = smul.u32 256, %s14
      %p163 = scmp.lt.s32.totalorder %s162, 1023
      %s164 = scalar_select %p163, %s162, 1023
      %s165 = smul.addr %s164, 4
      %s166 = scalar_lea.vmem %s0, %s165
      %s167 = smul.u32 256, %s14
      %s168 = smul.u32 256, %s14
      %p169 = scmp.lt.s32.totalorder %s168, 1023
      %s170 = scalar_select %p169, %s168, 1023
      %s171 = smul.addr %s170, 4
      %s172 = scalar_lea.vmem %s3, %s171
      %s173 = smul.u32 256, %s14
      %v175 = vld [vmem:[%s166] sm:$0xf]
      %v176 = vld [vmem:[%s166 + $0x4] sm:$0xf]
      %v177 = vld [vmem:[%s166 + $0x8] sm:$0xf]
      %v178 = vld [vmem:[%s166 + $0xc] sm:$0xf]
      %v179 = vld [vmem:[%s166 + $0x10] sm:$0xf]
      %v180 = vld [vmem:[%s166 + $0x14] sm:$0xf]
      %v181 = vld [vmem:[%s166 + $0x18] sm:$0xf]
      %v182 = vld [vmem:[%s166 + $0x1c] sm:$0xf]
      %v183 = vld [vmem:[%s166 + $0x20] sm:$0xf]
      %v184 = vld [vmem:[%s166 + $0x24] sm:$0xf]
      %v185 = vld [vmem:[%s166 + $0x28] sm:$0xf]
      %v186 = vld [vmem:[%s166 + $0x2c] sm:$0xf]
      %v187 = vld [vmem:[%s166 + $0x30] sm:$0xf]
      %v188 = vld [vmem:[%s166 + $0x34] sm:$0xf]
      %v189 = vld [vmem:[%s166 + $0x38] sm:$0xf]
      %v190 = vld [vmem:[%s166 + $0x3c] sm:$0xf]
      %v191 = vld [vmem:[%s166 + $0x40] sm:$0xf]
      %v192 = vld [vmem:[%s166 + $0x44] sm:$0xf]
      %v193 = vld [vmem:[%s166 + $0x48] sm:$0xf]
      %v194 = vld [vmem:[%s166 + $0x4c] sm:$0xf]
      %v195 = vld [vmem:[%s166 + $0x50] sm:$0xf]
      %v196 = vld [vmem:[%s166 + $0x54] sm:$0xf]
      %v197 = vld [vmem:[%s166 + $0x58] sm:$0xf]
      %v198 = vld [vmem:[%s166 + $0x5c] sm:$0xf]
      %v199 = vld [vmem:[%s166 + $0x60] sm:$0xf]
      %v200 = vld [vmem:[%s166 + $0x64] sm:$0xf]
      %v201 = vld [vmem:[%s166 + $0x68] sm:$0xf]
      %v202 = vld [vmem:[%s166 + $0x6c] sm:$0xf]
      %v203 = vld [vmem:[%s166 + $0x70] sm:$0xf]
      %v204 = vld [vmem:[%s166 + $0x74] sm:$0xf]
      %v205 = vld [vmem:[%s166 + $0x78] sm:$0xf]
      %v206 = vld [vmem:[%s166 + $0x7c] sm:$0xf]
      %v207 = vld [vmem:[%s166 + $0x80] sm:$0xf]
      %v208 = vld [vmem:[%s166 + $0x84] sm:$0xf]
      %v209 = vld [vmem:[%s166 + $0x88] sm:$0xf]
      %v210 = vld [vmem:[%s166 + $0x8c] sm:$0xf]
      %v211 = vld [vmem:[%s166 + $0x90] sm:$0xf]
      %v212 = vld [vmem:[%s166 + $0x94] sm:$0xf]
      %v213 = vld [vmem:[%s166 + $0x98] sm:$0xf]
      %v214 = vld [vmem:[%s166 + $0x9c] sm:$0xf]
      %v215 = vld [vmem:[%s166 + $0xa0] sm:$0xf]
      %v216 = vld [vmem:[%s166 + $0xa4] sm:$0xf]
      %v217 = vld [vmem:[%s166 + $0xa8] sm:$0xf]
      %v218 = vld [vmem:[%s166 + $0xac] sm:$0xf]
      %v219 = vld [vmem:[%s166 + $0xb0] sm:$0xf]
      %v220 = vld [vmem:[%s166 + $0xb4] sm:$0xf]
      %v221 = vld [vmem:[%s166 + $0xb8] sm:$0xf]
      %v222 = vld [vmem:[%s166 + $0xbc] sm:$0xf]
      %v223 = vld [vmem:[%s166 + $0xc0] sm:$0xf]
      %v224 = vld [vmem:[%s166 + $0xc4] sm:$0xf]
      %v225 = vld [vmem:[%s166 + $0xc8] sm:$0xf]
      %v226 = vld [vmem:[%s166 + $0xcc] sm:$0xf]
      %v227 = vld [vmem:[%s166 + $0xd0] sm:$0xf]
      %v228 = vld [vmem:[%s166 + $0xd4] sm:$0xf]
      %v229 = vld [vmem:[%s166 + $0xd8] sm:$0xf]
      %v230 = vld [vmem:[%s166 + $0xdc] sm:$0xf]
      %v231 = vld [vmem:[%s166 + $0xe0] sm:$0xf]
      %v232 = vld [vmem:[%s166 + $0xe4] sm:$0xf]
      %v233 = vld [vmem:[%s166 + $0xe8] sm:$0xf]
      %v234 = vld [vmem:[%s166 + $0xec] sm:$0xf]
      %v235 = vld [vmem:[%s166 + $0xf0] sm:$0xf]
      %v236 = vld [vmem:[%s166 + $0xf4] sm:$0xf]
      %v237 = vld [vmem:[%s166 + $0xf8] sm:$0xf]
      %v238 = vld [vmem:[%s166 + $0xfc] sm:$0xf]
      %v239 = vld [vmem:[%s166 + $0x100] sm:$0xf]
      %v240 = vld [vmem:[%s166 + $0x104] sm:$0xf]
      %v241 = vld [vmem:[%s166 + $0x108] sm:$0xf]
      %v242 = vld [vmem:[%s166 + $0x10c] sm:$0xf]
      %v243 = vld [vmem:[%s166 + $0x110] sm:$0xf]
      %v244 = vld [vmem:[%s166 + $0x114] sm:$0xf]
      %v245 = vld [vmem:[%s166 + $0x118] sm:$0xf]
      %v246 = vld [vmem:[%s166 + $0x11c] sm:$0xf]
      %v247 = vld [vmem:[%s166 + $0x120] sm:$0xf]
      %v248 = vld [vmem:[%s166 + $0x124] sm:$0xf]
      %v249 = vld [vmem:[%s166 + $0x128] sm:$0xf]
      %v250 = vld [vmem:[%s166 + $0x12c] sm:$0xf]
      %v251 = vld [vmem:[%s166 + $0x130] sm:$0xf]
      %v252 = vld [vmem:[%s166 + $0x134] sm:$0xf]
      %v253 = vld [vmem:[%s166 + $0x138] sm:$0xf]
      %v254 = vld [vmem:[%s166 + $0x13c] sm:$0xf]
      %v255 = vld [vmem:[%s166 + $0x140] sm:$0xf]
      %v256 = vld [vmem:[%s166 + $0x144] sm:$0xf]
      %v257 = vld [vmem:[%s166 + $0x148] sm:$0xf]
      %v258 = vld [vmem:[%s166 + $0x14c] sm:$0xf]
      %v259 = vld [vmem:[%s166 + $0x150] sm:$0xf]
      %v260 = vld [vmem:[%s166 + $0x154] sm:$0xf]
      %v261 = vld [vmem:[%s166 + $0x158] sm:$0xf]
      %v262 = vld [vmem:[%s166 + $0x15c] sm:$0xf]
      %v263 = vld [vmem:[%s166 + $0x160] sm:$0xf]
      %v264 = vld [vmem:[%s166 + $0x164] sm:$0xf]
      %v265 = vld [vmem:[%s166 + $0x168] sm:$0xf]
      %v266 = vld [vmem:[%s166 + $0x16c] sm:$0xf]
      %v267 = vld [vmem:[%s166 + $0x170] sm:$0xf]
      %v268 = vld [vmem:[%s166 + $0x174] sm:$0xf]
      %v269 = vld [vmem:[%s166 + $0x178] sm:$0xf]
      %v270 = vld [vmem:[%s166 + $0x17c] sm:$0xf]
      %v271 = vld [vmem:[%s166 + $0x180] sm:$0xf]
      %v272 = vld [vmem:[%s166 + $0x184] sm:$0xf]
      %v273 = vld [vmem:[%s166 + $0x188] sm:$0xf]
      %v274 = vld [vmem:[%s166 + $0x18c] sm:$0xf]
      %v275 = vld [vmem:[%s166 + $0x190] sm:$0xf]
      %v276 = vld [vmem:[%s166 + $0x194] sm:$0xf]
      %v277 = vld [vmem:[%s166 + $0x198] sm:$0xf]
      %v278 = vld [vmem:[%s166 + $0x19c] sm:$0xf]
      %v279 = vld [vmem:[%s166 + $0x1a0] sm:$0xf]
      %v280 = vld [vmem:[%s166 + $0x1a4] sm:$0xf]
      %v281 = vld [vmem:[%s166 + $0x1a8] sm:$0xf]
      %v282 = vld [vmem:[%s166 + $0x1ac] sm:$0xf]
      %v283 = vld [vmem:[%s166 + $0x1b0] sm:$0xf]
      %v284 = vld [vmem:[%s166 + $0x1b4] sm:$0xf]
      %v285 = vld [vmem:[%s166 + $0x1b8] sm:$0xf]
      %v286 = vld [vmem:[%s166 + $0x1bc] sm:$0xf]
      %v287 = vld [vmem:[%s166 + $0x1c0] sm:$0xf]
      %v288 = vld [vmem:[%s166 + $0x1c4] sm:$0xf]
      %v289 = vld [vmem:[%s166 + $0x1c8] sm:$0xf]
      %v290 = vld [vmem:[%s166 + $0x1cc] sm:$0xf]
      %v291 = vld [vmem:[%s166 + $0x1d0] sm:$0xf]
      %v292 = vld [vmem:[%s166 + $0x1d4] sm:$0xf]
      %v293 = vld [vmem:[%s166 + $0x1d8] sm:$0xf]
      %v294 = vld [vmem:[%s166 + $0x1dc] sm:$0xf]
      %v295 = vld [vmem:[%s166 + $0x1e0] sm:$0xf]
      %v296 = vld [vmem:[%s166 + $0x1e4] sm:$0xf]
      %v297 = vld [vmem:[%s166 + $0x1e8] sm:$0xf]
      %v298 = vld [vmem:[%s166 + $0x1ec] sm:$0xf]
      %v299 = vld [vmem:[%s166 + $0x1f0] sm:$0xf]
      %v300 = vld [vmem:[%s166 + $0x1f4] sm:$0xf]
      %v301 = vld [vmem:[%s166 + $0x1f8] sm:$0xf]
      %v302 = vld [vmem:[%s166 + $0x1fc] sm:$0xf]
      %v303 = vld [vmem:[%s166 + $0x200] sm:$0xf]
      %v304 = vld [vmem:[%s166 + $0x204] sm:$0xf]
      %v305 = vld [vmem:[%s166 + $0x208] sm:$0xf]
      %v306 = vld [vmem:[%s166 + $0x20c] sm:$0xf]
      %v307 = vld [vmem:[%s166 + $0x210] sm:$0xf]
      %v308 = vld [vmem:[%s166 + $0x214] sm:$0xf]
      %v309 = vld [vmem:[%s166 + $0x218] sm:$0xf]
      %v310 = vld [vmem:[%s166 + $0x21c] sm:$0xf]
      %v311 = vld [vmem:[%s166 + $0x220] sm:$0xf]
      %v312 = vld [vmem:[%s166 + $0x224] sm:$0xf]
      %v313 = vld [vmem:[%s166 + $0x228] sm:$0xf]
      %v314 = vld [vmem:[%s166 + $0x22c] sm:$0xf]
      %v315 = vld [vmem:[%s166 + $0x230] sm:$0xf]
      %v316 = vld [vmem:[%s166 + $0x234] sm:$0xf]
      %v317 = vld [vmem:[%s166 + $0x238] sm:$0xf]
      %v318 = vld [vmem:[%s166 + $0x23c] sm:$0xf]
      %v319 = vld [vmem:[%s166 + $0x240] sm:$0xf]
      %v320 = vld [vmem:[%s166 + $0x244] sm:$0xf]
      %v321 = vld [vmem:[%s166 + $0x248] sm:$0xf]
      %v322 = vld [vmem:[%s166 + $0x24c] sm:$0xf]
      %v323 = vld [vmem:[%s166 + $0x250] sm:$0xf]
      %v324 = vld [vmem:[%s166 + $0x254] sm:$0xf]
      %v325 = vld [vmem:[%s166 + $0x258] sm:$0xf]
      %v326 = vld [vmem:[%s166 + $0x25c] sm:$0xf]
      %v327 = vld [vmem:[%s166 + $0x260] sm:$0xf]
      %v328 = vld [vmem:[%s166 + $0x264] sm:$0xf]
      %v329 = vld [vmem:[%s166 + $0x268] sm:$0xf]
      %v330 = vld [vmem:[%s166 + $0x26c] sm:$0xf]
      %v331 = vld [vmem:[%s166 + $0x270] sm:$0xf]
      %v332 = vld [vmem:[%s166 + $0x274] sm:$0xf]
      %v333 = vld [vmem:[%s166 + $0x278] sm:$0xf]
      %v334 = vld [vmem:[%s166 + $0x27c] sm:$0xf]
      %v335 = vld [vmem:[%s166 + $0x280] sm:$0xf]
      %v336 = vld [vmem:[%s166 + $0x284] sm:$0xf]
      %v337 = vld [vmem:[%s166 + $0x288] sm:$0xf]
      %v338 = vld [vmem:[%s166 + $0x28c] sm:$0xf]
      %v339 = vld [vmem:[%s166 + $0x290] sm:$0xf]
      %v340 = vld [vmem:[%s166 + $0x294] sm:$0xf]
      %v341 = vld [vmem:[%s166 + $0x298] sm:$0xf]
      %v342 = vld [vmem:[%s166 + $0x29c] sm:$0xf]
      %v343 = vld [vmem:[%s166 + $0x2a0] sm:$0xf]
      %v344 = vld [vmem:[%s166 + $0x2a4] sm:$0xf]
      %v345 = vld [vmem:[%s166 + $0x2a8] sm:$0xf]
      %v346 = vld [vmem:[%s166 + $0x2ac] sm:$0xf]
      %v347 = vld [vmem:[%s166 + $0x2b0] sm:$0xf]
      %v348 = vld [vmem:[%s166 + $0x2b4] sm:$0xf]
      %v349 = vld [vmem:[%s166 + $0x2b8] sm:$0xf]
      %v350 = vld [vmem:[%s166 + $0x2bc] sm:$0xf]
      %v351 = vld [vmem:[%s166 + $0x2c0] sm:$0xf]
      %v352 = vld [vmem:[%s166 + $0x2c4] sm:$0xf]
      %v353 = vld [vmem:[%s166 + $0x2c8] sm:$0xf]
      %v354 = vld [vmem:[%s166 + $0x2cc] sm:$0xf]
      %v355 = vld [vmem:[%s166 + $0x2d0] sm:$0xf]
      %v356 = vld [vmem:[%s166 + $0x2d4] sm:$0xf]
      %v357 = vld [vmem:[%s166 + $0x2d8] sm:$0xf]
      %v358 = vld [vmem:[%s166 + $0x2dc] sm:$0xf]
      %v359 = vld [vmem:[%s166 + $0x2e0] sm:$0xf]
      %v360 = vld [vmem:[%s166 + $0x2e4] sm:$0xf]
      %v361 = vld [vmem:[%s166 + $0x2e8] sm:$0xf]
      %v362 = vld [vmem:[%s166 + $0x2ec] sm:$0xf]
      %v363 = vld [vmem:[%s166 + $0x2f0] sm:$0xf]
      %v364 = vld [vmem:[%s166 + $0x2f4] sm:$0xf]
      %v365 = vld [vmem:[%s166 + $0x2f8] sm:$0xf]
      %v366 = vld [vmem:[%s166 + $0x2fc] sm:$0xf]
      %v367 = vld [vmem:[%s166 + $0x300] sm:$0xf]
      %v368 = vld [vmem:[%s166 + $0x304] sm:$0xf]
      %v369 = vld [vmem:[%s166 + $0x308] sm:$0xf]
      %v370 = vld [vmem:[%s166 + $0x30c] sm:$0xf]
      %v371 = vld [vmem:[%s166 + $0x310] sm:$0xf]
      %v372 = vld [vmem:[%s166 + $0x314] sm:$0xf]
      %v373 = vld [vmem:[%s166 + $0x318] sm:$0xf]
      %v374 = vld [vmem:[%s166 + $0x31c] sm:$0xf]
      %v375 = vld [vmem:[%s166 + $0x320] sm:$0xf]
      %v376 = vld [vmem:[%s166 + $0x324] sm:$0xf]
      %v377 = vld [vmem:[%s166 + $0x328] sm:$0xf]
      %v378 = vld [vmem:[%s166 + $0x32c] sm:$0xf]
      %v379 = vld [vmem:[%s166 + $0x330] sm:$0xf]
      %v380 = vld [vmem:[%s166 + $0x334] sm:$0xf]
      %v381 = vld [vmem:[%s166 + $0x338] sm:$0xf]
      %v382 = vld [vmem:[%s166 + $0x33c] sm:$0xf]
      %v383 = vld [vmem:[%s166 + $0x340] sm:$0xf]
      %v384 = vld [vmem:[%s166 + $0x344] sm:$0xf]
      %v385 = vld [vmem:[%s166 + $0x348] sm:$0xf]
      %v386 = vld [vmem:[%s166 + $0x34c] sm:$0xf]
      %v387 = vld [vmem:[%s166 + $0x350] sm:$0xf]
      %v388 = vld [vmem:[%s166 + $0x354] sm:$0xf]
      %v389 = vld [vmem:[%s166 + $0x358] sm:$0xf]
      %v390 = vld [vmem:[%s166 + $0x35c] sm:$0xf]
      %v391 = vld [vmem:[%s166 + $0x360] sm:$0xf]
      %v392 = vld [vmem:[%s166 + $0x364] sm:$0xf]
      %v393 = vld [vmem:[%s166 + $0x368] sm:$0xf]
      %v394 = vld [vmem:[%s166 + $0x36c] sm:$0xf]
      %v395 = vld [vmem:[%s166 + $0x370] sm:$0xf]
      %v396 = vld [vmem:[%s166 + $0x374] sm:$0xf]
      %v397 = vld [vmem:[%s166 + $0x378] sm:$0xf]
      %v398 = vld [vmem:[%s166 + $0x37c] sm:$0xf]
      %v399 = vld [vmem:[%s166 + $0x380] sm:$0xf]
      %v400 = vld [vmem:[%s166 + $0x384] sm:$0xf]
      %v401 = vld [vmem:[%s166 + $0x388] sm:$0xf]
      %v402 = vld [vmem:[%s166 + $0x38c] sm:$0xf]
      %v403 = vld [vmem:[%s166 + $0x390] sm:$0xf]
      %v404 = vld [vmem:[%s166 + $0x394] sm:$0xf]
      %v405 = vld [vmem:[%s166 + $0x398] sm:$0xf]
      %v406 = vld [vmem:[%s166 + $0x39c] sm:$0xf]
      %v407 = vld [vmem:[%s166 + $0x3a0] sm:$0xf]
      %v408 = vld [vmem:[%s166 + $0x3a4] sm:$0xf]
      %v409 = vld [vmem:[%s166 + $0x3a8] sm:$0xf]
      %v410 = vld [vmem:[%s166 + $0x3ac] sm:$0xf]
      %v411 = vld [vmem:[%s166 + $0x3b0] sm:$0xf]
      %v412 = vld [vmem:[%s166 + $0x3b4] sm:$0xf]
      %v413 = vld [vmem:[%s166 + $0x3b8] sm:$0xf]
      %v414 = vld [vmem:[%s166 + $0x3bc] sm:$0xf]
      %v415 = vld [vmem:[%s166 + $0x3c0] sm:$0xf]
      %v416 = vld [vmem:[%s166 + $0x3c4] sm:$0xf]
      %v417 = vld [vmem:[%s166 + $0x3c8] sm:$0xf]
      %v418 = vld [vmem:[%s166 + $0x3cc] sm:$0xf]
      %v419 = vld [vmem:[%s166 + $0x3d0] sm:$0xf]
      %v420 = vld [vmem:[%s166 + $0x3d4] sm:$0xf]
      %v421 = vld [vmem:[%s166 + $0x3d8] sm:$0xf]
      %v422 = vld [vmem:[%s166 + $0x3dc] sm:$0xf]
      %v423 = vld [vmem:[%s166 + $0x3e0] sm:$0xf]
      %v424 = vld [vmem:[%s166 + $0x3e4] sm:$0xf]
      %v425 = vld [vmem:[%s166 + $0x3e8] sm:$0xf]
      %v426 = vld [vmem:[%s166 + $0x3ec] sm:$0xf]
      %v427 = vld [vmem:[%s166 + $0x3f0] sm:$0xf]
      %v428 = vld [vmem:[%s166 + $0x3f4] sm:$0xf]
      %v429 = vld [vmem:[%s166 + $0x3f8] sm:$0xf]
      %v430 = vld [vmem:[%s166 + $0x3fc] sm:$0xf]
      %v431 = vld [vmem:[%s1] sm:$0xf]
      %v432 = vld [vmem:[%s1 + $0x4] sm:$0xf]
      %v433 = vld [vmem:[%s1 + $0x8] sm:$0xf]
      %v434 = vld [vmem:[%s1 + $0xc] sm:$0xf]
      %v435 = vld [vmem:[%s1 + $0x10] sm:$0xf]
      %v436 = vld [vmem:[%s1 + $0x14] sm:$0xf]
      %v437 = vld [vmem:[%s1 + $0x18] sm:$0xf]
      %v438 = vld [vmem:[%s1 + $0x1c] sm:$0xf]
      %v439 = vld [vmem:[%s1 + $0x20] sm:$0xf]
      %v440 = vld [vmem:[%s1 + $0x24] sm:$0xf]
      %v441 = vld [vmem:[%s1 + $0x28] sm:$0xf]
      %v442 = vld [vmem:[%s1 + $0x2c] sm:$0xf]
      %v443 = vld [vmem:[%s1 + $0x30] sm:$0xf]
      %v444 = vld [vmem:[%s1 + $0x34] sm:$0xf]
      %v445 = vld [vmem:[%s1 + $0x38] sm:$0xf]
      %v446 = vld [vmem:[%s1 + $0x3c] sm:$0xf]
      %v447 = vld [vmem:[%s2] sm:$0x1]
      %v449 = vlaneseq
      %v450 = vshrl.u32 %v449, 7
      %v451 = vsub.s32 0, %v450
      %v452 = vrot.slane %v447, %v451
      %v710 = vunpack.c.l.b16 %v175
      %v711 = vunpack.c.l.b16 %v176
      %v712 = vunpack.c.l.b16 %v177
      %v713 = vunpack.c.l.b16 %v178
      %v714 = vunpack.c.l.b16 %v179
      %v715 = vunpack.c.l.b16 %v180
      %v716 = vunpack.c.l.b16 %v181
      %v717 = vunpack.c.l.b16 %v182
      %v718 = vunpack.c.l.b16 %v183
      %v719 = vunpack.c.l.b16 %v184
      %v720 = vunpack.c.l.b16 %v185
      %v721 = vunpack.c.l.b16 %v186
      %v722 = vunpack.c.l.b16 %v187
      %v723 = vunpack.c.l.b16 %v188
      %v724 = vunpack.c.l.b16 %v189
      %v725 = vunpack.c.l.b16 %v190
      %v726 = vunpack.c.l.b16 %v191
      %v727 = vunpack.c.l.b16 %v192
      %v728 = vunpack.c.l.b16 %v193
      %v729 = vunpack.c.l.b16 %v194
      %v730 = vunpack.c.l.b16 %v195
      %v731 = vunpack.c.l.b16 %v196
      %v732 = vunpack.c.l.b16 %v197
      %v733 = vunpack.c.l.b16 %v198
      %v734 = vunpack.c.l.b16 %v199
      %v735 = vunpack.c.l.b16 %v200
      %v736 = vunpack.c.l.b16 %v201
      %v737 = vunpack.c.l.b16 %v202
      %v738 = vunpack.c.l.b16 %v203
      %v739 = vunpack.c.l.b16 %v204
      %v740 = vunpack.c.l.b16 %v205
      %v741 = vunpack.c.l.b16 %v206
      %v742 = vunpack.c.l.b16 %v207
      %v743 = vunpack.c.l.b16 %v208
      %v744 = vunpack.c.l.b16 %v209
      %v745 = vunpack.c.l.b16 %v210
      %v746 = vunpack.c.l.b16 %v211
      %v747 = vunpack.c.l.b16 %v212
      %v748 = vunpack.c.l.b16 %v213
      %v749 = vunpack.c.l.b16 %v214
      %v750 = vunpack.c.l.b16 %v215
      %v751 = vunpack.c.l.b16 %v216
      %v752 = vunpack.c.l.b16 %v217
      %v753 = vunpack.c.l.b16 %v218
      %v754 = vunpack.c.l.b16 %v219
      %v755 = vunpack.c.l.b16 %v220
      %v756 = vunpack.c.l.b16 %v221
      %v757 = vunpack.c.l.b16 %v222
      %v758 = vunpack.c.l.b16 %v223
      %v759 = vunpack.c.l.b16 %v224
      %v760 = vunpack.c.l.b16 %v225
      %v761 = vunpack.c.l.b16 %v226
      %v762 = vunpack.c.l.b16 %v227
      %v763 = vunpack.c.l.b16 %v228
      %v764 = vunpack.c.l.b16 %v229
      %v765 = vunpack.c.l.b16 %v230
      %v766 = vunpack.c.l.b16 %v231
      %v767 = vunpack.c.l.b16 %v232
      %v768 = vunpack.c.l.b16 %v233
      %v769 = vunpack.c.l.b16 %v234
      %v770 = vunpack.c.l.b16 %v235
      %v771 = vunpack.c.l.b16 %v236
      %v772 = vunpack.c.l.b16 %v237
      %v773 = vunpack.c.l.b16 %v238
      %v774 = vunpack.c.l.b16 %v239
      %v775 = vunpack.c.l.b16 %v240
      %v776 = vunpack.c.l.b16 %v241
      %v777 = vunpack.c.l.b16 %v242
      %v778 = vunpack.c.l.b16 %v243
      %v779 = vunpack.c.l.b16 %v244
      %v780 = vunpack.c.l.b16 %v245
      %v781 = vunpack.c.l.b16 %v246
      %v782 = vunpack.c.l.b16 %v247
      %v783 = vunpack.c.l.b16 %v248
      %v784 = vunpack.c.l.b16 %v249
      %v785 = vunpack.c.l.b16 %v250
      %v786 = vunpack.c.l.b16 %v251
      %v787 = vunpack.c.l.b16 %v252
      %v788 = vunpack.c.l.b16 %v253
      %v789 = vunpack.c.l.b16 %v254
      %v790 = vunpack.c.l.b16 %v255
      %v791 = vunpack.c.l.b16 %v256
      %v792 = vunpack.c.l.b16 %v257
      %v793 = vunpack.c.l.b16 %v258
      %v794 = vunpack.c.l.b16 %v259
      %v795 = vunpack.c.l.b16 %v260
      %v796 = vunpack.c.l.b16 %v261
      %v797 = vunpack.c.l.b16 %v262
      %v798 = vunpack.c.l.b16 %v263
      %v799 = vunpack.c.l.b16 %v264
      %v800 = vunpack.c.l.b16 %v265
      %v801 = vunpack.c.l.b16 %v266
      %v802 = vunpack.c.l.b16 %v267
      %v803 = vunpack.c.l.b16 %v268
      %v804 = vunpack.c.l.b16 %v269
      %v805 = vunpack.c.l.b16 %v270
      %v806 = vunpack.c.l.b16 %v271
      %v807 = vunpack.c.l.b16 %v272
      %v808 = vunpack.c.l.b16 %v273
      %v809 = vunpack.c.l.b16 %v274
      %v810 = vunpack.c.l.b16 %v275
      %v811 = vunpack.c.l.b16 %v276
      %v812 = vunpack.c.l.b16 %v277
      %v813 = vunpack.c.l.b16 %v278
      %v814 = vunpack.c.l.b16 %v279
      %v815 = vunpack.c.l.b16 %v280
      %v816 = vunpack.c.l.b16 %v281
      %v817 = vunpack.c.l.b16 %v282
      %v818 = vunpack.c.l.b16 %v283
      %v819 = vunpack.c.l.b16 %v284
      %v820 = vunpack.c.l.b16 %v285
      %v821 = vunpack.c.l.b16 %v286
      %v822 = vunpack.c.l.b16 %v287
      %v823 = vunpack.c.l.b16 %v288
      %v824 = vunpack.c.l.b16 %v289
      %v825 = vunpack.c.l.b16 %v290
      %v826 = vunpack.c.l.b16 %v291
      %v827 = vunpack.c.l.b16 %v292
      %v828 = vunpack.c.l.b16 %v293
      %v829 = vunpack.c.l.b16 %v294
      %v830 = vunpack.c.l.b16 %v295
      %v831 = vunpack.c.l.b16 %v296
      %v832 = vunpack.c.l.b16 %v297
      %v833 = vunpack.c.l.b16 %v298
      %v834 = vunpack.c.l.b16 %v299
      %v835 = vunpack.c.l.b16 %v300
      %v836 = vunpack.c.l.b16 %v301
      %v837 = vunpack.c.l.b16 %v302
      %v838 = vunpack.c.l.b16 %v303
      %v839 = vunpack.c.l.b16 %v304
      %v840 = vunpack.c.l.b16 %v305
      %v841 = vunpack.c.l.b16 %v306
      %v842 = vunpack.c.l.b16 %v307
      %v843 = vunpack.c.l.b16 %v308
      %v844 = vunpack.c.l.b16 %v309
      %v845 = vunpack.c.l.b16 %v310
      %v846 = vunpack.c.l.b16 %v311
      %v847 = vunpack.c.l.b16 %v312
      %v848 = vunpack.c.l.b16 %v313
      %v849 = vunpack.c.l.b16 %v314
      %v850 = vunpack.c.l.b16 %v315
      %v851 = vunpack.c.l.b16 %v316
      %v852 = vunpack.c.l.b16 %v317
      %v853 = vunpack.c.l.b16 %v318
      %v854 = vunpack.c.l.b16 %v319
      %v855 = vunpack.c.l.b16 %v320
      %v856 = vunpack.c.l.b16 %v321
      %v857 = vunpack.c.l.b16 %v322
      %v858 = vunpack.c.l.b16 %v323
      %v859 = vunpack.c.l.b16 %v324
      %v860 = vunpack.c.l.b16 %v325
      %v861 = vunpack.c.l.b16 %v326
      %v862 = vunpack.c.l.b16 %v327
      %v863 = vunpack.c.l.b16 %v328
      %v864 = vunpack.c.l.b16 %v329
      %v865 = vunpack.c.l.b16 %v330
      %v866 = vunpack.c.l.b16 %v331
      %v867 = vunpack.c.l.b16 %v332
      %v868 = vunpack.c.l.b16 %v333
      %v869 = vunpack.c.l.b16 %v334
      %v870 = vunpack.c.l.b16 %v335
      %v871 = vunpack.c.l.b16 %v336
      %v872 = vunpack.c.l.b16 %v337
      %v873 = vunpack.c.l.b16 %v338
      %v874 = vunpack.c.l.b16 %v339
      %v875 = vunpack.c.l.b16 %v340
      %v876 = vunpack.c.l.b16 %v341
      %v877 = vunpack.c.l.b16 %v342
      %v878 = vunpack.c.l.b16 %v343
      %v879 = vunpack.c.l.b16 %v344
      %v880 = vunpack.c.l.b16 %v345
      %v881 = vunpack.c.l.b16 %v346
      %v882 = vunpack.c.l.b16 %v347
      %v883 = vunpack.c.l.b16 %v348
      %v884 = vunpack.c.l.b16 %v349
      %v885 = vunpack.c.l.b16 %v350
      %v886 = vunpack.c.l.b16 %v351
      %v887 = vunpack.c.l.b16 %v352
      %v888 = vunpack.c.l.b16 %v353
      %v889 = vunpack.c.l.b16 %v354
      %v890 = vunpack.c.l.b16 %v355
      %v891 = vunpack.c.l.b16 %v356
      %v892 = vunpack.c.l.b16 %v357
      %v893 = vunpack.c.l.b16 %v358
      %v894 = vunpack.c.l.b16 %v359
      %v895 = vunpack.c.l.b16 %v360
      %v896 = vunpack.c.l.b16 %v361
      %v897 = vunpack.c.l.b16 %v362
      %v898 = vunpack.c.l.b16 %v363
      %v899 = vunpack.c.l.b16 %v364
      %v900 = vunpack.c.l.b16 %v365
      %v901 = vunpack.c.l.b16 %v366
      %v902 = vunpack.c.l.b16 %v367
      %v903 = vunpack.c.l.b16 %v368
      %v904 = vunpack.c.l.b16 %v369
      %v905 = vunpack.c.l.b16 %v370
      %v906 = vunpack.c.l.b16 %v371
      %v907 = vunpack.c.l.b16 %v372
      %v908 = vunpack.c.l.b16 %v373
      %v909 = vunpack.c.l.b16 %v374
      %v910 = vunpack.c.l.b16 %v375
      %v911 = vunpack.c.l.b16 %v376
      %v912 = vunpack.c.l.b16 %v377
      %v913 = vunpack.c.l.b16 %v378
      %v914 = vunpack.c.l.b16 %v379
      %v915 = vunpack.c.l.b16 %v380
      %v916 = vunpack.c.l.b16 %v381
      %v917 = vunpack.c.l.b16 %v382
      %v918 = vunpack.c.l.b16 %v383
      %v919 = vunpack.c.l.b16 %v384
      %v920 = vunpack.c.l.b16 %v385
      %v921 = vunpack.c.l.b16 %v386
      %v922 = vunpack.c.l.b16 %v387
      %v923 = vunpack.c.l.b16 %v388
      %v924 = vunpack.c.l.b16 %v389
      %v925 = vunpack.c.l.b16 %v390
      %v926 = vunpack.c.l.b16 %v391
      %v927 = vunpack.c.l.b16 %v392
      %v928 = vunpack.c.l.b16 %v393
      %v929 = vunpack.c.l.b16 %v394
      %v930 = vunpack.c.l.b16 %v395
      %v931 = vunpack.c.l.b16 %v396
      %v932 = vunpack.c.l.b16 %v397
      %v933 = vunpack.c.l.b16 %v398
      %v934 = vunpack.c.l.b16 %v399
      %v935 = vunpack.c.l.b16 %v400
      %v936 = vunpack.c.l.b16 %v401
      %v937 = vunpack.c.l.b16 %v402
      %v938 = vunpack.c.l.b16 %v403
      %v939 = vunpack.c.l.b16 %v404
      %v940 = vunpack.c.l.b16 %v405
      %v941 = vunpack.c.l.b16 %v406
      %v942 = vunpack.c.l.b16 %v407
      %v943 = vunpack.c.l.b16 %v408
      %v944 = vunpack.c.l.b16 %v409
      %v945 = vunpack.c.l.b16 %v410
      %v946 = vunpack.c.l.b16 %v411
      %v947 = vunpack.c.l.b16 %v412
      %v948 = vunpack.c.l.b16 %v413
      %v949 = vunpack.c.l.b16 %v414
      %v950 = vunpack.c.l.b16 %v415
      %v951 = vunpack.c.l.b16 %v416
      %v952 = vunpack.c.l.b16 %v417
      %v953 = vunpack.c.l.b16 %v418
      %v954 = vunpack.c.l.b16 %v419
      %v955 = vunpack.c.l.b16 %v420
      %v956 = vunpack.c.l.b16 %v421
      %v957 = vunpack.c.l.b16 %v422
      %v958 = vunpack.c.l.b16 %v423
      %v959 = vunpack.c.l.b16 %v424
      %v960 = vunpack.c.l.b16 %v425
      %v961 = vunpack.c.l.b16 %v426
      %v962 = vunpack.c.l.b16 %v427
      %v963 = vunpack.c.l.b16 %v428
      %v964 = vunpack.c.l.b16 %v429
      %v965 = vunpack.c.l.b16 %v430
      %v966 = vpack.c.b16 %v711, %v710
      %v967 = vpack.c.b16 %v713, %v712
      %v968 = vpack.c.b16 %v715, %v714
      %v969 = vpack.c.b16 %v717, %v716
      %v970 = vpack.c.b16 %v719, %v718
      %v971 = vpack.c.b16 %v721, %v720
      %v972 = vpack.c.b16 %v723, %v722
      %v973 = vpack.c.b16 %v725, %v724
      %v974 = vpack.c.b16 %v727, %v726
      %v975 = vpack.c.b16 %v729, %v728
      %v976 = vpack.c.b16 %v731, %v730
      %v977 = vpack.c.b16 %v733, %v732
      %v978 = vpack.c.b16 %v735, %v734
      %v979 = vpack.c.b16 %v737, %v736
      %v980 = vpack.c.b16 %v739, %v738
      %v981 = vpack.c.b16 %v741, %v740
      %v982 = vpack.c.b16 %v743, %v742
      %v983 = vpack.c.b16 %v745, %v744
      %v984 = vpack.c.b16 %v747, %v746
      %v985 = vpack.c.b16 %v749, %v748
      %v986 = vpack.c.b16 %v751, %v750
      %v987 = vpack.c.b16 %v753, %v752
      %v988 = vpack.c.b16 %v755, %v754
      %v989 = vpack.c.b16 %v757, %v756
      %v990 = vpack.c.b16 %v759, %v758
      %v991 = vpack.c.b16 %v761, %v760
      %v992 = vpack.c.b16 %v763, %v762
      %v993 = vpack.c.b16 %v765, %v764
      %v994 = vpack.c.b16 %v767, %v766
      %v995 = vpack.c.b16 %v769, %v768
      %v996 = vpack.c.b16 %v771, %v770
      %v997 = vpack.c.b16 %v773, %v772
      %v998 = vpack.c.b16 %v775, %v774
      %v999 = vpack.c.b16 %v777, %v776
      %v1000 = vpack.c.b16 %v779, %v778
      %v1001 = vpack.c.b16 %v781, %v780
      %v1002 = vpack.c.b16 %v783, %v782
      %v1003 = vpack.c.b16 %v785, %v784
      %v1004 = vpack.c.b16 %v787, %v786
      %v1005 = vpack.c.b16 %v789, %v788
      %v1006 = vpack.c.b16 %v791, %v790
      %v1007 = vpack.c.b16 %v793, %v792
      %v1008 = vpack.c.b16 %v795, %v794
      %v1009 = vpack.c.b16 %v797, %v796
      %v1010 = vpack.c.b16 %v799, %v798
      %v1011 = vpack.c.b16 %v801, %v800
      %v1012 = vpack.c.b16 %v803, %v802
      %v1013 = vpack.c.b16 %v805, %v804
      %v1014 = vpack.c.b16 %v807, %v806
      %v1015 = vpack.c.b16 %v809, %v808
      %v1016 = vpack.c.b16 %v811, %v810
      %v1017 = vpack.c.b16 %v813, %v812
      %v1018 = vpack.c.b16 %v815, %v814
      %v1019 = vpack.c.b16 %v817, %v816
      %v1020 = vpack.c.b16 %v819, %v818
      %v1021 = vpack.c.b16 %v821, %v820
      %v1022 = vpack.c.b16 %v823, %v822
      %v1023 = vpack.c.b16 %v825, %v824
      %v1024 = vpack.c.b16 %v827, %v826
      %v1025 = vpack.c.b16 %v829, %v828
      %v1026 = vpack.c.b16 %v831, %v830
      %v1027 = vpack.c.b16 %v833, %v832
      %v1028 = vpack.c.b16 %v835, %v834
      %v1029 = vpack.c.b16 %v837, %v836
      %v1030 = vpack.c.b16 %v839, %v838
      %v1031 = vpack.c.b16 %v841, %v840
      %v1032 = vpack.c.b16 %v843, %v842
      %v1033 = vpack.c.b16 %v845, %v844
      %v1034 = vpack.c.b16 %v847, %v846
      %v1035 = vpack.c.b16 %v849, %v848
      %v1036 = vpack.c.b16 %v851, %v850
      %v1037 = vpack.c.b16 %v853, %v852
      %v1038 = vpack.c.b16 %v855, %v854
      %v1039 = vpack.c.b16 %v857, %v856
      %v1040 = vpack.c.b16 %v859, %v858
      %v1041 = vpack.c.b16 %v861, %v860
      %v1042 = vpack.c.b16 %v863, %v862
      %v1043 = vpack.c.b16 %v865, %v864
      %v1044 = vpack.c.b16 %v867, %v866
      %v1045 = vpack.c.b16 %v869, %v868
      %v1046 = vpack.c.b16 %v871, %v870
      %v1047 = vpack.c.b16 %v873, %v872
      %v1048 = vpack.c.b16 %v875, %v874
      %v1049 = vpack.c.b16 %v877, %v876
      %v1050 = vpack.c.b16 %v879, %v878
      %v1051 = vpack.c.b16 %v881, %v880
      %v1052 = vpack.c.b16 %v883, %v882
      %v1053 = vpack.c.b16 %v885, %v884
      %v1054 = vpack.c.b16 %v887, %v886
      %v1055 = vpack.c.b16 %v889, %v888
      %v1056 = vpack.c.b16 %v891, %v890
      %v1057 = vpack.c.b16 %v893, %v892
      %v1058 = vpack.c.b16 %v895, %v894
      %v1059 = vpack.c.b16 %v897, %v896
      %v1060 = vpack.c.b16 %v899, %v898
      %v1061 = vpack.c.b16 %v901, %v900
      %v1062 = vpack.c.b16 %v903, %v902
      %v1063 = vpack.c.b16 %v905, %v904
      %v1064 = vpack.c.b16 %v907, %v906
      %v1065 = vpack.c.b16 %v909, %v908
      %v1066 = vpack.c.b16 %v911, %v910
      %v1067 = vpack.c.b16 %v913, %v912
      %v1068 = vpack.c.b16 %v915, %v914
      %v1069 = vpack.c.b16 %v917, %v916
      %v1070 = vpack.c.b16 %v919, %v918
      %v1071 = vpack.c.b16 %v921, %v920
      %v1072 = vpack.c.b16 %v923, %v922
      %v1073 = vpack.c.b16 %v925, %v924
      %v1074 = vpack.c.b16 %v927, %v926
      %v1075 = vpack.c.b16 %v929, %v928
      %v1076 = vpack.c.b16 %v931, %v930
      %v1077 = vpack.c.b16 %v933, %v932
      %v1078 = vpack.c.b16 %v935, %v934
      %v1079 = vpack.c.b16 %v937, %v936
      %v1080 = vpack.c.b16 %v939, %v938
      %v1081 = vpack.c.b16 %v941, %v940
      %v1082 = vpack.c.b16 %v943, %v942
      %v1083 = vpack.c.b16 %v945, %v944
      %v1084 = vpack.c.b16 %v947, %v946
      %v1085 = vpack.c.b16 %v949, %v948
      %v1086 = vpack.c.b16 %v951, %v950
      %v1087 = vpack.c.b16 %v953, %v952
      %v1088 = vpack.c.b16 %v955, %v954
      %v1089 = vpack.c.b16 %v957, %v956
      %v1090 = vpack.c.b16 %v959, %v958
      %v1091 = vpack.c.b16 %v961, %v960
      %v1092 = vpack.c.b16 %v963, %v962
      %v1093 = vpack.c.b16 %v965, %v964
      %v1238 = vunpack.c.l.b16 %v431
      %v1239 = vunpack.c.l.b16 %v432
      %v1240 = vunpack.c.l.b16 %v433
      %v1241 = vunpack.c.l.b16 %v434
      %v1242 = vunpack.c.l.b16 %v435
      %v1243 = vunpack.c.l.b16 %v436
      %v1244 = vunpack.c.l.b16 %v437
      %v1245 = vunpack.c.l.b16 %v438
      %v1246 = vunpack.c.l.b16 %v439
      %v1247 = vunpack.c.l.b16 %v440
      %v1248 = vunpack.c.l.b16 %v441
      %v1249 = vunpack.c.l.b16 %v442
      %v1250 = vunpack.c.l.b16 %v443
      %v1251 = vunpack.c.l.b16 %v444
      %v1252 = vunpack.c.l.b16 %v445
      %v1253 = vunpack.c.l.b16 %v446
      %v1254 = vpack.c.b16 %v1239, %v1238
      %v1255 = vpack.c.b16 %v1241, %v1240
      %v1256 = vpack.c.b16 %v1243, %v1242
      %v1257 = vpack.c.b16 %v1245, %v1244
      %v1258 = vpack.c.b16 %v1247, %v1246
      %v1259 = vpack.c.b16 %v1249, %v1248
      %v1260 = vpack.c.b16 %v1251, %v1250
      %v1261 = vpack.c.b16 %v1253, %v1252
      %1270 = vmatprep.subr.bf16.mxu0 0
      %1271 = vmatpush1.bf16.msra.mxu0 %v1254
      %1272 = vmatprep.subr.bf16.mxu0 0
      %1273 = vmatpush1.bf16.msra.mxu0 %v1255
      %1274 = vmatprep.subr.bf16.mxu0 0
      %1275 = vmatpush1.bf16.msra.mxu0 %v1256
      %1276 = vmatprep.subr.bf16.mxu0 0
      %1277 = vmatpush1.bf16.msra.mxu0 %v1257
      %1278 = vmatprep.subr.bf16.mxu0 0
      %1279 = vmatpush1.bf16.msra.mxu0 %v1258
      %1280 = vmatprep.subr.bf16.mxu0 0
      %1281 = vmatpush1.bf16.msra.mxu0 %v1259
      %1282 = vmatprep.subr.bf16.mxu0 0
      %1283 = vmatpush1.bf16.msra.mxu0 %v1260
      %1284 = vmatprep.subr.bf16.mxu0 0
      %1285 = vmatpush1.bf16.msra.mxu0 %v1261
      %1286 = vmatprep.subr.bf16.mxu0 0
      %1287 = vmatpush1.bf16.msra.mxu0 0
      %1288 = vmatprep.subr.bf16.mxu0 0
      %1289 = vmatpush1.bf16.msra.mxu0 0
      %1290 = vmatprep.subr.bf16.mxu0 0
      %1291 = vmatpush1.bf16.msra.mxu0 0
      %1292 = vmatprep.subr.bf16.mxu0 0
      %1293 = vmatpush1.bf16.msra.mxu0 0
      %1294 = vmatprep.subr.bf16.mxu0 0
      %1295 = vmatpush1.bf16.msra.mxu0 0
      %1296 = vmatprep.subr.bf16.mxu0 0
      %1297 = vmatpush1.bf16.msra.mxu0 0
      %1298 = vmatprep.subr.bf16.mxu0 0
      %1299 = vmatpush1.bf16.msra.mxu0 0
      %1300 = vmatprep.subr.bf16.mxu0 0
      %1301 = vmatpush1.bf16.msra.mxu0 0
      %1302 = vmatprep.mubr.bf16.mxu0 0
      %1303 = vmatmul.mubr.bf16.gmra.mrb[0].mxu0 %v966
      %v1304 = vpop.f32.mrb[0].mxu0
      %v1305 = vadd.f32 %v452, %v1304
      %v1306 = vpop.f32.mrb[0].mxu0
      %v1307 = vpop.f32.mrb[0].mxu0
      %v1308 = vadd.f32 %v452, %v1307
      %v1309 = vpop.f32.mrb[0].mxu0
      %1310 = vmatprep.mubr.bf16.mxu0 0
      %1311 = vmatmul.mubr.bf16.gmra.mrb[0].mxu0 %v967
      %v1312 = vpop.f32.mrb[0].mxu0
      %v1313 = vadd.f32 %v452, %v1312
      %v1314 = vpop.f32.mrb[0].mxu0
      %v1315 = vpop.f32.mrb[0].mxu0
      %v1316 = vadd.f32 %v452, %v1315
      %v1317 = vpop.f32.mrb[0].mxu0
      %1318 = vmatprep.mubr.bf16.mxu0 0
      %1319 = vmatmul.mubr.bf16.gmra.mrb[0].mxu0 %v968
      %v1320 = vpop.f32.mrb[0].mxu0
      %v1321 = vadd.f32 %v452, %v1320
      %v1322 = vpop.f32.mrb[0].mxu0
      %v1323 = vpop.f32.mrb[0].mxu0
      %v1324 = vadd.f32 %v452, %v1323
      %v1325 = vpop.f32.mrb[0].mxu0
      %1326 = vmatprep.mubr.bf16.mxu0 0
      %1327 = vmatmul.mubr.bf16.gmra.mrb[0].mxu0 %v969
      %v1328 = vpop.f32.mrb[0].mxu0
      %v1329 = vadd.f32 %v452, %v1328
      %v1330 = vpop.f32.mrb[0].mxu0
      %v1331 = vpop.f32.mrb[0].mxu0
      %v1332 = vadd.f32 %v452, %v1331
      %v1333 = vpop.f32.mrb[0].mxu0
      %1334 = vmatprep.mubr.bf16.mxu0 0
      %1335 = vmatmul.mubr.bf16.gmra.mrb[0].mxu0 %v970
      %v1336 = vpop.f32.mrb[0].mxu0
      %v1337 = vadd.f32 %v452, %v1336
      %v1338 = vpop.f32.mrb[0].mxu0
      %v1339 = vpop.f32.mrb[0].mxu0
      %v1340 = vadd.f32 %v452, %v1339
      %v1341 = vpop.f32.mrb[0].mxu0
      %1342 = vmatprep.mubr.bf16.mxu0 0
      %1343 = vmatmul.mubr.bf16.gmra.mrb[0].mxu0 %v971
      %v1344 = vpop.f32.mrb[0].mxu0
      %v1345 = vadd.f32 %v452, %v1344
      %v1346 = vpop.f32.mrb[0].mxu0
      %v1347 = vpop.f32.mrb[0].mxu0
      %v1348 = vadd.f32 %v452, %v1347
      %v1349 = vpop.f32.mrb[0].mxu0
      %1350 = vmatprep.mubr.bf16.mxu0 0
      %1351 = vmatmul.mubr.bf16.gmra.mrb[0].mxu0 %v972
      %v1352 = vpop.f32.mrb[0].mxu0
      %v1353 = vadd.f32 %v452, %v1352
      %v1354 = vpop.f32.mrb[0].mxu0
      %v1355 = vpop.f32.mrb[0].mxu0
      %v1356 = vadd.f32 %v452, %v1355
      %v1357 = vpop.f32.mrb[0].mxu0
      %1358 = vmatprep.mubr.bf16.mxu0 0
      %1359 = vmatmul.mubr.bf16.gmra.mrb[0].mxu0 %v973
      %v1360 = vpop.f32.mrb[0].mxu0
      %v1361 = vadd.f32 %v452, %v1360
      %v1362 = vpop.f32.mrb[0].mxu0
      %v1363 = vpop.f32.mrb[0].mxu0
      %v1364 = vadd.f32 %v452, %v1363
      %v1365 = vpop.f32.mrb[0].mxu0
      %1366 = vmatprep.mubr.bf16.mxu0 0
      %1367 = vmatmul.mubr.bf16.gmra.mrb[0].mxu0 %v974
      %v1368 = vpop.f32.mrb[0].mxu0
      %v1369 = vadd.f32 %v452, %v1368
      %v1370 = vpop.f32.mrb[0].mxu0
      %v1371 = vpop.f32.mrb[0].mxu0
      %v1372 = vadd.f32 %v452, %v1371
      %v1373 = vpop.f32.mrb[0].mxu0
      %1374 = vmatprep.mubr.bf16.mxu0 0
      %1375 = vmatmul.mubr.bf16.gmra.mrb[0].mxu0 %v975
      %v1376 = vpop.f32.mrb[0].mxu0
      %v1377 = vadd.f32 %v452, %v1376
      %v1378 = vpop.f32.mrb[0].mxu0
      %v1379 = vpop.f32.mrb[0].mxu0
      %v1380 = vadd.f32 %v452, %v1379
      %v1381 = vpop.f32.mrb[0].mxu0
      %1382 = vmatprep.mubr.bf16.mxu0 0
      %1383 = vmatmul.mubr.bf16.gmra.mrb[0].mxu0 %v976
      %v1384 = vpop.f32.mrb[0].mxu0
      %v1385 = vadd.f32 %v452, %v1384
      %v1386 = vpop.f32.mrb[0].mxu0
      %v1387 = vpop.f32.mrb[0].mxu0
      %v1388 = vadd.f32 %v452, %v1387
      %v1389 = vpop.f32.mrb[0].mxu0
      %1390 = vmatprep.mubr.bf16.mxu0 0
      %1391 = vmatmul.mubr.bf16.gmra.mrb[0].mxu0 %v977
      %v1392 = vpop.f32.mrb[0].mxu0
      %v1393 = vadd.f32 %v452, %v1392
      %v1394 = vpop.f32.mrb[0].mxu0
      %v1395 = vpop.f32.mrb[0].mxu0
      %v1396 = vadd.f32 %v452, %v1395
      %v1397 = vpop.f32.mrb[0].mxu0
      %1398 = vmatprep.mubr.bf16.mxu0 0
      %1399 = vmatmul.mubr.bf16.gmra.mrb[0].mxu0 %v978
      %v1400 = vpop.f32.mrb[0].mxu0
      %v1401 = vadd.f32 %v452, %v1400
      %v1402 = vpop.f32.mrb[0].mxu0
      %v1403 = vpop.f32.mrb[0].mxu0
      %v1404 = vadd.f32 %v452, %v1403
      %v1405 = vpop.f32.mrb[0].mxu0
      %1406 = vmatprep.mubr.bf16.mxu0 0
      %1407 = vmatmul.mubr.bf16.gmra.mrb[0].mxu0 %v979
      %v1408 = vpop.f32.mrb[0].mxu0
      %v1409 = vadd.f32 %v452, %v1408
      %v1410 = vpop.f32.mrb[0].mxu0
      %v1411 = vpop.f32.mrb[0].mxu0
      %v1412 = vadd.f32 %v452, %v1411
      %v1413 = vpop.f32.mrb[0].mxu0
      %1414 = vmatprep.mubr.bf16.mxu0 0
      %1415 = vmatmul.mubr.bf16.gmra.mrb[0].mxu0 %v980
      %v1416 = vpop.f32.mrb[0].mxu0
      %v1417 = vadd.f32 %v452, %v1416
      %v1418 = vpop.f32.mrb[0].mxu0
      %v1419 = vpop.f32.mrb[0].mxu0
      %v1420 = vadd.f32 %v452, %v1419
      %v1421 = vpop.f32.mrb[0].mxu0
      %1422 = vmatprep.mubr.bf16.mxu0 0
      %1423 = vmatmul.mubr.bf16.gmra.mrb[0].mxu0 %v981
      %v1424 = vpop.f32.mrb[0].mxu0
      %v1425 = vadd.f32 %v452, %v1424
      %v1426 = vpop.f32.mrb[0].mxu0
      %v1427 = vpop.f32.mrb[0].mxu0
      %v1428 = vadd.f32 %v452, %v1427
      %v1429 = vpop.f32.mrb[0].mxu0
      %1430 = vmatprep.mubr.bf16.mxu0 0
      %1431 = vmatmul.mubr.bf16.gmra.mrb[0].mxu0 %v982
      %v1432 = vpop.f32.mrb[0].mxu0
      %v1433 = vadd.f32 %v452, %v1432
      %v1434 = vpop.f32.mrb[0].mxu0
      %v1435 = vpop.f32.mrb[0].mxu0
      %v1436 = vadd.f32 %v452, %v1435
      %v1437 = vpop.f32.mrb[0].mxu0
      %1438 = vmatprep.mubr.bf16.mxu0 0
      %1439 = vmatmul.mubr.bf16.gmra.mrb[0].mxu0 %v983
      %v1440 = vpop.f32.mrb[0].mxu0
      %v1441 = vadd.f32 %v452, %v1440
      %v1442 = vpop.f32.mrb[0].mxu0
      %v1443 = vpop.f32.mrb[0].mxu0
      %v1444 = vadd.f32 %v452, %v1443
      %v1445 = vpop.f32.mrb[0].mxu0
      %1446 = vmatprep.mubr.bf16.mxu0 0
      %1447 = vmatmul.mubr.bf16.gmra.mrb[0].mxu0 %v984
      %v1448 = vpop.f32.mrb[0].mxu0
      %v1449 = vadd.f32 %v452, %v1448
      %v1450 = vpop.f32.mrb[0].mxu0
      %v1451 = vpop.f32.mrb[0].mxu0
      %v1452 = vadd.f32 %v452, %v1451
      %v1453 = vpop.f32.mrb[0].mxu0
      %1454 = vmatprep.mubr.bf16.mxu0 0
      %1455 = vmatmul.mubr.bf16.gmra.mrb[0].mxu0 %v985
      %v1456 = vpop.f32.mrb[0].mxu0
      %v1457 = vadd.f32 %v452, %v1456
      %v1458 = vpop.f32.mrb[0].mxu0
      %v1459 = vpop.f32.mrb[0].mxu0
      %v1460 = vadd.f32 %v452, %v1459
      %v1461 = vpop.f32.mrb[0].mxu0
      %1462 = vmatprep.mubr.bf16.mxu0 0
      %1463 = vmatmul.mubr.bf16.gmra.mrb[0].mxu0 %v986
      %v1464 = vpop.f32.mrb[0].mxu0
      %v1465 = vadd.f32 %v452, %v1464
      %v1466 = vpop.f32.mrb[0].mxu0
      %v1467 = vpop.f32.mrb[0].mxu0
      %v1468 = vadd.f32 %v452, %v1467
      %v1469 = vpop.f32.mrb[0].mxu0
      %1470 = vmatprep.mubr.bf16.mxu0 0
      %1471 = vmatmul.mubr.bf16.gmra.mrb[0].mxu0 %v987
      %v1472 = vpop.f32.mrb[0].mxu0
      %v1473 = vadd.f32 %v452, %v1472
      %v1474 = vpop.f32.mrb[0].mxu0
      %v1475 = vpop.f32.mrb[0].mxu0
      %v1476 = vadd.f32 %v452, %v1475
      %v1477 = vpop.f32.mrb[0].mxu0
      %1478 = vmatprep.mubr.bf16.mxu0 0
      %1479 = vmatmul.mubr.bf16.gmra.mrb[0].mxu0 %v988
      %v1480 = vpop.f32.mrb[0].mxu0
      %v1481 = vadd.f32 %v452, %v1480
      %v1482 = vpop.f32.mrb[0].mxu0
      %v1483 = vpop.f32.mrb[0].mxu0
      %v1484 = vadd.f32 %v452, %v1483
      %v1485 = vpop.f32.mrb[0].mxu0
      %1486 = vmatprep.mubr.bf16.mxu0 0
      %1487 = vmatmul.mubr.bf16.gmra.mrb[0].mxu0 %v989
      %v1488 = vpop.f32.mrb[0].mxu0
      %v1489 = vadd.f32 %v452, %v1488
      %v1490 = vpop.f32.mrb[0].mxu0
      %v1491 = vpop.f32.mrb[0].mxu0
      %v1492 = vadd.f32 %v452, %v1491
      %v1493 = vpop.f32.mrb[0].mxu0
      %1494 = vmatprep.mubr.bf16.mxu0 0
      %1495 = vmatmul.mubr.bf16.gmra.mrb[0].mxu0 %v990
      %v1496 = vpop.f32.mrb[0].mxu0
      %v1497 = vadd.f32 %v452, %v1496
      %v1498 = vpop.f32.mrb[0].mxu0
      %v1499 = vpop.f32.mrb[0].mxu0
      %v1500 = vadd.f32 %v452, %v1499
      %v1501 = vpop.f32.mrb[0].mxu0
      %1502 = vmatprep.mubr.bf16.mxu0 0
      %1503 = vmatmul.mubr.bf16.gmra.mrb[0].mxu0 %v991
      %v1504 = vpop.f32.mrb[0].mxu0
      %v1505 = vadd.f32 %v452, %v1504
      %v1506 = vpop.f32.mrb[0].mxu0
      %v1507 = vpop.f32.mrb[0].mxu0
      %v1508 = vadd.f32 %v452, %v1507
      %v1509 = vpop.f32.mrb[0].mxu0
      %1510 = vmatprep.mubr.bf16.mxu0 0
      %1511 = vmatmul.mubr.bf16.gmra.mrb[0].mxu0 %v992
      %v1512 = vpop.f32.mrb[0].mxu0
      %v1513 = vadd.f32 %v452, %v1512
      %v1514 = vpop.f32.mrb[0].mxu0
      %v1515 = vpop.f32.mrb[0].mxu0
      %v1516 = vadd.f32 %v452, %v1515
      %v1517 = vpop.f32.mrb[0].mxu0
      %1518 = vmatprep.mubr.bf16.mxu0 0
      %1519 = vmatmul.mubr.bf16.gmra.mrb[0].mxu0 %v993
      %v1520 = vpop.f32.mrb[0].mxu0
      %v1521 = vadd.f32 %v452, %v1520
      %v1522 = vpop.f32.mrb[0].mxu0
      %v1523 = vpop.f32.mrb[0].mxu0
      %v1524 = vadd.f32 %v452, %v1523
      %v1525 = vpop.f32.mrb[0].mxu0
      %1526 = vmatprep.mubr.bf16.mxu0 0
      %1527 = vmatmul.mubr.bf16.gmra.mrb[0].mxu0 %v994
      %v1528 = vpop.f32.mrb[0].mxu0
      %v1529 = vadd.f32 %v452, %v1528
      %v1530 = vpop.f32.mrb[0].mxu0
      %v1531 = vpop.f32.mrb[0].mxu0
      %v1532 = vadd.f32 %v452, %v1531
      %v1533 = vpop.f32.mrb[0].mxu0
      %1534 = vmatprep.mubr.bf16.mxu0 0
      %1535 = vmatmul.mubr.bf16.gmra.mrb[0].mxu0 %v995
      %v1536 = vpop.f32.mrb[0].mxu0
      %v1537 = vadd.f32 %v452, %v1536
      %v1538 = vpop.f32.mrb[0].mxu0
      %v1539 = vpop.f32.mrb[0].mxu0
      %v1540 = vadd.f32 %v452, %v1539
      %v1541 = vpop.f32.mrb[0].mxu0
      %1542 = vmatprep.mubr.bf16.mxu0 0
      %1543 = vmatmul.mubr.bf16.gmra.mrb[0].mxu0 %v996
      %v1544 = vpop.f32.mrb[0].mxu0
      %v1545 = vadd.f32 %v452, %v1544
      %v1546 = vpop.f32.mrb[0].mxu0
      %v1547 = vpop.f32.mrb[0].mxu0
      %v1548 = vadd.f32 %v452, %v1547
      %v1549 = vpop.f32.mrb[0].mxu0
      %1550 = vmatprep.mubr.bf16.mxu0 0
      %1551 = vmatmul.mubr.bf16.gmra.mrb[0].mxu0 %v997
      %v1552 = vpop.f32.mrb[0].mxu0
      %v1553 = vadd.f32 %v452, %v1552
      %v1554 = vpop.f32.mrb[0].mxu0
      %v1555 = vpop.f32.mrb[0].mxu0
      %v1556 = vadd.f32 %v452, %v1555
      %v1557 = vpop.f32.mrb[0].mxu0
      %1558 = vmatprep.mubr.bf16.mxu0 0
      %1559 = vmatmul.mubr.bf16.gmra.mrb[0].mxu0 %v998
      %v1560 = vpop.f32.mrb[0].mxu0
      %v1561 = vadd.f32 %v452, %v1560
      %v1562 = vpop.f32.mrb[0].mxu0
      %v1563 = vpop.f32.mrb[0].mxu0
      %v1564 = vadd.f32 %v452, %v1563
      %v1565 = vpop.f32.mrb[0].mxu0
      %1566 = vmatprep.mubr.bf16.mxu0 0
      %1567 = vmatmul.mubr.bf16.gmra.mrb[0].mxu0 %v999
      %v1568 = vpop.f32.mrb[0].mxu0
      %v1569 = vadd.f32 %v452, %v1568
      %v1570 = vpop.f32.mrb[0].mxu0
      %v1571 = vpop.f32.mrb[0].mxu0
      %v1572 = vadd.f32 %v452, %v1571
      %v1573 = vpop.f32.mrb[0].mxu0
      %1574 = vmatprep.mubr.bf16.mxu0 0
      %1575 = vmatmul.mubr.bf16.gmra.mrb[0].mxu0 %v1000
      %v1576 = vpop.f32.mrb[0].mxu0
      %v1577 = vadd.f32 %v452, %v1576
      %v1578 = vpop.f32.mrb[0].mxu0
      %v1579 = vpop.f32.mrb[0].mxu0
      %v1580 = vadd.f32 %v452, %v1579
      %v1581 = vpop.f32.mrb[0].mxu0
      %1582 = vmatprep.mubr.bf16.mxu0 0
      %1583 = vmatmul.mubr.bf16.gmra.mrb[0].mxu0 %v1001
      %v1584 = vpop.f32.mrb[0].mxu0
      %v1585 = vadd.f32 %v452, %v1584
      %v1586 = vpop.f32.mrb[0].mxu0
      %v1587 = vpop.f32.mrb[0].mxu0
      %v1588 = vadd.f32 %v452, %v1587
      %v1589 = vpop.f32.mrb[0].mxu0
      %1590 = vmatprep.mubr.bf16.mxu0 0
      %1591 = vmatmul.mubr.bf16.gmra.mrb[0].mxu0 %v1002
      %v1592 = vpop.f32.mrb[0].mxu0
      %v1593 = vadd.f32 %v452, %v1592
      %v1594 = vpop.f32.mrb[0].mxu0
      %v1595 = vpop.f32.mrb[0].mxu0
      %v1596 = vadd.f32 %v452, %v1595
      %v1597 = vpop.f32.mrb[0].mxu0
      %1598 = vmatprep.mubr.bf16.mxu0 0
      %1599 = vmatmul.mubr.bf16.gmra.mrb[0].mxu0 %v1003
      %v1600 = vpop.f32.mrb[0].mxu0
      %v1601 = vadd.f32 %v452, %v1600
      %v1602 = vpop.f32.mrb[0].mxu0
      %v1603 = vpop.f32.mrb[0].mxu0
      %v1604 = vadd.f32 %v452, %v1603
      %v1605 = vpop.f32.mrb[0].mxu0
      %1606 = vmatprep.mubr.bf16.mxu0 0
      %1607 = vmatmul.mubr.bf16.gmra.mrb[0].mxu0 %v1004
      %v1608 = vpop.f32.mrb[0].mxu0
      %v1609 = vadd.f32 %v452, %v1608
      %v1610 = vpop.f32.mrb[0].mxu0
      %v1611 = vpop.f32.mrb[0].mxu0
      %v1612 = vadd.f32 %v452, %v1611
      %v1613 = vpop.f32.mrb[0].mxu0
      %1614 = vmatprep.mubr.bf16.mxu0 0
      %1615 = vmatmul.mubr.bf16.gmra.mrb[0].mxu0 %v1005
      %v1616 = vpop.f32.mrb[0].mxu0
      %v1617 = vadd.f32 %v452, %v1616
      %v1618 = vpop.f32.mrb[0].mxu0
      %v1619 = vpop.f32.mrb[0].mxu0
      %v1620 = vadd.f32 %v452, %v1619
      %v1621 = vpop.f32.mrb[0].mxu0
      %1622 = vmatprep.mubr.bf16.mxu0 0
      %1623 = vmatmul.mubr.bf16.gmra.mrb[0].mxu0 %v1006
      %v1624 = vpop.f32.mrb[0].mxu0
      %v1625 = vadd.f32 %v452, %v1624
      %v1626 = vpop.f32.mrb[0].mxu0
      %v1627 = vpop.f32.mrb[0].mxu0
      %v1628 = vadd.f32 %v452, %v1627
      %v1629 = vpop.f32.mrb[0].mxu0
      %1630 = vmatprep.mubr.bf16.mxu0 0
      %1631 = vmatmul.mubr.bf16.gmra.mrb[0].mxu0 %v1007
      %v1632 = vpop.f32.mrb[0].mxu0
      %v1633 = vadd.f32 %v452, %v1632
      %v1634 = vpop.f32.mrb[0].mxu0
      %v1635 = vpop.f32.mrb[0].mxu0
      %v1636 = vadd.f32 %v452, %v1635
      %v1637 = vpop.f32.mrb[0].mxu0
      %1638 = vmatprep.mubr.bf16.mxu0 0
      %1639 = vmatmul.mubr.bf16.gmra.mrb[0].mxu0 %v1008
      %v1640 = vpop.f32.mrb[0].mxu0
      %v1641 = vadd.f32 %v452, %v1640
      %v1642 = vpop.f32.mrb[0].mxu0
      %v1643 = vpop.f32.mrb[0].mxu0
      %v1644 = vadd.f32 %v452, %v1643
      %v1645 = vpop.f32.mrb[0].mxu0
      %1646 = vmatprep.mubr.bf16.mxu0 0
      %1647 = vmatmul.mubr.bf16.gmra.mrb[0].mxu0 %v1009
      %v1648 = vpop.f32.mrb[0].mxu0
      %v1649 = vadd.f32 %v452, %v1648
      %v1650 = vpop.f32.mrb[0].mxu0
      %v1651 = vpop.f32.mrb[0].mxu0
      %v1652 = vadd.f32 %v452, %v1651
      %v1653 = vpop.f32.mrb[0].mxu0
      %1654 = vmatprep.mubr.bf16.mxu0 0
      %1655 = vmatmul.mubr.bf16.gmra.mrb[0].mxu0 %v1010
      %v1656 = vpop.f32.mrb[0].mxu0
      %v1657 = vadd.f32 %v452, %v1656
      %v1658 = vpop.f32.mrb[0].mxu0
      %v1659 = vpop.f32.mrb[0].mxu0
      %v1660 = vadd.f32 %v452, %v1659
      %v1661 = vpop.f32.mrb[0].mxu0
      %1662 = vmatprep.mubr.bf16.mxu0 0
      %1663 = vmatmul.mubr.bf16.gmra.mrb[0].mxu0 %v1011
      %v1664 = vpop.f32.mrb[0].mxu0
      %v1665 = vadd.f32 %v452, %v1664
      %v1666 = vpop.f32.mrb[0].mxu0
      %v1667 = vpop.f32.mrb[0].mxu0
      %v1668 = vadd.f32 %v452, %v1667
      %v1669 = vpop.f32.mrb[0].mxu0
      %1670 = vmatprep.mubr.bf16.mxu0 0
      %1671 = vmatmul.mubr.bf16.gmra.mrb[0].mxu0 %v1012
      %v1672 = vpop.f32.mrb[0].mxu0
      %v1673 = vadd.f32 %v452, %v1672
      %v1674 = vpop.f32.mrb[0].mxu0
      %v1675 = vpop.f32.mrb[0].mxu0
      %v1676 = vadd.f32 %v452, %v1675
      %v1677 = vpop.f32.mrb[0].mxu0
      %1678 = vmatprep.mubr.bf16.mxu0 0
      %1679 = vmatmul.mubr.bf16.gmra.mrb[0].mxu0 %v1013
      %v1680 = vpop.f32.mrb[0].mxu0
      %v1681 = vadd.f32 %v452, %v1680
      %v1682 = vpop.f32.mrb[0].mxu0
      %v1683 = vpop.f32.mrb[0].mxu0
      %v1684 = vadd.f32 %v452, %v1683
      %v1685 = vpop.f32.mrb[0].mxu0
      %1686 = vmatprep.mubr.bf16.mxu0 0
      %1687 = vmatmul.mubr.bf16.gmra.mrb[0].mxu0 %v1014
      %v1688 = vpop.f32.mrb[0].mxu0
      %v1689 = vadd.f32 %v452, %v1688
      %v1690 = vpop.f32.mrb[0].mxu0
      %v1691 = vpop.f32.mrb[0].mxu0
      %v1692 = vadd.f32 %v452, %v1691
      %v1693 = vpop.f32.mrb[0].mxu0
      %1694 = vmatprep.mubr.bf16.mxu0 0
      %1695 = vmatmul.mubr.bf16.gmra.mrb[0].mxu0 %v1015
      %v1696 = vpop.f32.mrb[0].mxu0
      %v1697 = vadd.f32 %v452, %v1696
      %v1698 = vpop.f32.mrb[0].mxu0
      %v1699 = vpop.f32.mrb[0].mxu0
      %v1700 = vadd.f32 %v452, %v1699
      %v1701 = vpop.f32.mrb[0].mxu0
      %1702 = vmatprep.mubr.bf16.mxu0 0
      %1703 = vmatmul.mubr.bf16.gmra.mrb[0].mxu0 %v1016
      %v1704 = vpop.f32.mrb[0].mxu0
      %v1705 = vadd.f32 %v452, %v1704
      %v1706 = vpop.f32.mrb[0].mxu0
      %v1707 = vpop.f32.mrb[0].mxu0
      %v1708 = vadd.f32 %v452, %v1707
      %v1709 = vpop.f32.mrb[0].mxu0
      %1710 = vmatprep.mubr.bf16.mxu0 0
      %1711 = vmatmul.mubr.bf16.gmra.mrb[0].mxu0 %v1017
      %v1712 = vpop.f32.mrb[0].mxu0
      %v1713 = vadd.f32 %v452, %v1712
      %v1714 = vpop.f32.mrb[0].mxu0
      %v1715 = vpop.f32.mrb[0].mxu0
      %v1716 = vadd.f32 %v452, %v1715
      %v1717 = vpop.f32.mrb[0].mxu0
      %1718 = vmatprep.mubr.bf16.mxu0 0
      %1719 = vmatmul.mubr.bf16.gmra.mrb[0].mxu0 %v1018
      %v1720 = vpop.f32.mrb[0].mxu0
      %v1721 = vadd.f32 %v452, %v1720
      %v1722 = vpop.f32.mrb[0].mxu0
      %v1723 = vpop.f32.mrb[0].mxu0
      %v1724 = vadd.f32 %v452, %v1723
      %v1725 = vpop.f32.mrb[0].mxu0
      %1726 = vmatprep.mubr.bf16.mxu0 0
      %1727 = vmatmul.mubr.bf16.gmra.mrb[0].mxu0 %v1019
      %v1728 = vpop.f32.mrb[0].mxu0
      %v1729 = vadd.f32 %v452, %v1728
      %v1730 = vpop.f32.mrb[0].mxu0
      %v1731 = vpop.f32.mrb[0].mxu0
      %v1732 = vadd.f32 %v452, %v1731
      %v1733 = vpop.f32.mrb[0].mxu0
      %1734 = vmatprep.mubr.bf16.mxu0 0
      %1735 = vmatmul.mubr.bf16.gmra.mrb[0].mxu0 %v1020
      %v1736 = vpop.f32.mrb[0].mxu0
      %v1737 = vadd.f32 %v452, %v1736
      %v1738 = vpop.f32.mrb[0].mxu0
      %v1739 = vpop.f32.mrb[0].mxu0
      %v1740 = vadd.f32 %v452, %v1739
      %v1741 = vpop.f32.mrb[0].mxu0
      %1742 = vmatprep.mubr.bf16.mxu0 0
      %1743 = vmatmul.mubr.bf16.gmra.mrb[0].mxu0 %v1021
      %v1744 = vpop.f32.mrb[0].mxu0
      %v1745 = vadd.f32 %v452, %v1744
      %v1746 = vpop.f32.mrb[0].mxu0
      %v1747 = vpop.f32.mrb[0].mxu0
      %v1748 = vadd.f32 %v452, %v1747
      %v1749 = vpop.f32.mrb[0].mxu0
      %1750 = vmatprep.mubr.bf16.mxu0 0
      %1751 = vmatmul.mubr.bf16.gmra.mrb[0].mxu0 %v1022
      %v1752 = vpop.f32.mrb[0].mxu0
      %v1753 = vadd.f32 %v452, %v1752
      %v1754 = vpop.f32.mrb[0].mxu0
      %v1755 = vpop.f32.mrb[0].mxu0
      %v1756 = vadd.f32 %v452, %v1755
      %v1757 = vpop.f32.mrb[0].mxu0
      %1758 = vmatprep.mubr.bf16.mxu0 0
      %1759 = vmatmul.mubr.bf16.gmra.mrb[0].mxu0 %v1023
      %v1760 = vpop.f32.mrb[0].mxu0
      %v1761 = vadd.f32 %v452, %v1760
      %v1762 = vpop.f32.mrb[0].mxu0
      %v1763 = vpop.f32.mrb[0].mxu0
      %v1764 = vadd.f32 %v452, %v1763
      %v1765 = vpop.f32.mrb[0].mxu0
      %1766 = vmatprep.mubr.bf16.mxu0 0
      %1767 = vmatmul.mubr.bf16.gmra.mrb[0].mxu0 %v1024
      %v1768 = vpop.f32.mrb[0].mxu0
      %v1769 = vadd.f32 %v452, %v1768
      %v1770 = vpop.f32.mrb[0].mxu0
      %v1771 = vpop.f32.mrb[0].mxu0
      %v1772 = vadd.f32 %v452, %v1771
      %v1773 = vpop.f32.mrb[0].mxu0
      %1774 = vmatprep.mubr.bf16.mxu0 0
      %1775 = vmatmul.mubr.bf16.gmra.mrb[0].mxu0 %v1025
      %v1776 = vpop.f32.mrb[0].mxu0
      %v1777 = vadd.f32 %v452, %v1776
      %v1778 = vpop.f32.mrb[0].mxu0
      %v1779 = vpop.f32.mrb[0].mxu0
      %v1780 = vadd.f32 %v452, %v1779
      %v1781 = vpop.f32.mrb[0].mxu0
      %1782 = vmatprep.mubr.bf16.mxu0 0
      %1783 = vmatmul.mubr.bf16.gmra.mrb[0].mxu0 %v1026
      %v1784 = vpop.f32.mrb[0].mxu0
      %v1785 = vadd.f32 %v452, %v1784
      %v1786 = vpop.f32.mrb[0].mxu0
      %v1787 = vpop.f32.mrb[0].mxu0
      %v1788 = vadd.f32 %v452, %v1787
      %v1789 = vpop.f32.mrb[0].mxu0
      %1790 = vmatprep.mubr.bf16.mxu0 0
      %1791 = vmatmul.mubr.bf16.gmra.mrb[0].mxu0 %v1027
      %v1792 = vpop.f32.mrb[0].mxu0
      %v1793 = vadd.f32 %v452, %v1792
      %v1794 = vpop.f32.mrb[0].mxu0
      %v1795 = vpop.f32.mrb[0].mxu0
      %v1796 = vadd.f32 %v452, %v1795
      %v1797 = vpop.f32.mrb[0].mxu0
      %1798 = vmatprep.mubr.bf16.mxu0 0
      %1799 = vmatmul.mubr.bf16.gmra.mrb[0].mxu0 %v1028
      %v1800 = vpop.f32.mrb[0].mxu0
      %v1801 = vadd.f32 %v452, %v1800
      %v1802 = vpop.f32.mrb[0].mxu0
      %v1803 = vpop.f32.mrb[0].mxu0
      %v1804 = vadd.f32 %v452, %v1803
      %v1805 = vpop.f32.mrb[0].mxu0
      %1806 = vmatprep.mubr.bf16.mxu0 0
      %1807 = vmatmul.mubr.bf16.gmra.mrb[0].mxu0 %v1029
      %v1808 = vpop.f32.mrb[0].mxu0
      %v1809 = vadd.f32 %v452, %v1808
      %v1810 = vpop.f32.mrb[0].mxu0
      %v1811 = vpop.f32.mrb[0].mxu0
      %v1812 = vadd.f32 %v452, %v1811
      %v1813 = vpop.f32.mrb[0].mxu0
      %1814 = vmatprep.mubr.bf16.mxu0 0
      %1815 = vmatmul.mubr.bf16.gmra.mrb[0].mxu0 %v1030
      %v1816 = vpop.f32.mrb[0].mxu0
      %v1817 = vadd.f32 %v452, %v1816
      %v1818 = vpop.f32.mrb[0].mxu0
      %v1819 = vpop.f32.mrb[0].mxu0
      %v1820 = vadd.f32 %v452, %v1819
      %v1821 = vpop.f32.mrb[0].mxu0
      %1822 = vmatprep.mubr.bf16.mxu0 0
      %1823 = vmatmul.mubr.bf16.gmra.mrb[0].mxu0 %v1031
      %v1824 = vpop.f32.mrb[0].mxu0
      %v1825 = vadd.f32 %v452, %v1824
      %v1826 = vpop.f32.mrb[0].mxu0
      %v1827 = vpop.f32.mrb[0].mxu0
      %v1828 = vadd.f32 %v452, %v1827
      %v1829 = vpop.f32.mrb[0].mxu0
      %1830 = vmatprep.mubr.bf16.mxu0 0
      %1831 = vmatmul.mubr.bf16.gmra.mrb[0].mxu0 %v1032
      %v1832 = vpop.f32.mrb[0].mxu0
      %v1833 = vadd.f32 %v452, %v1832
      %v1834 = vpop.f32.mrb[0].mxu0
      %v1835 = vpop.f32.mrb[0].mxu0
      %v1836 = vadd.f32 %v452, %v1835
      %v1837 = vpop.f32.mrb[0].mxu0
      %1838 = vmatprep.mubr.bf16.mxu0 0
      %1839 = vmatmul.mubr.bf16.gmra.mrb[0].mxu0 %v1033
      %v1840 = vpop.f32.mrb[0].mxu0
      %v1841 = vadd.f32 %v452, %v1840
      %v1842 = vpop.f32.mrb[0].mxu0
      %v1843 = vpop.f32.mrb[0].mxu0
      %v1844 = vadd.f32 %v452, %v1843
      %v1845 = vpop.f32.mrb[0].mxu0
      %1846 = vmatprep.mubr.bf16.mxu0 0
      %1847 = vmatmul.mubr.bf16.gmra.mrb[0].mxu0 %v1034
      %v1848 = vpop.f32.mrb[0].mxu0
      %v1849 = vadd.f32 %v452, %v1848
      %v1850 = vpop.f32.mrb[0].mxu0
      %v1851 = vpop.f32.mrb[0].mxu0
      %v1852 = vadd.f32 %v452, %v1851
      %v1853 = vpop.f32.mrb[0].mxu0
      %1854 = vmatprep.mubr.bf16.mxu0 0
      %1855 = vmatmul.mubr.bf16.gmra.mrb[0].mxu0 %v1035
      %v1856 = vpop.f32.mrb[0].mxu0
      %v1857 = vadd.f32 %v452, %v1856
      %v1858 = vpop.f32.mrb[0].mxu0
      %v1859 = vpop.f32.mrb[0].mxu0
      %v1860 = vadd.f32 %v452, %v1859
      %v1861 = vpop.f32.mrb[0].mxu0
      %1862 = vmatprep.mubr.bf16.mxu0 0
      %1863 = vmatmul.mubr.bf16.gmra.mrb[0].mxu0 %v1036
      %v1864 = vpop.f32.mrb[0].mxu0
      %v1865 = vadd.f32 %v452, %v1864
      %v1866 = vpop.f32.mrb[0].mxu0
      %v1867 = vpop.f32.mrb[0].mxu0
      %v1868 = vadd.f32 %v452, %v1867
      %v1869 = vpop.f32.mrb[0].mxu0
      %1870 = vmatprep.mubr.bf16.mxu0 0
      %1871 = vmatmul.mubr.bf16.gmra.mrb[0].mxu0 %v1037
      %v1872 = vpop.f32.mrb[0].mxu0
      %v1873 = vadd.f32 %v452, %v1872
      %v1874 = vpop.f32.mrb[0].mxu0
      %v1875 = vpop.f32.mrb[0].mxu0
      %v1876 = vadd.f32 %v452, %v1875
      %v1877 = vpop.f32.mrb[0].mxu0
      %1878 = vmatprep.mubr.bf16.mxu0 0
      %1879 = vmatmul.mubr.bf16.gmra.mrb[0].mxu0 %v1038
      %v1880 = vpop.f32.mrb[0].mxu0
      %v1881 = vadd.f32 %v452, %v1880
      %v1882 = vpop.f32.mrb[0].mxu0
      %v1883 = vpop.f32.mrb[0].mxu0
      %v1884 = vadd.f32 %v452, %v1883
      %v1885 = vpop.f32.mrb[0].mxu0
      %1886 = vmatprep.mubr.bf16.mxu0 0
      %1887 = vmatmul.mubr.bf16.gmra.mrb[0].mxu0 %v1039
      %v1888 = vpop.f32.mrb[0].mxu0
      %v1889 = vadd.f32 %v452, %v1888
      %v1890 = vpop.f32.mrb[0].mxu0
      %v1891 = vpop.f32.mrb[0].mxu0
      %v1892 = vadd.f32 %v452, %v1891
      %v1893 = vpop.f32.mrb[0].mxu0
      %1894 = vmatprep.mubr.bf16.mxu0 0
      %1895 = vmatmul.mubr.bf16.gmra.mrb[0].mxu0 %v1040
      %v1896 = vpop.f32.mrb[0].mxu0
      %v1897 = vadd.f32 %v452, %v1896
      %v1898 = vpop.f32.mrb[0].mxu0
      %v1899 = vpop.f32.mrb[0].mxu0
      %v1900 = vadd.f32 %v452, %v1899
      %v1901 = vpop.f32.mrb[0].mxu0
      %1902 = vmatprep.mubr.bf16.mxu0 0
      %1903 = vmatmul.mubr.bf16.gmra.mrb[0].mxu0 %v1041
      %v1904 = vpop.f32.mrb[0].mxu0
      %v1905 = vadd.f32 %v452, %v1904
      %v1906 = vpop.f32.mrb[0].mxu0
      %v1907 = vpop.f32.mrb[0].mxu0
      %v1908 = vadd.f32 %v452, %v1907
      %v1909 = vpop.f32.mrb[0].mxu0
      %1910 = vmatprep.mubr.bf16.mxu0 0
      %1911 = vmatmul.mubr.bf16.gmra.mrb[0].mxu0 %v1042
      %v1912 = vpop.f32.mrb[0].mxu0
      %v1913 = vadd.f32 %v452, %v1912
      %v1914 = vpop.f32.mrb[0].mxu0
      %v1915 = vpop.f32.mrb[0].mxu0
      %v1916 = vadd.f32 %v452, %v1915
      %v1917 = vpop.f32.mrb[0].mxu0
      %1918 = vmatprep.mubr.bf16.mxu0 0
      %1919 = vmatmul.mubr.bf16.gmra.mrb[0].mxu0 %v1043
      %v1920 = vpop.f32.mrb[0].mxu0
      %v1921 = vadd.f32 %v452, %v1920
      %v1922 = vpop.f32.mrb[0].mxu0
      %v1923 = vpop.f32.mrb[0].mxu0
      %v1924 = vadd.f32 %v452, %v1923
      %v1925 = vpop.f32.mrb[0].mxu0
      %1926 = vmatprep.mubr.bf16.mxu0 0
      %1927 = vmatmul.mubr.bf16.gmra.mrb[0].mxu0 %v1044
      %v1928 = vpop.f32.mrb[0].mxu0
      %v1929 = vadd.f32 %v452, %v1928
      %v1930 = vpop.f32.mrb[0].mxu0
      %v1931 = vpop.f32.mrb[0].mxu0
      %v1932 = vadd.f32 %v452, %v1931
      %v1933 = vpop.f32.mrb[0].mxu0
      %1934 = vmatprep.mubr.bf16.mxu0 0
      %1935 = vmatmul.mubr.bf16.gmra.mrb[0].mxu0 %v1045
      %v1936 = vpop.f32.mrb[0].mxu0
      %v1937 = vadd.f32 %v452, %v1936
      %v1938 = vpop.f32.mrb[0].mxu0
      %v1939 = vpop.f32.mrb[0].mxu0
      %v1940 = vadd.f32 %v452, %v1939
      %v1941 = vpop.f32.mrb[0].mxu0
      %1942 = vmatprep.mubr.bf16.mxu0 0
      %1943 = vmatmul.mubr.bf16.gmra.mrb[0].mxu0 %v1046
      %v1944 = vpop.f32.mrb[0].mxu0
      %v1945 = vadd.f32 %v452, %v1944
      %v1946 = vpop.f32.mrb[0].mxu0
      %v1947 = vpop.f32.mrb[0].mxu0
      %v1948 = vadd.f32 %v452, %v1947
      %v1949 = vpop.f32.mrb[0].mxu0
      %1950 = vmatprep.mubr.bf16.mxu0 0
      %1951 = vmatmul.mubr.bf16.gmra.mrb[0].mxu0 %v1047
      %v1952 = vpop.f32.mrb[0].mxu0
      %v1953 = vadd.f32 %v452, %v1952
      %v1954 = vpop.f32.mrb[0].mxu0
      %v1955 = vpop.f32.mrb[0].mxu0
      %v1956 = vadd.f32 %v452, %v1955
      %v1957 = vpop.f32.mrb[0].mxu0
      %1958 = vmatprep.mubr.bf16.mxu0 0
      %1959 = vmatmul.mubr.bf16.gmra.mrb[0].mxu0 %v1048
      %v1960 = vpop.f32.mrb[0].mxu0
      %v1961 = vadd.f32 %v452, %v1960
      %v1962 = vpop.f32.mrb[0].mxu0
      %v1963 = vpop.f32.mrb[0].mxu0
      %v1964 = vadd.f32 %v452, %v1963
      %v1965 = vpop.f32.mrb[0].mxu0
      %1966 = vmatprep.mubr.bf16.mxu0 0
      %1967 = vmatmul.mubr.bf16.gmra.mrb[0].mxu0 %v1049
      %v1968 = vpop.f32.mrb[0].mxu0
      %v1969 = vadd.f32 %v452, %v1968
      %v1970 = vpop.f32.mrb[0].mxu0
      %v1971 = vpop.f32.mrb[0].mxu0
      %v1972 = vadd.f32 %v452, %v1971
      %v1973 = vpop.f32.mrb[0].mxu0
      %1974 = vmatprep.mubr.bf16.mxu0 0
      %1975 = vmatmul.mubr.bf16.gmra.mrb[0].mxu0 %v1050
      %v1976 = vpop.f32.mrb[0].mxu0
      %v1977 = vadd.f32 %v452, %v1976
      %v1978 = vpop.f32.mrb[0].mxu0
      %v1979 = vpop.f32.mrb[0].mxu0
      %v1980 = vadd.f32 %v452, %v1979
      %v1981 = vpop.f32.mrb[0].mxu0
      %1982 = vmatprep.mubr.bf16.mxu0 0
      %1983 = vmatmul.mubr.bf16.gmra.mrb[0].mxu0 %v1051
      %v1984 = vpop.f32.mrb[0].mxu0
      %v1985 = vadd.f32 %v452, %v1984
      %v1986 = vpop.f32.mrb[0].mxu0
      %v1987 = vpop.f32.mrb[0].mxu0
      %v1988 = vadd.f32 %v452, %v1987
      %v1989 = vpop.f32.mrb[0].mxu0
      %1990 = vmatprep.mubr.bf16.mxu0 0
      %1991 = vmatmul.mubr.bf16.gmra.mrb[0].mxu0 %v1052
      %v1992 = vpop.f32.mrb[0].mxu0
      %v1993 = vadd.f32 %v452, %v1992
      %v1994 = vpop.f32.mrb[0].mxu0
      %v1995 = vpop.f32.mrb[0].mxu0
      %v1996 = vadd.f32 %v452, %v1995
      %v1997 = vpop.f32.mrb[0].mxu0
      %1998 = vmatprep.mubr.bf16.mxu0 0
      %1999 = vmatmul.mubr.bf16.gmra.mrb[0].mxu0 %v1053
      %v2000 = vpop.f32.mrb[0].mxu0
      %v2001 = vadd.f32 %v452, %v2000
      %v2002 = vpop.f32.mrb[0].mxu0
      %v2003 = vpop.f32.mrb[0].mxu0
      %v2004 = vadd.f32 %v452, %v2003
      %v2005 = vpop.f32.mrb[0].mxu0
      %2006 = vmatprep.mubr.bf16.mxu0 0
      %2007 = vmatmul.mubr.bf16.gmra.mrb[0].mxu0 %v1054
      %v2008 = vpop.f32.mrb[0].mxu0
      %v2009 = vadd.f32 %v452, %v2008
      %v2010 = vpop.f32.mrb[0].mxu0
      %v2011 = vpop.f32.mrb[0].mxu0
      %v2012 = vadd.f32 %v452, %v2011
      %v2013 = vpop.f32.mrb[0].mxu0
      %2014 = vmatprep.mubr.bf16.mxu0 0
      %2015 = vmatmul.mubr.bf16.gmra.mrb[0].mxu0 %v1055
      %v2016 = vpop.f32.mrb[0].mxu0
      %v2017 = vadd.f32 %v452, %v2016
      %v2018 = vpop.f32.mrb[0].mxu0
      %v2019 = vpop.f32.mrb[0].mxu0
      %v2020 = vadd.f32 %v452, %v2019
      %v2021 = vpop.f32.mrb[0].mxu0
      %2022 = vmatprep.mubr.bf16.mxu0 0
      %2023 = vmatmul.mubr.bf16.gmra.mrb[0].mxu0 %v1056
      %v2024 = vpop.f32.mrb[0].mxu0
      %v2025 = vadd.f32 %v452, %v2024
      %v2026 = vpop.f32.mrb[0].mxu0
      %v2027 = vpop.f32.mrb[0].mxu0
      %v2028 = vadd.f32 %v452, %v2027
      %v2029 = vpop.f32.mrb[0].mxu0
      %2030 = vmatprep.mubr.bf16.mxu0 0
      %2031 = vmatmul.mubr.bf16.gmra.mrb[0].mxu0 %v1057
      %v2032 = vpop.f32.mrb[0].mxu0
      %v2033 = vadd.f32 %v452, %v2032
      %v2034 = vpop.f32.mrb[0].mxu0
      %v2035 = vpop.f32.mrb[0].mxu0
      %v2036 = vadd.f32 %v452, %v2035
      %v2037 = vpop.f32.mrb[0].mxu0
      %2038 = vmatprep.mubr.bf16.mxu0 0
      %2039 = vmatmul.mubr.bf16.gmra.mrb[0].mxu0 %v1058
      %v2040 = vpop.f32.mrb[0].mxu0
      %v2041 = vadd.f32 %v452, %v2040
      %v2042 = vpop.f32.mrb[0].mxu0
      %v2043 = vpop.f32.mrb[0].mxu0
      %v2044 = vadd.f32 %v452, %v2043
      %v2045 = vpop.f32.mrb[0].mxu0
      %2046 = vmatprep.mubr.bf16.mxu0 0
      %2047 = vmatmul.mubr.bf16.gmra.mrb[0].mxu0 %v1059
      %v2048 = vpop.f32.mrb[0].mxu0
      %v2049 = vadd.f32 %v452, %v2048
      %v2050 = vpop.f32.mrb[0].mxu0
      %v2051 = vpop.f32.mrb[0].mxu0
      %v2052 = vadd.f32 %v452, %v2051
      %v2053 = vpop.f32.mrb[0].mxu0
      %2054 = vmatprep.mubr.bf16.mxu0 0
      %2055 = vmatmul.mubr.bf16.gmra.mrb[0].mxu0 %v1060
      %v2056 = vpop.f32.mrb[0].mxu0
      %v2057 = vadd.f32 %v452, %v2056
      %v2058 = vpop.f32.mrb[0].mxu0
      %v2059 = vpop.f32.mrb[0].mxu0
      %v2060 = vadd.f32 %v452, %v2059
      %v2061 = vpop.f32.mrb[0].mxu0
      %2062 = vmatprep.mubr.bf16.mxu0 0
      %2063 = vmatmul.mubr.bf16.gmra.mrb[0].mxu0 %v1061
      %v2064 = vpop.f32.mrb[0].mxu0
      %v2065 = vadd.f32 %v452, %v2064
      %v2066 = vpop.f32.mrb[0].mxu0
      %v2067 = vpop.f32.mrb[0].mxu0
      %v2068 = vadd.f32 %v452, %v2067
      %v2069 = vpop.f32.mrb[0].mxu0
      %2070 = vmatprep.mubr.bf16.mxu0 0
      %2071 = vmatmul.mubr.bf16.gmra.mrb[0].mxu0 %v1062
      %v2072 = vpop.f32.mrb[0].mxu0
      %v2073 = vadd.f32 %v452, %v2072
      %v2074 = vpop.f32.mrb[0].mxu0
      %v2075 = vpop.f32.mrb[0].mxu0
      %v2076 = vadd.f32 %v452, %v2075
      %v2077 = vpop.f32.mrb[0].mxu0
      %2078 = vmatprep.mubr.bf16.mxu0 0
      %2079 = vmatmul.mubr.bf16.gmra.mrb[0].mxu0 %v1063
      %v2080 = vpop.f32.mrb[0].mxu0
      %v2081 = vadd.f32 %v452, %v2080
      %v2082 = vpop.f32.mrb[0].mxu0
      %v2083 = vpop.f32.mrb[0].mxu0
      %v2084 = vadd.f32 %v452, %v2083
      %v2085 = vpop.f32.mrb[0].mxu0
      %2086 = vmatprep.mubr.bf16.mxu0 0
      %2087 = vmatmul.mubr.bf16.gmra.mrb[0].mxu0 %v1064
      %v2088 = vpop.f32.mrb[0].mxu0
      %v2089 = vadd.f32 %v452, %v2088
      %v2090 = vpop.f32.mrb[0].mxu0
      %v2091 = vpop.f32.mrb[0].mxu0
      %v2092 = vadd.f32 %v452, %v2091
      %v2093 = vpop.f32.mrb[0].mxu0
      %2094 = vmatprep.mubr.bf16.mxu0 0
      %2095 = vmatmul.mubr.bf16.gmra.mrb[0].mxu0 %v1065
      %v2096 = vpop.f32.mrb[0].mxu0
      %v2097 = vadd.f32 %v452, %v2096
      %v2098 = vpop.f32.mrb[0].mxu0
      %v2099 = vpop.f32.mrb[0].mxu0
      %v2100 = vadd.f32 %v452, %v2099
      %v2101 = vpop.f32.mrb[0].mxu0
      %2102 = vmatprep.mubr.bf16.mxu0 0
      %2103 = vmatmul.mubr.bf16.gmra.mrb[0].mxu0 %v1066
      %v2104 = vpop.f32.mrb[0].mxu0
      %v2105 = vadd.f32 %v452, %v2104
      %v2106 = vpop.f32.mrb[0].mxu0
      %v2107 = vpop.f32.mrb[0].mxu0
      %v2108 = vadd.f32 %v452, %v2107
      %v2109 = vpop.f32.mrb[0].mxu0
      %2110 = vmatprep.mubr.bf16.mxu0 0
      %2111 = vmatmul.mubr.bf16.gmra.mrb[0].mxu0 %v1067
      %v2112 = vpop.f32.mrb[0].mxu0
      %v2113 = vadd.f32 %v452, %v2112
      %v2114 = vpop.f32.mrb[0].mxu0
      %v2115 = vpop.f32.mrb[0].mxu0
      %v2116 = vadd.f32 %v452, %v2115
      %v2117 = vpop.f32.mrb[0].mxu0
      %2118 = vmatprep.mubr.bf16.mxu0 0
      %2119 = vmatmul.mubr.bf16.gmra.mrb[0].mxu0 %v1068
      %v2120 = vpop.f32.mrb[0].mxu0
      %v2121 = vadd.f32 %v452, %v2120
      %v2122 = vpop.f32.mrb[0].mxu0
      %v2123 = vpop.f32.mrb[0].mxu0
      %v2124 = vadd.f32 %v452, %v2123
      %v2125 = vpop.f32.mrb[0].mxu0
      %2126 = vmatprep.mubr.bf16.mxu0 0
      %2127 = vmatmul.mubr.bf16.gmra.mrb[0].mxu0 %v1069
      %v2128 = vpop.f32.mrb[0].mxu0
      %v2129 = vadd.f32 %v452, %v2128
      %v2130 = vpop.f32.mrb[0].mxu0
      %v2131 = vpop.f32.mrb[0].mxu0
      %v2132 = vadd.f32 %v452, %v2131
      %v2133 = vpop.f32.mrb[0].mxu0
      %2134 = vmatprep.mubr.bf16.mxu0 0
      %2135 = vmatmul.mubr.bf16.gmra.mrb[0].mxu0 %v1070
      %v2136 = vpop.f32.mrb[0].mxu0
      %v2137 = vadd.f32 %v452, %v2136
      %v2138 = vpop.f32.mrb[0].mxu0
      %v2139 = vpop.f32.mrb[0].mxu0
      %v2140 = vadd.f32 %v452, %v2139
      %v2141 = vpop.f32.mrb[0].mxu0
      %2142 = vmatprep.mubr.bf16.mxu0 0
      %2143 = vmatmul.mubr.bf16.gmra.mrb[0].mxu0 %v1071
      %v2144 = vpop.f32.mrb[0].mxu0
      %v2145 = vadd.f32 %v452, %v2144
      %v2146 = vpop.f32.mrb[0].mxu0
      %v2147 = vpop.f32.mrb[0].mxu0
      %v2148 = vadd.f32 %v452, %v2147
      %v2149 = vpop.f32.mrb[0].mxu0
      %2150 = vmatprep.mubr.bf16.mxu0 0
      %2151 = vmatmul.mubr.bf16.gmra.mrb[0].mxu0 %v1072
      %v2152 = vpop.f32.mrb[0].mxu0
      %v2153 = vadd.f32 %v452, %v2152
      %v2154 = vpop.f32.mrb[0].mxu0
      %v2155 = vpop.f32.mrb[0].mxu0
      %v2156 = vadd.f32 %v452, %v2155
      %v2157 = vpop.f32.mrb[0].mxu0
      %2158 = vmatprep.mubr.bf16.mxu0 0
      %2159 = vmatmul.mubr.bf16.gmra.mrb[0].mxu0 %v1073
      %v2160 = vpop.f32.mrb[0].mxu0
      %v2161 = vadd.f32 %v452, %v2160
      %v2162 = vpop.f32.mrb[0].mxu0
      %v2163 = vpop.f32.mrb[0].mxu0
      %v2164 = vadd.f32 %v452, %v2163
      %v2165 = vpop.f32.mrb[0].mxu0
      %2166 = vmatprep.mubr.bf16.mxu0 0
      %2167 = vmatmul.mubr.bf16.gmra.mrb[0].mxu0 %v1074
      %v2168 = vpop.f32.mrb[0].mxu0
      %v2169 = vadd.f32 %v452, %v2168
      %v2170 = vpop.f32.mrb[0].mxu0
      %v2171 = vpop.f32.mrb[0].mxu0
      %v2172 = vadd.f32 %v452, %v2171
      %v2173 = vpop.f32.mrb[0].mxu0
      %2174 = vmatprep.mubr.bf16.mxu0 0
      %2175 = vmatmul.mubr.bf16.gmra.mrb[0].mxu0 %v1075
      %v2176 = vpop.f32.mrb[0].mxu0
      %v2177 = vadd.f32 %v452, %v2176
      %v2178 = vpop.f32.mrb[0].mxu0
      %v2179 = vpop.f32.mrb[0].mxu0
      %v2180 = vadd.f32 %v452, %v2179
      %v2181 = vpop.f32.mrb[0].mxu0
      %2182 = vmatprep.mubr.bf16.mxu0 0
      %2183 = vmatmul.mubr.bf16.gmra.mrb[0].mxu0 %v1076
      %v2184 = vpop.f32.mrb[0].mxu0
      %v2185 = vadd.f32 %v452, %v2184
      %v2186 = vpop.f32.mrb[0].mxu0
      %v2187 = vpop.f32.mrb[0].mxu0
      %v2188 = vadd.f32 %v452, %v2187
      %v2189 = vpop.f32.mrb[0].mxu0
      %2190 = vmatprep.mubr.bf16.mxu0 0
      %2191 = vmatmul.mubr.bf16.gmra.mrb[0].mxu0 %v1077
      %v2192 = vpop.f32.mrb[0].mxu0
      %v2193 = vadd.f32 %v452, %v2192
      %v2194 = vpop.f32.mrb[0].mxu0
      %v2195 = vpop.f32.mrb[0].mxu0
      %v2196 = vadd.f32 %v452, %v2195
      %v2197 = vpop.f32.mrb[0].mxu0
      %2198 = vmatprep.mubr.bf16.mxu0 0
      %2199 = vmatmul.mubr.bf16.gmra.mrb[0].mxu0 %v1078
      %v2200 = vpop.f32.mrb[0].mxu0
      %v2201 = vadd.f32 %v452, %v2200
      %v2202 = vpop.f32.mrb[0].mxu0
      %v2203 = vpop.f32.mrb[0].mxu0
      %v2204 = vadd.f32 %v452, %v2203
      %v2205 = vpop.f32.mrb[0].mxu0
      %2206 = vmatprep.mubr.bf16.mxu0 0
      %2207 = vmatmul.mubr.bf16.gmra.mrb[0].mxu0 %v1079
      %v2208 = vpop.f32.mrb[0].mxu0
      %v2209 = vadd.f32 %v452, %v2208
      %v2210 = vpop.f32.mrb[0].mxu0
      %v2211 = vpop.f32.mrb[0].mxu0
      %v2212 = vadd.f32 %v452, %v2211
      %v2213 = vpop.f32.mrb[0].mxu0
      %2214 = vmatprep.mubr.bf16.mxu0 0
      %2215 = vmatmul.mubr.bf16.gmra.mrb[0].mxu0 %v1080
      %v2216 = vpop.f32.mrb[0].mxu0
      %v2217 = vadd.f32 %v452, %v2216
      %v2218 = vpop.f32.mrb[0].mxu0
      %v2219 = vpop.f32.mrb[0].mxu0
      %v2220 = vadd.f32 %v452, %v2219
      %v2221 = vpop.f32.mrb[0].mxu0
      %2222 = vmatprep.mubr.bf16.mxu0 0
      %2223 = vmatmul.mubr.bf16.gmra.mrb[0].mxu0 %v1081
      %v2224 = vpop.f32.mrb[0].mxu0
      %v2225 = vadd.f32 %v452, %v2224
      %v2226 = vpop.f32.mrb[0].mxu0
      %v2227 = vpop.f32.mrb[0].mxu0
      %v2228 = vadd.f32 %v452, %v2227
      %v2229 = vpop.f32.mrb[0].mxu0
      %2230 = vmatprep.mubr.bf16.mxu0 0
      %2231 = vmatmul.mubr.bf16.gmra.mrb[0].mxu0 %v1082
      %v2232 = vpop.f32.mrb[0].mxu0
      %v2233 = vadd.f32 %v452, %v2232
      %v2234 = vpop.f32.mrb[0].mxu0
      %v2235 = vpop.f32.mrb[0].mxu0
      %v2236 = vadd.f32 %v452, %v2235
      %v2237 = vpop.f32.mrb[0].mxu0
      %2238 = vmatprep.mubr.bf16.mxu0 0
      %2239 = vmatmul.mubr.bf16.gmra.mrb[0].mxu0 %v1083
      %v2240 = vpop.f32.mrb[0].mxu0
      %v2241 = vadd.f32 %v452, %v2240
      %v2242 = vpop.f32.mrb[0].mxu0
      %v2243 = vpop.f32.mrb[0].mxu0
      %v2244 = vadd.f32 %v452, %v2243
      %v2245 = vpop.f32.mrb[0].mxu0
      %2246 = vmatprep.mubr.bf16.mxu0 0
      %2247 = vmatmul.mubr.bf16.gmra.mrb[0].mxu0 %v1084
      %v2248 = vpop.f32.mrb[0].mxu0
      %v2249 = vadd.f32 %v452, %v2248
      %v2250 = vpop.f32.mrb[0].mxu0
      %v2251 = vpop.f32.mrb[0].mxu0
      %v2252 = vadd.f32 %v452, %v2251
      %v2253 = vpop.f32.mrb[0].mxu0
      %2254 = vmatprep.mubr.bf16.mxu0 0
      %2255 = vmatmul.mubr.bf16.gmra.mrb[0].mxu0 %v1085
      %v2256 = vpop.f32.mrb[0].mxu0
      %v2257 = vadd.f32 %v452, %v2256
      %v2258 = vpop.f32.mrb[0].mxu0
      %v2259 = vpop.f32.mrb[0].mxu0
      %v2260 = vadd.f32 %v452, %v2259
      %v2261 = vpop.f32.mrb[0].mxu0
      %2262 = vmatprep.mubr.bf16.mxu0 0
      %2263 = vmatmul.mubr.bf16.gmra.mrb[0].mxu0 %v1086
      %v2264 = vpop.f32.mrb[0].mxu0
      %v2265 = vadd.f32 %v452, %v2264
      %v2266 = vpop.f32.mrb[0].mxu0
      %v2267 = vpop.f32.mrb[0].mxu0
      %v2268 = vadd.f32 %v452, %v2267
      %v2269 = vpop.f32.mrb[0].mxu0
      %2270 = vmatprep.mubr.bf16.mxu0 0
      %2271 = vmatmul.mubr.bf16.gmra.mrb[0].mxu0 %v1087
      %v2272 = vpop.f32.mrb[0].mxu0
      %v2273 = vadd.f32 %v452, %v2272
      %v2274 = vpop.f32.mrb[0].mxu0
      %v2275 = vpop.f32.mrb[0].mxu0
      %v2276 = vadd.f32 %v452, %v2275
      %v2277 = vpop.f32.mrb[0].mxu0
      %2278 = vmatprep.mubr.bf16.mxu0 0
      %2279 = vmatmul.mubr.bf16.gmra.mrb[0].mxu0 %v1088
      %v2280 = vpop.f32.mrb[0].mxu0
      %v2281 = vadd.f32 %v452, %v2280
      %v2282 = vpop.f32.mrb[0].mxu0
      %v2283 = vpop.f32.mrb[0].mxu0
      %v2284 = vadd.f32 %v452, %v2283
      %v2285 = vpop.f32.mrb[0].mxu0
      %2286 = vmatprep.mubr.bf16.mxu0 0
      %2287 = vmatmul.mubr.bf16.gmra.mrb[0].mxu0 %v1089
      %v2288 = vpop.f32.mrb[0].mxu0
      %v2289 = vadd.f32 %v452, %v2288
      %v2290 = vpop.f32.mrb[0].mxu0
      %v2291 = vpop.f32.mrb[0].mxu0
      %v2292 = vadd.f32 %v452, %v2291
      %v2293 = vpop.f32.mrb[0].mxu0
      %2294 = vmatprep.mubr.bf16.mxu0 0
      %2295 = vmatmul.mubr.bf16.gmra.mrb[0].mxu0 %v1090
      %v2296 = vpop.f32.mrb[0].mxu0
      %v2297 = vadd.f32 %v452, %v2296
      %v2298 = vpop.f32.mrb[0].mxu0
      %v2299 = vpop.f32.mrb[0].mxu0
      %v2300 = vadd.f32 %v452, %v2299
      %v2301 = vpop.f32.mrb[0].mxu0
      %2302 = vmatprep.mubr.bf16.mxu0 0
      %2303 = vmatmul.mubr.bf16.gmra.mrb[0].mxu0 %v1091
      %v2304 = vpop.f32.mrb[0].mxu0
      %v2305 = vadd.f32 %v452, %v2304
      %v2306 = vpop.f32.mrb[0].mxu0
      %v2307 = vpop.f32.mrb[0].mxu0
      %v2308 = vadd.f32 %v452, %v2307
      %v2309 = vpop.f32.mrb[0].mxu0
      %2310 = vmatprep.mubr.bf16.mxu0 0
      %2311 = vmatmul.mubr.bf16.gmra.mrb[0].mxu0 %v1092
      %v2312 = vpop.f32.mrb[0].mxu0
      %v2313 = vadd.f32 %v452, %v2312
      %v2314 = vpop.f32.mrb[0].mxu0
      %v2315 = vpop.f32.mrb[0].mxu0
      %v2316 = vadd.f32 %v452, %v2315
      %v2317 = vpop.f32.mrb[0].mxu0
      %2318 = vmatprep.mubr.bf16.mxu0 0
      %2319 = vmatmul.mubr.bf16.gmra.mrb[0].mxu0 %v1093
      %v2320 = vpop.f32.mrb[0].mxu0
      %v2321 = vadd.f32 %v452, %v2320
      %v2322 = vpop.f32.mrb[0].mxu0
      %v2323 = vpop.f32.mrb[0].mxu0
      %v2324 = vadd.f32 %v452, %v2323
      %v2325 = vpop.f32.mrb[0].mxu0
      %2326 = vdwg.mxu0
      %vm2327 = vcmp.gt.f32.partialorder %v1305, 0.0
      %vm2328 = vcmp.gt.f32.partialorder %v1308, 0.0
      %vm2329 = vcmp.gt.f32.partialorder %v1313, 0.0
      %vm2330 = vcmp.gt.f32.partialorder %v1316, 0.0
      %vm2331 = vcmp.gt.f32.partialorder %v1321, 0.0
      %vm2332 = vcmp.gt.f32.partialorder %v1324, 0.0
      %vm2333 = vcmp.gt.f32.partialorder %v1329, 0.0
      %vm2334 = vcmp.gt.f32.partialorder %v1332, 0.0
      %vm2335 = vcmp.gt.f32.partialorder %v1337, 0.0
      %vm2336 = vcmp.gt.f32.partialorder %v1340, 0.0
      %vm2337 = vcmp.gt.f32.partialorder %v1345, 0.0
      %vm2338 = vcmp.gt.f32.partialorder %v1348, 0.0
      %vm2339 = vcmp.gt.f32.partialorder %v1353, 0.0
      %vm2340 = vcmp.gt.f32.partialorder %v1356, 0.0
      %vm2341 = vcmp.gt.f32.partialorder %v1361, 0.0
      %vm2342 = vcmp.gt.f32.partialorder %v1364, 0.0
      %vm2343 = vcmp.gt.f32.partialorder %v1369, 0.0
      %vm2344 = vcmp.gt.f32.partialorder %v1372, 0.0
      %vm2345 = vcmp.gt.f32.partialorder %v1377, 0.0
      %vm2346 = vcmp.gt.f32.partialorder %v1380, 0.0
      %vm2347 = vcmp.gt.f32.partialorder %v1385, 0.0
      %vm2348 = vcmp.gt.f32.partialorder %v1388, 0.0
      %vm2349 = vcmp.gt.f32.partialorder %v1393, 0.0
      %vm2350 = vcmp.gt.f32.partialorder %v1396, 0.0
      %vm2351 = vcmp.gt.f32.partialorder %v1401, 0.0
      %vm2352 = vcmp.gt.f32.partialorder %v1404, 0.0
      %vm2353 = vcmp.gt.f32.partialorder %v1409, 0.0
      %vm2354 = vcmp.gt.f32.partialorder %v1412, 0.0
      %vm2355 = vcmp.gt.f32.partialorder %v1417, 0.0
      %vm2356 = vcmp.gt.f32.partialorder %v1420, 0.0
      %vm2357 = vcmp.gt.f32.partialorder %v1425, 0.0
      %vm2358 = vcmp.gt.f32.partialorder %v1428, 0.0
      %vm2359 = vcmp.gt.f32.partialorder %v1433, 0.0
      %vm2360 = vcmp.gt.f32.partialorder %v1436, 0.0
      %vm2361 = vcmp.gt.f32.partialorder %v1441, 0.0
      %vm2362 = vcmp.gt.f32.partialorder %v1444, 0.0
      %vm2363 = vcmp.gt.f32.partialorder %v1449, 0.0
      %vm2364 = vcmp.gt.f32.partialorder %v1452, 0.0
      %vm2365 = vcmp.gt.f32.partialorder %v1457, 0.0
      %vm2366 = vcmp.gt.f32.partialorder %v1460, 0.0
      %vm2367 = vcmp.gt.f32.partialorder %v1465, 0.0
      %vm2368 = vcmp.gt.f32.partialorder %v1468, 0.0
      %vm2369 = vcmp.gt.f32.partialorder %v1473, 0.0
      %vm2370 = vcmp.gt.f32.partialorder %v1476, 0.0
      %vm2371 = vcmp.gt.f32.partialorder %v1481, 0.0
      %vm2372 = vcmp.gt.f32.partialorder %v1484, 0.0
      %vm2373 = vcmp.gt.f32.partialorder %v1489, 0.0
      %vm2374 = vcmp.gt.f32.partialorder %v1492, 0.0
      %vm2375 = vcmp.gt.f32.partialorder %v1497, 0.0
      %vm2376 = vcmp.gt.f32.partialorder %v1500, 0.0
      %vm2377 = vcmp.gt.f32.partialorder %v1505, 0.0
      %vm2378 = vcmp.gt.f32.partialorder %v1508, 0.0
      %vm2379 = vcmp.gt.f32.partialorder %v1513, 0.0
      %vm2380 = vcmp.gt.f32.partialorder %v1516, 0.0
      %vm2381 = vcmp.gt.f32.partialorder %v1521, 0.0
      %vm2382 = vcmp.gt.f32.partialorder %v1524, 0.0
      %vm2383 = vcmp.gt.f32.partialorder %v1529, 0.0
      %vm2384 = vcmp.gt.f32.partialorder %v1532, 0.0
      %vm2385 = vcmp.gt.f32.partialorder %v1537, 0.0
      %vm2386 = vcmp.gt.f32.partialorder %v1540, 0.0
      %vm2387 = vcmp.gt.f32.partialorder %v1545, 0.0
      %vm2388 = vcmp.gt.f32.partialorder %v1548, 0.0
      %vm2389 = vcmp.gt.f32.partialorder %v1553, 0.0
      %vm2390 = vcmp.gt.f32.partialorder %v1556, 0.0
      %vm2391 = vcmp.gt.f32.partialorder %v1561, 0.0
      %vm2392 = vcmp.gt.f32.partialorder %v1564, 0.0
      %vm2393 = vcmp.gt.f32.partialorder %v1569, 0.0
      %vm2394 = vcmp.gt.f32.partialorder %v1572, 0.0
      %vm2395 = vcmp.gt.f32.partialorder %v1577, 0.0
      %vm2396 = vcmp.gt.f32.partialorder %v1580, 0.0
      %vm2397 = vcmp.gt.f32.partialorder %v1585, 0.0
      %vm2398 = vcmp.gt.f32.partialorder %v1588, 0.0
      %vm2399 = vcmp.gt.f32.partialorder %v1593, 0.0
      %vm2400 = vcmp.gt.f32.partialorder %v1596, 0.0
      %vm2401 = vcmp.gt.f32.partialorder %v1601, 0.0
      %vm2402 = vcmp.gt.f32.partialorder %v1604, 0.0
      %vm2403 = vcmp.gt.f32.partialorder %v1609, 0.0
      %vm2404 = vcmp.gt.f32.partialorder %v1612, 0.0
      %vm2405 = vcmp.gt.f32.partialorder %v1617, 0.0
      %vm2406 = vcmp.gt.f32.partialorder %v1620, 0.0
      %vm2407 = vcmp.gt.f32.partialorder %v1625, 0.0
      %vm2408 = vcmp.gt.f32.partialorder %v1628, 0.0
      %vm2409 = vcmp.gt.f32.partialorder %v1633, 0.0
      %vm2410 = vcmp.gt.f32.partialorder %v1636, 0.0
      %vm2411 = vcmp.gt.f32.partialorder %v1641, 0.0
      %vm2412 = vcmp.gt.f32.partialorder %v1644, 0.0
      %vm2413 = vcmp.gt.f32.partialorder %v1649, 0.0
      %vm2414 = vcmp.gt.f32.partialorder %v1652, 0.0
      %vm2415 = vcmp.gt.f32.partialorder %v1657, 0.0
      %vm2416 = vcmp.gt.f32.partialorder %v1660, 0.0
      %vm2417 = vcmp.gt.f32.partialorder %v1665, 0.0
      %vm2418 = vcmp.gt.f32.partialorder %v1668, 0.0
      %vm2419 = vcmp.gt.f32.partialorder %v1673, 0.0
      %vm2420 = vcmp.gt.f32.partialorder %v1676, 0.0
      %vm2421 = vcmp.gt.f32.partialorder %v1681, 0.0
      %vm2422 = vcmp.gt.f32.partialorder %v1684, 0.0
      %vm2423 = vcmp.gt.f32.partialorder %v1689, 0.0
      %vm2424 = vcmp.gt.f32.partialorder %v1692, 0.0
      %vm2425 = vcmp.gt.f32.partialorder %v1697, 0.0
      %vm2426 = vcmp.gt.f32.partialorder %v1700, 0.0
      %vm2427 = vcmp.gt.f32.partialorder %v1705, 0.0
      %vm2428 = vcmp.gt.f32.partialorder %v1708, 0.0
      %vm2429 = vcmp.gt.f32.partialorder %v1713, 0.0
      %vm2430 = vcmp.gt.f32.partialorder %v1716, 0.0
      %vm2431 = vcmp.gt.f32.partialorder %v1721, 0.0
      %vm2432 = vcmp.gt.f32.partialorder %v1724, 0.0
      %vm2433 = vcmp.gt.f32.partialorder %v1729, 0.0
      %vm2434 = vcmp.gt.f32.partialorder %v1732, 0.0
      %vm2435 = vcmp.gt.f32.partialorder %v1737, 0.0
      %vm2436 = vcmp.gt.f32.partialorder %v1740, 0.0
      %vm2437 = vcmp.gt.f32.partialorder %v1745, 0.0
      %vm2438 = vcmp.gt.f32.partialorder %v1748, 0.0
      %vm2439 = vcmp.gt.f32.partialorder %v1753, 0.0
      %vm2440 = vcmp.gt.f32.partialorder %v1756, 0.0
      %vm2441 = vcmp.gt.f32.partialorder %v1761, 0.0
      %vm2442 = vcmp.gt.f32.partialorder %v1764, 0.0
      %vm2443 = vcmp.gt.f32.partialorder %v1769, 0.0
      %vm2444 = vcmp.gt.f32.partialorder %v1772, 0.0
      %vm2445 = vcmp.gt.f32.partialorder %v1777, 0.0
      %vm2446 = vcmp.gt.f32.partialorder %v1780, 0.0
      %vm2447 = vcmp.gt.f32.partialorder %v1785, 0.0
      %vm2448 = vcmp.gt.f32.partialorder %v1788, 0.0
      %vm2449 = vcmp.gt.f32.partialorder %v1793, 0.0
      %vm2450 = vcmp.gt.f32.partialorder %v1796, 0.0
      %vm2451 = vcmp.gt.f32.partialorder %v1801, 0.0
      %vm2452 = vcmp.gt.f32.partialorder %v1804, 0.0
      %vm2453 = vcmp.gt.f32.partialorder %v1809, 0.0
      %vm2454 = vcmp.gt.f32.partialorder %v1812, 0.0
      %vm2455 = vcmp.gt.f32.partialorder %v1817, 0.0
      %vm2456 = vcmp.gt.f32.partialorder %v1820, 0.0
      %vm2457 = vcmp.gt.f32.partialorder %v1825, 0.0
      %vm2458 = vcmp.gt.f32.partialorder %v1828, 0.0
      %vm2459 = vcmp.gt.f32.partialorder %v1833, 0.0
      %vm2460 = vcmp.gt.f32.partialorder %v1836, 0.0
      %vm2461 = vcmp.gt.f32.partialorder %v1841, 0.0
      %vm2462 = vcmp.gt.f32.partialorder %v1844, 0.0
      %vm2463 = vcmp.gt.f32.partialorder %v1849, 0.0
      %vm2464 = vcmp.gt.f32.partialorder %v1852, 0.0
      %vm2465 = vcmp.gt.f32.partialorder %v1857, 0.0
      %vm2466 = vcmp.gt.f32.partialorder %v1860, 0.0
      %vm2467 = vcmp.gt.f32.partialorder %v1865, 0.0
      %vm2468 = vcmp.gt.f32.partialorder %v1868, 0.0
      %vm2469 = vcmp.gt.f32.partialorder %v1873, 0.0
      %vm2470 = vcmp.gt.f32.partialorder %v1876, 0.0
      %vm2471 = vcmp.gt.f32.partialorder %v1881, 0.0
      %vm2472 = vcmp.gt.f32.partialorder %v1884, 0.0
      %vm2473 = vcmp.gt.f32.partialorder %v1889, 0.0
      %vm2474 = vcmp.gt.f32.partialorder %v1892, 0.0
      %vm2475 = vcmp.gt.f32.partialorder %v1897, 0.0
      %vm2476 = vcmp.gt.f32.partialorder %v1900, 0.0
      %vm2477 = vcmp.gt.f32.partialorder %v1905, 0.0
      %vm2478 = vcmp.gt.f32.partialorder %v1908, 0.0
      %vm2479 = vcmp.gt.f32.partialorder %v1913, 0.0
      %vm2480 = vcmp.gt.f32.partialorder %v1916, 0.0
      %vm2481 = vcmp.gt.f32.partialorder %v1921, 0.0
      %vm2482 = vcmp.gt.f32.partialorder %v1924, 0.0
      %vm2483 = vcmp.gt.f32.partialorder %v1929, 0.0
      %vm2484 = vcmp.gt.f32.partialorder %v1932, 0.0
      %vm2485 = vcmp.gt.f32.partialorder %v1937, 0.0
      %vm2486 = vcmp.gt.f32.partialorder %v1940, 0.0
      %vm2487 = vcmp.gt.f32.partialorder %v1945, 0.0
      %vm2488 = vcmp.gt.f32.partialorder %v1948, 0.0
      %vm2489 = vcmp.gt.f32.partialorder %v1953, 0.0
      %vm2490 = vcmp.gt.f32.partialorder %v1956, 0.0
      %vm2491 = vcmp.gt.f32.partialorder %v1961, 0.0
      %vm2492 = vcmp.gt.f32.partialorder %v1964, 0.0
      %vm2493 = vcmp.gt.f32.partialorder %v1969, 0.0
      %vm2494 = vcmp.gt.f32.partialorder %v1972, 0.0
      %vm2495 = vcmp.gt.f32.partialorder %v1977, 0.0
      %vm2496 = vcmp.gt.f32.partialorder %v1980, 0.0
      %vm2497 = vcmp.gt.f32.partialorder %v1985, 0.0
      %vm2498 = vcmp.gt.f32.partialorder %v1988, 0.0
      %vm2499 = vcmp.gt.f32.partialorder %v1993, 0.0
      %vm2500 = vcmp.gt.f32.partialorder %v1996, 0.0
      %vm2501 = vcmp.gt.f32.partialorder %v2001, 0.0
      %vm2502 = vcmp.gt.f32.partialorder %v2004, 0.0
      %vm2503 = vcmp.gt.f32.partialorder %v2009, 0.0
      %vm2504 = vcmp.gt.f32.partialorder %v2012, 0.0
      %vm2505 = vcmp.gt.f32.partialorder %v2017, 0.0
      %vm2506 = vcmp.gt.f32.partialorder %v2020, 0.0
      %vm2507 = vcmp.gt.f32.partialorder %v2025, 0.0
      %vm2508 = vcmp.gt.f32.partialorder %v2028, 0.0
      %vm2509 = vcmp.gt.f32.partialorder %v2033, 0.0
      %vm2510 = vcmp.gt.f32.partialorder %v2036, 0.0
      %vm2511 = vcmp.gt.f32.partialorder %v2041, 0.0
      %vm2512 = vcmp.gt.f32.partialorder %v2044, 0.0
      %vm2513 = vcmp.gt.f32.partialorder %v2049, 0.0
      %vm2514 = vcmp.gt.f32.partialorder %v2052, 0.0
      %vm2515 = vcmp.gt.f32.partialorder %v2057, 0.0
      %vm2516 = vcmp.gt.f32.partialorder %v2060, 0.0
      %vm2517 = vcmp.gt.f32.partialorder %v2065, 0.0
      %vm2518 = vcmp.gt.f32.partialorder %v2068, 0.0
      %vm2519 = vcmp.gt.f32.partialorder %v2073, 0.0
      %vm2520 = vcmp.gt.f32.partialorder %v2076, 0.0
      %vm2521 = vcmp.gt.f32.partialorder %v2081, 0.0
      %vm2522 = vcmp.gt.f32.partialorder %v2084, 0.0
      %vm2523 = vcmp.gt.f32.partialorder %v2089, 0.0
      %vm2524 = vcmp.gt.f32.partialorder %v2092, 0.0
      %vm2525 = vcmp.gt.f32.partialorder %v2097, 0.0
      %vm2526 = vcmp.gt.f32.partialorder %v2100, 0.0
      %vm2527 = vcmp.gt.f32.partialorder %v2105, 0.0
      %vm2528 = vcmp.gt.f32.partialorder %v2108, 0.0
      %vm2529 = vcmp.gt.f32.partialorder %v2113, 0.0
      %vm2530 = vcmp.gt.f32.partialorder %v2116, 0.0
      %vm2531 = vcmp.gt.f32.partialorder %v2121, 0.0
      %vm2532 = vcmp.gt.f32.partialorder %v2124, 0.0
      %vm2533 = vcmp.gt.f32.partialorder %v2129, 0.0
      %vm2534 = vcmp.gt.f32.partialorder %v2132, 0.0
      %vm2535 = vcmp.gt.f32.partialorder %v2137, 0.0
      %vm2536 = vcmp.gt.f32.partialorder %v2140, 0.0
      %vm2537 = vcmp.gt.f32.partialorder %v2145, 0.0
      %vm2538 = vcmp.gt.f32.partialorder %v2148, 0.0
      %vm2539 = vcmp.gt.f32.partialorder %v2153, 0.0
      %vm2540 = vcmp.gt.f32.partialorder %v2156, 0.0
      %vm2541 = vcmp.gt.f32.partialorder %v2161, 0.0
      %vm2542 = vcmp.gt.f32.partialorder %v2164, 0.0
      %vm2543 = vcmp.gt.f32.partialorder %v2169, 0.0
      %vm2544 = vcmp.gt.f32.partialorder %v2172, 0.0
      %vm2545 = vcmp.gt.f32.partialorder %v2177, 0.0
      %vm2546 = vcmp.gt.f32.partialorder %v2180, 0.0
      %vm2547 = vcmp.gt.f32.partialorder %v2185, 0.0
      %vm2548 = vcmp.gt.f32.partialorder %v2188, 0.0
      %vm2549 = vcmp.gt.f32.partialorder %v2193, 0.0
      %vm2550 = vcmp.gt.f32.partialorder %v2196, 0.0
      %vm2551 = vcmp.gt.f32.partialorder %v2201, 0.0
      %vm2552 = vcmp.gt.f32.partialorder %v2204, 0.0
      %vm2553 = vcmp.gt.f32.partialorder %v2209, 0.0
      %vm2554 = vcmp.gt.f32.partialorder %v2212, 0.0
      %vm2555 = vcmp.gt.f32.partialorder %v2217, 0.0
      %vm2556 = vcmp.gt.f32.partialorder %v2220, 0.0
      %vm2557 = vcmp.gt.f32.partialorder %v2225, 0.0
      %vm2558 = vcmp.gt.f32.partialorder %v2228, 0.0
      %vm2559 = vcmp.gt.f32.partialorder %v2233, 0.0
      %vm2560 = vcmp.gt.f32.partialorder %v2236, 0.0
      %vm2561 = vcmp.gt.f32.partialorder %v2241, 0.0
      %vm2562 = vcmp.gt.f32.partialorder %v2244, 0.0
      %vm2563 = vcmp.gt.f32.partialorder %v2249, 0.0
      %vm2564 = vcmp.gt.f32.partialorder %v2252, 0.0
      %vm2565 = vcmp.gt.f32.partialorder %v2257, 0.0
      %vm2566 = vcmp.gt.f32.partialorder %v2260, 0.0
      %vm2567 = vcmp.gt.f32.partialorder %v2265, 0.0
      %vm2568 = vcmp.gt.f32.partialorder %v2268, 0.0
      %vm2569 = vcmp.gt.f32.partialorder %v2273, 0.0
      %vm2570 = vcmp.gt.f32.partialorder %v2276, 0.0
      %vm2571 = vcmp.gt.f32.partialorder %v2281, 0.0
      %vm2572 = vcmp.gt.f32.partialorder %v2284, 0.0
      %vm2573 = vcmp.gt.f32.partialorder %v2289, 0.0
      %vm2574 = vcmp.gt.f32.partialorder %v2292, 0.0
      %vm2575 = vcmp.gt.f32.partialorder %v2297, 0.0
      %vm2576 = vcmp.gt.f32.partialorder %v2300, 0.0
      %vm2577 = vcmp.gt.f32.partialorder %v2305, 0.0
      %vm2578 = vcmp.gt.f32.partialorder %v2308, 0.0
      %vm2579 = vcmp.gt.f32.partialorder %v2313, 0.0
      %vm2580 = vcmp.gt.f32.partialorder %v2316, 0.0
      %vm2581 = vcmp.gt.f32.partialorder %v2321, 0.0
      %vm2582 = vcmp.gt.f32.partialorder %v2324, 0.0
      %v2583 = vmul.f32 %v1305, 0.2
      %v2584 = vmul.f32 %v1308, 0.2
      %v2585 = vmul.f32 %v1313, 0.2
      %v2586 = vmul.f32 %v1316, 0.2
      %v2587 = vmul.f32 %v1321, 0.2
      %v2588 = vmul.f32 %v1324, 0.2
      %v2589 = vmul.f32 %v1329, 0.2
      %v2590 = vmul.f32 %v1332, 0.2
      %v2591 = vmul.f32 %v1337, 0.2
      %v2592 = vmul.f32 %v1340, 0.2
      %v2593 = vmul.f32 %v1345, 0.2
      %v2594 = vmul.f32 %v1348, 0.2
      %v2595 = vmul.f32 %v1353, 0.2
      %v2596 = vmul.f32 %v1356, 0.2
      %v2597 = vmul.f32 %v1361, 0.2
      %v2598 = vmul.f32 %v1364, 0.2
      %v2599 = vmul.f32 %v1369, 0.2
      %v2600 = vmul.f32 %v1372, 0.2
      %v2601 = vmul.f32 %v1377, 0.2
      %v2602 = vmul.f32 %v1380, 0.2
      %v2603 = vmul.f32 %v1385, 0.2
      %v2604 = vmul.f32 %v1388, 0.2
      %v2605 = vmul.f32 %v1393, 0.2
      %v2606 = vmul.f32 %v1396, 0.2
      %v2607 = vmul.f32 %v1401, 0.2
      %v2608 = vmul.f32 %v1404, 0.2
      %v2609 = vmul.f32 %v1409, 0.2
      %v2610 = vmul.f32 %v1412, 0.2
      %v2611 = vmul.f32 %v1417, 0.2
      %v2612 = vmul.f32 %v1420, 0.2
      %v2613 = vmul.f32 %v1425, 0.2
      %v2614 = vmul.f32 %v1428, 0.2
      %v2615 = vmul.f32 %v1433, 0.2
      %v2616 = vmul.f32 %v1436, 0.2
      %v2617 = vmul.f32 %v1441, 0.2
      %v2618 = vmul.f32 %v1444, 0.2
      %v2619 = vmul.f32 %v1449, 0.2
      %v2620 = vmul.f32 %v1452, 0.2
      %v2621 = vmul.f32 %v1457, 0.2
      %v2622 = vmul.f32 %v1460, 0.2
      %v2623 = vmul.f32 %v1465, 0.2
      %v2624 = vmul.f32 %v1468, 0.2
      %v2625 = vmul.f32 %v1473, 0.2
      %v2626 = vmul.f32 %v1476, 0.2
      %v2627 = vmul.f32 %v1481, 0.2
      %v2628 = vmul.f32 %v1484, 0.2
      %v2629 = vmul.f32 %v1489, 0.2
      %v2630 = vmul.f32 %v1492, 0.2
      %v2631 = vmul.f32 %v1497, 0.2
      %v2632 = vmul.f32 %v1500, 0.2
      %v2633 = vmul.f32 %v1505, 0.2
      %v2634 = vmul.f32 %v1508, 0.2
      %v2635 = vmul.f32 %v1513, 0.2
      %v2636 = vmul.f32 %v1516, 0.2
      %v2637 = vmul.f32 %v1521, 0.2
      %v2638 = vmul.f32 %v1524, 0.2
      %v2639 = vmul.f32 %v1529, 0.2
      %v2640 = vmul.f32 %v1532, 0.2
      %v2641 = vmul.f32 %v1537, 0.2
      %v2642 = vmul.f32 %v1540, 0.2
      %v2643 = vmul.f32 %v1545, 0.2
      %v2644 = vmul.f32 %v1548, 0.2
      %v2645 = vmul.f32 %v1553, 0.2
      %v2646 = vmul.f32 %v1556, 0.2
      %v2647 = vmul.f32 %v1561, 0.2
      %v2648 = vmul.f32 %v1564, 0.2
      %v2649 = vmul.f32 %v1569, 0.2
      %v2650 = vmul.f32 %v1572, 0.2
      %v2651 = vmul.f32 %v1577, 0.2
      %v2652 = vmul.f32 %v1580, 0.2
      %v2653 = vmul.f32 %v1585, 0.2
      %v2654 = vmul.f32 %v1588, 0.2
      %v2655 = vmul.f32 %v1593, 0.2
      %v2656 = vmul.f32 %v1596, 0.2
      %v2657 = vmul.f32 %v1601, 0.2
      %v2658 = vmul.f32 %v1604, 0.2
      %v2659 = vmul.f32 %v1609, 0.2
      %v2660 = vmul.f32 %v1612, 0.2
      %v2661 = vmul.f32 %v1617, 0.2
      %v2662 = vmul.f32 %v1620, 0.2
      %v2663 = vmul.f32 %v1625, 0.2
      %v2664 = vmul.f32 %v1628, 0.2
      %v2665 = vmul.f32 %v1633, 0.2
      %v2666 = vmul.f32 %v1636, 0.2
      %v2667 = vmul.f32 %v1641, 0.2
      %v2668 = vmul.f32 %v1644, 0.2
      %v2669 = vmul.f32 %v1649, 0.2
      %v2670 = vmul.f32 %v1652, 0.2
      %v2671 = vmul.f32 %v1657, 0.2
      %v2672 = vmul.f32 %v1660, 0.2
      %v2673 = vmul.f32 %v1665, 0.2
      %v2674 = vmul.f32 %v1668, 0.2
      %v2675 = vmul.f32 %v1673, 0.2
      %v2676 = vmul.f32 %v1676, 0.2
      %v2677 = vmul.f32 %v1681, 0.2
      %v2678 = vmul.f32 %v1684, 0.2
      %v2679 = vmul.f32 %v1689, 0.2
      %v2680 = vmul.f32 %v1692, 0.2
      %v2681 = vmul.f32 %v1697, 0.2
      %v2682 = vmul.f32 %v1700, 0.2
      %v2683 = vmul.f32 %v1705, 0.2
      %v2684 = vmul.f32 %v1708, 0.2
      %v2685 = vmul.f32 %v1713, 0.2
      %v2686 = vmul.f32 %v1716, 0.2
      %v2687 = vmul.f32 %v1721, 0.2
      %v2688 = vmul.f32 %v1724, 0.2
      %v2689 = vmul.f32 %v1729, 0.2
      %v2690 = vmul.f32 %v1732, 0.2
      %v2691 = vmul.f32 %v1737, 0.2
      %v2692 = vmul.f32 %v1740, 0.2
      %v2693 = vmul.f32 %v1745, 0.2
      %v2694 = vmul.f32 %v1748, 0.2
      %v2695 = vmul.f32 %v1753, 0.2
      %v2696 = vmul.f32 %v1756, 0.2
      %v2697 = vmul.f32 %v1761, 0.2
      %v2698 = vmul.f32 %v1764, 0.2
      %v2699 = vmul.f32 %v1769, 0.2
      %v2700 = vmul.f32 %v1772, 0.2
      %v2701 = vmul.f32 %v1777, 0.2
      %v2702 = vmul.f32 %v1780, 0.2
      %v2703 = vmul.f32 %v1785, 0.2
      %v2704 = vmul.f32 %v1788, 0.2
      %v2705 = vmul.f32 %v1793, 0.2
      %v2706 = vmul.f32 %v1796, 0.2
      %v2707 = vmul.f32 %v1801, 0.2
      %v2708 = vmul.f32 %v1804, 0.2
      %v2709 = vmul.f32 %v1809, 0.2
      %v2710 = vmul.f32 %v1812, 0.2
      %v2711 = vmul.f32 %v1817, 0.2
      %v2712 = vmul.f32 %v1820, 0.2
      %v2713 = vmul.f32 %v1825, 0.2
      %v2714 = vmul.f32 %v1828, 0.2
      %v2715 = vmul.f32 %v1833, 0.2
      %v2716 = vmul.f32 %v1836, 0.2
      %v2717 = vmul.f32 %v1841, 0.2
      %v2718 = vmul.f32 %v1844, 0.2
      %v2719 = vmul.f32 %v1849, 0.2
      %v2720 = vmul.f32 %v1852, 0.2
      %v2721 = vmul.f32 %v1857, 0.2
      %v2722 = vmul.f32 %v1860, 0.2
      %v2723 = vmul.f32 %v1865, 0.2
      %v2724 = vmul.f32 %v1868, 0.2
      %v2725 = vmul.f32 %v1873, 0.2
      %v2726 = vmul.f32 %v1876, 0.2
      %v2727 = vmul.f32 %v1881, 0.2
      %v2728 = vmul.f32 %v1884, 0.2
      %v2729 = vmul.f32 %v1889, 0.2
      %v2730 = vmul.f32 %v1892, 0.2
      %v2731 = vmul.f32 %v1897, 0.2
      %v2732 = vmul.f32 %v1900, 0.2
      %v2733 = vmul.f32 %v1905, 0.2
      %v2734 = vmul.f32 %v1908, 0.2
      %v2735 = vmul.f32 %v1913, 0.2
      %v2736 = vmul.f32 %v1916, 0.2
      %v2737 = vmul.f32 %v1921, 0.2
      %v2738 = vmul.f32 %v1924, 0.2
      %v2739 = vmul.f32 %v1929, 0.2
      %v2740 = vmul.f32 %v1932, 0.2
      %v2741 = vmul.f32 %v1937, 0.2
      %v2742 = vmul.f32 %v1940, 0.2
      %v2743 = vmul.f32 %v1945, 0.2
      %v2744 = vmul.f32 %v1948, 0.2
      %v2745 = vmul.f32 %v1953, 0.2
      %v2746 = vmul.f32 %v1956, 0.2
      %v2747 = vmul.f32 %v1961, 0.2
      %v2748 = vmul.f32 %v1964, 0.2
      %v2749 = vmul.f32 %v1969, 0.2
      %v2750 = vmul.f32 %v1972, 0.2
      %v2751 = vmul.f32 %v1977, 0.2
      %v2752 = vmul.f32 %v1980, 0.2
      %v2753 = vmul.f32 %v1985, 0.2
      %v2754 = vmul.f32 %v1988, 0.2
      %v2755 = vmul.f32 %v1993, 0.2
      %v2756 = vmul.f32 %v1996, 0.2
      %v2757 = vmul.f32 %v2001, 0.2
      %v2758 = vmul.f32 %v2004, 0.2
      %v2759 = vmul.f32 %v2009, 0.2
      %v2760 = vmul.f32 %v2012, 0.2
      %v2761 = vmul.f32 %v2017, 0.2
      %v2762 = vmul.f32 %v2020, 0.2
      %v2763 = vmul.f32 %v2025, 0.2
      %v2764 = vmul.f32 %v2028, 0.2
      %v2765 = vmul.f32 %v2033, 0.2
      %v2766 = vmul.f32 %v2036, 0.2
      %v2767 = vmul.f32 %v2041, 0.2
      %v2768 = vmul.f32 %v2044, 0.2
      %v2769 = vmul.f32 %v2049, 0.2
      %v2770 = vmul.f32 %v2052, 0.2
      %v2771 = vmul.f32 %v2057, 0.2
      %v2772 = vmul.f32 %v2060, 0.2
      %v2773 = vmul.f32 %v2065, 0.2
      %v2774 = vmul.f32 %v2068, 0.2
      %v2775 = vmul.f32 %v2073, 0.2
      %v2776 = vmul.f32 %v2076, 0.2
      %v2777 = vmul.f32 %v2081, 0.2
      %v2778 = vmul.f32 %v2084, 0.2
      %v2779 = vmul.f32 %v2089, 0.2
      %v2780 = vmul.f32 %v2092, 0.2
      %v2781 = vmul.f32 %v2097, 0.2
      %v2782 = vmul.f32 %v2100, 0.2
      %v2783 = vmul.f32 %v2105, 0.2
      %v2784 = vmul.f32 %v2108, 0.2
      %v2785 = vmul.f32 %v2113, 0.2
      %v2786 = vmul.f32 %v2116, 0.2
      %v2787 = vmul.f32 %v2121, 0.2
      %v2788 = vmul.f32 %v2124, 0.2
      %v2789 = vmul.f32 %v2129, 0.2
      %v2790 = vmul.f32 %v2132, 0.2
      %v2791 = vmul.f32 %v2137, 0.2
      %v2792 = vmul.f32 %v2140, 0.2
      %v2793 = vmul.f32 %v2145, 0.2
      %v2794 = vmul.f32 %v2148, 0.2
      %v2795 = vmul.f32 %v2153, 0.2
      %v2796 = vmul.f32 %v2156, 0.2
      %v2797 = vmul.f32 %v2161, 0.2
      %v2798 = vmul.f32 %v2164, 0.2
      %v2799 = vmul.f32 %v2169, 0.2
      %v2800 = vmul.f32 %v2172, 0.2
      %v2801 = vmul.f32 %v2177, 0.2
      %v2802 = vmul.f32 %v2180, 0.2
      %v2803 = vmul.f32 %v2185, 0.2
      %v2804 = vmul.f32 %v2188, 0.2
      %v2805 = vmul.f32 %v2193, 0.2
      %v2806 = vmul.f32 %v2196, 0.2
      %v2807 = vmul.f32 %v2201, 0.2
      %v2808 = vmul.f32 %v2204, 0.2
      %v2809 = vmul.f32 %v2209, 0.2
      %v2810 = vmul.f32 %v2212, 0.2
      %v2811 = vmul.f32 %v2217, 0.2
      %v2812 = vmul.f32 %v2220, 0.2
      %v2813 = vmul.f32 %v2225, 0.2
      %v2814 = vmul.f32 %v2228, 0.2
      %v2815 = vmul.f32 %v2233, 0.2
      %v2816 = vmul.f32 %v2236, 0.2
      %v2817 = vmul.f32 %v2241, 0.2
      %v2818 = vmul.f32 %v2244, 0.2
      %v2819 = vmul.f32 %v2249, 0.2
      %v2820 = vmul.f32 %v2252, 0.2
      %v2821 = vmul.f32 %v2257, 0.2
      %v2822 = vmul.f32 %v2260, 0.2
      %v2823 = vmul.f32 %v2265, 0.2
      %v2824 = vmul.f32 %v2268, 0.2
      %v2825 = vmul.f32 %v2273, 0.2
      %v2826 = vmul.f32 %v2276, 0.2
      %v2827 = vmul.f32 %v2281, 0.2
      %v2828 = vmul.f32 %v2284, 0.2
      %v2829 = vmul.f32 %v2289, 0.2
      %v2830 = vmul.f32 %v2292, 0.2
      %v2831 = vmul.f32 %v2297, 0.2
      %v2832 = vmul.f32 %v2300, 0.2
      %v2833 = vmul.f32 %v2305, 0.2
      %v2834 = vmul.f32 %v2308, 0.2
      %v2835 = vmul.f32 %v2313, 0.2
      %v2836 = vmul.f32 %v2316, 0.2
      %v2837 = vmul.f32 %v2321, 0.2
      %v2838 = vmul.f32 %v2324, 0.2
      %v2839 = vsel %vm2327, %v1305, %v2583
      %v2840 = vsel %vm2328, %v1308, %v2584
      %v2841 = vsel %vm2329, %v1313, %v2585
      %v2842 = vsel %vm2330, %v1316, %v2586
      %v2843 = vsel %vm2331, %v1321, %v2587
      %v2844 = vsel %vm2332, %v1324, %v2588
      %v2845 = vsel %vm2333, %v1329, %v2589
      %v2846 = vsel %vm2334, %v1332, %v2590
      %v2847 = vsel %vm2335, %v1337, %v2591
      %v2848 = vsel %vm2336, %v1340, %v2592
      %v2849 = vsel %vm2337, %v1345, %v2593
      %v2850 = vsel %vm2338, %v1348, %v2594
      %v2851 = vsel %vm2339, %v1353, %v2595
      %v2852 = vsel %vm2340, %v1356, %v2596
      %v2853 = vsel %vm2341, %v1361, %v2597
      %v2854 = vsel %vm2342, %v1364, %v2598
      %v2855 = vsel %vm2343, %v1369, %v2599
      %v2856 = vsel %vm2344, %v1372, %v2600
      %v2857 = vsel %vm2345, %v1377, %v2601
      %v2858 = vsel %vm2346, %v1380, %v2602
      %v2859 = vsel %vm2347, %v1385, %v2603
      %v2860 = vsel %vm2348, %v1388, %v2604
      %v2861 = vsel %vm2349, %v1393, %v2605
      %v2862 = vsel %vm2350, %v1396, %v2606
      %v2863 = vsel %vm2351, %v1401, %v2607
      %v2864 = vsel %vm2352, %v1404, %v2608
      %v2865 = vsel %vm2353, %v1409, %v2609
      %v2866 = vsel %vm2354, %v1412, %v2610
      %v2867 = vsel %vm2355, %v1417, %v2611
      %v2868 = vsel %vm2356, %v1420, %v2612
      %v2869 = vsel %vm2357, %v1425, %v2613
      %v2870 = vsel %vm2358, %v1428, %v2614
      %v2871 = vsel %vm2359, %v1433, %v2615
      %v2872 = vsel %vm2360, %v1436, %v2616
      %v2873 = vsel %vm2361, %v1441, %v2617
      %v2874 = vsel %vm2362, %v1444, %v2618
      %v2875 = vsel %vm2363, %v1449, %v2619
      %v2876 = vsel %vm2364, %v1452, %v2620
      %v2877 = vsel %vm2365, %v1457, %v2621
      %v2878 = vsel %vm2366, %v1460, %v2622
      %v2879 = vsel %vm2367, %v1465, %v2623
      %v2880 = vsel %vm2368, %v1468, %v2624
      %v2881 = vsel %vm2369, %v1473, %v2625
      %v2882 = vsel %vm2370, %v1476, %v2626
      %v2883 = vsel %vm2371, %v1481, %v2627
      %v2884 = vsel %vm2372, %v1484, %v2628
      %v2885 = vsel %vm2373, %v1489, %v2629
      %v2886 = vsel %vm2374, %v1492, %v2630
      %v2887 = vsel %vm2375, %v1497, %v2631
      %v2888 = vsel %vm2376, %v1500, %v2632
      %v2889 = vsel %vm2377, %v1505, %v2633
      %v2890 = vsel %vm2378, %v1508, %v2634
      %v2891 = vsel %vm2379, %v1513, %v2635
      %v2892 = vsel %vm2380, %v1516, %v2636
      %v2893 = vsel %vm2381, %v1521, %v2637
      %v2894 = vsel %vm2382, %v1524, %v2638
      %v2895 = vsel %vm2383, %v1529, %v2639
      %v2896 = vsel %vm2384, %v1532, %v2640
      %v2897 = vsel %vm2385, %v1537, %v2641
      %v2898 = vsel %vm2386, %v1540, %v2642
      %v2899 = vsel %vm2387, %v1545, %v2643
      %v2900 = vsel %vm2388, %v1548, %v2644
      %v2901 = vsel %vm2389, %v1553, %v2645
      %v2902 = vsel %vm2390, %v1556, %v2646
      %v2903 = vsel %vm2391, %v1561, %v2647
      %v2904 = vsel %vm2392, %v1564, %v2648
      %v2905 = vsel %vm2393, %v1569, %v2649
      %v2906 = vsel %vm2394, %v1572, %v2650
      %v2907 = vsel %vm2395, %v1577, %v2651
      %v2908 = vsel %vm2396, %v1580, %v2652
      %v2909 = vsel %vm2397, %v1585, %v2653
      %v2910 = vsel %vm2398, %v1588, %v2654
      %v2911 = vsel %vm2399, %v1593, %v2655
      %v2912 = vsel %vm2400, %v1596, %v2656
      %v2913 = vsel %vm2401, %v1601, %v2657
      %v2914 = vsel %vm2402, %v1604, %v2658
      %v2915 = vsel %vm2403, %v1609, %v2659
      %v2916 = vsel %vm2404, %v1612, %v2660
      %v2917 = vsel %vm2405, %v1617, %v2661
      %v2918 = vsel %vm2406, %v1620, %v2662
      %v2919 = vsel %vm2407, %v1625, %v2663
      %v2920 = vsel %vm2408, %v1628, %v2664
      %v2921 = vsel %vm2409, %v1633, %v2665
      %v2922 = vsel %vm2410, %v1636, %v2666
      %v2923 = vsel %vm2411, %v1641, %v2667
      %v2924 = vsel %vm2412, %v1644, %v2668
      %v2925 = vsel %vm2413, %v1649, %v2669
      %v2926 = vsel %vm2414, %v1652, %v2670
      %v2927 = vsel %vm2415, %v1657, %v2671
      %v2928 = vsel %vm2416, %v1660, %v2672
      %v2929 = vsel %vm2417, %v1665, %v2673
      %v2930 = vsel %vm2418, %v1668, %v2674
      %v2931 = vsel %vm2419, %v1673, %v2675
      %v2932 = vsel %vm2420, %v1676, %v2676
      %v2933 = vsel %vm2421, %v1681, %v2677
      %v2934 = vsel %vm2422, %v1684, %v2678
      %v2935 = vsel %vm2423, %v1689, %v2679
      %v2936 = vsel %vm2424, %v1692, %v2680
      %v2937 = vsel %vm2425, %v1697, %v2681
      %v2938 = vsel %vm2426, %v1700, %v2682
      %v2939 = vsel %vm2427, %v1705, %v2683
      %v2940 = vsel %vm2428, %v1708, %v2684
      %v2941 = vsel %vm2429, %v1713, %v2685
      %v2942 = vsel %vm2430, %v1716, %v2686
      %v2943 = vsel %vm2431, %v1721, %v2687
      %v2944 = vsel %vm2432, %v1724, %v2688
      %v2945 = vsel %vm2433, %v1729, %v2689
      %v2946 = vsel %vm2434, %v1732, %v2690
      %v2947 = vsel %vm2435, %v1737, %v2691
      %v2948 = vsel %vm2436, %v1740, %v2692
      %v2949 = vsel %vm2437, %v1745, %v2693
      %v2950 = vsel %vm2438, %v1748, %v2694
      %v2951 = vsel %vm2439, %v1753, %v2695
      %v2952 = vsel %vm2440, %v1756, %v2696
      %v2953 = vsel %vm2441, %v1761, %v2697
      %v2954 = vsel %vm2442, %v1764, %v2698
      %v2955 = vsel %vm2443, %v1769, %v2699
      %v2956 = vsel %vm2444, %v1772, %v2700
      %v2957 = vsel %vm2445, %v1777, %v2701
      %v2958 = vsel %vm2446, %v1780, %v2702
      %v2959 = vsel %vm2447, %v1785, %v2703
      %v2960 = vsel %vm2448, %v1788, %v2704
      %v2961 = vsel %vm2449, %v1793, %v2705
      %v2962 = vsel %vm2450, %v1796, %v2706
      %v2963 = vsel %vm2451, %v1801, %v2707
      %v2964 = vsel %vm2452, %v1804, %v2708
      %v2965 = vsel %vm2453, %v1809, %v2709
      %v2966 = vsel %vm2454, %v1812, %v2710
      %v2967 = vsel %vm2455, %v1817, %v2711
      %v2968 = vsel %vm2456, %v1820, %v2712
      %v2969 = vsel %vm2457, %v1825, %v2713
      %v2970 = vsel %vm2458, %v1828, %v2714
      %v2971 = vsel %vm2459, %v1833, %v2715
      %v2972 = vsel %vm2460, %v1836, %v2716
      %v2973 = vsel %vm2461, %v1841, %v2717
      %v2974 = vsel %vm2462, %v1844, %v2718
      %v2975 = vsel %vm2463, %v1849, %v2719
      %v2976 = vsel %vm2464, %v1852, %v2720
      %v2977 = vsel %vm2465, %v1857, %v2721
      %v2978 = vsel %vm2466, %v1860, %v2722
      %v2979 = vsel %vm2467, %v1865, %v2723
      %v2980 = vsel %vm2468, %v1868, %v2724
      %v2981 = vsel %vm2469, %v1873, %v2725
      %v2982 = vsel %vm2470, %v1876, %v2726
      %v2983 = vsel %vm2471, %v1881, %v2727
      %v2984 = vsel %vm2472, %v1884, %v2728
      %v2985 = vsel %vm2473, %v1889, %v2729
      %v2986 = vsel %vm2474, %v1892, %v2730
      %v2987 = vsel %vm2475, %v1897, %v2731
      %v2988 = vsel %vm2476, %v1900, %v2732
      %v2989 = vsel %vm2477, %v1905, %v2733
      %v2990 = vsel %vm2478, %v1908, %v2734
      %v2991 = vsel %vm2479, %v1913, %v2735
      %v2992 = vsel %vm2480, %v1916, %v2736
      %v2993 = vsel %vm2481, %v1921, %v2737
      %v2994 = vsel %vm2482, %v1924, %v2738
      %v2995 = vsel %vm2483, %v1929, %v2739
      %v2996 = vsel %vm2484, %v1932, %v2740
      %v2997 = vsel %vm2485, %v1937, %v2741
      %v2998 = vsel %vm2486, %v1940, %v2742
      %v2999 = vsel %vm2487, %v1945, %v2743
      %v3000 = vsel %vm2488, %v1948, %v2744
      %v3001 = vsel %vm2489, %v1953, %v2745
      %v3002 = vsel %vm2490, %v1956, %v2746
      %v3003 = vsel %vm2491, %v1961, %v2747
      %v3004 = vsel %vm2492, %v1964, %v2748
      %v3005 = vsel %vm2493, %v1969, %v2749
      %v3006 = vsel %vm2494, %v1972, %v2750
      %v3007 = vsel %vm2495, %v1977, %v2751
      %v3008 = vsel %vm2496, %v1980, %v2752
      %v3009 = vsel %vm2497, %v1985, %v2753
      %v3010 = vsel %vm2498, %v1988, %v2754
      %v3011 = vsel %vm2499, %v1993, %v2755
      %v3012 = vsel %vm2500, %v1996, %v2756
      %v3013 = vsel %vm2501, %v2001, %v2757
      %v3014 = vsel %vm2502, %v2004, %v2758
      %v3015 = vsel %vm2503, %v2009, %v2759
      %v3016 = vsel %vm2504, %v2012, %v2760
      %v3017 = vsel %vm2505, %v2017, %v2761
      %v3018 = vsel %vm2506, %v2020, %v2762
      %v3019 = vsel %vm2507, %v2025, %v2763
      %v3020 = vsel %vm2508, %v2028, %v2764
      %v3021 = vsel %vm2509, %v2033, %v2765
      %v3022 = vsel %vm2510, %v2036, %v2766
      %v3023 = vsel %vm2511, %v2041, %v2767
      %v3024 = vsel %vm2512, %v2044, %v2768
      %v3025 = vsel %vm2513, %v2049, %v2769
      %v3026 = vsel %vm2514, %v2052, %v2770
      %v3027 = vsel %vm2515, %v2057, %v2771
      %v3028 = vsel %vm2516, %v2060, %v2772
      %v3029 = vsel %vm2517, %v2065, %v2773
      %v3030 = vsel %vm2518, %v2068, %v2774
      %v3031 = vsel %vm2519, %v2073, %v2775
      %v3032 = vsel %vm2520, %v2076, %v2776
      %v3033 = vsel %vm2521, %v2081, %v2777
      %v3034 = vsel %vm2522, %v2084, %v2778
      %v3035 = vsel %vm2523, %v2089, %v2779
      %v3036 = vsel %vm2524, %v2092, %v2780
      %v3037 = vsel %vm2525, %v2097, %v2781
      %v3038 = vsel %vm2526, %v2100, %v2782
      %v3039 = vsel %vm2527, %v2105, %v2783
      %v3040 = vsel %vm2528, %v2108, %v2784
      %v3041 = vsel %vm2529, %v2113, %v2785
      %v3042 = vsel %vm2530, %v2116, %v2786
      %v3043 = vsel %vm2531, %v2121, %v2787
      %v3044 = vsel %vm2532, %v2124, %v2788
      %v3045 = vsel %vm2533, %v2129, %v2789
      %v3046 = vsel %vm2534, %v2132, %v2790
      %v3047 = vsel %vm2535, %v2137, %v2791
      %v3048 = vsel %vm2536, %v2140, %v2792
      %v3049 = vsel %vm2537, %v2145, %v2793
      %v3050 = vsel %vm2538, %v2148, %v2794
      %v3051 = vsel %vm2539, %v2153, %v2795
      %v3052 = vsel %vm2540, %v2156, %v2796
      %v3053 = vsel %vm2541, %v2161, %v2797
      %v3054 = vsel %vm2542, %v2164, %v2798
      %v3055 = vsel %vm2543, %v2169, %v2799
      %v3056 = vsel %vm2544, %v2172, %v2800
      %v3057 = vsel %vm2545, %v2177, %v2801
      %v3058 = vsel %vm2546, %v2180, %v2802
      %v3059 = vsel %vm2547, %v2185, %v2803
      %v3060 = vsel %vm2548, %v2188, %v2804
      %v3061 = vsel %vm2549, %v2193, %v2805
      %v3062 = vsel %vm2550, %v2196, %v2806
      %v3063 = vsel %vm2551, %v2201, %v2807
      %v3064 = vsel %vm2552, %v2204, %v2808
      %v3065 = vsel %vm2553, %v2209, %v2809
      %v3066 = vsel %vm2554, %v2212, %v2810
      %v3067 = vsel %vm2555, %v2217, %v2811
      %v3068 = vsel %vm2556, %v2220, %v2812
      %v3069 = vsel %vm2557, %v2225, %v2813
      %v3070 = vsel %vm2558, %v2228, %v2814
      %v3071 = vsel %vm2559, %v2233, %v2815
      %v3072 = vsel %vm2560, %v2236, %v2816
      %v3073 = vsel %vm2561, %v2241, %v2817
      %v3074 = vsel %vm2562, %v2244, %v2818
      %v3075 = vsel %vm2563, %v2249, %v2819
      %v3076 = vsel %vm2564, %v2252, %v2820
      %v3077 = vsel %vm2565, %v2257, %v2821
      %v3078 = vsel %vm2566, %v2260, %v2822
      %v3079 = vsel %vm2567, %v2265, %v2823
      %v3080 = vsel %vm2568, %v2268, %v2824
      %v3081 = vsel %vm2569, %v2273, %v2825
      %v3082 = vsel %vm2570, %v2276, %v2826
      %v3083 = vsel %vm2571, %v2281, %v2827
      %v3084 = vsel %vm2572, %v2284, %v2828
      %v3085 = vsel %vm2573, %v2289, %v2829
      %v3086 = vsel %vm2574, %v2292, %v2830
      %v3087 = vsel %vm2575, %v2297, %v2831
      %v3088 = vsel %vm2576, %v2300, %v2832
      %v3089 = vsel %vm2577, %v2305, %v2833
      %v3090 = vsel %vm2578, %v2308, %v2834
      %v3091 = vsel %vm2579, %v2313, %v2835
      %v3092 = vsel %vm2580, %v2316, %v2836
      %v3093 = vsel %vm2581, %v2321, %v2837
      %v3094 = vsel %vm2582, %v2324, %v2838
      %v3095 = vpack.c.bf16 %v2840, %v2839
      %v3096 = vpack.c.bf16 %v2842, %v2841
      %v3097 = vpack.c.bf16 %v2844, %v2843
      %v3098 = vpack.c.bf16 %v2846, %v2845
      %v3099 = vpack.c.bf16 %v2848, %v2847
      %v3100 = vpack.c.bf16 %v2850, %v2849
      %v3101 = vpack.c.bf16 %v2852, %v2851
      %v3102 = vpack.c.bf16 %v2854, %v2853
      %v3103 = vpack.c.bf16 %v2856, %v2855
      %v3104 = vpack.c.bf16 %v2858, %v2857
      %v3105 = vpack.c.bf16 %v2860, %v2859
      %v3106 = vpack.c.bf16 %v2862, %v2861
      %v3107 = vpack.c.bf16 %v2864, %v2863
      %v3108 = vpack.c.bf16 %v2866, %v2865
      %v3109 = vpack.c.bf16 %v2868, %v2867
      %v3110 = vpack.c.bf16 %v2870, %v2869
      %v3111 = vpack.c.bf16 %v2872, %v2871
      %v3112 = vpack.c.bf16 %v2874, %v2873
      %v3113 = vpack.c.bf16 %v2876, %v2875
      %v3114 = vpack.c.bf16 %v2878, %v2877
      %v3115 = vpack.c.bf16 %v2880, %v2879
      %v3116 = vpack.c.bf16 %v2882, %v2881
      %v3117 = vpack.c.bf16 %v2884, %v2883
      %v3118 = vpack.c.bf16 %v2886, %v2885
      %v3119 = vpack.c.bf16 %v2888, %v2887
      %v3120 = vpack.c.bf16 %v2890, %v2889
      %v3121 = vpack.c.bf16 %v2892, %v2891
      %v3122 = vpack.c.bf16 %v2894, %v2893
      %v3123 = vpack.c.bf16 %v2896, %v2895
      %v3124 = vpack.c.bf16 %v2898, %v2897
      %v3125 = vpack.c.bf16 %v2900, %v2899
      %v3126 = vpack.c.bf16 %v2902, %v2901
      %v3127 = vpack.c.bf16 %v2904, %v2903
      %v3128 = vpack.c.bf16 %v2906, %v2905
      %v3129 = vpack.c.bf16 %v2908, %v2907
      %v3130 = vpack.c.bf16 %v2910, %v2909
      %v3131 = vpack.c.bf16 %v2912, %v2911
      %v3132 = vpack.c.bf16 %v2914, %v2913
      %v3133 = vpack.c.bf16 %v2916, %v2915
      %v3134 = vpack.c.bf16 %v2918, %v2917
      %v3135 = vpack.c.bf16 %v2920, %v2919
      %v3136 = vpack.c.bf16 %v2922, %v2921
      %v3137 = vpack.c.bf16 %v2924, %v2923
      %v3138 = vpack.c.bf16 %v2926, %v2925
      %v3139 = vpack.c.bf16 %v2928, %v2927
      %v3140 = vpack.c.bf16 %v2930, %v2929
      %v3141 = vpack.c.bf16 %v2932, %v2931
      %v3142 = vpack.c.bf16 %v2934, %v2933
      %v3143 = vpack.c.bf16 %v2936, %v2935
      %v3144 = vpack.c.bf16 %v2938, %v2937
      %v3145 = vpack.c.bf16 %v2940, %v2939
      %v3146 = vpack.c.bf16 %v2942, %v2941
      %v3147 = vpack.c.bf16 %v2944, %v2943
      %v3148 = vpack.c.bf16 %v2946, %v2945
      %v3149 = vpack.c.bf16 %v2948, %v2947
      %v3150 = vpack.c.bf16 %v2950, %v2949
      %v3151 = vpack.c.bf16 %v2952, %v2951
      %v3152 = vpack.c.bf16 %v2954, %v2953
      %v3153 = vpack.c.bf16 %v2956, %v2955
      %v3154 = vpack.c.bf16 %v2958, %v2957
      %v3155 = vpack.c.bf16 %v2960, %v2959
      %v3156 = vpack.c.bf16 %v2962, %v2961
      %v3157 = vpack.c.bf16 %v2964, %v2963
      %v3158 = vpack.c.bf16 %v2966, %v2965
      %v3159 = vpack.c.bf16 %v2968, %v2967
      %v3160 = vpack.c.bf16 %v2970, %v2969
      %v3161 = vpack.c.bf16 %v2972, %v2971
      %v3162 = vpack.c.bf16 %v2974, %v2973
      %v3163 = vpack.c.bf16 %v2976, %v2975
      %v3164 = vpack.c.bf16 %v2978, %v2977
      %v3165 = vpack.c.bf16 %v2980, %v2979
      %v3166 = vpack.c.bf16 %v2982, %v2981
      %v3167 = vpack.c.bf16 %v2984, %v2983
      %v3168 = vpack.c.bf16 %v2986, %v2985
      %v3169 = vpack.c.bf16 %v2988, %v2987
      %v3170 = vpack.c.bf16 %v2990, %v2989
      %v3171 = vpack.c.bf16 %v2992, %v2991
      %v3172 = vpack.c.bf16 %v2994, %v2993
      %v3173 = vpack.c.bf16 %v2996, %v2995
      %v3174 = vpack.c.bf16 %v2998, %v2997
      %v3175 = vpack.c.bf16 %v3000, %v2999
      %v3176 = vpack.c.bf16 %v3002, %v3001
      %v3177 = vpack.c.bf16 %v3004, %v3003
      %v3178 = vpack.c.bf16 %v3006, %v3005
      %v3179 = vpack.c.bf16 %v3008, %v3007
      %v3180 = vpack.c.bf16 %v3010, %v3009
      %v3181 = vpack.c.bf16 %v3012, %v3011
      %v3182 = vpack.c.bf16 %v3014, %v3013
      %v3183 = vpack.c.bf16 %v3016, %v3015
      %v3184 = vpack.c.bf16 %v3018, %v3017
      %v3185 = vpack.c.bf16 %v3020, %v3019
      %v3186 = vpack.c.bf16 %v3022, %v3021
      %v3187 = vpack.c.bf16 %v3024, %v3023
      %v3188 = vpack.c.bf16 %v3026, %v3025
      %v3189 = vpack.c.bf16 %v3028, %v3027
      %v3190 = vpack.c.bf16 %v3030, %v3029
      %v3191 = vpack.c.bf16 %v3032, %v3031
      %v3192 = vpack.c.bf16 %v3034, %v3033
      %v3193 = vpack.c.bf16 %v3036, %v3035
      %v3194 = vpack.c.bf16 %v3038, %v3037
      %v3195 = vpack.c.bf16 %v3040, %v3039
      %v3196 = vpack.c.bf16 %v3042, %v3041
      %v3197 = vpack.c.bf16 %v3044, %v3043
      %v3198 = vpack.c.bf16 %v3046, %v3045
      %v3199 = vpack.c.bf16 %v3048, %v3047
      %v3200 = vpack.c.bf16 %v3050, %v3049
      %v3201 = vpack.c.bf16 %v3052, %v3051
      %v3202 = vpack.c.bf16 %v3054, %v3053
      %v3203 = vpack.c.bf16 %v3056, %v3055
      %v3204 = vpack.c.bf16 %v3058, %v3057
      %v3205 = vpack.c.bf16 %v3060, %v3059
      %v3206 = vpack.c.bf16 %v3062, %v3061
      %v3207 = vpack.c.bf16 %v3064, %v3063
      %v3208 = vpack.c.bf16 %v3066, %v3065
      %v3209 = vpack.c.bf16 %v3068, %v3067
      %v3210 = vpack.c.bf16 %v3070, %v3069
      %v3211 = vpack.c.bf16 %v3072, %v3071
      %v3212 = vpack.c.bf16 %v3074, %v3073
      %v3213 = vpack.c.bf16 %v3076, %v3075
      %v3214 = vpack.c.bf16 %v3078, %v3077
      %v3215 = vpack.c.bf16 %v3080, %v3079
      %v3216 = vpack.c.bf16 %v3082, %v3081
      %v3217 = vpack.c.bf16 %v3084, %v3083
      %v3218 = vpack.c.bf16 %v3086, %v3085
      %v3219 = vpack.c.bf16 %v3088, %v3087
      %v3220 = vpack.c.bf16 %v3090, %v3089
      %v3221 = vpack.c.bf16 %v3092, %v3091
      %v3222 = vpack.c.bf16 %v3094, %v3093
      %v3351 = vunpack.c.l.b16 %v3095
      %v3352 = vunpack.c.h.b16 %v3095
      %v3353 = vunpack.c.l.b16 %v3096
      %v3354 = vunpack.c.h.b16 %v3096
      %v3355 = vunpack.c.l.b16 %v3097
      %v3356 = vunpack.c.h.b16 %v3097
      %v3357 = vunpack.c.l.b16 %v3098
      %v3358 = vunpack.c.h.b16 %v3098
      %v3359 = vunpack.c.l.b16 %v3099
      %v3360 = vunpack.c.h.b16 %v3099
      %v3361 = vunpack.c.l.b16 %v3100
      %v3362 = vunpack.c.h.b16 %v3100
      %v3363 = vunpack.c.l.b16 %v3101
      %v3364 = vunpack.c.h.b16 %v3101
      %v3365 = vunpack.c.l.b16 %v3102
      %v3366 = vunpack.c.h.b16 %v3102
      %v3367 = vunpack.c.l.b16 %v3103
      %v3368 = vunpack.c.h.b16 %v3103
      %v3369 = vunpack.c.l.b16 %v3104
      %v3370 = vunpack.c.h.b16 %v3104
      %v3371 = vunpack.c.l.b16 %v3105
      %v3372 = vunpack.c.h.b16 %v3105
      %v3373 = vunpack.c.l.b16 %v3106
      %v3374 = vunpack.c.h.b16 %v3106
      %v3375 = vunpack.c.l.b16 %v3107
      %v3376 = vunpack.c.h.b16 %v3107
      %v3377 = vunpack.c.l.b16 %v3108
      %v3378 = vunpack.c.h.b16 %v3108
      %v3379 = vunpack.c.l.b16 %v3109
      %v3380 = vunpack.c.h.b16 %v3109
      %v3381 = vunpack.c.l.b16 %v3110
      %v3382 = vunpack.c.h.b16 %v3110
      %v3383 = vunpack.c.l.b16 %v3111
      %v3384 = vunpack.c.h.b16 %v3111
      %v3385 = vunpack.c.l.b16 %v3112
      %v3386 = vunpack.c.h.b16 %v3112
      %v3387 = vunpack.c.l.b16 %v3113
      %v3388 = vunpack.c.h.b16 %v3113
      %v3389 = vunpack.c.l.b16 %v3114
      %v3390 = vunpack.c.h.b16 %v3114
      %v3391 = vunpack.c.l.b16 %v3115
      %v3392 = vunpack.c.h.b16 %v3115
      %v3393 = vunpack.c.l.b16 %v3116
      %v3394 = vunpack.c.h.b16 %v3116
      %v3395 = vunpack.c.l.b16 %v3117
      %v3396 = vunpack.c.h.b16 %v3117
      %v3397 = vunpack.c.l.b16 %v3118
      %v3398 = vunpack.c.h.b16 %v3118
      %v3399 = vunpack.c.l.b16 %v3119
      %v3400 = vunpack.c.h.b16 %v3119
      %v3401 = vunpack.c.l.b16 %v3120
      %v3402 = vunpack.c.h.b16 %v3120
      %v3403 = vunpack.c.l.b16 %v3121
      %v3404 = vunpack.c.h.b16 %v3121
      %v3405 = vunpack.c.l.b16 %v3122
      %v3406 = vunpack.c.h.b16 %v3122
      %v3407 = vunpack.c.l.b16 %v3123
      %v3408 = vunpack.c.h.b16 %v3123
      %v3409 = vunpack.c.l.b16 %v3124
      %v3410 = vunpack.c.h.b16 %v3124
      %v3411 = vunpack.c.l.b16 %v3125
      %v3412 = vunpack.c.h.b16 %v3125
      %v3413 = vunpack.c.l.b16 %v3126
      %v3414 = vunpack.c.h.b16 %v3126
      %v3415 = vunpack.c.l.b16 %v3127
      %v3416 = vunpack.c.h.b16 %v3127
      %v3417 = vunpack.c.l.b16 %v3128
      %v3418 = vunpack.c.h.b16 %v3128
      %v3419 = vunpack.c.l.b16 %v3129
      %v3420 = vunpack.c.h.b16 %v3129
      %v3421 = vunpack.c.l.b16 %v3130
      %v3422 = vunpack.c.h.b16 %v3130
      %v3423 = vunpack.c.l.b16 %v3131
      %v3424 = vunpack.c.h.b16 %v3131
      %v3425 = vunpack.c.l.b16 %v3132
      %v3426 = vunpack.c.h.b16 %v3132
      %v3427 = vunpack.c.l.b16 %v3133
      %v3428 = vunpack.c.h.b16 %v3133
      %v3429 = vunpack.c.l.b16 %v3134
      %v3430 = vunpack.c.h.b16 %v3134
      %v3431 = vunpack.c.l.b16 %v3135
      %v3432 = vunpack.c.h.b16 %v3135
      %v3433 = vunpack.c.l.b16 %v3136
      %v3434 = vunpack.c.h.b16 %v3136
      %v3435 = vunpack.c.l.b16 %v3137
      %v3436 = vunpack.c.h.b16 %v3137
      %v3437 = vunpack.c.l.b16 %v3138
      %v3438 = vunpack.c.h.b16 %v3138
      %v3439 = vunpack.c.l.b16 %v3139
      %v3440 = vunpack.c.h.b16 %v3139
      %v3441 = vunpack.c.l.b16 %v3140
      %v3442 = vunpack.c.h.b16 %v3140
      %v3443 = vunpack.c.l.b16 %v3141
      %v3444 = vunpack.c.h.b16 %v3141
      %v3445 = vunpack.c.l.b16 %v3142
      %v3446 = vunpack.c.h.b16 %v3142
      %v3447 = vunpack.c.l.b16 %v3143
      %v3448 = vunpack.c.h.b16 %v3143
      %v3449 = vunpack.c.l.b16 %v3144
      %v3450 = vunpack.c.h.b16 %v3144
      %v3451 = vunpack.c.l.b16 %v3145
      %v3452 = vunpack.c.h.b16 %v3145
      %v3453 = vunpack.c.l.b16 %v3146
      %v3454 = vunpack.c.h.b16 %v3146
      %v3455 = vunpack.c.l.b16 %v3147
      %v3456 = vunpack.c.h.b16 %v3147
      %v3457 = vunpack.c.l.b16 %v3148
      %v3458 = vunpack.c.h.b16 %v3148
      %v3459 = vunpack.c.l.b16 %v3149
      %v3460 = vunpack.c.h.b16 %v3149
      %v3461 = vunpack.c.l.b16 %v3150
      %v3462 = vunpack.c.h.b16 %v3150
      %v3463 = vunpack.c.l.b16 %v3151
      %v3464 = vunpack.c.h.b16 %v3151
      %v3465 = vunpack.c.l.b16 %v3152
      %v3466 = vunpack.c.h.b16 %v3152
      %v3467 = vunpack.c.l.b16 %v3153
      %v3468 = vunpack.c.h.b16 %v3153
      %v3469 = vunpack.c.l.b16 %v3154
      %v3470 = vunpack.c.h.b16 %v3154
      %v3471 = vunpack.c.l.b16 %v3155
      %v3472 = vunpack.c.h.b16 %v3155
      %v3473 = vunpack.c.l.b16 %v3156
      %v3474 = vunpack.c.h.b16 %v3156
      %v3475 = vunpack.c.l.b16 %v3157
      %v3476 = vunpack.c.h.b16 %v3157
      %v3477 = vunpack.c.l.b16 %v3158
      %v3478 = vunpack.c.h.b16 %v3158
      %v3479 = vunpack.c.l.b16 %v3159
      %v3480 = vunpack.c.h.b16 %v3159
      %v3481 = vunpack.c.l.b16 %v3160
      %v3482 = vunpack.c.h.b16 %v3160
      %v3483 = vunpack.c.l.b16 %v3161
      %v3484 = vunpack.c.h.b16 %v3161
      %v3485 = vunpack.c.l.b16 %v3162
      %v3486 = vunpack.c.h.b16 %v3162
      %v3487 = vunpack.c.l.b16 %v3163
      %v3488 = vunpack.c.h.b16 %v3163
      %v3489 = vunpack.c.l.b16 %v3164
      %v3490 = vunpack.c.h.b16 %v3164
      %v3491 = vunpack.c.l.b16 %v3165
      %v3492 = vunpack.c.h.b16 %v3165
      %v3493 = vunpack.c.l.b16 %v3166
      %v3494 = vunpack.c.h.b16 %v3166
      %v3495 = vunpack.c.l.b16 %v3167
      %v3496 = vunpack.c.h.b16 %v3167
      %v3497 = vunpack.c.l.b16 %v3168
      %v3498 = vunpack.c.h.b16 %v3168
      %v3499 = vunpack.c.l.b16 %v3169
      %v3500 = vunpack.c.h.b16 %v3169
      %v3501 = vunpack.c.l.b16 %v3170
      %v3502 = vunpack.c.h.b16 %v3170
      %v3503 = vunpack.c.l.b16 %v3171
      %v3504 = vunpack.c.h.b16 %v3171
      %v3505 = vunpack.c.l.b16 %v3172
      %v3506 = vunpack.c.h.b16 %v3172
      %v3507 = vunpack.c.l.b16 %v3173
      %v3508 = vunpack.c.h.b16 %v3173
      %v3509 = vunpack.c.l.b16 %v3174
      %v3510 = vunpack.c.h.b16 %v3174
      %v3511 = vunpack.c.l.b16 %v3175
      %v3512 = vunpack.c.h.b16 %v3175
      %v3513 = vunpack.c.l.b16 %v3176
      %v3514 = vunpack.c.h.b16 %v3176
      %v3515 = vunpack.c.l.b16 %v3177
      %v3516 = vunpack.c.h.b16 %v3177
      %v3517 = vunpack.c.l.b16 %v3178
      %v3518 = vunpack.c.h.b16 %v3178
      %v3519 = vunpack.c.l.b16 %v3179
      %v3520 = vunpack.c.h.b16 %v3179
      %v3521 = vunpack.c.l.b16 %v3180
      %v3522 = vunpack.c.h.b16 %v3180
      %v3523 = vunpack.c.l.b16 %v3181
      %v3524 = vunpack.c.h.b16 %v3181
      %v3525 = vunpack.c.l.b16 %v3182
      %v3526 = vunpack.c.h.b16 %v3182
      %v3527 = vunpack.c.l.b16 %v3183
      %v3528 = vunpack.c.h.b16 %v3183
      %v3529 = vunpack.c.l.b16 %v3184
      %v3530 = vunpack.c.h.b16 %v3184
      %v3531 = vunpack.c.l.b16 %v3185
      %v3532 = vunpack.c.h.b16 %v3185
      %v3533 = vunpack.c.l.b16 %v3186
      %v3534 = vunpack.c.h.b16 %v3186
      %v3535 = vunpack.c.l.b16 %v3187
      %v3536 = vunpack.c.h.b16 %v3187
      %v3537 = vunpack.c.l.b16 %v3188
      %v3538 = vunpack.c.h.b16 %v3188
      %v3539 = vunpack.c.l.b16 %v3189
      %v3540 = vunpack.c.h.b16 %v3189
      %v3541 = vunpack.c.l.b16 %v3190
      %v3542 = vunpack.c.h.b16 %v3190
      %v3543 = vunpack.c.l.b16 %v3191
      %v3544 = vunpack.c.h.b16 %v3191
      %v3545 = vunpack.c.l.b16 %v3192
      %v3546 = vunpack.c.h.b16 %v3192
      %v3547 = vunpack.c.l.b16 %v3193
      %v3548 = vunpack.c.h.b16 %v3193
      %v3549 = vunpack.c.l.b16 %v3194
      %v3550 = vunpack.c.h.b16 %v3194
      %v3551 = vunpack.c.l.b16 %v3195
      %v3552 = vunpack.c.h.b16 %v3195
      %v3553 = vunpack.c.l.b16 %v3196
      %v3554 = vunpack.c.h.b16 %v3196
      %v3555 = vunpack.c.l.b16 %v3197
      %v3556 = vunpack.c.h.b16 %v3197
      %v3557 = vunpack.c.l.b16 %v3198
      %v3558 = vunpack.c.h.b16 %v3198
      %v3559 = vunpack.c.l.b16 %v3199
      %v3560 = vunpack.c.h.b16 %v3199
      %v3561 = vunpack.c.l.b16 %v3200
      %v3562 = vunpack.c.h.b16 %v3200
      %v3563 = vunpack.c.l.b16 %v3201
      %v3564 = vunpack.c.h.b16 %v3201
      %v3565 = vunpack.c.l.b16 %v3202
      %v3566 = vunpack.c.h.b16 %v3202
      %v3567 = vunpack.c.l.b16 %v3203
      %v3568 = vunpack.c.h.b16 %v3203
      %v3569 = vunpack.c.l.b16 %v3204
      %v3570 = vunpack.c.h.b16 %v3204
      %v3571 = vunpack.c.l.b16 %v3205
      %v3572 = vunpack.c.h.b16 %v3205
      %v3573 = vunpack.c.l.b16 %v3206
      %v3574 = vunpack.c.h.b16 %v3206
      %v3575 = vunpack.c.l.b16 %v3207
      %v3576 = vunpack.c.h.b16 %v3207
      %v3577 = vunpack.c.l.b16 %v3208
      %v3578 = vunpack.c.h.b16 %v3208
      %v3579 = vunpack.c.l.b16 %v3209
      %v3580 = vunpack.c.h.b16 %v3209
      %v3581 = vunpack.c.l.b16 %v3210
      %v3582 = vunpack.c.h.b16 %v3210
      %v3583 = vunpack.c.l.b16 %v3211
      %v3584 = vunpack.c.h.b16 %v3211
      %v3585 = vunpack.c.l.b16 %v3212
      %v3586 = vunpack.c.h.b16 %v3212
      %v3587 = vunpack.c.l.b16 %v3213
      %v3588 = vunpack.c.h.b16 %v3213
      %v3589 = vunpack.c.l.b16 %v3214
      %v3590 = vunpack.c.h.b16 %v3214
      %v3591 = vunpack.c.l.b16 %v3215
      %v3592 = vunpack.c.h.b16 %v3215
      %v3593 = vunpack.c.l.b16 %v3216
      %v3594 = vunpack.c.h.b16 %v3216
      %v3595 = vunpack.c.l.b16 %v3217
      %v3596 = vunpack.c.h.b16 %v3217
      %v3597 = vunpack.c.l.b16 %v3218
      %v3598 = vunpack.c.h.b16 %v3218
      %v3599 = vunpack.c.l.b16 %v3219
      %v3600 = vunpack.c.h.b16 %v3219
      %v3601 = vunpack.c.l.b16 %v3220
      %v3602 = vunpack.c.h.b16 %v3220
      %v3603 = vunpack.c.l.b16 %v3221
      %v3604 = vunpack.c.h.b16 %v3221
      %v3605 = vunpack.c.l.b16 %v3222
      %v3606 = vunpack.c.h.b16 %v3222
      %v3607 = vpack.c.b16 %v3351, %v3351
      %v3608 = vpack.c.b16 %v3352, %v3352
      %v3609 = vpack.c.b16 %v3353, %v3353
      %v3610 = vpack.c.b16 %v3354, %v3354
      %v3611 = vpack.c.b16 %v3355, %v3355
      %v3612 = vpack.c.b16 %v3356, %v3356
      %v3613 = vpack.c.b16 %v3357, %v3357
      %v3614 = vpack.c.b16 %v3358, %v3358
      %v3615 = vpack.c.b16 %v3359, %v3359
      %v3616 = vpack.c.b16 %v3360, %v3360
      %v3617 = vpack.c.b16 %v3361, %v3361
      %v3618 = vpack.c.b16 %v3362, %v3362
      %v3619 = vpack.c.b16 %v3363, %v3363
      %v3620 = vpack.c.b16 %v3364, %v3364
      %v3621 = vpack.c.b16 %v3365, %v3365
      %v3622 = vpack.c.b16 %v3366, %v3366
      %v3623 = vpack.c.b16 %v3367, %v3367
      %v3624 = vpack.c.b16 %v3368, %v3368
      %v3625 = vpack.c.b16 %v3369, %v3369
      %v3626 = vpack.c.b16 %v3370, %v3370
      %v3627 = vpack.c.b16 %v3371, %v3371
      %v3628 = vpack.c.b16 %v3372, %v3372
      %v3629 = vpack.c.b16 %v3373, %v3373
      %v3630 = vpack.c.b16 %v3374, %v3374
      %v3631 = vpack.c.b16 %v3375, %v3375
      %v3632 = vpack.c.b16 %v3376, %v3376
      %v3633 = vpack.c.b16 %v3377, %v3377
      %v3634 = vpack.c.b16 %v3378, %v3378
      %v3635 = vpack.c.b16 %v3379, %v3379
      %v3636 = vpack.c.b16 %v3380, %v3380
      %v3637 = vpack.c.b16 %v3381, %v3381
      %v3638 = vpack.c.b16 %v3382, %v3382
      %v3639 = vpack.c.b16 %v3383, %v3383
      %v3640 = vpack.c.b16 %v3384, %v3384
      %v3641 = vpack.c.b16 %v3385, %v3385
      %v3642 = vpack.c.b16 %v3386, %v3386
      %v3643 = vpack.c.b16 %v3387, %v3387
      %v3644 = vpack.c.b16 %v3388, %v3388
      %v3645 = vpack.c.b16 %v3389, %v3389
      %v3646 = vpack.c.b16 %v3390, %v3390
      %v3647 = vpack.c.b16 %v3391, %v3391
      %v3648 = vpack.c.b16 %v3392, %v3392
      %v3649 = vpack.c.b16 %v3393, %v3393
      %v3650 = vpack.c.b16 %v3394, %v3394
      %v3651 = vpack.c.b16 %v3395, %v3395
      %v3652 = vpack.c.b16 %v3396, %v3396
      %v3653 = vpack.c.b16 %v3397, %v3397
      %v3654 = vpack.c.b16 %v3398, %v3398
      %v3655 = vpack.c.b16 %v3399, %v3399
      %v3656 = vpack.c.b16 %v3400, %v3400
      %v3657 = vpack.c.b16 %v3401, %v3401
      %v3658 = vpack.c.b16 %v3402, %v3402
      %v3659 = vpack.c.b16 %v3403, %v3403
      %v3660 = vpack.c.b16 %v3404, %v3404
      %v3661 = vpack.c.b16 %v3405, %v3405
      %v3662 = vpack.c.b16 %v3406, %v3406
      %v3663 = vpack.c.b16 %v3407, %v3407
      %v3664 = vpack.c.b16 %v3408, %v3408
      %v3665 = vpack.c.b16 %v3409, %v3409
      %v3666 = vpack.c.b16 %v3410, %v3410
      %v3667 = vpack.c.b16 %v3411, %v3411
      %v3668 = vpack.c.b16 %v3412, %v3412
      %v3669 = vpack.c.b16 %v3413, %v3413
      %v3670 = vpack.c.b16 %v3414, %v3414
      %v3671 = vpack.c.b16 %v3415, %v3415
      %v3672 = vpack.c.b16 %v3416, %v3416
      %v3673 = vpack.c.b16 %v3417, %v3417
      %v3674 = vpack.c.b16 %v3418, %v3418
      %v3675 = vpack.c.b16 %v3419, %v3419
      %v3676 = vpack.c.b16 %v3420, %v3420
      %v3677 = vpack.c.b16 %v3421, %v3421
      %v3678 = vpack.c.b16 %v3422, %v3422
      %v3679 = vpack.c.b16 %v3423, %v3423
      %v3680 = vpack.c.b16 %v3424, %v3424
      %v3681 = vpack.c.b16 %v3425, %v3425
      %v3682 = vpack.c.b16 %v3426, %v3426
      %v3683 = vpack.c.b16 %v3427, %v3427
      %v3684 = vpack.c.b16 %v3428, %v3428
      %v3685 = vpack.c.b16 %v3429, %v3429
      %v3686 = vpack.c.b16 %v3430, %v3430
      %v3687 = vpack.c.b16 %v3431, %v3431
      %v3688 = vpack.c.b16 %v3432, %v3432
      %v3689 = vpack.c.b16 %v3433, %v3433
      %v3690 = vpack.c.b16 %v3434, %v3434
      %v3691 = vpack.c.b16 %v3435, %v3435
      %v3692 = vpack.c.b16 %v3436, %v3436
      %v3693 = vpack.c.b16 %v3437, %v3437
      %v3694 = vpack.c.b16 %v3438, %v3438
      %v3695 = vpack.c.b16 %v3439, %v3439
      %v3696 = vpack.c.b16 %v3440, %v3440
      %v3697 = vpack.c.b16 %v3441, %v3441
      %v3698 = vpack.c.b16 %v3442, %v3442
      %v3699 = vpack.c.b16 %v3443, %v3443
      %v3700 = vpack.c.b16 %v3444, %v3444
      %v3701 = vpack.c.b16 %v3445, %v3445
      %v3702 = vpack.c.b16 %v3446, %v3446
      %v3703 = vpack.c.b16 %v3447, %v3447
      %v3704 = vpack.c.b16 %v3448, %v3448
      %v3705 = vpack.c.b16 %v3449, %v3449
      %v3706 = vpack.c.b16 %v3450, %v3450
      %v3707 = vpack.c.b16 %v3451, %v3451
      %v3708 = vpack.c.b16 %v3452, %v3452
      %v3709 = vpack.c.b16 %v3453, %v3453
      %v3710 = vpack.c.b16 %v3454, %v3454
      %v3711 = vpack.c.b16 %v3455, %v3455
      %v3712 = vpack.c.b16 %v3456, %v3456
      %v3713 = vpack.c.b16 %v3457, %v3457
      %v3714 = vpack.c.b16 %v3458, %v3458
      %v3715 = vpack.c.b16 %v3459, %v3459
      %v3716 = vpack.c.b16 %v3460, %v3460
      %v3717 = vpack.c.b16 %v3461, %v3461
      %v3718 = vpack.c.b16 %v3462, %v3462
      %v3719 = vpack.c.b16 %v3463, %v3463
      %v3720 = vpack.c.b16 %v3464, %v3464
      %v3721 = vpack.c.b16 %v3465, %v3465
      %v3722 = vpack.c.b16 %v3466, %v3466
      %v3723 = vpack.c.b16 %v3467, %v3467
      %v3724 = vpack.c.b16 %v3468, %v3468
      %v3725 = vpack.c.b16 %v3469, %v3469
      %v3726 = vpack.c.b16 %v3470, %v3470
      %v3727 = vpack.c.b16 %v3471, %v3471
      %v3728 = vpack.c.b16 %v3472, %v3472
      %v3729 = vpack.c.b16 %v3473, %v3473
      %v3730 = vpack.c.b16 %v3474, %v3474
      %v3731 = vpack.c.b16 %v3475, %v3475
      %v3732 = vpack.c.b16 %v3476, %v3476
      %v3733 = vpack.c.b16 %v3477, %v3477
      %v3734 = vpack.c.b16 %v3478, %v3478
      %v3735 = vpack.c.b16 %v3479, %v3479
      %v3736 = vpack.c.b16 %v3480, %v3480
      %v3737 = vpack.c.b16 %v3481, %v3481
      %v3738 = vpack.c.b16 %v3482, %v3482
      %v3739 = vpack.c.b16 %v3483, %v3483
      %v3740 = vpack.c.b16 %v3484, %v3484
      %v3741 = vpack.c.b16 %v3485, %v3485
      %v3742 = vpack.c.b16 %v3486, %v3486
      %v3743 = vpack.c.b16 %v3487, %v3487
      %v3744 = vpack.c.b16 %v3488, %v3488
      %v3745 = vpack.c.b16 %v3489, %v3489
      %v3746 = vpack.c.b16 %v3490, %v3490
      %v3747 = vpack.c.b16 %v3491, %v3491
      %v3748 = vpack.c.b16 %v3492, %v3492
      %v3749 = vpack.c.b16 %v3493, %v3493
      %v3750 = vpack.c.b16 %v3494, %v3494
      %v3751 = vpack.c.b16 %v3495, %v3495
      %v3752 = vpack.c.b16 %v3496, %v3496
      %v3753 = vpack.c.b16 %v3497, %v3497
      %v3754 = vpack.c.b16 %v3498, %v3498
      %v3755 = vpack.c.b16 %v3499, %v3499
      %v3756 = vpack.c.b16 %v3500, %v3500
      %v3757 = vpack.c.b16 %v3501, %v3501
      %v3758 = vpack.c.b16 %v3502, %v3502
      %v3759 = vpack.c.b16 %v3503, %v3503
      %v3760 = vpack.c.b16 %v3504, %v3504
      %v3761 = vpack.c.b16 %v3505, %v3505
      %v3762 = vpack.c.b16 %v3506, %v3506
      %v3763 = vpack.c.b16 %v3507, %v3507
      %v3764 = vpack.c.b16 %v3508, %v3508
      %v3765 = vpack.c.b16 %v3509, %v3509
      %v3766 = vpack.c.b16 %v3510, %v3510
      %v3767 = vpack.c.b16 %v3511, %v3511
      %v3768 = vpack.c.b16 %v3512, %v3512
      %v3769 = vpack.c.b16 %v3513, %v3513
      %v3770 = vpack.c.b16 %v3514, %v3514
      %v3771 = vpack.c.b16 %v3515, %v3515
      %v3772 = vpack.c.b16 %v3516, %v3516
      %v3773 = vpack.c.b16 %v3517, %v3517
      %v3774 = vpack.c.b16 %v3518, %v3518
      %v3775 = vpack.c.b16 %v3519, %v3519
      %v3776 = vpack.c.b16 %v3520, %v3520
      %v3777 = vpack.c.b16 %v3521, %v3521
      %v3778 = vpack.c.b16 %v3522, %v3522
      %v3779 = vpack.c.b16 %v3523, %v3523
      %v3780 = vpack.c.b16 %v3524, %v3524
      %v3781 = vpack.c.b16 %v3525, %v3525
      %v3782 = vpack.c.b16 %v3526, %v3526
      %v3783 = vpack.c.b16 %v3527, %v3527
      %v3784 = vpack.c.b16 %v3528, %v3528
      %v3785 = vpack.c.b16 %v3529, %v3529
      %v3786 = vpack.c.b16 %v3530, %v3530
      %v3787 = vpack.c.b16 %v3531, %v3531
      %v3788 = vpack.c.b16 %v3532, %v3532
      %v3789 = vpack.c.b16 %v3533, %v3533
      %v3790 = vpack.c.b16 %v3534, %v3534
      %v3791 = vpack.c.b16 %v3535, %v3535
      %v3792 = vpack.c.b16 %v3536, %v3536
      %v3793 = vpack.c.b16 %v3537, %v3537
      %v3794 = vpack.c.b16 %v3538, %v3538
      %v3795 = vpack.c.b16 %v3539, %v3539
      %v3796 = vpack.c.b16 %v3540, %v3540
      %v3797 = vpack.c.b16 %v3541, %v3541
      %v3798 = vpack.c.b16 %v3542, %v3542
      %v3799 = vpack.c.b16 %v3543, %v3543
      %v3800 = vpack.c.b16 %v3544, %v3544
      %v3801 = vpack.c.b16 %v3545, %v3545
      %v3802 = vpack.c.b16 %v3546, %v3546
      %v3803 = vpack.c.b16 %v3547, %v3547
      %v3804 = vpack.c.b16 %v3548, %v3548
      %v3805 = vpack.c.b16 %v3549, %v3549
      %v3806 = vpack.c.b16 %v3550, %v3550
      %v3807 = vpack.c.b16 %v3551, %v3551
      %v3808 = vpack.c.b16 %v3552, %v3552
      %v3809 = vpack.c.b16 %v3553, %v3553
      %v3810 = vpack.c.b16 %v3554, %v3554
      %v3811 = vpack.c.b16 %v3555, %v3555
      %v3812 = vpack.c.b16 %v3556, %v3556
      %v3813 = vpack.c.b16 %v3557, %v3557
      %v3814 = vpack.c.b16 %v3558, %v3558
      %v3815 = vpack.c.b16 %v3559, %v3559
      %v3816 = vpack.c.b16 %v3560, %v3560
      %v3817 = vpack.c.b16 %v3561, %v3561
      %v3818 = vpack.c.b16 %v3562, %v3562
      %v3819 = vpack.c.b16 %v3563, %v3563
      %v3820 = vpack.c.b16 %v3564, %v3564
      %v3821 = vpack.c.b16 %v3565, %v3565
      %v3822 = vpack.c.b16 %v3566, %v3566
      %v3823 = vpack.c.b16 %v3567, %v3567
      %v3824 = vpack.c.b16 %v3568, %v3568
      %v3825 = vpack.c.b16 %v3569, %v3569
      %v3826 = vpack.c.b16 %v3570, %v3570
      %v3827 = vpack.c.b16 %v3571, %v3571
      %v3828 = vpack.c.b16 %v3572, %v3572
      %v3829 = vpack.c.b16 %v3573, %v3573
      %v3830 = vpack.c.b16 %v3574, %v3574
      %v3831 = vpack.c.b16 %v3575, %v3575
      %v3832 = vpack.c.b16 %v3576, %v3576
      %v3833 = vpack.c.b16 %v3577, %v3577
      %v3834 = vpack.c.b16 %v3578, %v3578
      %v3835 = vpack.c.b16 %v3579, %v3579
      %v3836 = vpack.c.b16 %v3580, %v3580
      %v3837 = vpack.c.b16 %v3581, %v3581
      %v3838 = vpack.c.b16 %v3582, %v3582
      %v3839 = vpack.c.b16 %v3583, %v3583
      %v3840 = vpack.c.b16 %v3584, %v3584
      %v3841 = vpack.c.b16 %v3585, %v3585
      %v3842 = vpack.c.b16 %v3586, %v3586
      %v3843 = vpack.c.b16 %v3587, %v3587
      %v3844 = vpack.c.b16 %v3588, %v3588
      %v3845 = vpack.c.b16 %v3589, %v3589
      %v3846 = vpack.c.b16 %v3590, %v3590
      %v3847 = vpack.c.b16 %v3591, %v3591
      %v3848 = vpack.c.b16 %v3592, %v3592
      %v3849 = vpack.c.b16 %v3593, %v3593
      %v3850 = vpack.c.b16 %v3594, %v3594
      %v3851 = vpack.c.b16 %v3595, %v3595
      %v3852 = vpack.c.b16 %v3596, %v3596
      %v3853 = vpack.c.b16 %v3597, %v3597
      %v3854 = vpack.c.b16 %v3598, %v3598
      %v3855 = vpack.c.b16 %v3599, %v3599
      %v3856 = vpack.c.b16 %v3600, %v3600
      %v3857 = vpack.c.b16 %v3601, %v3601
      %v3858 = vpack.c.b16 %v3602, %v3602
      %v3859 = vpack.c.b16 %v3603, %v3603
      %v3860 = vpack.c.b16 %v3604, %v3604
      %v3861 = vpack.c.b16 %v3605, %v3605
      %v3862 = vpack.c.b16 %v3606, %v3606
      %4119 = vst [vmem:[%s172] sm:$0xf] %v3607
      %4120 = vst [vmem:[%s172 + $0x4] sm:$0xf] %v3608
      %4121 = vst [vmem:[%s172 + $0x8] sm:$0xf] %v3609
      %4122 = vst [vmem:[%s172 + $0xc] sm:$0xf] %v3610
      %4123 = vst [vmem:[%s172 + $0x10] sm:$0xf] %v3611
      %4124 = vst [vmem:[%s172 + $0x14] sm:$0xf] %v3612
      %4125 = vst [vmem:[%s172 + $0x18] sm:$0xf] %v3613
      %4126 = vst [vmem:[%s172 + $0x1c] sm:$0xf] %v3614
      %4127 = vst [vmem:[%s172 + $0x20] sm:$0xf] %v3615
      %4128 = vst [vmem:[%s172 + $0x24] sm:$0xf] %v3616
      %4129 = vst [vmem:[%s172 + $0x28] sm:$0xf] %v3617
      %4130 = vst [vmem:[%s172 + $0x2c] sm:$0xf] %v3618
      %4131 = vst [vmem:[%s172 + $0x30] sm:$0xf] %v3619
      %4132 = vst [vmem:[%s172 + $0x34] sm:$0xf] %v3620
      %4133 = vst [vmem:[%s172 + $0x38] sm:$0xf] %v3621
      %4134 = vst [vmem:[%s172 + $0x3c] sm:$0xf] %v3622
      %4135 = vst [vmem:[%s172 + $0x40] sm:$0xf] %v3623
      %4136 = vst [vmem:[%s172 + $0x44] sm:$0xf] %v3624
      %4137 = vst [vmem:[%s172 + $0x48] sm:$0xf] %v3625
      %4138 = vst [vmem:[%s172 + $0x4c] sm:$0xf] %v3626
      %4139 = vst [vmem:[%s172 + $0x50] sm:$0xf] %v3627
      %4140 = vst [vmem:[%s172 + $0x54] sm:$0xf] %v3628
      %4141 = vst [vmem:[%s172 + $0x58] sm:$0xf] %v3629
      %4142 = vst [vmem:[%s172 + $0x5c] sm:$0xf] %v3630
      %4143 = vst [vmem:[%s172 + $0x60] sm:$0xf] %v3631
      %4144 = vst [vmem:[%s172 + $0x64] sm:$0xf] %v3632
      %4145 = vst [vmem:[%s172 + $0x68] sm:$0xf] %v3633
      %4146 = vst [vmem:[%s172 + $0x6c] sm:$0xf] %v3634
      %4147 = vst [vmem:[%s172 + $0x70] sm:$0xf] %v3635
      %4148 = vst [vmem:[%s172 + $0x74] sm:$0xf] %v3636
      %4149 = vst [vmem:[%s172 + $0x78] sm:$0xf] %v3637
      %4150 = vst [vmem:[%s172 + $0x7c] sm:$0xf] %v3638
      %4151 = vst [vmem:[%s172 + $0x80] sm:$0xf] %v3639
      %4152 = vst [vmem:[%s172 + $0x84] sm:$0xf] %v3640
      %4153 = vst [vmem:[%s172 + $0x88] sm:$0xf] %v3641
      %4154 = vst [vmem:[%s172 + $0x8c] sm:$0xf] %v3642
      %4155 = vst [vmem:[%s172 + $0x90] sm:$0xf] %v3643
      %4156 = vst [vmem:[%s172 + $0x94] sm:$0xf] %v3644
      %4157 = vst [vmem:[%s172 + $0x98] sm:$0xf] %v3645
      %4158 = vst [vmem:[%s172 + $0x9c] sm:$0xf] %v3646
      %4159 = vst [vmem:[%s172 + $0xa0] sm:$0xf] %v3647
      %4160 = vst [vmem:[%s172 + $0xa4] sm:$0xf] %v3648
      %4161 = vst [vmem:[%s172 + $0xa8] sm:$0xf] %v3649
      %4162 = vst [vmem:[%s172 + $0xac] sm:$0xf] %v3650
      %4163 = vst [vmem:[%s172 + $0xb0] sm:$0xf] %v3651
      %4164 = vst [vmem:[%s172 + $0xb4] sm:$0xf] %v3652
      %4165 = vst [vmem:[%s172 + $0xb8] sm:$0xf] %v3653
      %4166 = vst [vmem:[%s172 + $0xbc] sm:$0xf] %v3654
      %4167 = vst [vmem:[%s172 + $0xc0] sm:$0xf] %v3655
      %4168 = vst [vmem:[%s172 + $0xc4] sm:$0xf] %v3656
      %4169 = vst [vmem:[%s172 + $0xc8] sm:$0xf] %v3657
      %4170 = vst [vmem:[%s172 + $0xcc] sm:$0xf] %v3658
      %4171 = vst [vmem:[%s172 + $0xd0] sm:$0xf] %v3659
      %4172 = vst [vmem:[%s172 + $0xd4] sm:$0xf] %v3660
      %4173 = vst [vmem:[%s172 + $0xd8] sm:$0xf] %v3661
      %4174 = vst [vmem:[%s172 + $0xdc] sm:$0xf] %v3662
      %4175 = vst [vmem:[%s172 + $0xe0] sm:$0xf] %v3663
      %4176 = vst [vmem:[%s172 + $0xe4] sm:$0xf] %v3664
      %4177 = vst [vmem:[%s172 + $0xe8] sm:$0xf] %v3665
      %4178 = vst [vmem:[%s172 + $0xec] sm:$0xf] %v3666
      %4179 = vst [vmem:[%s172 + $0xf0] sm:$0xf] %v3667
      %4180 = vst [vmem:[%s172 + $0xf4] sm:$0xf] %v3668
      %4181 = vst [vmem:[%s172 + $0xf8] sm:$0xf] %v3669
      %4182 = vst [vmem:[%s172 + $0xfc] sm:$0xf] %v3670
      %4183 = vst [vmem:[%s172 + $0x100] sm:$0xf] %v3671
      %4184 = vst [vmem:[%s172 + $0x104] sm:$0xf] %v3672
      %4185 = vst [vmem:[%s172 + $0x108] sm:$0xf] %v3673
      %4186 = vst [vmem:[%s172 + $0x10c] sm:$0xf] %v3674
      %4187 = vst [vmem:[%s172 + $0x110] sm:$0xf] %v3675
      %4188 = vst [vmem:[%s172 + $0x114] sm:$0xf] %v3676
      %4189 = vst [vmem:[%s172 + $0x118] sm:$0xf] %v3677
      %4190 = vst [vmem:[%s172 + $0x11c] sm:$0xf] %v3678
      %4191 = vst [vmem:[%s172 + $0x120] sm:$0xf] %v3679
      %4192 = vst [vmem:[%s172 + $0x124] sm:$0xf] %v3680
      %4193 = vst [vmem:[%s172 + $0x128] sm:$0xf] %v3681
      %4194 = vst [vmem:[%s172 + $0x12c] sm:$0xf] %v3682
      %4195 = vst [vmem:[%s172 + $0x130] sm:$0xf] %v3683
      %4196 = vst [vmem:[%s172 + $0x134] sm:$0xf] %v3684
      %4197 = vst [vmem:[%s172 + $0x138] sm:$0xf] %v3685
      %4198 = vst [vmem:[%s172 + $0x13c] sm:$0xf] %v3686
      %4199 = vst [vmem:[%s172 + $0x140] sm:$0xf] %v3687
      %4200 = vst [vmem:[%s172 + $0x144] sm:$0xf] %v3688
      %4201 = vst [vmem:[%s172 + $0x148] sm:$0xf] %v3689
      %4202 = vst [vmem:[%s172 + $0x14c] sm:$0xf] %v3690
      %4203 = vst [vmem:[%s172 + $0x150] sm:$0xf] %v3691
      %4204 = vst [vmem:[%s172 + $0x154] sm:$0xf] %v3692
      %4205 = vst [vmem:[%s172 + $0x158] sm:$0xf] %v3693
      %4206 = vst [vmem:[%s172 + $0x15c] sm:$0xf] %v3694
      %4207 = vst [vmem:[%s172 + $0x160] sm:$0xf] %v3695
      %4208 = vst [vmem:[%s172 + $0x164] sm:$0xf] %v3696
      %4209 = vst [vmem:[%s172 + $0x168] sm:$0xf] %v3697
      %4210 = vst [vmem:[%s172 + $0x16c] sm:$0xf] %v3698
      %4211 = vst [vmem:[%s172 + $0x170] sm:$0xf] %v3699
      %4212 = vst [vmem:[%s172 + $0x174] sm:$0xf] %v3700
      %4213 = vst [vmem:[%s172 + $0x178] sm:$0xf] %v3701
      %4214 = vst [vmem:[%s172 + $0x17c] sm:$0xf] %v3702
      %4215 = vst [vmem:[%s172 + $0x180] sm:$0xf] %v3703
      %4216 = vst [vmem:[%s172 + $0x184] sm:$0xf] %v3704
      %4217 = vst [vmem:[%s172 + $0x188] sm:$0xf] %v3705
      %4218 = vst [vmem:[%s172 + $0x18c] sm:$0xf] %v3706
      %4219 = vst [vmem:[%s172 + $0x190] sm:$0xf] %v3707
      %4220 = vst [vmem:[%s172 + $0x194] sm:$0xf] %v3708
      %4221 = vst [vmem:[%s172 + $0x198] sm:$0xf] %v3709
      %4222 = vst [vmem:[%s172 + $0x19c] sm:$0xf] %v3710
      %4223 = vst [vmem:[%s172 + $0x1a0] sm:$0xf] %v3711
      %4224 = vst [vmem:[%s172 + $0x1a4] sm:$0xf] %v3712
      %4225 = vst [vmem:[%s172 + $0x1a8] sm:$0xf] %v3713
      %4226 = vst [vmem:[%s172 + $0x1ac] sm:$0xf] %v3714
      %4227 = vst [vmem:[%s172 + $0x1b0] sm:$0xf] %v3715
      %4228 = vst [vmem:[%s172 + $0x1b4] sm:$0xf] %v3716
      %4229 = vst [vmem:[%s172 + $0x1b8] sm:$0xf] %v3717
      %4230 = vst [vmem:[%s172 + $0x1bc] sm:$0xf] %v3718
      %4231 = vst [vmem:[%s172 + $0x1c0] sm:$0xf] %v3719
      %4232 = vst [vmem:[%s172 + $0x1c4] sm:$0xf] %v3720
      %4233 = vst [vmem:[%s172 + $0x1c8] sm:$0xf] %v3721
      %4234 = vst [vmem:[%s172 + $0x1cc] sm:$0xf] %v3722
      %4235 = vst [vmem:[%s172 + $0x1d0] sm:$0xf] %v3723
      %4236 = vst [vmem:[%s172 + $0x1d4] sm:$0xf] %v3724
      %4237 = vst [vmem:[%s172 + $0x1d8] sm:$0xf] %v3725
      %4238 = vst [vmem:[%s172 + $0x1dc] sm:$0xf] %v3726
      %4239 = vst [vmem:[%s172 + $0x1e0] sm:$0xf] %v3727
      %4240 = vst [vmem:[%s172 + $0x1e4] sm:$0xf] %v3728
      %4241 = vst [vmem:[%s172 + $0x1e8] sm:$0xf] %v3729
      %4242 = vst [vmem:[%s172 + $0x1ec] sm:$0xf] %v3730
      %4243 = vst [vmem:[%s172 + $0x1f0] sm:$0xf] %v3731
      %4244 = vst [vmem:[%s172 + $0x1f4] sm:$0xf] %v3732
      %4245 = vst [vmem:[%s172 + $0x1f8] sm:$0xf] %v3733
      %4246 = vst [vmem:[%s172 + $0x1fc] sm:$0xf] %v3734
      %4247 = vst [vmem:[%s172 + $0x200] sm:$0xf] %v3735
      %4248 = vst [vmem:[%s172 + $0x204] sm:$0xf] %v3736
      %4249 = vst [vmem:[%s172 + $0x208] sm:$0xf] %v3737
      %4250 = vst [vmem:[%s172 + $0x20c] sm:$0xf] %v3738
      %4251 = vst [vmem:[%s172 + $0x210] sm:$0xf] %v3739
      %4252 = vst [vmem:[%s172 + $0x214] sm:$0xf] %v3740
      %4253 = vst [vmem:[%s172 + $0x218] sm:$0xf] %v3741
      %4254 = vst [vmem:[%s172 + $0x21c] sm:$0xf] %v3742
      %4255 = vst [vmem:[%s172 + $0x220] sm:$0xf] %v3743
      %4256 = vst [vmem:[%s172 + $0x224] sm:$0xf] %v3744
      %4257 = vst [vmem:[%s172 + $0x228] sm:$0xf] %v3745
      %4258 = vst [vmem:[%s172 + $0x22c] sm:$0xf] %v3746
      %4259 = vst [vmem:[%s172 + $0x230] sm:$0xf] %v3747
      %4260 = vst [vmem:[%s172 + $0x234] sm:$0xf] %v3748
      %4261 = vst [vmem:[%s172 + $0x238] sm:$0xf] %v3749
      %4262 = vst [vmem:[%s172 + $0x23c] sm:$0xf] %v3750
      %4263 = vst [vmem:[%s172 + $0x240] sm:$0xf] %v3751
      %4264 = vst [vmem:[%s172 + $0x244] sm:$0xf] %v3752
      %4265 = vst [vmem:[%s172 + $0x248] sm:$0xf] %v3753
      %4266 = vst [vmem:[%s172 + $0x24c] sm:$0xf] %v3754
      %4267 = vst [vmem:[%s172 + $0x250] sm:$0xf] %v3755
      %4268 = vst [vmem:[%s172 + $0x254] sm:$0xf] %v3756
      %4269 = vst [vmem:[%s172 + $0x258] sm:$0xf] %v3757
      %4270 = vst [vmem:[%s172 + $0x25c] sm:$0xf] %v3758
      %4271 = vst [vmem:[%s172 + $0x260] sm:$0xf] %v3759
      %4272 = vst [vmem:[%s172 + $0x264] sm:$0xf] %v3760
      %4273 = vst [vmem:[%s172 + $0x268] sm:$0xf] %v3761
      %4274 = vst [vmem:[%s172 + $0x26c] sm:$0xf] %v3762
      %4275 = vst [vmem:[%s172 + $0x270] sm:$0xf] %v3763
      %4276 = vst [vmem:[%s172 + $0x274] sm:$0xf] %v3764
      %4277 = vst [vmem:[%s172 + $0x278] sm:$0xf] %v3765
      %4278 = vst [vmem:[%s172 + $0x27c] sm:$0xf] %v3766
      %4279 = vst [vmem:[%s172 + $0x280] sm:$0xf] %v3767
      %4280 = vst [vmem:[%s172 + $0x284] sm:$0xf] %v3768
      %4281 = vst [vmem:[%s172 + $0x288] sm:$0xf] %v3769
      %4282 = vst [vmem:[%s172 + $0x28c] sm:$0xf] %v3770
      %4283 = vst [vmem:[%s172 + $0x290] sm:$0xf] %v3771
      %4284 = vst [vmem:[%s172 + $0x294] sm:$0xf] %v3772
      %4285 = vst [vmem:[%s172 + $0x298] sm:$0xf] %v3773
      %4286 = vst [vmem:[%s172 + $0x29c] sm:$0xf] %v3774
      %4287 = vst [vmem:[%s172 + $0x2a0] sm:$0xf] %v3775
      %4288 = vst [vmem:[%s172 + $0x2a4] sm:$0xf] %v3776
      %4289 = vst [vmem:[%s172 + $0x2a8] sm:$0xf] %v3777
      %4290 = vst [vmem:[%s172 + $0x2ac] sm:$0xf] %v3778
      %4291 = vst [vmem:[%s172 + $0x2b0] sm:$0xf] %v3779
      %4292 = vst [vmem:[%s172 + $0x2b4] sm:$0xf] %v3780
      %4293 = vst [vmem:[%s172 + $0x2b8] sm:$0xf] %v3781
      %4294 = vst [vmem:[%s172 + $0x2bc] sm:$0xf] %v3782
      %4295 = vst [vmem:[%s172 + $0x2c0] sm:$0xf] %v3783
      %4296 = vst [vmem:[%s172 + $0x2c4] sm:$0xf] %v3784
      %4297 = vst [vmem:[%s172 + $0x2c8] sm:$0xf] %v3785
      %4298 = vst [vmem:[%s172 + $0x2cc] sm:$0xf] %v3786
      %4299 = vst [vmem:[%s172 + $0x2d0] sm:$0xf] %v3787
      %4300 = vst [vmem:[%s172 + $0x2d4] sm:$0xf] %v3788
      %4301 = vst [vmem:[%s172 + $0x2d8] sm:$0xf] %v3789
      %4302 = vst [vmem:[%s172 + $0x2dc] sm:$0xf] %v3790
      %4303 = vst [vmem:[%s172 + $0x2e0] sm:$0xf] %v3791
      %4304 = vst [vmem:[%s172 + $0x2e4] sm:$0xf] %v3792
      %4305 = vst [vmem:[%s172 + $0x2e8] sm:$0xf] %v3793
      %4306 = vst [vmem:[%s172 + $0x2ec] sm:$0xf] %v3794
      %4307 = vst [vmem:[%s172 + $0x2f0] sm:$0xf] %v3795
      %4308 = vst [vmem:[%s172 + $0x2f4] sm:$0xf] %v3796
      %4309 = vst [vmem:[%s172 + $0x2f8] sm:$0xf] %v3797
      %4310 = vst [vmem:[%s172 + $0x2fc] sm:$0xf] %v3798
      %4311 = vst [vmem:[%s172 + $0x300] sm:$0xf] %v3799
      %4312 = vst [vmem:[%s172 + $0x304] sm:$0xf] %v3800
      %4313 = vst [vmem:[%s172 + $0x308] sm:$0xf] %v3801
      %4314 = vst [vmem:[%s172 + $0x30c] sm:$0xf] %v3802
      %4315 = vst [vmem:[%s172 + $0x310] sm:$0xf] %v3803
      %4316 = vst [vmem:[%s172 + $0x314] sm:$0xf] %v3804
      %4317 = vst [vmem:[%s172 + $0x318] sm:$0xf] %v3805
      %4318 = vst [vmem:[%s172 + $0x31c] sm:$0xf] %v3806
      %4319 = vst [vmem:[%s172 + $0x320] sm:$0xf] %v3807
      %4320 = vst [vmem:[%s172 + $0x324] sm:$0xf] %v3808
      %4321 = vst [vmem:[%s172 + $0x328] sm:$0xf] %v3809
      %4322 = vst [vmem:[%s172 + $0x32c] sm:$0xf] %v3810
      %4323 = vst [vmem:[%s172 + $0x330] sm:$0xf] %v3811
      %4324 = vst [vmem:[%s172 + $0x334] sm:$0xf] %v3812
      %4325 = vst [vmem:[%s172 + $0x338] sm:$0xf] %v3813
      %4326 = vst [vmem:[%s172 + $0x33c] sm:$0xf] %v3814
      %4327 = vst [vmem:[%s172 + $0x340] sm:$0xf] %v3815
      %4328 = vst [vmem:[%s172 + $0x344] sm:$0xf] %v3816
      %4329 = vst [vmem:[%s172 + $0x348] sm:$0xf] %v3817
      %4330 = vst [vmem:[%s172 + $0x34c] sm:$0xf] %v3818
      %4331 = vst [vmem:[%s172 + $0x350] sm:$0xf] %v3819
      %4332 = vst [vmem:[%s172 + $0x354] sm:$0xf] %v3820
      %4333 = vst [vmem:[%s172 + $0x358] sm:$0xf] %v3821
      %4334 = vst [vmem:[%s172 + $0x35c] sm:$0xf] %v3822
      %4335 = vst [vmem:[%s172 + $0x360] sm:$0xf] %v3823
      %4336 = vst [vmem:[%s172 + $0x364] sm:$0xf] %v3824
      %4337 = vst [vmem:[%s172 + $0x368] sm:$0xf] %v3825
      %4338 = vst [vmem:[%s172 + $0x36c] sm:$0xf] %v3826
      %4339 = vst [vmem:[%s172 + $0x370] sm:$0xf] %v3827
      %4340 = vst [vmem:[%s172 + $0x374] sm:$0xf] %v3828
      %4341 = vst [vmem:[%s172 + $0x378] sm:$0xf] %v3829
      %4342 = vst [vmem:[%s172 + $0x37c] sm:$0xf] %v3830
      %4343 = vst [vmem:[%s172 + $0x380] sm:$0xf] %v3831
      %4344 = vst [vmem:[%s172 + $0x384] sm:$0xf] %v3832
      %4345 = vst [vmem:[%s172 + $0x388] sm:$0xf] %v3833
      %4346 = vst [vmem:[%s172 + $0x38c] sm:$0xf] %v3834
      %4347 = vst [vmem:[%s172 + $0x390] sm:$0xf] %v3835
      %4348 = vst [vmem:[%s172 + $0x394] sm:$0xf] %v3836
      %4349 = vst [vmem:[%s172 + $0x398] sm:$0xf] %v3837
      %4350 = vst [vmem:[%s172 + $0x39c] sm:$0xf] %v3838
      %4351 = vst [vmem:[%s172 + $0x3a0] sm:$0xf] %v3839
      %4352 = vst [vmem:[%s172 + $0x3a4] sm:$0xf] %v3840
      %4353 = vst [vmem:[%s172 + $0x3a8] sm:$0xf] %v3841
      %4354 = vst [vmem:[%s172 + $0x3ac] sm:$0xf] %v3842
      %4355 = vst [vmem:[%s172 + $0x3b0] sm:$0xf] %v3843
      %4356 = vst [vmem:[%s172 + $0x3b4] sm:$0xf] %v3844
      %4357 = vst [vmem:[%s172 + $0x3b8] sm:$0xf] %v3845
      %4358 = vst [vmem:[%s172 + $0x3bc] sm:$0xf] %v3846
      %4359 = vst [vmem:[%s172 + $0x3c0] sm:$0xf] %v3847
      %4360 = vst [vmem:[%s172 + $0x3c4] sm:$0xf] %v3848
      %4361 = vst [vmem:[%s172 + $0x3c8] sm:$0xf] %v3849
      %4362 = vst [vmem:[%s172 + $0x3cc] sm:$0xf] %v3850
      %4363 = vst [vmem:[%s172 + $0x3d0] sm:$0xf] %v3851
      %4364 = vst [vmem:[%s172 + $0x3d4] sm:$0xf] %v3852
      %4365 = vst [vmem:[%s172 + $0x3d8] sm:$0xf] %v3853
      %4366 = vst [vmem:[%s172 + $0x3dc] sm:$0xf] %v3854
      %4367 = vst [vmem:[%s172 + $0x3e0] sm:$0xf] %v3855
      %4368 = vst [vmem:[%s172 + $0x3e4] sm:$0xf] %v3856
      %4369 = vst [vmem:[%s172 + $0x3e8] sm:$0xf] %v3857
      %4370 = vst [vmem:[%s172 + $0x3ec] sm:$0xf] %v3858
      %4371 = vst [vmem:[%s172 + $0x3f0] sm:$0xf] %v3859
      %4372 = vst [vmem:[%s172 + $0x3f4] sm:$0xf] %v3860
      %4373 = vst [vmem:[%s172 + $0x3f8] sm:$0xf] %v3861
      %4374 = vst [vmem:[%s172 + $0x3fc] sm:$0xf] %v3862
      %s4375 = smul.u32 256, %s14
      %p4376 = scmp.lt.s32.totalorder %s4375, 1023
      %s4377 = scalar_select %p4376, %s4375, 1023
      %s4378 = smul.addr %s4377, 4
      %s4379 = scalar_lea.vmem %s3, %s4378
      // Predicated region
      $region33: #{_lambda_.5} parent=31 // pred_check
        %p4380 = pneg %p100
      $region34: #{_lambda_.5} parent=31 // pred_check_branch
        %4382 = sbr.rel (%p4380) target = $region36
      $region35: #{_lambda_.5} parent=31 // pred_region
        %s4383 = smul.u32 256, %s14
      $region36: #{_lambda_.5} parent=31 // pred_fallthru
        _
    $region32: #{_lambda_.5} parent=5 // pred_fallthru
      _
    %p4384 = scmp.le.s32.totalorder 2, %s9
    // Predicated region
    $region37: #{_lambda_.5} parent=5 // pred_check
      %p4385 = pneg %p4384
    $region38: #{_lambda_.5} parent=5 // pred_check_branch
      %4387 = sbr.rel (%p4385) target = $region40
    $region39: #{_lambda_.5} parent=5 // pred_region
      %s4388 = ssub.s32 %s9, 2
      // Predicated region
      $region41: #{_lambda_.5} parent=39 // pred_check
        %p4389 = pneg %p106
      $region42: #{_lambda_.5} parent=39 // pred_check_branch
        %4391 = sbr.rel (%p4389) target = $region44
      $region43: #{_lambda_.5} parent=39 // pred_region
        %s4392 = smul.u32 256, %s15
        %p4393 = scmp.lt.s32.totalorder %s4392, 1023
        %s4394 = scalar_select %p4393, %s4392, 1023
        %s4395 = smul.addr %s4394, 4
        %s4396 = scalar_lea.vmem %s3, %s4395
      $region44: #{_lambda_.5} parent=39 // pred_fallthru
        _
    $region40: #{_lambda_.5} parent=5 // pred_fallthru
      _
  $region6: #{_lambda_.5} parent=0 // loop_footer
    %s13 = sadd.s32 1, %s9
  $region7: #{_lambda_.5} parent=0 // loop_footer_branch
    %8 = sbr.rel target = $region3
  $region8: #{_lambda_.5} parent=0 // loop_exit
    _

// kernel: _lambda_.6
$region0: #{_lambda_.6}
  #allocation0 [shape = 'u32[]', space=smem, size = 0x4, offset = 0x4, fixed_abs, tag = 'smem constant byte address 0x4 - core index']
  #allocation1 [shape = 'u32[144,128]{1,0:T(1,128)}', space=vmem, size = 0x12000, scoped, tag = 'internal scratch']
  %s0 = inlined_call_operand.vmem [shape: bf16[2048,128], index: 0, kind: input, shape index: {}]
  %s1 = inlined_call_operand.vmem [shape: bf16[128,128], index: 1, kind: input, shape index: {}]
  %s2 = inlined_call_operand.vmem [shape: f32[1,128], index: 2, kind: input, shape index: {}]
  %s3 = inlined_call_operand.vmem [shape: bf16[2048,128], index: 3, kind: output, shape index: {}]
  %s4 = sld [smem:[#allocation0]]
  $region45: #{_lambda_.6} parent=0
    _
  %s6 = ssub.s32 1, %s4
  %s7 = scalar_select 0, %s6, %s4
  loop: start=0, step=1, limit=4
  $region2: #{_lambda_.6} parent=0 // loop_pre_header
    _
  $region3: #{_lambda_.6} parent=0 // loop_header
    %s9 = sphi 0, %s13
    %p10 = scmp.ge.s32.totalorder %s9, 4
    %s19 = sphi 0, %s21
    %s22 = sphi 0, %s19
    %s23 = sphi 0, %s22
    %s39 = sphi 0, %s23
    %s43 = sphi 0, %s43
    %s45 = sphi 0, %s43
    %s46 = sphi 0, %s45
    %s60 = sphi 0, %s46
    %s64 = sphi 0, %s64
    %s66 = sphi 0, %s64
    %s67 = sphi 0, %s66
    %s81 = sphi 0, %s67
    %s87 = sphi 0, %s89
    %s90 = sphi 0, %s87
    %s91 = sphi 0, %s90
    %s107 = sphi 0, %s91
  $region4: #{_lambda_.6} parent=0 // loop_header_branch
    %12 = sbr.rel (%p10) target = $region8
  $region5: #{_lambda_.6} parent=0 // loop_body
    %s14 = ssub.s32 %s9, 1
    %s15 = ssub.s32 %s9, 2
    %s16 = sadd.s32 %s9, 1
    %s17 = ssub.s32 %s9, %s16
    %p18 = scmp.eq.s32.totalorder %s17, 0
    %s20 = sadd.s32 %s19, 1
    %s21 = scalar_select %p18, %s19, %s20
    %p24 = pneg %p18
    %p25 = scmp.eq.s32.totalorder %s9, 1
    %p26 = por %p24, %p25
    %p27 = scmp.ne.s32.totalorder %s19, %s22
    %p28 = scmp.eq.s32.totalorder %s9, 0
    %p29 = por %p27, %p28
    %p30 = scmp.ne.s32.totalorder %s19, %s22
    %p31 = scmp.eq.s32.totalorder %s14, 1
    %p32 = por %p30, %p31
    %p33 = scmp.ne.s32.totalorder %s22, %s23
    %p34 = scmp.eq.s32.totalorder %s14, 0
    %p35 = por %p33, %p34
    %p36 = scmp.ne.s32.totalorder %s22, %s23
    %p37 = scmp.eq.s32.totalorder %s15, 1
    %p38 = por %p36, %p37
    %p40 = scmp.ne.s32.totalorder %s23, %s39
    %p41 = scmp.eq.s32.totalorder %s15, 0
    %p42 = por %p40, %p41
    %s44 = sadd.s32 %s43, 1
    %p47 = scmp.eq.s32.totalorder %s9, 1
    %p48 = scmp.ne.s32.totalorder %s43, %s45
    %p49 = scmp.eq.s32.totalorder %s9, 0
    %p50 = por %p48, %p49
    %p51 = scmp.ne.s32.totalorder %s43, %s45
    %p52 = scmp.eq.s32.totalorder %s14, 1
    %p53 = por %p51, %p52
    %p54 = scmp.ne.s32.totalorder %s45, %s46
    %p55 = scmp.eq.s32.totalorder %s14, 0
    %p56 = por %p54, %p55
    %p57 = scmp.ne.s32.totalorder %s45, %s46
    %p58 = scmp.eq.s32.totalorder %s15, 1
    %p59 = por %p57, %p58
    %p61 = scmp.ne.s32.totalorder %s46, %s60
    %p62 = scmp.eq.s32.totalorder %s15, 0
    %p63 = por %p61, %p62
    %s65 = sadd.s32 %s64, 1
    %p68 = scmp.eq.s32.totalorder %s9, 1
    %p69 = scmp.ne.s32.totalorder %s64, %s66
    %p70 = scmp.eq.s32.totalorder %s9, 0
    %p71 = por %p69, %p70
    %p72 = scmp.ne.s32.totalorder %s64, %s66
    %p73 = scmp.eq.s32.totalorder %s14, 1
    %p74 = por %p72, %p73
    %p75 = scmp.ne.s32.totalorder %s66, %s67
    %p76 = scmp.eq.s32.totalorder %s14, 0
    %p77 = por %p75, %p76
    %p78 = scmp.ne.s32.totalorder %s66, %s67
    %p79 = scmp.eq.s32.totalorder %s15, 1
    %p80 = por %p78, %p79
    %p82 = scmp.ne.s32.totalorder %s67, %s81
    %p83 = scmp.eq.s32.totalorder %s15, 0
    %p84 = por %p82, %p83
    %s85 = ssub.s32 %s9, %s16
    %p86 = scmp.eq.s32.totalorder %s85, 0
    %s88 = sadd.s32 %s87, 1
    %s89 = scalar_select %p86, %s87, %s88
    %p92 = pneg %p86
    %p93 = scmp.eq.s32.totalorder %s9, 1
    %p94 = por %p92, %p93
    %p95 = scmp.ne.s32.totalorder %s87, %s90
    %p96 = scmp.eq.s32.totalorder %s9, 0
    %p97 = por %p95, %p96
    %p98 = scmp.ne.s32.totalorder %s87, %s90
    %p99 = scmp.eq.s32.totalorder %s14, 1
    %p100 = por %p98, %p99
    %p101 = scmp.ne.s32.totalorder %s90, %s91
    %p102 = scmp.eq.s32.totalorder %s14, 0
    %p103 = por %p101, %p102
    %p104 = scmp.ne.s32.totalorder %s90, %s91
    %p105 = scmp.eq.s32.totalorder %s15, 1
    %p106 = por %p104, %p105
    %p108 = scmp.ne.s32.totalorder %s91, %s107
    %p109 = scmp.eq.s32.totalorder %s15, 0
    %p110 = por %p108, %p109
    %p111 = scmp.le.s32.totalorder 1, %s9
    %p112 = scmp.lt.s32.totalorder %s9, 3
    %p113 = pnand %p111, %p112
    %p114 = pneg %p113
    // Predicated region
    $region9: #{_lambda_.6} parent=5 // pred_check
      _
    $region10: #{_lambda_.6} parent=5 // pred_check_branch
      %116 = sbr.rel (%p113) target = $region12
    $region11: #{_lambda_.6} parent=5 // pred_region
      %s117 = ssub.s32 %s9, 1
      // Predicated region
      $region13: #{_lambda_.6} parent=11 // pred_check
        %p118 = pneg %p56
      $region14: #{_lambda_.6} parent=11 // pred_check_branch
        %120 = sbr.rel (%p118) target = $region16
      $region15: #{_lambda_.6} parent=11 // pred_region
        _
      $region16: #{_lambda_.6} parent=11 // pred_fallthru
        _
      // Predicated region
      $region17: #{_lambda_.6} parent=11 // pred_check
        %p121 = pneg %p77
      $region18: #{_lambda_.6} parent=11 // pred_check_branch
        %123 = sbr.rel (%p121) target = $region20
      $region19: #{_lambda_.6} parent=11 // pred_region
        _
      $region20: #{_lambda_.6} parent=11 // pred_fallthru
        _
    $region12: #{_lambda_.6} parent=5 // pred_fallthru
      _
    %p124 = scmp.lt.s32.totalorder %s9, 2
    // Predicated region
    $region21: #{_lambda_.6} parent=5 // pred_check
      %p125 = pneg %p124
    $region22: #{_lambda_.6} parent=5 // pred_check_branch
      %127 = sbr.rel (%p125) target = $region24
    $region23: #{_lambda_.6} parent=5 // pred_region
      // Predicated region
      $region25: #{_lambda_.6} parent=23 // pred_check
        %p128 = pneg %p29
      $region26: #{_lambda_.6} parent=23 // pred_check_branch
        %130 = sbr.rel (%p128) target = $region28
      $region27: #{_lambda_.6} parent=23 // pred_region
        %s131 = smul.u32 128, %s9
        %p132 = scmp.lt.s32.totalorder %s131, 255
        %s133 = scalar_select %p132, %s131, 255
        %s134 = smul.addr %s133, 4
        %s135 = scalar_lea.vmem %s0, %s134
        %s136 = smul.u32 128, %s9
      $region28: #{_lambda_.6} parent=23 // pred_fallthru
        _
    $region24: #{_lambda_.6} parent=5 // pred_fallthru
      _
    %p137 = scmp.le.s32.totalorder 1, %s9
    %p138 = scmp.lt.s32.totalorder %s9, 3
    %p139 = pnand %p137, %p138
    %p140 = pneg %p139
    // Predicated region
    $region29: #{_lambda_.6} parent=5 // pred_check
      _
    $region30: #{_lambda_.6} parent=5 // pred_check_branch
      %142 = sbr.rel (%p139) target = $region32
    $region31: #{_lambda_.6} parent=5 // pred_region
      %s143 = ssub.s32 %s9, 1
      %s144 = smul.u32 128, %s14
      %p145 = scmp.lt.s32.totalorder %s144, 255
      %s146 = scalar_select %p145, %s144, 255
      %s147 = smul.addr %s146, 4
      %s148 = scalar_lea.vmem %s0, %s147
      %p149 = pneg %p35
      %p150 = pneg %p32
      %p151 = pneg %p56
      %p152 = pneg %p53
      %p153 = pneg %p77
      %p154 = pneg %p74
      %p155 = pneg %p103
      %p156 = pneg %p100
      %s157 = smul.u32 128, %s14
      %p158 = scmp.lt.s32.totalorder %s157, 255
      %s159 = scalar_select %p158, %s157, 255
      %s160 = smul.addr %s159, 4
      %s161 = scalar_lea.vmem %s3, %s160
      %s162 = smul.u32 128, %s14
      %p163 = scmp.lt.s32.totalorder %s162, 255
      %s164 = scalar_select %p163, %s162, 255
      %s165 = smul.addr %s164, 4
      %s166 = scalar_lea.vmem %s0, %s165
      %s167 = smul.u32 128, %s14
      %s168 = smul.u32 128, %s14
      %p169 = scmp.lt.s32.totalorder %s168, 255
      %s170 = scalar_select %p169, %s168, 255
      %s171 = smul.addr %s170, 4
      %s172 = scalar_lea.vmem %s3, %s171
      %s173 = smul.u32 128, %s14
      %v175 = vld [vmem:[%s166] sm:$0xf]
      %v176 = vld [vmem:[%s166 + $0x4] sm:$0xf]
      %v177 = vld [vmem:[%s166 + $0x8] sm:$0xf]
      %v178 = vld [vmem:[%s166 + $0xc] sm:$0xf]
      %v179 = vld [vmem:[%s166 + $0x10] sm:$0xf]
      %v180 = vld [vmem:[%s166 + $0x14] sm:$0xf]
      %v181 = vld [vmem:[%s166 + $0x18] sm:$0xf]
      %v182 = vld [vmem:[%s166 + $0x1c] sm:$0xf]
      %v183 = vld [vmem:[%s166 + $0x20] sm:$0xf]
      %v184 = vld [vmem:[%s166 + $0x24] sm:$0xf]
      %v185 = vld [vmem:[%s166 + $0x28] sm:$0xf]
      %v186 = vld [vmem:[%s166 + $0x2c] sm:$0xf]
      %v187 = vld [vmem:[%s166 + $0x30] sm:$0xf]
      %v188 = vld [vmem:[%s166 + $0x34] sm:$0xf]
      %v189 = vld [vmem:[%s166 + $0x38] sm:$0xf]
      %v190 = vld [vmem:[%s166 + $0x3c] sm:$0xf]
      %v191 = vld [vmem:[%s166 + $0x40] sm:$0xf]
      %v192 = vld [vmem:[%s166 + $0x44] sm:$0xf]
      %v193 = vld [vmem:[%s166 + $0x48] sm:$0xf]
      %v194 = vld [vmem:[%s166 + $0x4c] sm:$0xf]
      %v195 = vld [vmem:[%s166 + $0x50] sm:$0xf]
      %v196 = vld [vmem:[%s166 + $0x54] sm:$0xf]
      %v197 = vld [vmem:[%s166 + $0x58] sm:$0xf]
      %v198 = vld [vmem:[%s166 + $0x5c] sm:$0xf]
      %v199 = vld [vmem:[%s166 + $0x60] sm:$0xf]
      %v200 = vld [vmem:[%s166 + $0x64] sm:$0xf]
      %v201 = vld [vmem:[%s166 + $0x68] sm:$0xf]
      %v202 = vld [vmem:[%s166 + $0x6c] sm:$0xf]
      %v203 = vld [vmem:[%s166 + $0x70] sm:$0xf]
      %v204 = vld [vmem:[%s166 + $0x74] sm:$0xf]
      %v205 = vld [vmem:[%s166 + $0x78] sm:$0xf]
      %v206 = vld [vmem:[%s166 + $0x7c] sm:$0xf]
      %v207 = vld [vmem:[%s166 + $0x80] sm:$0xf]
      %v208 = vld [vmem:[%s166 + $0x84] sm:$0xf]
      %v209 = vld [vmem:[%s166 + $0x88] sm:$0xf]
      %v210 = vld [vmem:[%s166 + $0x8c] sm:$0xf]
      %v211 = vld [vmem:[%s166 + $0x90] sm:$0xf]
      %v212 = vld [vmem:[%s166 + $0x94] sm:$0xf]
      %v213 = vld [vmem:[%s166 + $0x98] sm:$0xf]
      %v214 = vld [vmem:[%s166 + $0x9c] sm:$0xf]
      %v215 = vld [vmem:[%s166 + $0xa0] sm:$0xf]
      %v216 = vld [vmem:[%s166 + $0xa4] sm:$0xf]
      %v217 = vld [vmem:[%s166 + $0xa8] sm:$0xf]
      %v218 = vld [vmem:[%s166 + $0xac] sm:$0xf]
      %v219 = vld [vmem:[%s166 + $0xb0] sm:$0xf]
      %v220 = vld [vmem:[%s166 + $0xb4] sm:$0xf]
      %v221 = vld [vmem:[%s166 + $0xb8] sm:$0xf]
      %v222 = vld [vmem:[%s166 + $0xbc] sm:$0xf]
      %v223 = vld [vmem:[%s166 + $0xc0] sm:$0xf]
      %v224 = vld [vmem:[%s166 + $0xc4] sm:$0xf]
      %v225 = vld [vmem:[%s166 + $0xc8] sm:$0xf]
      %v226 = vld [vmem:[%s166 + $0xcc] sm:$0xf]
      %v227 = vld [vmem:[%s166 + $0xd0] sm:$0xf]
      %v228 = vld [vmem:[%s166 + $0xd4] sm:$0xf]
      %v229 = vld [vmem:[%s166 + $0xd8] sm:$0xf]
      %v230 = vld [vmem:[%s166 + $0xdc] sm:$0xf]
      %v231 = vld [vmem:[%s166 + $0xe0] sm:$0xf]
      %v232 = vld [vmem:[%s166 + $0xe4] sm:$0xf]
      %v233 = vld [vmem:[%s166 + $0xe8] sm:$0xf]
      %v234 = vld [vmem:[%s166 + $0xec] sm:$0xf]
      %v235 = vld [vmem:[%s166 + $0xf0] sm:$0xf]
      %v236 = vld [vmem:[%s166 + $0xf4] sm:$0xf]
      %v237 = vld [vmem:[%s166 + $0xf8] sm:$0xf]
      %v238 = vld [vmem:[%s166 + $0xfc] sm:$0xf]
      %v239 = vld [vmem:[%s166 + $0x100] sm:$0xf]
      %v240 = vld [vmem:[%s166 + $0x104] sm:$0xf]
      %v241 = vld [vmem:[%s166 + $0x108] sm:$0xf]
      %v242 = vld [vmem:[%s166 + $0x10c] sm:$0xf]
      %v243 = vld [vmem:[%s166 + $0x110] sm:$0xf]
      %v244 = vld [vmem:[%s166 + $0x114] sm:$0xf]
      %v245 = vld [vmem:[%s166 + $0x118] sm:$0xf]
      %v246 = vld [vmem:[%s166 + $0x11c] sm:$0xf]
      %v247 = vld [vmem:[%s166 + $0x120] sm:$0xf]
      %v248 = vld [vmem:[%s166 + $0x124] sm:$0xf]
      %v249 = vld [vmem:[%s166 + $0x128] sm:$0xf]
      %v250 = vld [vmem:[%s166 + $0x12c] sm:$0xf]
      %v251 = vld [vmem:[%s166 + $0x130] sm:$0xf]
      %v252 = vld [vmem:[%s166 + $0x134] sm:$0xf]
      %v253 = vld [vmem:[%s166 + $0x138] sm:$0xf]
      %v254 = vld [vmem:[%s166 + $0x13c] sm:$0xf]
      %v255 = vld [vmem:[%s166 + $0x140] sm:$0xf]
      %v256 = vld [vmem:[%s166 + $0x144] sm:$0xf]
      %v257 = vld [vmem:[%s166 + $0x148] sm:$0xf]
      %v258 = vld [vmem:[%s166 + $0x14c] sm:$0xf]
      %v259 = vld [vmem:[%s166 + $0x150] sm:$0xf]
      %v260 = vld [vmem:[%s166 + $0x154] sm:$0xf]
      %v261 = vld [vmem:[%s166 + $0x158] sm:$0xf]
      %v262 = vld [vmem:[%s166 + $0x15c] sm:$0xf]
      %v263 = vld [vmem:[%s166 + $0x160] sm:$0xf]
      %v264 = vld [vmem:[%s166 + $0x164] sm:$0xf]
      %v265 = vld [vmem:[%s166 + $0x168] sm:$0xf]
      %v266 = vld [vmem:[%s166 + $0x16c] sm:$0xf]
      %v267 = vld [vmem:[%s166 + $0x170] sm:$0xf]
      %v268 = vld [vmem:[%s166 + $0x174] sm:$0xf]
      %v269 = vld [vmem:[%s166 + $0x178] sm:$0xf]
      %v270 = vld [vmem:[%s166 + $0x17c] sm:$0xf]
      %v271 = vld [vmem:[%s166 + $0x180] sm:$0xf]
      %v272 = vld [vmem:[%s166 + $0x184] sm:$0xf]
      %v273 = vld [vmem:[%s166 + $0x188] sm:$0xf]
      %v274 = vld [vmem:[%s166 + $0x18c] sm:$0xf]
      %v275 = vld [vmem:[%s166 + $0x190] sm:$0xf]
      %v276 = vld [vmem:[%s166 + $0x194] sm:$0xf]
      %v277 = vld [vmem:[%s166 + $0x198] sm:$0xf]
      %v278 = vld [vmem:[%s166 + $0x19c] sm:$0xf]
      %v279 = vld [vmem:[%s166 + $0x1a0] sm:$0xf]
      %v280 = vld [vmem:[%s166 + $0x1a4] sm:$0xf]
      %v281 = vld [vmem:[%s166 + $0x1a8] sm:$0xf]
      %v282 = vld [vmem:[%s166 + $0x1ac] sm:$0xf]
      %v283 = vld [vmem:[%s166 + $0x1b0] sm:$0xf]
      %v284 = vld [vmem:[%s166 + $0x1b4] sm:$0xf]
      %v285 = vld [vmem:[%s166 + $0x1b8] sm:$0xf]
      %v286 = vld [vmem:[%s166 + $0x1bc] sm:$0xf]
      %v287 = vld [vmem:[%s166 + $0x1c0] sm:$0xf]
      %v288 = vld [vmem:[%s166 + $0x1c4] sm:$0xf]
      %v289 = vld [vmem:[%s166 + $0x1c8] sm:$0xf]
      %v290 = vld [vmem:[%s166 + $0x1cc] sm:$0xf]
      %v291 = vld [vmem:[%s166 + $0x1d0] sm:$0xf]
      %v292 = vld [vmem:[%s166 + $0x1d4] sm:$0xf]
      %v293 = vld [vmem:[%s166 + $0x1d8] sm:$0xf]
      %v294 = vld [vmem:[%s166 + $0x1dc] sm:$0xf]
      %v295 = vld [vmem:[%s166 + $0x1e0] sm:$0xf]
      %v296 = vld [vmem:[%s166 + $0x1e4] sm:$0xf]
      %v297 = vld [vmem:[%s166 + $0x1e8] sm:$0xf]
      %v298 = vld [vmem:[%s166 + $0x1ec] sm:$0xf]
      %v299 = vld [vmem:[%s166 + $0x1f0] sm:$0xf]
      %v300 = vld [vmem:[%s166 + $0x1f4] sm:$0xf]
      %v301 = vld [vmem:[%s166 + $0x1f8] sm:$0xf]
      %v302 = vld [vmem:[%s166 + $0x1fc] sm:$0xf]
      %v303 = vld [vmem:[%s1] sm:$0xf]
      %v304 = vld [vmem:[%s1 + $0x4] sm:$0xf]
      %v305 = vld [vmem:[%s1 + $0x8] sm:$0xf]
      %v306 = vld [vmem:[%s1 + $0xc] sm:$0xf]
      %v307 = vld [vmem:[%s1 + $0x10] sm:$0xf]
      %v308 = vld [vmem:[%s1 + $0x14] sm:$0xf]
      %v309 = vld [vmem:[%s1 + $0x18] sm:$0xf]
      %v310 = vld [vmem:[%s1 + $0x1c] sm:$0xf]
      %v311 = vld [vmem:[%s1 + $0x20] sm:$0xf]
      %v312 = vld [vmem:[%s1 + $0x24] sm:$0xf]
      %v313 = vld [vmem:[%s1 + $0x28] sm:$0xf]
      %v314 = vld [vmem:[%s1 + $0x2c] sm:$0xf]
      %v315 = vld [vmem:[%s1 + $0x30] sm:$0xf]
      %v316 = vld [vmem:[%s1 + $0x34] sm:$0xf]
      %v317 = vld [vmem:[%s1 + $0x38] sm:$0xf]
      %v318 = vld [vmem:[%s1 + $0x3c] sm:$0xf]
      %v319 = vld [vmem:[%s2] sm:$0x1]
      %v321 = vlaneseq
      %v322 = vshrl.u32 %v321, 7
      %v323 = vsub.s32 0, %v322
      %v324 = vrot.slane %v319, %v323
      %v454 = vunpack.c.l.b16 %v175
      %v455 = vunpack.c.l.b16 %v176
      %v456 = vunpack.c.l.b16 %v177
      %v457 = vunpack.c.l.b16 %v178
      %v458 = vunpack.c.l.b16 %v179
      %v459 = vunpack.c.l.b16 %v180
      %v460 = vunpack.c.l.b16 %v181
      %v461 = vunpack.c.l.b16 %v182
      %v462 = vunpack.c.l.b16 %v183
      %v463 = vunpack.c.l.b16 %v184
      %v464 = vunpack.c.l.b16 %v185
      %v465 = vunpack.c.l.b16 %v186
      %v466 = vunpack.c.l.b16 %v187
      %v467 = vunpack.c.l.b16 %v188
      %v468 = vunpack.c.l.b16 %v189
      %v469 = vunpack.c.l.b16 %v190
      %v470 = vunpack.c.l.b16 %v191
      %v471 = vunpack.c.l.b16 %v192
      %v472 = vunpack.c.l.b16 %v193
      %v473 = vunpack.c.l.b16 %v194
      %v474 = vunpack.c.l.b16 %v195
      %v475 = vunpack.c.l.b16 %v196
      %v476 = vunpack.c.l.b16 %v197
      %v477 = vunpack.c.l.b16 %v198
      %v478 = vunpack.c.l.b16 %v199
      %v479 = vunpack.c.l.b16 %v200
      %v480 = vunpack.c.l.b16 %v201
      %v481 = vunpack.c.l.b16 %v202
      %v482 = vunpack.c.l.b16 %v203
      %v483 = vunpack.c.l.b16 %v204
      %v484 = vunpack.c.l.b16 %v205
      %v485 = vunpack.c.l.b16 %v206
      %v486 = vunpack.c.l.b16 %v207
      %v487 = vunpack.c.l.b16 %v208
      %v488 = vunpack.c.l.b16 %v209
      %v489 = vunpack.c.l.b16 %v210
      %v490 = vunpack.c.l.b16 %v211
      %v491 = vunpack.c.l.b16 %v212
      %v492 = vunpack.c.l.b16 %v213
      %v493 = vunpack.c.l.b16 %v214
      %v494 = vunpack.c.l.b16 %v215
      %v495 = vunpack.c.l.b16 %v216
      %v496 = vunpack.c.l.b16 %v217
      %v497 = vunpack.c.l.b16 %v218
      %v498 = vunpack.c.l.b16 %v219
      %v499 = vunpack.c.l.b16 %v220
      %v500 = vunpack.c.l.b16 %v221
      %v501 = vunpack.c.l.b16 %v222
      %v502 = vunpack.c.l.b16 %v223
      %v503 = vunpack.c.l.b16 %v224
      %v504 = vunpack.c.l.b16 %v225
      %v505 = vunpack.c.l.b16 %v226
      %v506 = vunpack.c.l.b16 %v227
      %v507 = vunpack.c.l.b16 %v228
      %v508 = vunpack.c.l.b16 %v229
      %v509 = vunpack.c.l.b16 %v230
      %v510 = vunpack.c.l.b16 %v231
      %v511 = vunpack.c.l.b16 %v232
      %v512 = vunpack.c.l.b16 %v233
      %v513 = vunpack.c.l.b16 %v234
      %v514 = vunpack.c.l.b16 %v235
      %v515 = vunpack.c.l.b16 %v236
      %v516 = vunpack.c.l.b16 %v237
      %v517 = vunpack.c.l.b16 %v238
      %v518 = vunpack.c.l.b16 %v239
      %v519 = vunpack.c.l.b16 %v240
      %v520 = vunpack.c.l.b16 %v241
      %v521 = vunpack.c.l.b16 %v242
      %v522 = vunpack.c.l.b16 %v243
      %v523 = vunpack.c.l.b16 %v244
      %v524 = vunpack.c.l.b16 %v245
      %v525 = vunpack.c.l.b16 %v246
      %v526 = vunpack.c.l.b16 %v247
      %v527 = vunpack.c.l.b16 %v248
      %v528 = vunpack.c.l.b16 %v249
      %v529 = vunpack.c.l.b16 %v250
      %v530 = vunpack.c.l.b16 %v251
      %v531 = vunpack.c.l.b16 %v252
      %v532 = vunpack.c.l.b16 %v253
      %v533 = vunpack.c.l.b16 %v254
      %v534 = vunpack.c.l.b16 %v255
      %v535 = vunpack.c.l.b16 %v256
      %v536 = vunpack.c.l.b16 %v257
      %v537 = vunpack.c.l.b16 %v258
      %v538 = vunpack.c.l.b16 %v259
      %v539 = vunpack.c.l.b16 %v260
      %v540 = vunpack.c.l.b16 %v261
      %v541 = vunpack.c.l.b16 %v262
      %v542 = vunpack.c.l.b16 %v263
      %v543 = vunpack.c.l.b16 %v264
      %v544 = vunpack.c.l.b16 %v265
      %v545 = vunpack.c.l.b16 %v266
      %v546 = vunpack.c.l.b16 %v267
      %v547 = vunpack.c.l.b16 %v268
      %v548 = vunpack.c.l.b16 %v269
      %v549 = vunpack.c.l.b16 %v270
      %v550 = vunpack.c.l.b16 %v271
      %v551 = vunpack.c.l.b16 %v272
      %v552 = vunpack.c.l.b16 %v273
      %v553 = vunpack.c.l.b16 %v274
      %v554 = vunpack.c.l.b16 %v275
      %v555 = vunpack.c.l.b16 %v276
      %v556 = vunpack.c.l.b16 %v277
      %v557 = vunpack.c.l.b16 %v278
      %v558 = vunpack.c.l.b16 %v279
      %v559 = vunpack.c.l.b16 %v280
      %v560 = vunpack.c.l.b16 %v281
      %v561 = vunpack.c.l.b16 %v282
      %v562 = vunpack.c.l.b16 %v283
      %v563 = vunpack.c.l.b16 %v284
      %v564 = vunpack.c.l.b16 %v285
      %v565 = vunpack.c.l.b16 %v286
      %v566 = vunpack.c.l.b16 %v287
      %v567 = vunpack.c.l.b16 %v288
      %v568 = vunpack.c.l.b16 %v289
      %v569 = vunpack.c.l.b16 %v290
      %v570 = vunpack.c.l.b16 %v291
      %v571 = vunpack.c.l.b16 %v292
      %v572 = vunpack.c.l.b16 %v293
      %v573 = vunpack.c.l.b16 %v294
      %v574 = vunpack.c.l.b16 %v295
      %v575 = vunpack.c.l.b16 %v296
      %v576 = vunpack.c.l.b16 %v297
      %v577 = vunpack.c.l.b16 %v298
      %v578 = vunpack.c.l.b16 %v299
      %v579 = vunpack.c.l.b16 %v300
      %v580 = vunpack.c.l.b16 %v301
      %v581 = vunpack.c.l.b16 %v302
      %v582 = vpack.c.b16 %v455, %v454
      %v583 = vpack.c.b16 %v457, %v456
      %v584 = vpack.c.b16 %v459, %v458
      %v585 = vpack.c.b16 %v461, %v460
      %v586 = vpack.c.b16 %v463, %v462
      %v587 = vpack.c.b16 %v465, %v464
      %v588 = vpack.c.b16 %v467, %v466
      %v589 = vpack.c.b16 %v469, %v468
      %v590 = vpack.c.b16 %v471, %v470
      %v591 = vpack.c.b16 %v473, %v472
      %v592 = vpack.c.b16 %v475, %v474
      %v593 = vpack.c.b16 %v477, %v476
      %v594 = vpack.c.b16 %v479, %v478
      %v595 = vpack.c.b16 %v481, %v480
      %v596 = vpack.c.b16 %v483, %v482
      %v597 = vpack.c.b16 %v485, %v484
      %v598 = vpack.c.b16 %v487, %v486
      %v599 = vpack.c.b16 %v489, %v488
      %v600 = vpack.c.b16 %v491, %v490
      %v601 = vpack.c.b16 %v493, %v492
      %v602 = vpack.c.b16 %v495, %v494
      %v603 = vpack.c.b16 %v497, %v496
      %v604 = vpack.c.b16 %v499, %v498
      %v605 = vpack.c.b16 %v501, %v500
      %v606 = vpack.c.b16 %v503, %v502
      %v607 = vpack.c.b16 %v505, %v504
      %v608 = vpack.c.b16 %v507, %v506
      %v609 = vpack.c.b16 %v509, %v508
      %v610 = vpack.c.b16 %v511, %v510
      %v611 = vpack.c.b16 %v513, %v512
      %v612 = vpack.c.b16 %v515, %v514
      %v613 = vpack.c.b16 %v517, %v516
      %v614 = vpack.c.b16 %v519, %v518
      %v615 = vpack.c.b16 %v521, %v520
      %v616 = vpack.c.b16 %v523, %v522
      %v617 = vpack.c.b16 %v525, %v524
      %v618 = vpack.c.b16 %v527, %v526
      %v619 = vpack.c.b16 %v529, %v528
      %v620 = vpack.c.b16 %v531, %v530
      %v621 = vpack.c.b16 %v533, %v532
      %v622 = vpack.c.b16 %v535, %v534
      %v623 = vpack.c.b16 %v537, %v536
      %v624 = vpack.c.b16 %v539, %v538
      %v625 = vpack.c.b16 %v541, %v540
      %v626 = vpack.c.b16 %v543, %v542
      %v627 = vpack.c.b16 %v545, %v544
      %v628 = vpack.c.b16 %v547, %v546
      %v629 = vpack.c.b16 %v549, %v548
      %v630 = vpack.c.b16 %v551, %v550
      %v631 = vpack.c.b16 %v553, %v552
      %v632 = vpack.c.b16 %v555, %v554
      %v633 = vpack.c.b16 %v557, %v556
      %v634 = vpack.c.b16 %v559, %v558
      %v635 = vpack.c.b16 %v561, %v560
      %v636 = vpack.c.b16 %v563, %v562
      %v637 = vpack.c.b16 %v565, %v564
      %v638 = vpack.c.b16 %v567, %v566
      %v639 = vpack.c.b16 %v569, %v568
      %v640 = vpack.c.b16 %v571, %v570
      %v641 = vpack.c.b16 %v573, %v572
      %v642 = vpack.c.b16 %v575, %v574
      %v643 = vpack.c.b16 %v577, %v576
      %v644 = vpack.c.b16 %v579, %v578
      %v645 = vpack.c.b16 %v581, %v580
      %v726 = vunpack.c.l.b16 %v303
      %v727 = vunpack.c.l.b16 %v304
      %v728 = vunpack.c.l.b16 %v305
      %v729 = vunpack.c.l.b16 %v306
      %v730 = vunpack.c.l.b16 %v307
      %v731 = vunpack.c.l.b16 %v308
      %v732 = vunpack.c.l.b16 %v309
      %v733 = vunpack.c.l.b16 %v310
      %v734 = vunpack.c.l.b16 %v311
      %v735 = vunpack.c.l.b16 %v312
      %v736 = vunpack.c.l.b16 %v313
      %v737 = vunpack.c.l.b16 %v314
      %v738 = vunpack.c.l.b16 %v315
      %v739 = vunpack.c.l.b16 %v316
      %v740 = vunpack.c.l.b16 %v317
      %v741 = vunpack.c.l.b16 %v318
      %v742 = vpack.c.b16 %v727, %v726
      %v743 = vpack.c.b16 %v729, %v728
      %v744 = vpack.c.b16 %v731, %v730
      %v745 = vpack.c.b16 %v733, %v732
      %v746 = vpack.c.b16 %v735, %v734
      %v747 = vpack.c.b16 %v737, %v736
      %v748 = vpack.c.b16 %v739, %v738
      %v749 = vpack.c.b16 %v741, %v740
      %758 = vmatprep.subr.bf16.mxu0 0
      %759 = vmatpush1.bf16.msra.mxu0 %v742
      %760 = vmatprep.subr.bf16.mxu0 0
      %761 = vmatpush1.bf16.msra.mxu0 %v743
      %762 = vmatprep.subr.bf16.mxu0 0
      %763 = vmatpush1.bf16.msra.mxu0 %v744
      %764 = vmatprep.subr.bf16.mxu0 0
      %765 = vmatpush1.bf16.msra.mxu0 %v745
      %766 = vmatprep.subr.bf16.mxu0 0
      %767 = vmatpush1.bf16.msra.mxu0 %v746
      %768 = vmatprep.subr.bf16.mxu0 0
      %769 = vmatpush1.bf16.msra.mxu0 %v747
      %770 = vmatprep.subr.bf16.mxu0 0
      %771 = vmatpush1.bf16.msra.mxu0 %v748
      %772 = vmatprep.subr.bf16.mxu0 0
      %773 = vmatpush1.bf16.msra.mxu0 %v749
      %774 = vmatprep.subr.bf16.mxu0 0
      %775 = vmatpush1.bf16.msra.mxu0 0
      %776 = vmatprep.subr.bf16.mxu0 0
      %777 = vmatpush1.bf16.msra.mxu0 0
      %778 = vmatprep.subr.bf16.mxu0 0
      %779 = vmatpush1.bf16.msra.mxu0 0
      %780 = vmatprep.subr.bf16.mxu0 0
      %781 = vmatpush1.bf16.msra.mxu0 0
      %782 = vmatprep.subr.bf16.mxu0 0
      %783 = vmatpush1.bf16.msra.mxu0 0
      %784 = vmatprep.subr.bf16.mxu0 0
      %785 = vmatpush1.bf16.msra.mxu0 0
      %786 = vmatprep.subr.bf16.mxu0 0
      %787 = vmatpush1.bf16.msra.mxu0 0
      %788 = vmatprep.subr.bf16.mxu0 0
      %789 = vmatpush1.bf16.msra.mxu0 0
      %790 = vmatprep.mubr.bf16.mxu0 0
      %791 = vmatmul.mubr.bf16.gmra.mrb[0].mxu0 %v582
      %v792 = vpop.f32.mrb[0].mxu0
      %v793 = vadd.f32 %v324, %v792
      %v794 = vpop.f32.mrb[0].mxu0
      %v795 = vpop.f32.mrb[0].mxu0
      %v796 = vadd.f32 %v324, %v795
      %v797 = vpop.f32.mrb[0].mxu0
      %798 = vmatprep.mubr.bf16.mxu0 0
      %799 = vmatmul.mubr.bf16.gmra.mrb[0].mxu0 %v583
      %v800 = vpop.f32.mrb[0].mxu0
      %v801 = vadd.f32 %v324, %v800
      %v802 = vpop.f32.mrb[0].mxu0
      %v803 = vpop.f32.mrb[0].mxu0
      %v804 = vadd.f32 %v324, %v803
      %v805 = vpop.f32.mrb[0].mxu0
      %806 = vmatprep.mubr.bf16.mxu0 0
      %807 = vmatmul.mubr.bf16.gmra.mrb[0].mxu0 %v584
      %v808 = vpop.f32.mrb[0].mxu0
      %v809 = vadd.f32 %v324, %v808
      %v810 = vpop.f32.mrb[0].mxu0
      %v811 = vpop.f32.mrb[0].mxu0
      %v812 = vadd.f32 %v324, %v811
      %v813 = vpop.f32.mrb[0].mxu0
      %814 = vmatprep.mubr.bf16.mxu0 0
      %815 = vmatmul.mubr.bf16.gmra.mrb[0].mxu0 %v585
      %v816 = vpop.f32.mrb[0].mxu0
      %v817 = vadd.f32 %v324, %v816
      %v818 = vpop.f32.mrb[0].mxu0
      %v819 = vpop.f32.mrb[0].mxu0
      %v820 = vadd.f32 %v324, %v819
      %v821 = vpop.f32.mrb[0].mxu0
      %822 = vmatprep.mubr.bf16.mxu0 0
      %823 = vmatmul.mubr.bf16.gmra.mrb[0].mxu0 %v586
      %v824 = vpop.f32.mrb[0].mxu0
      %v825 = vadd.f32 %v324, %v824
      %v826 = vpop.f32.mrb[0].mxu0
      %v827 = vpop.f32.mrb[0].mxu0
      %v828 = vadd.f32 %v324, %v827
      %v829 = vpop.f32.mrb[0].mxu0
      %830 = vmatprep.mubr.bf16.mxu0 0
      %831 = vmatmul.mubr.bf16.gmra.mrb[0].mxu0 %v587
      %v832 = vpop.f32.mrb[0].mxu0
      %v833 = vadd.f32 %v324, %v832
      %v834 = vpop.f32.mrb[0].mxu0
      %v835 = vpop.f32.mrb[0].mxu0
      %v836 = vadd.f32 %v324, %v835
      %v837 = vpop.f32.mrb[0].mxu0
      %838 = vmatprep.mubr.bf16.mxu0 0
      %839 = vmatmul.mubr.bf16.gmra.mrb[0].mxu0 %v588
      %v840 = vpop.f32.mrb[0].mxu0
      %v841 = vadd.f32 %v324, %v840
      %v842 = vpop.f32.mrb[0].mxu0
      %v843 = vpop.f32.mrb[0].mxu0
      %v844 = vadd.f32 %v324, %v843
      %v845 = vpop.f32.mrb[0].mxu0
      %846 = vmatprep.mubr.bf16.mxu0 0
      %847 = vmatmul.mubr.bf16.gmra.mrb[0].mxu0 %v589
      %v848 = vpop.f32.mrb[0].mxu0
      %v849 = vadd.f32 %v324, %v848
      %v850 = vpop.f32.mrb[0].mxu0
      %v851 = vpop.f32.mrb[0].mxu0
      %v852 = vadd.f32 %v324, %v851
      %v853 = vpop.f32.mrb[0].mxu0
      %854 = vmatprep.mubr.bf16.mxu0 0
      %855 = vmatmul.mubr.bf16.gmra.mrb[0].mxu0 %v590
      %v856 = vpop.f32.mrb[0].mxu0
      %v857 = vadd.f32 %v324, %v856
      %v858 = vpop.f32.mrb[0].mxu0
      %v859 = vpop.f32.mrb[0].mxu0
      %v860 = vadd.f32 %v324, %v859
      %v861 = vpop.f32.mrb[0].mxu0
      %862 = vmatprep.mubr.bf16.mxu0 0
      %863 = vmatmul.mubr.bf16.gmra.mrb[0].mxu0 %v591
      %v864 = vpop.f32.mrb[0].mxu0
      %v865 = vadd.f32 %v324, %v864
      %v866 = vpop.f32.mrb[0].mxu0
      %v867 = vpop.f32.mrb[0].mxu0
      %v868 = vadd.f32 %v324, %v867
      %v869 = vpop.f32.mrb[0].mxu0
      %870 = vmatprep.mubr.bf16.mxu0 0
      %871 = vmatmul.mubr.bf16.gmra.mrb[0].mxu0 %v592
      %v872 = vpop.f32.mrb[0].mxu0
      %v873 = vadd.f32 %v324, %v872
      %v874 = vpop.f32.mrb[0].mxu0
      %v875 = vpop.f32.mrb[0].mxu0
      %v876 = vadd.f32 %v324, %v875
      %v877 = vpop.f32.mrb[0].mxu0
      %878 = vmatprep.mubr.bf16.mxu0 0
      %879 = vmatmul.mubr.bf16.gmra.mrb[0].mxu0 %v593
      %v880 = vpop.f32.mrb[0].mxu0
      %v881 = vadd.f32 %v324, %v880
      %v882 = vpop.f32.mrb[0].mxu0
      %v883 = vpop.f32.mrb[0].mxu0
      %v884 = vadd.f32 %v324, %v883
      %v885 = vpop.f32.mrb[0].mxu0
      %886 = vmatprep.mubr.bf16.mxu0 0
      %887 = vmatmul.mubr.bf16.gmra.mrb[0].mxu0 %v594
      %v888 = vpop.f32.mrb[0].mxu0
      %v889 = vadd.f32 %v324, %v888
      %v890 = vpop.f32.mrb[0].mxu0
      %v891 = vpop.f32.mrb[0].mxu0
      %v892 = vadd.f32 %v324, %v891
      %v893 = vpop.f32.mrb[0].mxu0
      %894 = vmatprep.mubr.bf16.mxu0 0
      %895 = vmatmul.mubr.bf16.gmra.mrb[0].mxu0 %v595
      %v896 = vpop.f32.mrb[0].mxu0
      %v897 = vadd.f32 %v324, %v896
      %v898 = vpop.f32.mrb[0].mxu0
      %v899 = vpop.f32.mrb[0].mxu0
      %v900 = vadd.f32 %v324, %v899
      %v901 = vpop.f32.mrb[0].mxu0
      %902 = vmatprep.mubr.bf16.mxu0 0
      %903 = vmatmul.mubr.bf16.gmra.mrb[0].mxu0 %v596
      %v904 = vpop.f32.mrb[0].mxu0
      %v905 = vadd.f32 %v324, %v904
      %v906 = vpop.f32.mrb[0].mxu0
      %v907 = vpop.f32.mrb[0].mxu0
      %v908 = vadd.f32 %v324, %v907
      %v909 = vpop.f32.mrb[0].mxu0
      %910 = vmatprep.mubr.bf16.mxu0 0
      %911 = vmatmul.mubr.bf16.gmra.mrb[0].mxu0 %v597
      %v912 = vpop.f32.mrb[0].mxu0
      %v913 = vadd.f32 %v324, %v912
      %v914 = vpop.f32.mrb[0].mxu0
      %v915 = vpop.f32.mrb[0].mxu0
      %v916 = vadd.f32 %v324, %v915
      %v917 = vpop.f32.mrb[0].mxu0
      %918 = vmatprep.mubr.bf16.mxu0 0
      %919 = vmatmul.mubr.bf16.gmra.mrb[0].mxu0 %v598
      %v920 = vpop.f32.mrb[0].mxu0
      %v921 = vadd.f32 %v324, %v920
      %v922 = vpop.f32.mrb[0].mxu0
      %v923 = vpop.f32.mrb[0].mxu0
      %v924 = vadd.f32 %v324, %v923
      %v925 = vpop.f32.mrb[0].mxu0
      %926 = vmatprep.mubr.bf16.mxu0 0
      %927 = vmatmul.mubr.bf16.gmra.mrb[0].mxu0 %v599
      %v928 = vpop.f32.mrb[0].mxu0
      %v929 = vadd.f32 %v324, %v928
      %v930 = vpop.f32.mrb[0].mxu0
      %v931 = vpop.f32.mrb[0].mxu0
      %v932 = vadd.f32 %v324, %v931
      %v933 = vpop.f32.mrb[0].mxu0
      %934 = vmatprep.mubr.bf16.mxu0 0
      %935 = vmatmul.mubr.bf16.gmra.mrb[0].mxu0 %v600
      %v936 = vpop.f32.mrb[0].mxu0
      %v937 = vadd.f32 %v324, %v936
      %v938 = vpop.f32.mrb[0].mxu0
      %v939 = vpop.f32.mrb[0].mxu0
      %v940 = vadd.f32 %v324, %v939
      %v941 = vpop.f32.mrb[0].mxu0
      %942 = vmatprep.mubr.bf16.mxu0 0
      %943 = vmatmul.mubr.bf16.gmra.mrb[0].mxu0 %v601
      %v944 = vpop.f32.mrb[0].mxu0
      %v945 = vadd.f32 %v324, %v944
      %v946 = vpop.f32.mrb[0].mxu0
      %v947 = vpop.f32.mrb[0].mxu0
      %v948 = vadd.f32 %v324, %v947
      %v949 = vpop.f32.mrb[0].mxu0
      %950 = vmatprep.mubr.bf16.mxu0 0
      %951 = vmatmul.mubr.bf16.gmra.mrb[0].mxu0 %v602
      %v952 = vpop.f32.mrb[0].mxu0
      %v953 = vadd.f32 %v324, %v952
      %v954 = vpop.f32.mrb[0].mxu0
      %v955 = vpop.f32.mrb[0].mxu0
      %v956 = vadd.f32 %v324, %v955
      %v957 = vpop.f32.mrb[0].mxu0
      %958 = vmatprep.mubr.bf16.mxu0 0
      %959 = vmatmul.mubr.bf16.gmra.mrb[0].mxu0 %v603
      %v960 = vpop.f32.mrb[0].mxu0
      %v961 = vadd.f32 %v324, %v960
      %v962 = vpop.f32.mrb[0].mxu0
      %v963 = vpop.f32.mrb[0].mxu0
      %v964 = vadd.f32 %v324, %v963
      %v965 = vpop.f32.mrb[0].mxu0
      %966 = vmatprep.mubr.bf16.mxu0 0
      %967 = vmatmul.mubr.bf16.gmra.mrb[0].mxu0 %v604
      %v968 = vpop.f32.mrb[0].mxu0
      %v969 = vadd.f32 %v324, %v968
      %v970 = vpop.f32.mrb[0].mxu0
      %v971 = vpop.f32.mrb[0].mxu0
      %v972 = vadd.f32 %v324, %v971
      %v973 = vpop.f32.mrb[0].mxu0
      %974 = vmatprep.mubr.bf16.mxu0 0
      %975 = vmatmul.mubr.bf16.gmra.mrb[0].mxu0 %v605
      %v976 = vpop.f32.mrb[0].mxu0
      %v977 = vadd.f32 %v324, %v976
      %v978 = vpop.f32.mrb[0].mxu0
      %v979 = vpop.f32.mrb[0].mxu0
      %v980 = vadd.f32 %v324, %v979
      %v981 = vpop.f32.mrb[0].mxu0
      %982 = vmatprep.mubr.bf16.mxu0 0
      %983 = vmatmul.mubr.bf16.gmra.mrb[0].mxu0 %v606
      %v984 = vpop.f32.mrb[0].mxu0
      %v985 = vadd.f32 %v324, %v984
      %v986 = vpop.f32.mrb[0].mxu0
      %v987 = vpop.f32.mrb[0].mxu0
      %v988 = vadd.f32 %v324, %v987
      %v989 = vpop.f32.mrb[0].mxu0
      %990 = vmatprep.mubr.bf16.mxu0 0
      %991 = vmatmul.mubr.bf16.gmra.mrb[0].mxu0 %v607
      %v992 = vpop.f32.mrb[0].mxu0
      %v993 = vadd.f32 %v324, %v992
      %v994 = vpop.f32.mrb[0].mxu0
      %v995 = vpop.f32.mrb[0].mxu0
      %v996 = vadd.f32 %v324, %v995
      %v997 = vpop.f32.mrb[0].mxu0
      %998 = vmatprep.mubr.bf16.mxu0 0
      %999 = vmatmul.mubr.bf16.gmra.mrb[0].mxu0 %v608
      %v1000 = vpop.f32.mrb[0].mxu0
      %v1001 = vadd.f32 %v324, %v1000
      %v1002 = vpop.f32.mrb[0].mxu0
      %v1003 = vpop.f32.mrb[0].mxu0
      %v1004 = vadd.f32 %v324, %v1003
      %v1005 = vpop.f32.mrb[0].mxu0
      %1006 = vmatprep.mubr.bf16.mxu0 0
      %1007 = vmatmul.mubr.bf16.gmra.mrb[0].mxu0 %v609
      %v1008 = vpop.f32.mrb[0].mxu0
      %v1009 = vadd.f32 %v324, %v1008
      %v1010 = vpop.f32.mrb[0].mxu0
      %v1011 = vpop.f32.mrb[0].mxu0
      %v1012 = vadd.f32 %v324, %v1011
      %v1013 = vpop.f32.mrb[0].mxu0
      %1014 = vmatprep.mubr.bf16.mxu0 0
      %1015 = vmatmul.mubr.bf16.gmra.mrb[0].mxu0 %v610
      %v1016 = vpop.f32.mrb[0].mxu0
      %v1017 = vadd.f32 %v324, %v1016
      %v1018 = vpop.f32.mrb[0].mxu0
      %v1019 = vpop.f32.mrb[0].mxu0
      %v1020 = vadd.f32 %v324, %v1019
      %v1021 = vpop.f32.mrb[0].mxu0
      %1022 = vmatprep.mubr.bf16.mxu0 0
      %1023 = vmatmul.mubr.bf16.gmra.mrb[0].mxu0 %v611
      %v1024 = vpop.f32.mrb[0].mxu0
      %v1025 = vadd.f32 %v324, %v1024
      %v1026 = vpop.f32.mrb[0].mxu0
      %v1027 = vpop.f32.mrb[0].mxu0
      %v1028 = vadd.f32 %v324, %v1027
      %v1029 = vpop.f32.mrb[0].mxu0
      %1030 = vmatprep.mubr.bf16.mxu0 0
      %1031 = vmatmul.mubr.bf16.gmra.mrb[0].mxu0 %v612
      %v1032 = vpop.f32.mrb[0].mxu0
      %v1033 = vadd.f32 %v324, %v1032
      %v1034 = vpop.f32.mrb[0].mxu0
      %v1035 = vpop.f32.mrb[0].mxu0
      %v1036 = vadd.f32 %v324, %v1035
      %v1037 = vpop.f32.mrb[0].mxu0
      %1038 = vmatprep.mubr.bf16.mxu0 0
      %1039 = vmatmul.mubr.bf16.gmra.mrb[0].mxu0 %v613
      %v1040 = vpop.f32.mrb[0].mxu0
      %v1041 = vadd.f32 %v324, %v1040
      %v1042 = vpop.f32.mrb[0].mxu0
      %v1043 = vpop.f32.mrb[0].mxu0
      %v1044 = vadd.f32 %v324, %v1043
      %v1045 = vpop.f32.mrb[0].mxu0
      %1046 = vmatprep.mubr.bf16.mxu0 0
      %1047 = vmatmul.mubr.bf16.gmra.mrb[0].mxu0 %v614
      %v1048 = vpop.f32.mrb[0].mxu0
      %v1049 = vadd.f32 %v324, %v1048
      %v1050 = vpop.f32.mrb[0].mxu0
      %v1051 = vpop.f32.mrb[0].mxu0
      %v1052 = vadd.f32 %v324, %v1051
      %v1053 = vpop.f32.mrb[0].mxu0
      %1054 = vmatprep.mubr.bf16.mxu0 0
      %1055 = vmatmul.mubr.bf16.gmra.mrb[0].mxu0 %v615
      %v1056 = vpop.f32.mrb[0].mxu0
      %v1057 = vadd.f32 %v324, %v1056
      %v1058 = vpop.f32.mrb[0].mxu0
      %v1059 = vpop.f32.mrb[0].mxu0
      %v1060 = vadd.f32 %v324, %v1059
      %v1061 = vpop.f32.mrb[0].mxu0
      %1062 = vmatprep.mubr.bf16.mxu0 0
      %1063 = vmatmul.mubr.bf16.gmra.mrb[0].mxu0 %v616
      %v1064 = vpop.f32.mrb[0].mxu0
      %v1065 = vadd.f32 %v324, %v1064
      %v1066 = vpop.f32.mrb[0].mxu0
      %v1067 = vpop.f32.mrb[0].mxu0
      %v1068 = vadd.f32 %v324, %v1067
      %v1069 = vpop.f32.mrb[0].mxu0
      %1070 = vmatprep.mubr.bf16.mxu0 0
      %1071 = vmatmul.mubr.bf16.gmra.mrb[0].mxu0 %v617
      %v1072 = vpop.f32.mrb[0].mxu0
      %v1073 = vadd.f32 %v324, %v1072
      %v1074 = vpop.f32.mrb[0].mxu0
      %v1075 = vpop.f32.mrb[0].mxu0
      %v1076 = vadd.f32 %v324, %v1075
      %v1077 = vpop.f32.mrb[0].mxu0
      %1078 = vmatprep.mubr.bf16.mxu0 0
      %1079 = vmatmul.mubr.bf16.gmra.mrb[0].mxu0 %v618
      %v1080 = vpop.f32.mrb[0].mxu0
      %v1081 = vadd.f32 %v324, %v1080
      %v1082 = vpop.f32.mrb[0].mxu0
      %v1083 = vpop.f32.mrb[0].mxu0
      %v1084 = vadd.f32 %v324, %v1083
      %v1085 = vpop.f32.mrb[0].mxu0
      %1086 = vmatprep.mubr.bf16.mxu0 0
      %1087 = vmatmul.mubr.bf16.gmra.mrb[0].mxu0 %v619
      %v1088 = vpop.f32.mrb[0].mxu0
      %v1089 = vadd.f32 %v324, %v1088
      %v1090 = vpop.f32.mrb[0].mxu0
      %v1091 = vpop.f32.mrb[0].mxu0
      %v1092 = vadd.f32 %v324, %v1091
      %v1093 = vpop.f32.mrb[0].mxu0
      %1094 = vmatprep.mubr.bf16.mxu0 0
      %1095 = vmatmul.mubr.bf16.gmra.mrb[0].mxu0 %v620
      %v1096 = vpop.f32.mrb[0].mxu0
      %v1097 = vadd.f32 %v324, %v1096
      %v1098 = vpop.f32.mrb[0].mxu0
      %v1099 = vpop.f32.mrb[0].mxu0
      %v1100 = vadd.f32 %v324, %v1099
      %v1101 = vpop.f32.mrb[0].mxu0
      %1102 = vmatprep.mubr.bf16.mxu0 0
      %1103 = vmatmul.mubr.bf16.gmra.mrb[0].mxu0 %v621
      %v1104 = vpop.f32.mrb[0].mxu0
      %v1105 = vadd.f32 %v324, %v1104
      %v1106 = vpop.f32.mrb[0].mxu0
      %v1107 = vpop.f32.mrb[0].mxu0
      %v1108 = vadd.f32 %v324, %v1107
      %v1109 = vpop.f32.mrb[0].mxu0
      %1110 = vmatprep.mubr.bf16.mxu0 0
      %1111 = vmatmul.mubr.bf16.gmra.mrb[0].mxu0 %v622
      %v1112 = vpop.f32.mrb[0].mxu0
      %v1113 = vadd.f32 %v324, %v1112
      %v1114 = vpop.f32.mrb[0].mxu0
      %v1115 = vpop.f32.mrb[0].mxu0
      %v1116 = vadd.f32 %v324, %v1115
      %v1117 = vpop.f32.mrb[0].mxu0
      %1118 = vmatprep.mubr.bf16.mxu0 0
      %1119 = vmatmul.mubr.bf16.gmra.mrb[0].mxu0 %v623
      %v1120 = vpop.f32.mrb[0].mxu0
      %v1121 = vadd.f32 %v324, %v1120
      %v1122 = vpop.f32.mrb[0].mxu0
      %v1123 = vpop.f32.mrb[0].mxu0
      %v1124 = vadd.f32 %v324, %v1123
      %v1125 = vpop.f32.mrb[0].mxu0
      %1126 = vmatprep.mubr.bf16.mxu0 0
      %1127 = vmatmul.mubr.bf16.gmra.mrb[0].mxu0 %v624
      %v1128 = vpop.f32.mrb[0].mxu0
      %v1129 = vadd.f32 %v324, %v1128
      %v1130 = vpop.f32.mrb[0].mxu0
      %v1131 = vpop.f32.mrb[0].mxu0
      %v1132 = vadd.f32 %v324, %v1131
      %v1133 = vpop.f32.mrb[0].mxu0
      %1134 = vmatprep.mubr.bf16.mxu0 0
      %1135 = vmatmul.mubr.bf16.gmra.mrb[0].mxu0 %v625
      %v1136 = vpop.f32.mrb[0].mxu0
      %v1137 = vadd.f32 %v324, %v1136
      %v1138 = vpop.f32.mrb[0].mxu0
      %v1139 = vpop.f32.mrb[0].mxu0
      %v1140 = vadd.f32 %v324, %v1139
      %v1141 = vpop.f32.mrb[0].mxu0
      %1142 = vmatprep.mubr.bf16.mxu0 0
      %1143 = vmatmul.mubr.bf16.gmra.mrb[0].mxu0 %v626
      %v1144 = vpop.f32.mrb[0].mxu0
      %v1145 = vadd.f32 %v324, %v1144
      %v1146 = vpop.f32.mrb[0].mxu0
      %v1147 = vpop.f32.mrb[0].mxu0
      %v1148 = vadd.f32 %v324, %v1147
      %v1149 = vpop.f32.mrb[0].mxu0
      %1150 = vmatprep.mubr.bf16.mxu0 0
      %1151 = vmatmul.mubr.bf16.gmra.mrb[0].mxu0 %v627
      %v1152 = vpop.f32.mrb[0].mxu0
      %v1153 = vadd.f32 %v324, %v1152
      %v1154 = vpop.f32.mrb[0].mxu0
      %v1155 = vpop.f32.mrb[0].mxu0
      %v1156 = vadd.f32 %v324, %v1155
      %v1157 = vpop.f32.mrb[0].mxu0
      %1158 = vmatprep.mubr.bf16.mxu0 0
      %1159 = vmatmul.mubr.bf16.gmra.mrb[0].mxu0 %v628
      %v1160 = vpop.f32.mrb[0].mxu0
      %v1161 = vadd.f32 %v324, %v1160
      %v1162 = vpop.f32.mrb[0].mxu0
      %v1163 = vpop.f32.mrb[0].mxu0
      %v1164 = vadd.f32 %v324, %v1163
      %v1165 = vpop.f32.mrb[0].mxu0
      %1166 = vmatprep.mubr.bf16.mxu0 0
      %1167 = vmatmul.mubr.bf16.gmra.mrb[0].mxu0 %v629
      %v1168 = vpop.f32.mrb[0].mxu0
      %v1169 = vadd.f32 %v324, %v1168
      %v1170 = vpop.f32.mrb[0].mxu0
      %v1171 = vpop.f32.mrb[0].mxu0
      %v1172 = vadd.f32 %v324, %v1171
      %v1173 = vpop.f32.mrb[0].mxu0
      %1174 = vmatprep.mubr.bf16.mxu0 0
      %1175 = vmatmul.mubr.bf16.gmra.mrb[0].mxu0 %v630
      %v1176 = vpop.f32.mrb[0].mxu0
      %v1177 = vadd.f32 %v324, %v1176
      %v1178 = vpop.f32.mrb[0].mxu0
      %v1179 = vpop.f32.mrb[0].mxu0
      %v1180 = vadd.f32 %v324, %v1179
      %v1181 = vpop.f32.mrb[0].mxu0
      %1182 = vmatprep.mubr.bf16.mxu0 0
      %1183 = vmatmul.mubr.bf16.gmra.mrb[0].mxu0 %v631
      %v1184 = vpop.f32.mrb[0].mxu0
      %v1185 = vadd.f32 %v324, %v1184
      %v1186 = vpop.f32.mrb[0].mxu0
      %v1187 = vpop.f32.mrb[0].mxu0
      %v1188 = vadd.f32 %v324, %v1187
      %v1189 = vpop.f32.mrb[0].mxu0
      %1190 = vmatprep.mubr.bf16.mxu0 0
      %1191 = vmatmul.mubr.bf16.gmra.mrb[0].mxu0 %v632
      %v1192 = vpop.f32.mrb[0].mxu0
      %v1193 = vadd.f32 %v324, %v1192
      %v1194 = vpop.f32.mrb[0].mxu0
      %v1195 = vpop.f32.mrb[0].mxu0
      %v1196 = vadd.f32 %v324, %v1195
      %v1197 = vpop.f32.mrb[0].mxu0
      %1198 = vmatprep.mubr.bf16.mxu0 0
      %1199 = vmatmul.mubr.bf16.gmra.mrb[0].mxu0 %v633
      %v1200 = vpop.f32.mrb[0].mxu0
      %v1201 = vadd.f32 %v324, %v1200
      %v1202 = vpop.f32.mrb[0].mxu0
      %v1203 = vpop.f32.mrb[0].mxu0
      %v1204 = vadd.f32 %v324, %v1203
      %v1205 = vpop.f32.mrb[0].mxu0
      %1206 = vmatprep.mubr.bf16.mxu0 0
      %1207 = vmatmul.mubr.bf16.gmra.mrb[0].mxu0 %v634
      %v1208 = vpop.f32.mrb[0].mxu0
      %v1209 = vadd.f32 %v324, %v1208
      %v1210 = vpop.f32.mrb[0].mxu0
      %v1211 = vpop.f32.mrb[0].mxu0
      %v1212 = vadd.f32 %v324, %v1211
      %v1213 = vpop.f32.mrb[0].mxu0
      %1214 = vmatprep.mubr.bf16.mxu0 0
      %1215 = vmatmul.mubr.bf16.gmra.mrb[0].mxu0 %v635
      %v1216 = vpop.f32.mrb[0].mxu0
      %v1217 = vadd.f32 %v324, %v1216
      %v1218 = vpop.f32.mrb[0].mxu0
      %v1219 = vpop.f32.mrb[0].mxu0
      %v1220 = vadd.f32 %v324, %v1219
      %v1221 = vpop.f32.mrb[0].mxu0
      %1222 = vmatprep.mubr.bf16.mxu0 0
      %1223 = vmatmul.mubr.bf16.gmra.mrb[0].mxu0 %v636
      %v1224 = vpop.f32.mrb[0].mxu0
      %v1225 = vadd.f32 %v324, %v1224
      %v1226 = vpop.f32.mrb[0].mxu0
      %v1227 = vpop.f32.mrb[0].mxu0
      %v1228 = vadd.f32 %v324, %v1227
      %v1229 = vpop.f32.mrb[0].mxu0
      %1230 = vmatprep.mubr.bf16.mxu0 0
      %1231 = vmatmul.mubr.bf16.gmra.mrb[0].mxu0 %v637
      %v1232 = vpop.f32.mrb[0].mxu0
      %v1233 = vadd.f32 %v324, %v1232
      %v1234 = vpop.f32.mrb[0].mxu0
      %v1235 = vpop.f32.mrb[0].mxu0
      %v1236 = vadd.f32 %v324, %v1235
      %v1237 = vpop.f32.mrb[0].mxu0
      %1238 = vmatprep.mubr.bf16.mxu0 0
      %1239 = vmatmul.mubr.bf16.gmra.mrb[0].mxu0 %v638
      %v1240 = vpop.f32.mrb[0].mxu0
      %v1241 = vadd.f32 %v324, %v1240
      %v1242 = vpop.f32.mrb[0].mxu0
      %v1243 = vpop.f32.mrb[0].mxu0
      %v1244 = vadd.f32 %v324, %v1243
      %v1245 = vpop.f32.mrb[0].mxu0
      %1246 = vmatprep.mubr.bf16.mxu0 0
      %1247 = vmatmul.mubr.bf16.gmra.mrb[0].mxu0 %v639
      %v1248 = vpop.f32.mrb[0].mxu0
      %v1249 = vadd.f32 %v324, %v1248
      %v1250 = vpop.f32.mrb[0].mxu0
      %v1251 = vpop.f32.mrb[0].mxu0
      %v1252 = vadd.f32 %v324, %v1251
      %v1253 = vpop.f32.mrb[0].mxu0
      %1254 = vmatprep.mubr.bf16.mxu0 0
      %1255 = vmatmul.mubr.bf16.gmra.mrb[0].mxu0 %v640
      %v1256 = vpop.f32.mrb[0].mxu0
      %v1257 = vadd.f32 %v324, %v1256
      %v1258 = vpop.f32.mrb[0].mxu0
      %v1259 = vpop.f32.mrb[0].mxu0
      %v1260 = vadd.f32 %v324, %v1259
      %v1261 = vpop.f32.mrb[0].mxu0
      %1262 = vmatprep.mubr.bf16.mxu0 0
      %1263 = vmatmul.mubr.bf16.gmra.mrb[0].mxu0 %v641
      %v1264 = vpop.f32.mrb[0].mxu0
      %v1265 = vadd.f32 %v324, %v1264
      %v1266 = vpop.f32.mrb[0].mxu0
      %v1267 = vpop.f32.mrb[0].mxu0
      %v1268 = vadd.f32 %v324, %v1267
      %v1269 = vpop.f32.mrb[0].mxu0
      %1270 = vmatprep.mubr.bf16.mxu0 0
      %1271 = vmatmul.mubr.bf16.gmra.mrb[0].mxu0 %v642
      %v1272 = vpop.f32.mrb[0].mxu0
      %v1273 = vadd.f32 %v324, %v1272
      %v1274 = vpop.f32.mrb[0].mxu0
      %v1275 = vpop.f32.mrb[0].mxu0
      %v1276 = vadd.f32 %v324, %v1275
      %v1277 = vpop.f32.mrb[0].mxu0
      %1278 = vmatprep.mubr.bf16.mxu0 0
      %1279 = vmatmul.mubr.bf16.gmra.mrb[0].mxu0 %v643
      %v1280 = vpop.f32.mrb[0].mxu0
      %v1281 = vadd.f32 %v324, %v1280
      %v1282 = vpop.f32.mrb[0].mxu0
      %v1283 = vpop.f32.mrb[0].mxu0
      %v1284 = vadd.f32 %v324, %v1283
      %v1285 = vpop.f32.mrb[0].mxu0
      %1286 = vmatprep.mubr.bf16.mxu0 0
      %1287 = vmatmul.mubr.bf16.gmra.mrb[0].mxu0 %v644
      %v1288 = vpop.f32.mrb[0].mxu0
      %v1289 = vadd.f32 %v324, %v1288
      %v1290 = vpop.f32.mrb[0].mxu0
      %v1291 = vpop.f32.mrb[0].mxu0
      %v1292 = vadd.f32 %v324, %v1291
      %v1293 = vpop.f32.mrb[0].mxu0
      %1294 = vmatprep.mubr.bf16.mxu0 0
      %1295 = vmatmul.mubr.bf16.gmra.mrb[0].mxu0 %v645
      %v1296 = vpop.f32.mrb[0].mxu0
      %v1297 = vadd.f32 %v324, %v1296
      %v1298 = vpop.f32.mrb[0].mxu0
      %v1299 = vpop.f32.mrb[0].mxu0
      %v1300 = vadd.f32 %v324, %v1299
      %v1301 = vpop.f32.mrb[0].mxu0
      %1302 = vdwg.mxu0
      %vm1303 = vcmp.gt.f32.partialorder %v793, 0.0
      %vm1304 = vcmp.gt.f32.partialorder %v796, 0.0
      %vm1305 = vcmp.gt.f32.partialorder %v801, 0.0
      %vm1306 = vcmp.gt.f32.partialorder %v804, 0.0
      %vm1307 = vcmp.gt.f32.partialorder %v809, 0.0
      %vm1308 = vcmp.gt.f32.partialorder %v812, 0.0
      %vm1309 = vcmp.gt.f32.partialorder %v817, 0.0
      %vm1310 = vcmp.gt.f32.partialorder %v820, 0.0
      %vm1311 = vcmp.gt.f32.partialorder %v825, 0.0
      %vm1312 = vcmp.gt.f32.partialorder %v828, 0.0
      %vm1313 = vcmp.gt.f32.partialorder %v833, 0.0
      %vm1314 = vcmp.gt.f32.partialorder %v836, 0.0
      %vm1315 = vcmp.gt.f32.partialorder %v841, 0.0
      %vm1316 = vcmp.gt.f32.partialorder %v844, 0.0
      %vm1317 = vcmp.gt.f32.partialorder %v849, 0.0
      %vm1318 = vcmp.gt.f32.partialorder %v852, 0.0
      %vm1319 = vcmp.gt.f32.partialorder %v857, 0.0
      %vm1320 = vcmp.gt.f32.partialorder %v860, 0.0
      %vm1321 = vcmp.gt.f32.partialorder %v865, 0.0
      %vm1322 = vcmp.gt.f32.partialorder %v868, 0.0
      %vm1323 = vcmp.gt.f32.partialorder %v873, 0.0
      %vm1324 = vcmp.gt.f32.partialorder %v876, 0.0
      %vm1325 = vcmp.gt.f32.partialorder %v881, 0.0
      %vm1326 = vcmp.gt.f32.partialorder %v884, 0.0
      %vm1327 = vcmp.gt.f32.partialorder %v889, 0.0
      %vm1328 = vcmp.gt.f32.partialorder %v892, 0.0
      %vm1329 = vcmp.gt.f32.partialorder %v897, 0.0
      %vm1330 = vcmp.gt.f32.partialorder %v900, 0.0
      %vm1331 = vcmp.gt.f32.partialorder %v905, 0.0
      %vm1332 = vcmp.gt.f32.partialorder %v908, 0.0
      %vm1333 = vcmp.gt.f32.partialorder %v913, 0.0
      %vm1334 = vcmp.gt.f32.partialorder %v916, 0.0
      %vm1335 = vcmp.gt.f32.partialorder %v921, 0.0
      %vm1336 = vcmp.gt.f32.partialorder %v924, 0.0
      %vm1337 = vcmp.gt.f32.partialorder %v929, 0.0
      %vm1338 = vcmp.gt.f32.partialorder %v932, 0.0
      %vm1339 = vcmp.gt.f32.partialorder %v937, 0.0
      %vm1340 = vcmp.gt.f32.partialorder %v940, 0.0
      %vm1341 = vcmp.gt.f32.partialorder %v945, 0.0
      %vm1342 = vcmp.gt.f32.partialorder %v948, 0.0
      %vm1343 = vcmp.gt.f32.partialorder %v953, 0.0
      %vm1344 = vcmp.gt.f32.partialorder %v956, 0.0
      %vm1345 = vcmp.gt.f32.partialorder %v961, 0.0
      %vm1346 = vcmp.gt.f32.partialorder %v964, 0.0
      %vm1347 = vcmp.gt.f32.partialorder %v969, 0.0
      %vm1348 = vcmp.gt.f32.partialorder %v972, 0.0
      %vm1349 = vcmp.gt.f32.partialorder %v977, 0.0
      %vm1350 = vcmp.gt.f32.partialorder %v980, 0.0
      %vm1351 = vcmp.gt.f32.partialorder %v985, 0.0
      %vm1352 = vcmp.gt.f32.partialorder %v988, 0.0
      %vm1353 = vcmp.gt.f32.partialorder %v993, 0.0
      %vm1354 = vcmp.gt.f32.partialorder %v996, 0.0
      %vm1355 = vcmp.gt.f32.partialorder %v1001, 0.0
      %vm1356 = vcmp.gt.f32.partialorder %v1004, 0.0
      %vm1357 = vcmp.gt.f32.partialorder %v1009, 0.0
      %vm1358 = vcmp.gt.f32.partialorder %v1012, 0.0
      %vm1359 = vcmp.gt.f32.partialorder %v1017, 0.0
      %vm1360 = vcmp.gt.f32.partialorder %v1020, 0.0
      %vm1361 = vcmp.gt.f32.partialorder %v1025, 0.0
      %vm1362 = vcmp.gt.f32.partialorder %v1028, 0.0
      %vm1363 = vcmp.gt.f32.partialorder %v1033, 0.0
      %vm1364 = vcmp.gt.f32.partialorder %v1036, 0.0
      %vm1365 = vcmp.gt.f32.partialorder %v1041, 0.0
      %vm1366 = vcmp.gt.f32.partialorder %v1044, 0.0
      %vm1367 = vcmp.gt.f32.partialorder %v1049, 0.0
      %vm1368 = vcmp.gt.f32.partialorder %v1052, 0.0
      %vm1369 = vcmp.gt.f32.partialorder %v1057, 0.0
      %vm1370 = vcmp.gt.f32.partialorder %v1060, 0.0
      %vm1371 = vcmp.gt.f32.partialorder %v1065, 0.0
      %vm1372 = vcmp.gt.f32.partialorder %v1068, 0.0
      %vm1373 = vcmp.gt.f32.partialorder %v1073, 0.0
      %vm1374 = vcmp.gt.f32.partialorder %v1076, 0.0
      %vm1375 = vcmp.gt.f32.partialorder %v1081, 0.0
      %vm1376 = vcmp.gt.f32.partialorder %v1084, 0.0
      %vm1377 = vcmp.gt.f32.partialorder %v1089, 0.0
      %vm1378 = vcmp.gt.f32.partialorder %v1092, 0.0
      %vm1379 = vcmp.gt.f32.partialorder %v1097, 0.0
      %vm1380 = vcmp.gt.f32.partialorder %v1100, 0.0
      %vm1381 = vcmp.gt.f32.partialorder %v1105, 0.0
      %vm1382 = vcmp.gt.f32.partialorder %v1108, 0.0
      %vm1383 = vcmp.gt.f32.partialorder %v1113, 0.0
      %vm1384 = vcmp.gt.f32.partialorder %v1116, 0.0
      %vm1385 = vcmp.gt.f32.partialorder %v1121, 0.0
      %vm1386 = vcmp.gt.f32.partialorder %v1124, 0.0
      %vm1387 = vcmp.gt.f32.partialorder %v1129, 0.0
      %vm1388 = vcmp.gt.f32.partialorder %v1132, 0.0
      %vm1389 = vcmp.gt.f32.partialorder %v1137, 0.0
      %vm1390 = vcmp.gt.f32.partialorder %v1140, 0.0
      %vm1391 = vcmp.gt.f32.partialorder %v1145, 0.0
      %vm1392 = vcmp.gt.f32.partialorder %v1148, 0.0
      %vm1393 = vcmp.gt.f32.partialorder %v1153, 0.0
      %vm1394 = vcmp.gt.f32.partialorder %v1156, 0.0
      %vm1395 = vcmp.gt.f32.partialorder %v1161, 0.0
      %vm1396 = vcmp.gt.f32.partialorder %v1164, 0.0
      %vm1397 = vcmp.gt.f32.partialorder %v1169, 0.0
      %vm1398 = vcmp.gt.f32.partialorder %v1172, 0.0
      %vm1399 = vcmp.gt.f32.partialorder %v1177, 0.0
      %vm1400 = vcmp.gt.f32.partialorder %v1180, 0.0
      %vm1401 = vcmp.gt.f32.partialorder %v1185, 0.0
      %vm1402 = vcmp.gt.f32.partialorder %v1188, 0.0
      %vm1403 = vcmp.gt.f32.partialorder %v1193, 0.0
      %vm1404 = vcmp.gt.f32.partialorder %v1196, 0.0
      %vm1405 = vcmp.gt.f32.partialorder %v1201, 0.0
      %vm1406 = vcmp.gt.f32.partialorder %v1204, 0.0
      %vm1407 = vcmp.gt.f32.partialorder %v1209, 0.0
      %vm1408 = vcmp.gt.f32.partialorder %v1212, 0.0
      %vm1409 = vcmp.gt.f32.partialorder %v1217, 0.0
      %vm1410 = vcmp.gt.f32.partialorder %v1220, 0.0
      %vm1411 = vcmp.gt.f32.partialorder %v1225, 0.0
      %vm1412 = vcmp.gt.f32.partialorder %v1228, 0.0
      %vm1413 = vcmp.gt.f32.partialorder %v1233, 0.0
      %vm1414 = vcmp.gt.f32.partialorder %v1236, 0.0
      %vm1415 = vcmp.gt.f32.partialorder %v1241, 0.0
      %vm1416 = vcmp.gt.f32.partialorder %v1244, 0.0
      %vm1417 = vcmp.gt.f32.partialorder %v1249, 0.0
      %vm1418 = vcmp.gt.f32.partialorder %v1252, 0.0
      %vm1419 = vcmp.gt.f32.partialorder %v1257, 0.0
      %vm1420 = vcmp.gt.f32.partialorder %v1260, 0.0
      %vm1421 = vcmp.gt.f32.partialorder %v1265, 0.0
      %vm1422 = vcmp.gt.f32.partialorder %v1268, 0.0
      %vm1423 = vcmp.gt.f32.partialorder %v1273, 0.0
      %vm1424 = vcmp.gt.f32.partialorder %v1276, 0.0
      %vm1425 = vcmp.gt.f32.partialorder %v1281, 0.0
      %vm1426 = vcmp.gt.f32.partialorder %v1284, 0.0
      %vm1427 = vcmp.gt.f32.partialorder %v1289, 0.0
      %vm1428 = vcmp.gt.f32.partialorder %v1292, 0.0
      %vm1429 = vcmp.gt.f32.partialorder %v1297, 0.0
      %vm1430 = vcmp.gt.f32.partialorder %v1300, 0.0
      %v1431 = vmul.f32 %v793, 0.2
      %v1432 = vmul.f32 %v796, 0.2
      %v1433 = vmul.f32 %v801, 0.2
      %v1434 = vmul.f32 %v804, 0.2
      %v1435 = vmul.f32 %v809, 0.2
      %v1436 = vmul.f32 %v812, 0.2
      %v1437 = vmul.f32 %v817, 0.2
      %v1438 = vmul.f32 %v820, 0.2
      %v1439 = vmul.f32 %v825, 0.2
      %v1440 = vmul.f32 %v828, 0.2
      %v1441 = vmul.f32 %v833, 0.2
      %v1442 = vmul.f32 %v836, 0.2
      %v1443 = vmul.f32 %v841, 0.2
      %v1444 = vmul.f32 %v844, 0.2
      %v1445 = vmul.f32 %v849, 0.2
      %v1446 = vmul.f32 %v852, 0.2
      %v1447 = vmul.f32 %v857, 0.2
      %v1448 = vmul.f32 %v860, 0.2
      %v1449 = vmul.f32 %v865, 0.2
      %v1450 = vmul.f32 %v868, 0.2
      %v1451 = vmul.f32 %v873, 0.2
      %v1452 = vmul.f32 %v876, 0.2
      %v1453 = vmul.f32 %v881, 0.2
      %v1454 = vmul.f32 %v884, 0.2
      %v1455 = vmul.f32 %v889, 0.2
      %v1456 = vmul.f32 %v892, 0.2
      %v1457 = vmul.f32 %v897, 0.2
      %v1458 = vmul.f32 %v900, 0.2
      %v1459 = vmul.f32 %v905, 0.2
      %v1460 = vmul.f32 %v908, 0.2
      %v1461 = vmul.f32 %v913, 0.2
      %v1462 = vmul.f32 %v916, 0.2
      %v1463 = vmul.f32 %v921, 0.2
      %v1464 = vmul.f32 %v924, 0.2
      %v1465 = vmul.f32 %v929, 0.2
      %v1466 = vmul.f32 %v932, 0.2
      %v1467 = vmul.f32 %v937, 0.2
      %v1468 = vmul.f32 %v940, 0.2
      %v1469 = vmul.f32 %v945, 0.2
      %v1470 = vmul.f32 %v948, 0.2
      %v1471 = vmul.f32 %v953, 0.2
      %v1472 = vmul.f32 %v956, 0.2
      %v1473 = vmul.f32 %v961, 0.2
      %v1474 = vmul.f32 %v964, 0.2
      %v1475 = vmul.f32 %v969, 0.2
      %v1476 = vmul.f32 %v972, 0.2
      %v1477 = vmul.f32 %v977, 0.2
      %v1478 = vmul.f32 %v980, 0.2
      %v1479 = vmul.f32 %v985, 0.2
      %v1480 = vmul.f32 %v988, 0.2
      %v1481 = vmul.f32 %v993, 0.2
      %v1482 = vmul.f32 %v996, 0.2
      %v1483 = vmul.f32 %v1001, 0.2
      %v1484 = vmul.f32 %v1004, 0.2
      %v1485 = vmul.f32 %v1009, 0.2
      %v1486 = vmul.f32 %v1012, 0.2
      %v1487 = vmul.f32 %v1017, 0.2
      %v1488 = vmul.f32 %v1020, 0.2
      %v1489 = vmul.f32 %v1025, 0.2
      %v1490 = vmul.f32 %v1028, 0.2
      %v1491 = vmul.f32 %v1033, 0.2
      %v1492 = vmul.f32 %v1036, 0.2
      %v1493 = vmul.f32 %v1041, 0.2
      %v1494 = vmul.f32 %v1044, 0.2
      %v1495 = vmul.f32 %v1049, 0.2
      %v1496 = vmul.f32 %v1052, 0.2
      %v1497 = vmul.f32 %v1057, 0.2
      %v1498 = vmul.f32 %v1060, 0.2
      %v1499 = vmul.f32 %v1065, 0.2
      %v1500 = vmul.f32 %v1068, 0.2
      %v1501 = vmul.f32 %v1073, 0.2
      %v1502 = vmul.f32 %v1076, 0.2
      %v1503 = vmul.f32 %v1081, 0.2
      %v1504 = vmul.f32 %v1084, 0.2
      %v1505 = vmul.f32 %v1089, 0.2
      %v1506 = vmul.f32 %v1092, 0.2
      %v1507 = vmul.f32 %v1097, 0.2
      %v1508 = vmul.f32 %v1100, 0.2
      %v1509 = vmul.f32 %v1105, 0.2
      %v1510 = vmul.f32 %v1108, 0.2
      %v1511 = vmul.f32 %v1113, 0.2
      %v1512 = vmul.f32 %v1116, 0.2
      %v1513 = vmul.f32 %v1121, 0.2
      %v1514 = vmul.f32 %v1124, 0.2
      %v1515 = vmul.f32 %v1129, 0.2
      %v1516 = vmul.f32 %v1132, 0.2
      %v1517 = vmul.f32 %v1137, 0.2
      %v1518 = vmul.f32 %v1140, 0.2
      %v1519 = vmul.f32 %v1145, 0.2
      %v1520 = vmul.f32 %v1148, 0.2
      %v1521 = vmul.f32 %v1153, 0.2
      %v1522 = vmul.f32 %v1156, 0.2
      %v1523 = vmul.f32 %v1161, 0.2
      %v1524 = vmul.f32 %v1164, 0.2
      %v1525 = vmul.f32 %v1169, 0.2
      %v1526 = vmul.f32 %v1172, 0.2
      %v1527 = vmul.f32 %v1177, 0.2
      %v1528 = vmul.f32 %v1180, 0.2
      %v1529 = vmul.f32 %v1185, 0.2
      %v1530 = vmul.f32 %v1188, 0.2
      %v1531 = vmul.f32 %v1193, 0.2
      %v1532 = vmul.f32 %v1196, 0.2
      %v1533 = vmul.f32 %v1201, 0.2
      %v1534 = vmul.f32 %v1204, 0.2
      %v1535 = vmul.f32 %v1209, 0.2
      %v1536 = vmul.f32 %v1212, 0.2
      %v1537 = vmul.f32 %v1217, 0.2
      %v1538 = vmul.f32 %v1220, 0.2
      %v1539 = vmul.f32 %v1225, 0.2
      %v1540 = vmul.f32 %v1228, 0.2
      %v1541 = vmul.f32 %v1233, 0.2
      %v1542 = vmul.f32 %v1236, 0.2
      %v1543 = vmul.f32 %v1241, 0.2
      %v1544 = vmul.f32 %v1244, 0.2
      %v1545 = vmul.f32 %v1249, 0.2
      %v1546 = vmul.f32 %v1252, 0.2
      %v1547 = vmul.f32 %v1257, 0.2
      %v1548 = vmul.f32 %v1260, 0.2
      %v1549 = vmul.f32 %v1265, 0.2
      %v1550 = vmul.f32 %v1268, 0.2
      %v1551 = vmul.f32 %v1273, 0.2
      %v1552 = vmul.f32 %v1276, 0.2
      %v1553 = vmul.f32 %v1281, 0.2
      %v1554 = vmul.f32 %v1284, 0.2
      %v1555 = vmul.f32 %v1289, 0.2
      %v1556 = vmul.f32 %v1292, 0.2
      %v1557 = vmul.f32 %v1297, 0.2
      %v1558 = vmul.f32 %v1300, 0.2
      %v1559 = vsel %vm1303, %v793, %v1431
      %v1560 = vsel %vm1304, %v796, %v1432
      %v1561 = vsel %vm1305, %v801, %v1433
      %v1562 = vsel %vm1306, %v804, %v1434
      %v1563 = vsel %vm1307, %v809, %v1435
      %v1564 = vsel %vm1308, %v812, %v1436
      %v1565 = vsel %vm1309, %v817, %v1437
      %v1566 = vsel %vm1310, %v820, %v1438
      %v1567 = vsel %vm1311, %v825, %v1439
      %v1568 = vsel %vm1312, %v828, %v1440
      %v1569 = vsel %vm1313, %v833, %v1441
      %v1570 = vsel %vm1314, %v836, %v1442
      %v1571 = vsel %vm1315, %v841, %v1443
      %v1572 = vsel %vm1316, %v844, %v1444
      %v1573 = vsel %vm1317, %v849, %v1445
      %v1574 = vsel %vm1318, %v852, %v1446
      %v1575 = vsel %vm1319, %v857, %v1447
      %v1576 = vsel %vm1320, %v860, %v1448
      %v1577 = vsel %vm1321, %v865, %v1449
      %v1578 = vsel %vm1322, %v868, %v1450
      %v1579 = vsel %vm1323, %v873, %v1451
      %v1580 = vsel %vm1324, %v876, %v1452
      %v1581 = vsel %vm1325, %v881, %v1453
      %v1582 = vsel %vm1326, %v884, %v1454
      %v1583 = vsel %vm1327, %v889, %v1455
      %v1584 = vsel %vm1328, %v892, %v1456
      %v1585 = vsel %vm1329, %v897, %v1457
      %v1586 = vsel %vm1330, %v900, %v1458
      %v1587 = vsel %vm1331, %v905, %v1459
      %v1588 = vsel %vm1332, %v908, %v1460
      %v1589 = vsel %vm1333, %v913, %v1461
      %v1590 = vsel %vm1334, %v916, %v1462
      %v1591 = vsel %vm1335, %v921, %v1463
      %v1592 = vsel %vm1336, %v924, %v1464
      %v1593 = vsel %vm1337, %v929, %v1465
      %v1594 = vsel %vm1338, %v932, %v1466
      %v1595 = vsel %vm1339, %v937, %v1467
      %v1596 = vsel %vm1340, %v940, %v1468
      %v1597 = vsel %vm1341, %v945, %v1469
      %v1598 = vsel %vm1342, %v948, %v1470
      %v1599 = vsel %vm1343, %v953, %v1471
      %v1600 = vsel %vm1344, %v956, %v1472
      %v1601 = vsel %vm1345, %v961, %v1473
      %v1602 = vsel %vm1346, %v964, %v1474
      %v1603 = vsel %vm1347, %v969, %v1475
      %v1604 = vsel %vm1348, %v972, %v1476
      %v1605 = vsel %vm1349, %v977, %v1477
      %v1606 = vsel %vm1350, %v980, %v1478
      %v1607 = vsel %vm1351, %v985, %v1479
      %v1608 = vsel %vm1352, %v988, %v1480
      %v1609 = vsel %vm1353, %v993, %v1481
      %v1610 = vsel %vm1354, %v996, %v1482
      %v1611 = vsel %vm1355, %v1001, %v1483
      %v1612 = vsel %vm1356, %v1004, %v1484
      %v1613 = vsel %vm1357, %v1009, %v1485
      %v1614 = vsel %vm1358, %v1012, %v1486
      %v1615 = vsel %vm1359, %v1017, %v1487
      %v1616 = vsel %vm1360, %v1020, %v1488
      %v1617 = vsel %vm1361, %v1025, %v1489
      %v1618 = vsel %vm1362, %v1028, %v1490
      %v1619 = vsel %vm1363, %v1033, %v1491
      %v1620 = vsel %vm1364, %v1036, %v1492
      %v1621 = vsel %vm1365, %v1041, %v1493
      %v1622 = vsel %vm1366, %v1044, %v1494
      %v1623 = vsel %vm1367, %v1049, %v1495
      %v1624 = vsel %vm1368, %v1052, %v1496
      %v1625 = vsel %vm1369, %v1057, %v1497
      %v1626 = vsel %vm1370, %v1060, %v1498
      %v1627 = vsel %vm1371, %v1065, %v1499
      %v1628 = vsel %vm1372, %v1068, %v1500
      %v1629 = vsel %vm1373, %v1073, %v1501
      %v1630 = vsel %vm1374, %v1076, %v1502
      %v1631 = vsel %vm1375, %v1081, %v1503
      %v1632 = vsel %vm1376, %v1084, %v1504
      %v1633 = vsel %vm1377, %v1089, %v1505
      %v1634 = vsel %vm1378, %v1092, %v1506
      %v1635 = vsel %vm1379, %v1097, %v1507
      %v1636 = vsel %vm1380, %v1100, %v1508
      %v1637 = vsel %vm1381, %v1105, %v1509
      %v1638 = vsel %vm1382, %v1108, %v1510
      %v1639 = vsel %vm1383, %v1113, %v1511
      %v1640 = vsel %vm1384, %v1116, %v1512
      %v1641 = vsel %vm1385, %v1121, %v1513
      %v1642 = vsel %vm1386, %v1124, %v1514
      %v1643 = vsel %vm1387, %v1129, %v1515
      %v1644 = vsel %vm1388, %v1132, %v1516
      %v1645 = vsel %vm1389, %v1137, %v1517
      %v1646 = vsel %vm1390, %v1140, %v1518
      %v1647 = vsel %vm1391, %v1145, %v1519
      %v1648 = vsel %vm1392, %v1148, %v1520
      %v1649 = vsel %vm1393, %v1153, %v1521
      %v1650 = vsel %vm1394, %v1156, %v1522
      %v1651 = vsel %vm1395, %v1161, %v1523
      %v1652 = vsel %vm1396, %v1164, %v1524
      %v1653 = vsel %vm1397, %v1169, %v1525
      %v1654 = vsel %vm1398, %v1172, %v1526
      %v1655 = vsel %vm1399, %v1177, %v1527
      %v1656 = vsel %vm1400, %v1180, %v1528
      %v1657 = vsel %vm1401, %v1185, %v1529
      %v1658 = vsel %vm1402, %v1188, %v1530
      %v1659 = vsel %vm1403, %v1193, %v1531
      %v1660 = vsel %vm1404, %v1196, %v1532
      %v1661 = vsel %vm1405, %v1201, %v1533
      %v1662 = vsel %vm1406, %v1204, %v1534
      %v1663 = vsel %vm1407, %v1209, %v1535
      %v1664 = vsel %vm1408, %v1212, %v1536
      %v1665 = vsel %vm1409, %v1217, %v1537
      %v1666 = vsel %vm1410, %v1220, %v1538
      %v1667 = vsel %vm1411, %v1225, %v1539
      %v1668 = vsel %vm1412, %v1228, %v1540
      %v1669 = vsel %vm1413, %v1233, %v1541
      %v1670 = vsel %vm1414, %v1236, %v1542
      %v1671 = vsel %vm1415, %v1241, %v1543
      %v1672 = vsel %vm1416, %v1244, %v1544
      %v1673 = vsel %vm1417, %v1249, %v1545
      %v1674 = vsel %vm1418, %v1252, %v1546
      %v1675 = vsel %vm1419, %v1257, %v1547
      %v1676 = vsel %vm1420, %v1260, %v1548
      %v1677 = vsel %vm1421, %v1265, %v1549
      %v1678 = vsel %vm1422, %v1268, %v1550
      %v1679 = vsel %vm1423, %v1273, %v1551
      %v1680 = vsel %vm1424, %v1276, %v1552
      %v1681 = vsel %vm1425, %v1281, %v1553
      %v1682 = vsel %vm1426, %v1284, %v1554
      %v1683 = vsel %vm1427, %v1289, %v1555
      %v1684 = vsel %vm1428, %v1292, %v1556
      %v1685 = vsel %vm1429, %v1297, %v1557
      %v1686 = vsel %vm1430, %v1300, %v1558
      %v1687 = vpack.c.bf16 %v1560, %v1559
      %v1688 = vpack.c.bf16 %v1562, %v1561
      %v1689 = vpack.c.bf16 %v1564, %v1563
      %v1690 = vpack.c.bf16 %v1566, %v1565
      %v1691 = vpack.c.bf16 %v1568, %v1567
      %v1692 = vpack.c.bf16 %v1570, %v1569
      %v1693 = vpack.c.bf16 %v1572, %v1571
      %v1694 = vpack.c.bf16 %v1574, %v1573
      %v1695 = vpack.c.bf16 %v1576, %v1575
      %v1696 = vpack.c.bf16 %v1578, %v1577
      %v1697 = vpack.c.bf16 %v1580, %v1579
      %v1698 = vpack.c.bf16 %v1582, %v1581
      %v1699 = vpack.c.bf16 %v1584, %v1583
      %v1700 = vpack.c.bf16 %v1586, %v1585
      %v1701 = vpack.c.bf16 %v1588, %v1587
      %v1702 = vpack.c.bf16 %v1590, %v1589
      %v1703 = vpack.c.bf16 %v1592, %v1591
      %v1704 = vpack.c.bf16 %v1594, %v1593
      %v1705 = vpack.c.bf16 %v1596, %v1595
      %v1706 = vpack.c.bf16 %v1598, %v1597
      %v1707 = vpack.c.bf16 %v1600, %v1599
      %v1708 = vpack.c.bf16 %v1602, %v1601
      %v1709 = vpack.c.bf16 %v1604, %v1603
      %v1710 = vpack.c.bf16 %v1606, %v1605
      %v1711 = vpack.c.bf16 %v1608, %v1607
      %v1712 = vpack.c.bf16 %v1610, %v1609
      %v1713 = vpack.c.bf16 %v1612, %v1611
      %v1714 = vpack.c.bf16 %v1614, %v1613
      %v1715 = vpack.c.bf16 %v1616, %v1615
      %v1716 = vpack.c.bf16 %v1618, %v1617
      %v1717 = vpack.c.bf16 %v1620, %v1619
      %v1718 = vpack.c.bf16 %v1622, %v1621
      %v1719 = vpack.c.bf16 %v1624, %v1623
      %v1720 = vpack.c.bf16 %v1626, %v1625
      %v1721 = vpack.c.bf16 %v1628, %v1627
      %v1722 = vpack.c.bf16 %v1630, %v1629
      %v1723 = vpack.c.bf16 %v1632, %v1631
      %v1724 = vpack.c.bf16 %v1634, %v1633
      %v1725 = vpack.c.bf16 %v1636, %v1635
      %v1726 = vpack.c.bf16 %v1638, %v1637
      %v1727 = vpack.c.bf16 %v1640, %v1639
      %v1728 = vpack.c.bf16 %v1642, %v1641
      %v1729 = vpack.c.bf16 %v1644, %v1643
      %v1730 = vpack.c.bf16 %v1646, %v1645
      %v1731 = vpack.c.bf16 %v1648, %v1647
      %v1732 = vpack.c.bf16 %v1650, %v1649
      %v1733 = vpack.c.bf16 %v1652, %v1651
      %v1734 = vpack.c.bf16 %v1654, %v1653
      %v1735 = vpack.c.bf16 %v1656, %v1655
      %v1736 = vpack.c.bf16 %v1658, %v1657
      %v1737 = vpack.c.bf16 %v1660, %v1659
      %v1738 = vpack.c.bf16 %v1662, %v1661
      %v1739 = vpack.c.bf16 %v1664, %v1663
      %v1740 = vpack.c.bf16 %v1666, %v1665
      %v1741 = vpack.c.bf16 %v1668, %v1667
      %v1742 = vpack.c.bf16 %v1670, %v1669
      %v1743 = vpack.c.bf16 %v1672, %v1671
      %v1744 = vpack.c.bf16 %v1674, %v1673
      %v1745 = vpack.c.bf16 %v1676, %v1675
      %v1746 = vpack.c.bf16 %v1678, %v1677
      %v1747 = vpack.c.bf16 %v1680, %v1679
      %v1748 = vpack.c.bf16 %v1682, %v1681
      %v1749 = vpack.c.bf16 %v1684, %v1683
      %v1750 = vpack.c.bf16 %v1686, %v1685
      %v1815 = vunpack.c.l.b16 %v1687
      %v1816 = vunpack.c.h.b16 %v1687
      %v1817 = vunpack.c.l.b16 %v1688
      %v1818 = vunpack.c.h.b16 %v1688
      %v1819 = vunpack.c.l.b16 %v1689
      %v1820 = vunpack.c.h.b16 %v1689
      %v1821 = vunpack.c.l.b16 %v1690
      %v1822 = vunpack.c.h.b16 %v1690
      %v1823 = vunpack.c.l.b16 %v1691
      %v1824 = vunpack.c.h.b16 %v1691
      %v1825 = vunpack.c.l.b16 %v1692
      %v1826 = vunpack.c.h.b16 %v1692
      %v1827 = vunpack.c.l.b16 %v1693
      %v1828 = vunpack.c.h.b16 %v1693
      %v1829 = vunpack.c.l.b16 %v1694
      %v1830 = vunpack.c.h.b16 %v1694
      %v1831 = vunpack.c.l.b16 %v1695
      %v1832 = vunpack.c.h.b16 %v1695
      %v1833 = vunpack.c.l.b16 %v1696
      %v1834 = vunpack.c.h.b16 %v1696
      %v1835 = vunpack.c.l.b16 %v1697
      %v1836 = vunpack.c.h.b16 %v1697
      %v1837 = vunpack.c.l.b16 %v1698
      %v1838 = vunpack.c.h.b16 %v1698
      %v1839 = vunpack.c.l.b16 %v1699
      %v1840 = vunpack.c.h.b16 %v1699
      %v1841 = vunpack.c.l.b16 %v1700
      %v1842 = vunpack.c.h.b16 %v1700
      %v1843 = vunpack.c.l.b16 %v1701
      %v1844 = vunpack.c.h.b16 %v1701
      %v1845 = vunpack.c.l.b16 %v1702
      %v1846 = vunpack.c.h.b16 %v1702
      %v1847 = vunpack.c.l.b16 %v1703
      %v1848 = vunpack.c.h.b16 %v1703
      %v1849 = vunpack.c.l.b16 %v1704
      %v1850 = vunpack.c.h.b16 %v1704
      %v1851 = vunpack.c.l.b16 %v1705
      %v1852 = vunpack.c.h.b16 %v1705
      %v1853 = vunpack.c.l.b16 %v1706
      %v1854 = vunpack.c.h.b16 %v1706
      %v1855 = vunpack.c.l.b16 %v1707
      %v1856 = vunpack.c.h.b16 %v1707
      %v1857 = vunpack.c.l.b16 %v1708
      %v1858 = vunpack.c.h.b16 %v1708
      %v1859 = vunpack.c.l.b16 %v1709
      %v1860 = vunpack.c.h.b16 %v1709
      %v1861 = vunpack.c.l.b16 %v1710
      %v1862 = vunpack.c.h.b16 %v1710
      %v1863 = vunpack.c.l.b16 %v1711
      %v1864 = vunpack.c.h.b16 %v1711
      %v1865 = vunpack.c.l.b16 %v1712
      %v1866 = vunpack.c.h.b16 %v1712
      %v1867 = vunpack.c.l.b16 %v1713
      %v1868 = vunpack.c.h.b16 %v1713
      %v1869 = vunpack.c.l.b16 %v1714
      %v1870 = vunpack.c.h.b16 %v1714
      %v1871 = vunpack.c.l.b16 %v1715
      %v1872 = vunpack.c.h.b16 %v1715
      %v1873 = vunpack.c.l.b16 %v1716
      %v1874 = vunpack.c.h.b16 %v1716
      %v1875 = vunpack.c.l.b16 %v1717
      %v1876 = vunpack.c.h.b16 %v1717
      %v1877 = vunpack.c.l.b16 %v1718
      %v1878 = vunpack.c.h.b16 %v1718
      %v1879 = vunpack.c.l.b16 %v1719
      %v1880 = vunpack.c.h.b16 %v1719
      %v1881 = vunpack.c.l.b16 %v1720
      %v1882 = vunpack.c.h.b16 %v1720
      %v1883 = vunpack.c.l.b16 %v1721
      %v1884 = vunpack.c.h.b16 %v1721
      %v1885 = vunpack.c.l.b16 %v1722
      %v1886 = vunpack.c.h.b16 %v1722
      %v1887 = vunpack.c.l.b16 %v1723
      %v1888 = vunpack.c.h.b16 %v1723
      %v1889 = vunpack.c.l.b16 %v1724
      %v1890 = vunpack.c.h.b16 %v1724
      %v1891 = vunpack.c.l.b16 %v1725
      %v1892 = vunpack.c.h.b16 %v1725
      %v1893 = vunpack.c.l.b16 %v1726
      %v1894 = vunpack.c.h.b16 %v1726
      %v1895 = vunpack.c.l.b16 %v1727
      %v1896 = vunpack.c.h.b16 %v1727
      %v1897 = vunpack.c.l.b16 %v1728
      %v1898 = vunpack.c.h.b16 %v1728
      %v1899 = vunpack.c.l.b16 %v1729
      %v1900 = vunpack.c.h.b16 %v1729
      %v1901 = vunpack.c.l.b16 %v1730
      %v1902 = vunpack.c.h.b16 %v1730
      %v1903 = vunpack.c.l.b16 %v1731
      %v1904 = vunpack.c.h.b16 %v1731
      %v1905 = vunpack.c.l.b16 %v1732
      %v1906 = vunpack.c.h.b16 %v1732
      %v1907 = vunpack.c.l.b16 %v1733
      %v1908 = vunpack.c.h.b16 %v1733
      %v1909 = vunpack.c.l.b16 %v1734
      %v1910 = vunpack.c.h.b16 %v1734
      %v1911 = vunpack.c.l.b16 %v1735
      %v1912 = vunpack.c.h.b16 %v1735
      %v1913 = vunpack.c.l.b16 %v1736
      %v1914 = vunpack.c.h.b16 %v1736
      %v1915 = vunpack.c.l.b16 %v1737
      %v1916 = vunpack.c.h.b16 %v1737
      %v1917 = vunpack.c.l.b16 %v1738
      %v1918 = vunpack.c.h.b16 %v1738
      %v1919 = vunpack.c.l.b16 %v1739
      %v1920 = vunpack.c.h.b16 %v1739
      %v1921 = vunpack.c.l.b16 %v1740
      %v1922 = vunpack.c.h.b16 %v1740
      %v1923 = vunpack.c.l.b16 %v1741
      %v1924 = vunpack.c.h.b16 %v1741
      %v1925 = vunpack.c.l.b16 %v1742
      %v1926 = vunpack.c.h.b16 %v1742
      %v1927 = vunpack.c.l.b16 %v1743
      %v1928 = vunpack.c.h.b16 %v1743
      %v1929 = vunpack.c.l.b16 %v1744
      %v1930 = vunpack.c.h.b16 %v1744
      %v1931 = vunpack.c.l.b16 %v1745
      %v1932 = vunpack.c.h.b16 %v1745
      %v1933 = vunpack.c.l.b16 %v1746
      %v1934 = vunpack.c.h.b16 %v1746
      %v1935 = vunpack.c.l.b16 %v1747
      %v1936 = vunpack.c.h.b16 %v1747
      %v1937 = vunpack.c.l.b16 %v1748
      %v1938 = vunpack.c.h.b16 %v1748
      %v1939 = vunpack.c.l.b16 %v1749
      %v1940 = vunpack.c.h.b16 %v1749
      %v1941 = vunpack.c.l.b16 %v1750
      %v1942 = vunpack.c.h.b16 %v1750
      %v1943 = vpack.c.b16 %v1815, %v1815
      %v1944 = vpack.c.b16 %v1816, %v1816
      %v1945 = vpack.c.b16 %v1817, %v1817
      %v1946 = vpack.c.b16 %v1818, %v1818
      %v1947 = vpack.c.b16 %v1819, %v1819
      %v1948 = vpack.c.b16 %v1820, %v1820
      %v1949 = vpack.c.b16 %v1821, %v1821
      %v1950 = vpack.c.b16 %v1822, %v1822
      %v1951 = vpack.c.b16 %v1823, %v1823
      %v1952 = vpack.c.b16 %v1824, %v1824
      %v1953 = vpack.c.b16 %v1825, %v1825
      %v1954 = vpack.c.b16 %v1826, %v1826
      %v1955 = vpack.c.b16 %v1827, %v1827
      %v1956 = vpack.c.b16 %v1828, %v1828
      %v1957 = vpack.c.b16 %v1829, %v1829
      %v1958 = vpack.c.b16 %v1830, %v1830
      %v1959 = vpack.c.b16 %v1831, %v1831
      %v1960 = vpack.c.b16 %v1832, %v1832
      %v1961 = vpack.c.b16 %v1833, %v1833
      %v1962 = vpack.c.b16 %v1834, %v1834
      %v1963 = vpack.c.b16 %v1835, %v1835
      %v1964 = vpack.c.b16 %v1836, %v1836
      %v1965 = vpack.c.b16 %v1837, %v1837
      %v1966 = vpack.c.b16 %v1838, %v1838
      %v1967 = vpack.c.b16 %v1839, %v1839
      %v1968 = vpack.c.b16 %v1840, %v1840
      %v1969 = vpack.c.b16 %v1841, %v1841
      %v1970 = vpack.c.b16 %v1842, %v1842
      %v1971 = vpack.c.b16 %v1843, %v1843
      %v1972 = vpack.c.b16 %v1844, %v1844
      %v1973 = vpack.c.b16 %v1845, %v1845
      %v1974 = vpack.c.b16 %v1846, %v1846
      %v1975 = vpack.c.b16 %v1847, %v1847
      %v1976 = vpack.c.b16 %v1848, %v1848
      %v1977 = vpack.c.b16 %v1849, %v1849
      %v1978 = vpack.c.b16 %v1850, %v1850
      %v1979 = vpack.c.b16 %v1851, %v1851
      %v1980 = vpack.c.b16 %v1852, %v1852
      %v1981 = vpack.c.b16 %v1853, %v1853
      %v1982 = vpack.c.b16 %v1854, %v1854
      %v1983 = vpack.c.b16 %v1855, %v1855
      %v1984 = vpack.c.b16 %v1856, %v1856
      %v1985 = vpack.c.b16 %v1857, %v1857
      %v1986 = vpack.c.b16 %v1858, %v1858
      %v1987 = vpack.c.b16 %v1859, %v1859
      %v1988 = vpack.c.b16 %v1860, %v1860
      %v1989 = vpack.c.b16 %v1861, %v1861
      %v1990 = vpack.c.b16 %v1862, %v1862
      %v1991 = vpack.c.b16 %v1863, %v1863
      %v1992 = vpack.c.b16 %v1864, %v1864
      %v1993 = vpack.c.b16 %v1865, %v1865
      %v1994 = vpack.c.b16 %v1866, %v1866
      %v1995 = vpack.c.b16 %v1867, %v1867
      %v1996 = vpack.c.b16 %v1868, %v1868
      %v1997 = vpack.c.b16 %v1869, %v1869
      %v1998 = vpack.c.b16 %v1870, %v1870
      %v1999 = vpack.c.b16 %v1871, %v1871
      %v2000 = vpack.c.b16 %v1872, %v1872
      %v2001 = vpack.c.b16 %v1873, %v1873
      %v2002 = vpack.c.b16 %v1874, %v1874
      %v2003 = vpack.c.b16 %v1875, %v1875
      %v2004 = vpack.c.b16 %v1876, %v1876
      %v2005 = vpack.c.b16 %v1877, %v1877
      %v2006 = vpack.c.b16 %v1878, %v1878
      %v2007 = vpack.c.b16 %v1879, %v1879
      %v2008 = vpack.c.b16 %v1880, %v1880
      %v2009 = vpack.c.b16 %v1881, %v1881
      %v2010 = vpack.c.b16 %v1882, %v1882
      %v2011 = vpack.c.b16 %v1883, %v1883
      %v2012 = vpack.c.b16 %v1884, %v1884
      %v2013 = vpack.c.b16 %v1885, %v1885
      %v2014 = vpack.c.b16 %v1886, %v1886
      %v2015 = vpack.c.b16 %v1887, %v1887
      %v2016 = vpack.c.b16 %v1888, %v1888
      %v2017 = vpack.c.b16 %v1889, %v1889
      %v2018 = vpack.c.b16 %v1890, %v1890
      %v2019 = vpack.c.b16 %v1891, %v1891
      %v2020 = vpack.c.b16 %v1892, %v1892
      %v2021 = vpack.c.b16 %v1893, %v1893
      %v2022 = vpack.c.b16 %v1894, %v1894
      %v2023 = vpack.c.b16 %v1895, %v1895
      %v2024 = vpack.c.b16 %v1896, %v1896
      %v2025 = vpack.c.b16 %v1897, %v1897
      %v2026 = vpack.c.b16 %v1898, %v1898
      %v2027 = vpack.c.b16 %v1899, %v1899
      %v2028 = vpack.c.b16 %v1900, %v1900
      %v2029 = vpack.c.b16 %v1901, %v1901
      %v2030 = vpack.c.b16 %v1902, %v1902
      %v2031 = vpack.c.b16 %v1903, %v1903
      %v2032 = vpack.c.b16 %v1904, %v1904
      %v2033 = vpack.c.b16 %v1905, %v1905
      %v2034 = vpack.c.b16 %v1906, %v1906
      %v2035 = vpack.c.b16 %v1907, %v1907
      %v2036 = vpack.c.b16 %v1908, %v1908
      %v2037 = vpack.c.b16 %v1909, %v1909
      %v2038 = vpack.c.b16 %v1910, %v1910
      %v2039 = vpack.c.b16 %v1911, %v1911
      %v2040 = vpack.c.b16 %v1912, %v1912
      %v2041 = vpack.c.b16 %v1913, %v1913
      %v2042 = vpack.c.b16 %v1914, %v1914
      %v2043 = vpack.c.b16 %v1915, %v1915
      %v2044 = vpack.c.b16 %v1916, %v1916
      %v2045 = vpack.c.b16 %v1917, %v1917
      %v2046 = vpack.c.b16 %v1918, %v1918
      %v2047 = vpack.c.b16 %v1919, %v1919
      %v2048 = vpack.c.b16 %v1920, %v1920
      %v2049 = vpack.c.b16 %v1921, %v1921
      %v2050 = vpack.c.b16 %v1922, %v1922
      %v2051 = vpack.c.b16 %v1923, %v1923
      %v2052 = vpack.c.b16 %v1924, %v1924
      %v2053 = vpack.c.b16 %v1925, %v1925
      %v2054 = vpack.c.b16 %v1926, %v1926
      %v2055 = vpack.c.b16 %v1927, %v1927
      %v2056 = vpack.c.b16 %v1928, %v1928
      %v2057 = vpack.c.b16 %v1929, %v1929
      %v2058 = vpack.c.b16 %v1930, %v1930
      %v2059 = vpack.c.b16 %v1931, %v1931
      %v2060 = vpack.c.b16 %v1932, %v1932
      %v2061 = vpack.c.b16 %v1933, %v1933
      %v2062 = vpack.c.b16 %v1934, %v1934
      %v2063 = vpack.c.b16 %v1935, %v1935
      %v2064 = vpack.c.b16 %v1936, %v1936
      %v2065 = vpack.c.b16 %v1937, %v1937
      %v2066 = vpack.c.b16 %v1938, %v1938
      %v2067 = vpack.c.b16 %v1939, %v1939
      %v2068 = vpack.c.b16 %v1940, %v1940
      %v2069 = vpack.c.b16 %v1941, %v1941
      %v2070 = vpack.c.b16 %v1942, %v1942
      %2199 = vst [vmem:[%s172] sm:$0xf] %v1943
      %2200 = vst [vmem:[%s172 + $0x4] sm:$0xf] %v1944
      %2201 = vst [vmem:[%s172 + $0x8] sm:$0xf] %v1945
      %2202 = vst [vmem:[%s172 + $0xc] sm:$0xf] %v1946
      %2203 = vst [vmem:[%s172 + $0x10] sm:$0xf] %v1947
      %2204 = vst [vmem:[%s172 + $0x14] sm:$0xf] %v1948
      %2205 = vst [vmem:[%s172 + $0x18] sm:$0xf] %v1949
      %2206 = vst [vmem:[%s172 + $0x1c] sm:$0xf] %v1950
      %2207 = vst [vmem:[%s172 + $0x20] sm:$0xf] %v1951
      %2208 = vst [vmem:[%s172 + $0x24] sm:$0xf] %v1952
      %2209 = vst [vmem:[%s172 + $0x28] sm:$0xf] %v1953
      %2210 = vst [vmem:[%s172 + $0x2c] sm:$0xf] %v1954
      %2211 = vst [vmem:[%s172 + $0x30] sm:$0xf] %v1955
      %2212 = vst [vmem:[%s172 + $0x34] sm:$0xf] %v1956
      %2213 = vst [vmem:[%s172 + $0x38] sm:$0xf] %v1957
      %2214 = vst [vmem:[%s172 + $0x3c] sm:$0xf] %v1958
      %2215 = vst [vmem:[%s172 + $0x40] sm:$0xf] %v1959
      %2216 = vst [vmem:[%s172 + $0x44] sm:$0xf] %v1960
      %2217 = vst [vmem:[%s172 + $0x48] sm:$0xf] %v1961
      %2218 = vst [vmem:[%s172 + $0x4c] sm:$0xf] %v1962
      %2219 = vst [vmem:[%s172 + $0x50] sm:$0xf] %v1963
      %2220 = vst [vmem:[%s172 + $0x54] sm:$0xf] %v1964
      %2221 = vst [vmem:[%s172 + $0x58] sm:$0xf] %v1965
      %2222 = vst [vmem:[%s172 + $0x5c] sm:$0xf] %v1966
      %2223 = vst [vmem:[%s172 + $0x60] sm:$0xf] %v1967
      %2224 = vst [vmem:[%s172 + $0x64] sm:$0xf] %v1968
      %2225 = vst [vmem:[%s172 + $0x68] sm:$0xf] %v1969
      %2226 = vst [vmem:[%s172 + $0x6c] sm:$0xf] %v1970
      %2227 = vst [vmem:[%s172 + $0x70] sm:$0xf] %v1971
      %2228 = vst [vmem:[%s172 + $0x74] sm:$0xf] %v1972
      %2229 = vst [vmem:[%s172 + $0x78] sm:$0xf] %v1973
      %2230 = vst [vmem:[%s172 + $0x7c] sm:$0xf] %v1974
      %2231 = vst [vmem:[%s172 + $0x80] sm:$0xf] %v1975
      %2232 = vst [vmem:[%s172 + $0x84] sm:$0xf] %v1976
      %2233 = vst [vmem:[%s172 + $0x88] sm:$0xf] %v1977
      %2234 = vst [vmem:[%s172 + $0x8c] sm:$0xf] %v1978
      %2235 = vst [vmem:[%s172 + $0x90] sm:$0xf] %v1979
      %2236 = vst [vmem:[%s172 + $0x94] sm:$0xf] %v1980
      %2237 = vst [vmem:[%s172 + $0x98] sm:$0xf] %v1981
      %2238 = vst [vmem:[%s172 + $0x9c] sm:$0xf] %v1982
      %2239 = vst [vmem:[%s172 + $0xa0] sm:$0xf] %v1983
      %2240 = vst [vmem:[%s172 + $0xa4] sm:$0xf] %v1984
      %2241 = vst [vmem:[%s172 + $0xa8] sm:$0xf] %v1985
      %2242 = vst [vmem:[%s172 + $0xac] sm:$0xf] %v1986
      %2243 = vst [vmem:[%s172 + $0xb0] sm:$0xf] %v1987
      %2244 = vst [vmem:[%s172 + $0xb4] sm:$0xf] %v1988
      %2245 = vst [vmem:[%s172 + $0xb8] sm:$0xf] %v1989
      %2246 = vst [vmem:[%s172 + $0xbc] sm:$0xf] %v1990
      %2247 = vst [vmem:[%s172 + $0xc0] sm:$0xf] %v1991
      %2248 = vst [vmem:[%s172 + $0xc4] sm:$0xf] %v1992
      %2249 = vst [vmem:[%s172 + $0xc8] sm:$0xf] %v1993
      %2250 = vst [vmem:[%s172 + $0xcc] sm:$0xf] %v1994
      %2251 = vst [vmem:[%s172 + $0xd0] sm:$0xf] %v1995
      %2252 = vst [vmem:[%s172 + $0xd4] sm:$0xf] %v1996
      %2253 = vst [vmem:[%s172 + $0xd8] sm:$0xf] %v1997
      %2254 = vst [vmem:[%s172 + $0xdc] sm:$0xf] %v1998
      %2255 = vst [vmem:[%s172 + $0xe0] sm:$0xf] %v1999
      %2256 = vst [vmem:[%s172 + $0xe4] sm:$0xf] %v2000
      %2257 = vst [vmem:[%s172 + $0xe8] sm:$0xf] %v2001
      %2258 = vst [vmem:[%s172 + $0xec] sm:$0xf] %v2002
      %2259 = vst [vmem:[%s172 + $0xf0] sm:$0xf] %v2003
      %2260 = vst [vmem:[%s172 + $0xf4] sm:$0xf] %v2004
      %2261 = vst [vmem:[%s172 + $0xf8] sm:$0xf] %v2005
      %2262 = vst [vmem:[%s172 + $0xfc] sm:$0xf] %v2006
      %2263 = vst [vmem:[%s172 + $0x100] sm:$0xf] %v2007
      %2264 = vst [vmem:[%s172 + $0x104] sm:$0xf] %v2008
      %2265 = vst [vmem:[%s172 + $0x108] sm:$0xf] %v2009
      %2266 = vst [vmem:[%s172 + $0x10c] sm:$0xf] %v2010
      %2267 = vst [vmem:[%s172 + $0x110] sm:$0xf] %v2011
      %2268 = vst [vmem:[%s172 + $0x114] sm:$0xf] %v2012
      %2269 = vst [vmem:[%s172 + $0x118] sm:$0xf] %v2013
      %2270 = vst [vmem:[%s172 + $0x11c] sm:$0xf] %v2014
      %2271 = vst [vmem:[%s172 + $0x120] sm:$0xf] %v2015
      %2272 = vst [vmem:[%s172 + $0x124] sm:$0xf] %v2016
      %2273 = vst [vmem:[%s172 + $0x128] sm:$0xf] %v2017
      %2274 = vst [vmem:[%s172 + $0x12c] sm:$0xf] %v2018
      %2275 = vst [vmem:[%s172 + $0x130] sm:$0xf] %v2019
      %2276 = vst [vmem:[%s172 + $0x134] sm:$0xf] %v2020
      %2277 = vst [vmem:[%s172 + $0x138] sm:$0xf] %v2021
      %2278 = vst [vmem:[%s172 + $0x13c] sm:$0xf] %v2022
      %2279 = vst [vmem:[%s172 + $0x140] sm:$0xf] %v2023
      %2280 = vst [vmem:[%s172 + $0x144] sm:$0xf] %v2024
      %2281 = vst [vmem:[%s172 + $0x148] sm:$0xf] %v2025
      %2282 = vst [vmem:[%s172 + $0x14c] sm:$0xf] %v2026
      %2283 = vst [vmem:[%s172 + $0x150] sm:$0xf] %v2027
      %2284 = vst [vmem:[%s172 + $0x154] sm:$0xf] %v2028
      %2285 = vst [vmem:[%s172 + $0x158] sm:$0xf] %v2029
      %2286 = vst [vmem:[%s172 + $0x15c] sm:$0xf] %v2030
      %2287 = vst [vmem:[%s172 + $0x160] sm:$0xf] %v2031
      %2288 = vst [vmem:[%s172 + $0x164] sm:$0xf] %v2032
      %2289 = vst [vmem:[%s172 + $0x168] sm:$0xf] %v2033
      %2290 = vst [vmem:[%s172 + $0x16c] sm:$0xf] %v2034
      %2291 = vst [vmem:[%s172 + $0x170] sm:$0xf] %v2035
      %2292 = vst [vmem:[%s172 + $0x174] sm:$0xf] %v2036
      %2293 = vst [vmem:[%s172 + $0x178] sm:$0xf] %v2037
      %2294 = vst [vmem:[%s172 + $0x17c] sm:$0xf] %v2038
      %2295 = vst [vmem:[%s172 + $0x180] sm:$0xf] %v2039
      %2296 = vst [vmem:[%s172 + $0x184] sm:$0xf] %v2040
      %2297 = vst [vmem:[%s172 + $0x188] sm:$0xf] %v2041
      %2298 = vst [vmem:[%s172 + $0x18c] sm:$0xf] %v2042
      %2299 = vst [vmem:[%s172 + $0x190] sm:$0xf] %v2043
      %2300 = vst [vmem:[%s172 + $0x194] sm:$0xf] %v2044
      %2301 = vst [vmem:[%s172 + $0x198] sm:$0xf] %v2045
      %2302 = vst [vmem:[%s172 + $0x19c] sm:$0xf] %v2046
      %2303 = vst [vmem:[%s172 + $0x1a0] sm:$0xf] %v2047
      %2304 = vst [vmem:[%s172 + $0x1a4] sm:$0xf] %v2048
      %2305 = vst [vmem:[%s172 + $0x1a8] sm:$0xf] %v2049
      %2306 = vst [vmem:[%s172 + $0x1ac] sm:$0xf] %v2050
      %2307 = vst [vmem:[%s172 + $0x1b0] sm:$0xf] %v2051
      %2308 = vst [vmem:[%s172 + $0x1b4] sm:$0xf] %v2052
      %2309 = vst [vmem:[%s172 + $0x1b8] sm:$0xf] %v2053
      %2310 = vst [vmem:[%s172 + $0x1bc] sm:$0xf] %v2054
      %2311 = vst [vmem:[%s172 + $0x1c0] sm:$0xf] %v2055
      %2312 = vst [vmem:[%s172 + $0x1c4] sm:$0xf] %v2056
      %2313 = vst [vmem:[%s172 + $0x1c8] sm:$0xf] %v2057
      %2314 = vst [vmem:[%s172 + $0x1cc] sm:$0xf] %v2058
      %2315 = vst [vmem:[%s172 + $0x1d0] sm:$0xf] %v2059
      %2316 = vst [vmem:[%s172 + $0x1d4] sm:$0xf] %v2060
      %2317 = vst [vmem:[%s172 + $0x1d8] sm:$0xf] %v2061
      %2318 = vst [vmem:[%s172 + $0x1dc] sm:$0xf] %v2062
      %2319 = vst [vmem:[%s172 + $0x1e0] sm:$0xf] %v2063
      %2320 = vst [vmem:[%s172 + $0x1e4] sm:$0xf] %v2064
      %2321 = vst [vmem:[%s172 + $0x1e8] sm:$0xf] %v2065
      %2322 = vst [vmem:[%s172 + $0x1ec] sm:$0xf] %v2066
      %2323 = vst [vmem:[%s172 + $0x1f0] sm:$0xf] %v2067
      %2324 = vst [vmem:[%s172 + $0x1f4] sm:$0xf] %v2068
      %2325 = vst [vmem:[%s172 + $0x1f8] sm:$0xf] %v2069
      %2326 = vst [vmem:[%s172 + $0x1fc] sm:$0xf] %v2070
      %s2327 = smul.u32 128, %s14
      %p2328 = scmp.lt.s32.totalorder %s2327, 255
      %s2329 = scalar_select %p2328, %s2327, 255
      %s2330 = smul.addr %s2329, 4
      %s2331 = scalar_lea.vmem %s3, %s2330
      // Predicated region
      $region33: #{_lambda_.6} parent=31 // pred_check
        %p2332 = pneg %p100
      $region34: #{_lambda_.6} parent=31 // pred_check_branch
        %2334 = sbr.rel (%p2332) target = $region36
      $region35: #{_lambda_.6} parent=31 // pred_region
        %s2335 = smul.u32 128, %s14
      $region36: #{_lambda_.6} parent=31 // pred_fallthru
        _
    $region32: #{_lambda_.6} parent=5 // pred_fallthru
      _
    %p2336 = scmp.le.s32.totalorder 2, %s9
    // Predicated region
    $region37: #{_lambda_.6} parent=5 // pred_check
      %p2337 = pneg %p2336
    $region38: #{_lambda_.6} parent=5 // pred_check_branch
      %2339 = sbr.rel (%p2337) target = $region40
    $region39: #{_lambda_.6} parent=5 // pred_region
      %s2340 = ssub.s32 %s9, 2
      // Predicated region
      $region41: #{_lambda_.6} parent=39 // pred_check
        %p2341 = pneg %p106
      $region42: #{_lambda_.6} parent=39 // pred_check_branch
        %2343 = sbr.rel (%p2341) target = $region44
      $region43: #{_lambda_.6} parent=39 // pred_region
        %s2344 = smul.u32 128, %s15
        %p2345 = scmp.lt.s32.totalorder %s2344, 255
        %s2346 = scalar_select %p2345, %s2344, 255
        %s2347 = smul.addr %s2346, 4
        %s2348 = scalar_lea.vmem %s3, %s2347
      $region44: #{_lambda_.6} parent=39 // pred_fallthru
        _
    $region40: #{_lambda_.6} parent=5 // pred_fallthru
      _
  $region6: #{_lambda_.6} parent=0 // loop_footer
    %s13 = sadd.s32 1, %s9
  $region7: #{_lambda_.6} parent=0 // loop_footer_branch
    %8 = sbr.rel target = $region3
  $region8: #{_lambda_.6} parent=0 // loop_exit
    _

// kernel: _lambda_.7
$region0: #{_lambda_.7}
  #allocation0 [shape = 'u32[]', space=smem, size = 0x4, offset = 0x4, fixed_abs, tag = 'smem constant byte address 0x4 - core index']
  #allocation1 [shape = 'u32[144,128]{1,0:T(1,128)}', space=vmem, size = 0x12000, scoped, tag = 'internal scratch']
  %s0 = inlined_call_operand.vmem [shape: bf16[512,256], index: 0, kind: input, shape index: {}]
  %s1 = inlined_call_operand.vmem [shape: bf16[256,128], index: 1, kind: input, shape index: {}]
  %s2 = inlined_call_operand.vmem [shape: f32[1,128], index: 2, kind: input, shape index: {}]
  %s3 = inlined_call_operand.vmem [shape: bf16[512,128], index: 3, kind: output, shape index: {}]
  %s4 = sld [smem:[#allocation0]]
  $region45: #{_lambda_.7} parent=0
    _
  %s6 = ssub.s32 1, %s4
  %s7 = scalar_select 0, %s6, %s4
  loop: start=0, step=1, limit=4
  $region2: #{_lambda_.7} parent=0 // loop_pre_header
    _
  $region3: #{_lambda_.7} parent=0 // loop_header
    %s9 = sphi 0, %s13
    %p10 = scmp.ge.s32.totalorder %s9, 4
    %s19 = sphi 0, %s21
    %s22 = sphi 0, %s19
    %s23 = sphi 0, %s22
    %s39 = sphi 0, %s23
    %s43 = sphi 0, %s43
    %s45 = sphi 0, %s43
    %s46 = sphi 0, %s45
    %s60 = sphi 0, %s46
    %s64 = sphi 0, %s64
    %s66 = sphi 0, %s64
    %s67 = sphi 0, %s66
    %s81 = sphi 0, %s67
    %s87 = sphi 0, %s89
    %s90 = sphi 0, %s87
    %s91 = sphi 0, %s90
    %s107 = sphi 0, %s91
  $region4: #{_lambda_.7} parent=0 // loop_header_branch
    %12 = sbr.rel (%p10) target = $region8
  $region5: #{_lambda_.7} parent=0 // loop_body
    %s14 = ssub.s32 %s9, 1
    %s15 = ssub.s32 %s9, 2
    %s16 = sadd.s32 %s9, 1
    %s17 = ssub.s32 %s9, %s16
    %p18 = scmp.eq.s32.totalorder %s17, 0
    %s20 = sadd.s32 %s19, 1
    %s21 = scalar_select %p18, %s19, %s20
    %p24 = pneg %p18
    %p25 = scmp.eq.s32.totalorder %s9, 1
    %p26 = por %p24, %p25
    %p27 = scmp.ne.s32.totalorder %s19, %s22
    %p28 = scmp.eq.s32.totalorder %s9, 0
    %p29 = por %p27, %p28
    %p30 = scmp.ne.s32.totalorder %s19, %s22
    %p31 = scmp.eq.s32.totalorder %s14, 1
    %p32 = por %p30, %p31
    %p33 = scmp.ne.s32.totalorder %s22, %s23
    %p34 = scmp.eq.s32.totalorder %s14, 0
    %p35 = por %p33, %p34
    %p36 = scmp.ne.s32.totalorder %s22, %s23
    %p37 = scmp.eq.s32.totalorder %s15, 1
    %p38 = por %p36, %p37
    %p40 = scmp.ne.s32.totalorder %s23, %s39
    %p41 = scmp.eq.s32.totalorder %s15, 0
    %p42 = por %p40, %p41
    %s44 = sadd.s32 %s43, 1
    %p47 = scmp.eq.s32.totalorder %s9, 1
    %p48 = scmp.ne.s32.totalorder %s43, %s45
    %p49 = scmp.eq.s32.totalorder %s9, 0
    %p50 = por %p48, %p49
    %p51 = scmp.ne.s32.totalorder %s43, %s45
    %p52 = scmp.eq.s32.totalorder %s14, 1
    %p53 = por %p51, %p52
    %p54 = scmp.ne.s32.totalorder %s45, %s46
    %p55 = scmp.eq.s32.totalorder %s14, 0
    %p56 = por %p54, %p55
    %p57 = scmp.ne.s32.totalorder %s45, %s46
    %p58 = scmp.eq.s32.totalorder %s15, 1
    %p59 = por %p57, %p58
    %p61 = scmp.ne.s32.totalorder %s46, %s60
    %p62 = scmp.eq.s32.totalorder %s15, 0
    %p63 = por %p61, %p62
    %s65 = sadd.s32 %s64, 1
    %p68 = scmp.eq.s32.totalorder %s9, 1
    %p69 = scmp.ne.s32.totalorder %s64, %s66
    %p70 = scmp.eq.s32.totalorder %s9, 0
    %p71 = por %p69, %p70
    %p72 = scmp.ne.s32.totalorder %s64, %s66
    %p73 = scmp.eq.s32.totalorder %s14, 1
    %p74 = por %p72, %p73
    %p75 = scmp.ne.s32.totalorder %s66, %s67
    %p76 = scmp.eq.s32.totalorder %s14, 0
    %p77 = por %p75, %p76
    %p78 = scmp.ne.s32.totalorder %s66, %s67
    %p79 = scmp.eq.s32.totalorder %s15, 1
    %p80 = por %p78, %p79
    %p82 = scmp.ne.s32.totalorder %s67, %s81
    %p83 = scmp.eq.s32.totalorder %s15, 0
    %p84 = por %p82, %p83
    %s85 = ssub.s32 %s9, %s16
    %p86 = scmp.eq.s32.totalorder %s85, 0
    %s88 = sadd.s32 %s87, 1
    %s89 = scalar_select %p86, %s87, %s88
    %p92 = pneg %p86
    %p93 = scmp.eq.s32.totalorder %s9, 1
    %p94 = por %p92, %p93
    %p95 = scmp.ne.s32.totalorder %s87, %s90
    %p96 = scmp.eq.s32.totalorder %s9, 0
    %p97 = por %p95, %p96
    %p98 = scmp.ne.s32.totalorder %s87, %s90
    %p99 = scmp.eq.s32.totalorder %s14, 1
    %p100 = por %p98, %p99
    %p101 = scmp.ne.s32.totalorder %s90, %s91
    %p102 = scmp.eq.s32.totalorder %s14, 0
    %p103 = por %p101, %p102
    %p104 = scmp.ne.s32.totalorder %s90, %s91
    %p105 = scmp.eq.s32.totalorder %s15, 1
    %p106 = por %p104, %p105
    %p108 = scmp.ne.s32.totalorder %s91, %s107
    %p109 = scmp.eq.s32.totalorder %s15, 0
    %p110 = por %p108, %p109
    %p111 = scmp.le.s32.totalorder 1, %s9
    %p112 = scmp.lt.s32.totalorder %s9, 3
    %p113 = pnand %p111, %p112
    %p114 = pneg %p113
    // Predicated region
    $region9: #{_lambda_.7} parent=5 // pred_check
      _
    $region10: #{_lambda_.7} parent=5 // pred_check_branch
      %116 = sbr.rel (%p113) target = $region12
    $region11: #{_lambda_.7} parent=5 // pred_region
      %s117 = ssub.s32 %s9, 1
      // Predicated region
      $region13: #{_lambda_.7} parent=11 // pred_check
        %p118 = pneg %p56
      $region14: #{_lambda_.7} parent=11 // pred_check_branch
        %120 = sbr.rel (%p118) target = $region16
      $region15: #{_lambda_.7} parent=11 // pred_region
        _
      $region16: #{_lambda_.7} parent=11 // pred_fallthru
        _
      // Predicated region
      $region17: #{_lambda_.7} parent=11 // pred_check
        %p121 = pneg %p77
      $region18: #{_lambda_.7} parent=11 // pred_check_branch
        %123 = sbr.rel (%p121) target = $region20
      $region19: #{_lambda_.7} parent=11 // pred_region
        _
      $region20: #{_lambda_.7} parent=11 // pred_fallthru
        _
    $region12: #{_lambda_.7} parent=5 // pred_fallthru
      _
    %p124 = scmp.lt.s32.totalorder %s9, 2
    // Predicated region
    $region21: #{_lambda_.7} parent=5 // pred_check
      %p125 = pneg %p124
    $region22: #{_lambda_.7} parent=5 // pred_check_branch
      %127 = sbr.rel (%p125) target = $region24
    $region23: #{_lambda_.7} parent=5 // pred_region
      // Predicated region
      $region25: #{_lambda_.7} parent=23 // pred_check
        %p128 = pneg %p29
      $region26: #{_lambda_.7} parent=23 // pred_check_branch
        %130 = sbr.rel (%p128) target = $region28
      $region27: #{_lambda_.7} parent=23 // pred_region
        %s131 = smul.u32 32, %s9
        %p132 = scmp.lt.s32.totalorder %s131, 63
        %s133 = scalar_select %p132, %s131, 63
        %s134 = smul.addr %s133, 2
        %s135 = smul.addr %s134, 4
        %s136 = scalar_lea.vmem %s0, %s135
        %s137 = smul.u32 32, %s9
      $region28: #{_lambda_.7} parent=23 // pred_fallthru
        _
    $region24: #{_lambda_.7} parent=5 // pred_fallthru
      _
    %p138 = scmp.le.s32.totalorder 1, %s9
    %p139 = scmp.lt.s32.totalorder %s9, 3
    %p140 = pnand %p138, %p139
    %p141 = pneg %p140
    // Predicated region
    $region29: #{_lambda_.7} parent=5 // pred_check
      _
    $region30: #{_lambda_.7} parent=5 // pred_check_branch
      %143 = sbr.rel (%p140) target = $region32
    $region31: #{_lambda_.7} parent=5 // pred_region
      %s144 = ssub.s32 %s9, 1
      %s145 = smul.u32 32, %s14
      %p146 = scmp.lt.s32.totalorder %s145, 63
      %s147 = scalar_select %p146, %s145, 63
      %s148 = smul.addr %s147, 2
      %s149 = smul.addr %s148, 4
      %s150 = scalar_lea.vmem %s0, %s149
      %p151 = pneg %p35
      %p152 = pneg %p32
      %p153 = pneg %p56
      %p154 = pneg %p53
      %p155 = pneg %p77
      %p156 = pneg %p74
      %p157 = pneg %p103
      %p158 = pneg %p100
      %s159 = smul.u32 32, %s14
      %p160 = scmp.lt.s32.totalorder %s159, 63
      %s161 = scalar_select %p160, %s159, 63
      %s162 = smul.addr %s161, 4
      %s163 = scalar_lea.vmem %s3, %s162
      %s164 = smul.u32 32, %s14
      %p165 = scmp.lt.s32.totalorder %s164, 63
      %s166 = scalar_select %p165, %s164, 63
      %s167 = smul.addr %s166, 2
      %s168 = smul.addr %s167, 4
      %s169 = scalar_lea.vmem %s0, %s168
      %s170 = smul.u32 32, %s14
      %s171 = smul.u32 32, %s14
      %p172 = scmp.lt.s32.totalorder %s171, 63
      %s173 = scalar_select %p172, %s171, 63
      %s174 = smul.addr %s173, 4
      %s175 = scalar_lea.vmem %s3, %s174
      %s176 = smul.u32 32, %s14
      %v178 = vld [vmem:[%s169] sm:$0xff]
      %v179 = vld [vmem:[%s169 + $0x8] sm:$0xff]
      %v180 = vld [vmem:[%s169 + $0x10] sm:$0xff]
      %v181 = vld [vmem:[%s169 + $0x18] sm:$0xff]
      %v182 = vld [vmem:[%s169 + $0x20] sm:$0xff]
      %v183 = vld [vmem:[%s169 + $0x28] sm:$0xff]
      %v184 = vld [vmem:[%s169 + $0x30] sm:$0xff]
      %v185 = vld [vmem:[%s169 + $0x38] sm:$0xff]
      %v186 = vld [vmem:[%s169 + $0x40] sm:$0xff]
      %v187 = vld [vmem:[%s169 + $0x48] sm:$0xff]
      %v188 = vld [vmem:[%s169 + $0x50] sm:$0xff]
      %v189 = vld [vmem:[%s169 + $0x58] sm:$0xff]
      %v190 = vld [vmem:[%s169 + $0x60] sm:$0xff]
      %v191 = vld [vmem:[%s169 + $0x68] sm:$0xff]
      %v192 = vld [vmem:[%s169 + $0x70] sm:$0xff]
      %v193 = vld [vmem:[%s169 + $0x78] sm:$0xff]
      %v194 = vld [vmem:[%s169 + $0x80] sm:$0xff]
      %v195 = vld [vmem:[%s169 + $0x88] sm:$0xff]
      %v196 = vld [vmem:[%s169 + $0x90] sm:$0xff]
      %v197 = vld [vmem:[%s169 + $0x98] sm:$0xff]
      %v198 = vld [vmem:[%s169 + $0xa0] sm:$0xff]
      %v199 = vld [vmem:[%s169 + $0xa8] sm:$0xff]
      %v200 = vld [vmem:[%s169 + $0xb0] sm:$0xff]
      %v201 = vld [vmem:[%s169 + $0xb8] sm:$0xff]
      %v202 = vld [vmem:[%s169 + $0xc0] sm:$0xff]
      %v203 = vld [vmem:[%s169 + $0xc8] sm:$0xff]
      %v204 = vld [vmem:[%s169 + $0xd0] sm:$0xff]
      %v205 = vld [vmem:[%s169 + $0xd8] sm:$0xff]
      %v206 = vld [vmem:[%s169 + $0xe0] sm:$0xff]
      %v207 = vld [vmem:[%s169 + $0xe8] sm:$0xff]
      %v208 = vld [vmem:[%s169 + $0xf0] sm:$0xff]
      %v209 = vld [vmem:[%s169 + $0xf8] sm:$0xff]
      %v210 = vld [vmem:[%s1] sm:$0xf]
      %v211 = vld [vmem:[%s1 + $0x4] sm:$0xf]
      %v212 = vld [vmem:[%s1 + $0x8] sm:$0xf]
      %v213 = vld [vmem:[%s1 + $0xc] sm:$0xf]
      %v214 = vld [vmem:[%s1 + $0x10] sm:$0xf]
      %v215 = vld [vmem:[%s1 + $0x14] sm:$0xf]
      %v216 = vld [vmem:[%s1 + $0x18] sm:$0xf]
      %v217 = vld [vmem:[%s1 + $0x1c] sm:$0xf]
      %v218 = vld [vmem:[%s1 + $0x20] sm:$0xf]
      %v219 = vld [vmem:[%s1 + $0x24] sm:$0xf]
      %v220 = vld [vmem:[%s1 + $0x28] sm:$0xf]
      %v221 = vld [vmem:[%s1 + $0x2c] sm:$0xf]
      %v222 = vld [vmem:[%s1 + $0x30] sm:$0xf]
      %v223 = vld [vmem:[%s1 + $0x34] sm:$0xf]
      %v224 = vld [vmem:[%s1 + $0x38] sm:$0xf]
      %v225 = vld [vmem:[%s1 + $0x3c] sm:$0xf]
      %v226 = vld [vmem:[%s1 + $0x40] sm:$0xf]
      %v227 = vld [vmem:[%s1 + $0x44] sm:$0xf]
      %v228 = vld [vmem:[%s1 + $0x48] sm:$0xf]
      %v229 = vld [vmem:[%s1 + $0x4c] sm:$0xf]
      %v230 = vld [vmem:[%s1 + $0x50] sm:$0xf]
      %v231 = vld [vmem:[%s1 + $0x54] sm:$0xf]
      %v232 = vld [vmem:[%s1 + $0x58] sm:$0xf]
      %v233 = vld [vmem:[%s1 + $0x5c] sm:$0xf]
      %v234 = vld [vmem:[%s1 + $0x60] sm:$0xf]
      %v235 = vld [vmem:[%s1 + $0x64] sm:$0xf]
      %v236 = vld [vmem:[%s1 + $0x68] sm:$0xf]
      %v237 = vld [vmem:[%s1 + $0x6c] sm:$0xf]
      %v238 = vld [vmem:[%s1 + $0x70] sm:$0xf]
      %v239 = vld [vmem:[%s1 + $0x74] sm:$0xf]
      %v240 = vld [vmem:[%s1 + $0x78] sm:$0xf]
      %v241 = vld [vmem:[%s1 + $0x7c] sm:$0xf]
      %v242 = vld [vmem:[%s2] sm:$0x1]
      %v244 = vlaneseq
      %v245 = vshrl.u32 %v244, 7
      %v246 = vsub.s32 0, %v245
      %v247 = vrot.slane %v242, %v246
      %v281 = vunpack.c.l.b16 %v178
      %v282 = vunpack.c.h.b16 %v178
      %v283 = vunpack.c.l.b16 %v179
      %v284 = vunpack.c.h.b16 %v179
      %v285 = vunpack.c.l.b16 %v180
      %v286 = vunpack.c.h.b16 %v180
      %v287 = vunpack.c.l.b16 %v181
      %v288 = vunpack.c.h.b16 %v181
      %v289 = vunpack.c.l.b16 %v182
      %v290 = vunpack.c.h.b16 %v182
      %v291 = vunpack.c.l.b16 %v183
      %v292 = vunpack.c.h.b16 %v183
      %v293 = vunpack.c.l.b16 %v184
      %v294 = vunpack.c.h.b16 %v184
      %v295 = vunpack.c.l.b16 %v185
      %v296 = vunpack.c.h.b16 %v185
      %v297 = vunpack.c.l.b16 %v186
      %v298 = vunpack.c.h.b16 %v186
      %v299 = vunpack.c.l.b16 %v187
      %v300 = vunpack.c.h.b16 %v187
      %v301 = vunpack.c.l.b16 %v188
      %v302 = vunpack.c.h.b16 %v188
      %v303 = vunpack.c.l.b16 %v189
      %v304 = vunpack.c.h.b16 %v189
      %v305 = vunpack.c.l.b16 %v190
      %v306 = vunpack.c.h.b16 %v190
      %v307 = vunpack.c.l.b16 %v191
      %v308 = vunpack.c.h.b16 %v191
      %v309 = vunpack.c.l.b16 %v192
      %v310 = vunpack.c.h.b16 %v192
      %v311 = vunpack.c.l.b16 %v193
      %v312 = vunpack.c.h.b16 %v193
      %v313 = vunpack.c.l.b16 %v194
      %v314 = vunpack.c.h.b16 %v194
      %v315 = vunpack.c.l.b16 %v195
      %v316 = vunpack.c.h.b16 %v195
      %v317 = vunpack.c.l.b16 %v196
      %v318 = vunpack.c.h.b16 %v196
      %v319 = vunpack.c.l.b16 %v197
      %v320 = vunpack.c.h.b16 %v197
      %v321 = vunpack.c.l.b16 %v198
      %v322 = vunpack.c.h.b16 %v198
      %v323 = vunpack.c.l.b16 %v199
      %v324 = vunpack.c.h.b16 %v199
      %v325 = vunpack.c.l.b16 %v200
      %v326 = vunpack.c.h.b16 %v200
      %v327 = vunpack.c.l.b16 %v201
      %v328 = vunpack.c.h.b16 %v201
      %v329 = vunpack.c.l.b16 %v202
      %v330 = vunpack.c.h.b16 %v202
      %v331 = vunpack.c.l.b16 %v203
      %v332 = vunpack.c.h.b16 %v203
      %v333 = vunpack.c.l.b16 %v204
      %v334 = vunpack.c.h.b16 %v204
      %v335 = vunpack.c.l.b16 %v205
      %v336 = vunpack.c.h.b16 %v205
      %v337 = vunpack.c.l.b16 %v206
      %v338 = vunpack.c.h.b16 %v206
      %v339 = vunpack.c.l.b16 %v207
      %v340 = vunpack.c.h.b16 %v207
      %v341 = vunpack.c.l.b16 %v208
      %v342 = vunpack.c.h.b16 %v208
      %v343 = vunpack.c.l.b16 %v209
      %v344 = vunpack.c.h.b16 %v209
      %v345 = vpack.c.b16 %v283, %v281
      %v346 = vpack.c.b16 %v284, %v282
      %v347 = vpack.c.b16 %v287, %v285
      %v348 = vpack.c.b16 %v288, %v286
      %v349 = vpack.c.b16 %v291, %v289
      %v350 = vpack.c.b16 %v292, %v290
      %v351 = vpack.c.b16 %v295, %v293
      %v352 = vpack.c.b16 %v296, %v294
      %v353 = vpack.c.b16 %v299, %v297
      %v354 = vpack.c.b16 %v300, %v298
      %v355 = vpack.c.b16 %v303, %v301
      %v356 = vpack.c.b16 %v304, %v302
      %v357 = vpack.c.b16 %v307, %v305
      %v358 = vpack.c.b16 %v308, %v306
      %v359 = vpack.c.b16 %v311, %v309
      %v360 = vpack.c.b16 %v312, %v310
      %v361 = vpack.c.b16 %v315, %v313
      %v362 = vpack.c.b16 %v316, %v314
      %v363 = vpack.c.b16 %v319, %v317
      %v364 = vpack.c.b16 %v320, %v318
      %v365 = vpack.c.b16 %v323, %v321
      %v366 = vpack.c.b16 %v324, %v322
      %v367 = vpack.c.b16 %v327, %v325
      %v368 = vpack.c.b16 %v328, %v326
      %v369 = vpack.c.b16 %v331, %v329
      %v370 = vpack.c.b16 %v332, %v330
      %v371 = vpack.c.b16 %v335, %v333
      %v372 = vpack.c.b16 %v336, %v334
      %v373 = vpack.c.b16 %v339, %v337
      %v374 = vpack.c.b16 %v340, %v338
      %v375 = vpack.c.b16 %v343, %v341
      %v376 = vpack.c.b16 %v344, %v342
      %v441 = vunpack.c.l.b16 %v210
      %v442 = vunpack.c.l.b16 %v211
      %v443 = vunpack.c.l.b16 %v212
      %v444 = vunpack.c.l.b16 %v213
      %v445 = vunpack.c.l.b16 %v214
      %v446 = vunpack.c.l.b16 %v215
      %v447 = vunpack.c.l.b16 %v216
      %v448 = vunpack.c.l.b16 %v217
      %v449 = vunpack.c.l.b16 %v218
      %v450 = vunpack.c.l.b16 %v219
      %v451 = vunpack.c.l.b16 %v220
      %v452 = vunpack.c.l.b16 %v221
      %v453 = vunpack.c.l.b16 %v222
      %v454 = vunpack.c.l.b16 %v223
      %v455 = vunpack.c.l.b16 %v224
      %v456 = vunpack.c.l.b16 %v225
      %v457 = vunpack.c.l.b16 %v226
      %v458 = vunpack.c.l.b16 %v227
      %v459 = vunpack.c.l.b16 %v228
      %v460 = vunpack.c.l.b16 %v229
      %v461 = vunpack.c.l.b16 %v230
      %v462 = vunpack.c.l.b16 %v231
      %v463 = vunpack.c.l.b16 %v232
      %v464 = vunpack.c.l.b16 %v233
      %v465 = vunpack.c.l.b16 %v234
      %v466 = vunpack.c.l.b16 %v235
      %v467 = vunpack.c.l.b16 %v236
      %v468 = vunpack.c.l.b16 %v237
      %v469 = vunpack.c.l.b16 %v238
      %v470 = vunpack.c.l.b16 %v239
      %v471 = vunpack.c.l.b16 %v240
      %v472 = vunpack.c.l.b16 %v241
      %v473 = vpack.c.b16 %v442, %v441
      %v474 = vpack.c.b16 %v444, %v443
      %v475 = vpack.c.b16 %v446, %v445
      %v476 = vpack.c.b16 %v448, %v447
      %v477 = vpack.c.b16 %v450, %v449
      %v478 = vpack.c.b16 %v452, %v451
      %v479 = vpack.c.b16 %v454, %v453
      %v480 = vpack.c.b16 %v456, %v455
      %v481 = vpack.c.b16 %v458, %v457
      %v482 = vpack.c.b16 %v460, %v459
      %v483 = vpack.c.b16 %v462, %v461
      %v484 = vpack.c.b16 %v464, %v463
      %v485 = vpack.c.b16 %v466, %v465
      %v486 = vpack.c.b16 %v468, %v467
      %v487 = vpack.c.b16 %v470, %v469
      %v488 = vpack.c.b16 %v472, %v471
      %505 = vmatprep.subr.bf16.mxu0 0
      %506 = vmatpush1.bf16.msra.mxu0 %v473
      %507 = vmatprep.subr.bf16.mxu0 0
      %508 = vmatpush1.bf16.msra.mxu0 %v474
      %509 = vmatprep.subr.bf16.mxu0 0
      %510 = vmatpush1.bf16.msra.mxu0 %v475
      %511 = vmatprep.subr.bf16.mxu0 0
      %512 = vmatpush1.bf16.msra.mxu0 %v476
      %513 = vmatprep.subr.bf16.mxu0 0
      %514 = vmatpush1.bf16.msra.mxu0 %v477
      %515 = vmatprep.subr.bf16.mxu0 0
      %516 = vmatpush1.bf16.msra.mxu0 %v478
      %517 = vmatprep.subr.bf16.mxu0 0
      %518 = vmatpush1.bf16.msra.mxu0 %v479
      %519 = vmatprep.subr.bf16.mxu0 0
      %520 = vmatpush1.bf16.msra.mxu0 %v480
      %521 = vmatprep.subr.bf16.mxu0 0
      %522 = vmatpush1.bf16.msra.mxu0 %v481
      %523 = vmatprep.subr.bf16.mxu0 0
      %524 = vmatpush1.bf16.msra.mxu0 %v482
      %525 = vmatprep.subr.bf16.mxu0 0
      %526 = vmatpush1.bf16.msra.mxu0 %v483
      %527 = vmatprep.subr.bf16.mxu0 0
      %528 = vmatpush1.bf16.msra.mxu0 %v484
      %529 = vmatprep.subr.bf16.mxu0 0
      %530 = vmatpush1.bf16.msra.mxu0 %v485
      %531 = vmatprep.subr.bf16.mxu0 0
      %532 = vmatpush1.bf16.msra.mxu0 %v486
      %533 = vmatprep.subr.bf16.mxu0 0
      %534 = vmatpush1.bf16.msra.mxu0 %v487
      %535 = vmatprep.subr.bf16.mxu0 0
      %536 = vmatpush1.bf16.msra.mxu0 %v488
      %537 = vmatprep.mubr.bf16.mxu0 %v346
      %538 = vmatmul.mubr.bf16.gmra.mrb[0].mxu0 %v345
      %v539 = vpop.f32.mrb[0].mxu0
      %v540 = vadd.f32 %v247, %v539
      %v541 = vpop.f32.mrb[0].mxu0
      %v542 = vpop.f32.mrb[0].mxu0
      %v543 = vadd.f32 %v247, %v542
      %v544 = vpop.f32.mrb[0].mxu0
      %545 = vmatprep.mubr.bf16.mxu0 %v348
      %546 = vmatmul.mubr.bf16.gmra.mrb[0].mxu0 %v347
      %v547 = vpop.f32.mrb[0].mxu0
      %v548 = vadd.f32 %v247, %v547
      %v549 = vpop.f32.mrb[0].mxu0
      %v550 = vpop.f32.mrb[0].mxu0
      %v551 = vadd.f32 %v247, %v550
      %v552 = vpop.f32.mrb[0].mxu0
      %553 = vmatprep.mubr.bf16.mxu0 %v350
      %554 = vmatmul.mubr.bf16.gmra.mrb[0].mxu0 %v349
      %v555 = vpop.f32.mrb[0].mxu0
      %v556 = vadd.f32 %v247, %v555
      %v557 = vpop.f32.mrb[0].mxu0
      %v558 = vpop.f32.mrb[0].mxu0
      %v559 = vadd.f32 %v247, %v558
      %v560 = vpop.f32.mrb[0].mxu0
      %561 = vmatprep.mubr.bf16.mxu0 %v352
      %562 = vmatmul.mubr.bf16.gmra.mrb[0].mxu0 %v351
      %v563 = vpop.f32.mrb[0].mxu0
      %v564 = vadd.f32 %v247, %v563
      %v565 = vpop.f32.mrb[0].mxu0
      %v566 = vpop.f32.mrb[0].mxu0
      %v567 = vadd.f32 %v247, %v566
      %v568 = vpop.f32.mrb[0].mxu0
      %569 = vmatprep.mubr.bf16.mxu0 %v354
      %570 = vmatmul.mubr.bf16.gmra.mrb[0].mxu0 %v353
      %v571 = vpop.f32.mrb[0].mxu0
      %v572 = vadd.f32 %v247, %v571
      %v573 = vpop.f32.mrb[0].mxu0
      %v574 = vpop.f32.mrb[0].mxu0
      %v575 = vadd.f32 %v247, %v574
      %v576 = vpop.f32.mrb[0].mxu0
      %577 = vmatprep.mubr.bf16.mxu0 %v356
      %578 = vmatmul.mubr.bf16.gmra.mrb[0].mxu0 %v355
      %v579 = vpop.f32.mrb[0].mxu0
      %v580 = vadd.f32 %v247, %v579
      %v581 = vpop.f32.mrb[0].mxu0
      %v582 = vpop.f32.mrb[0].mxu0
      %v583 = vadd.f32 %v247, %v582
      %v584 = vpop.f32.mrb[0].mxu0
      %585 = vmatprep.mubr.bf16.mxu0 %v358
      %586 = vmatmul.mubr.bf16.gmra.mrb[0].mxu0 %v357
      %v587 = vpop.f32.mrb[0].mxu0
      %v588 = vadd.f32 %v247, %v587
      %v589 = vpop.f32.mrb[0].mxu0
      %v590 = vpop.f32.mrb[0].mxu0
      %v591 = vadd.f32 %v247, %v590
      %v592 = vpop.f32.mrb[0].mxu0
      %593 = vmatprep.mubr.bf16.mxu0 %v360
      %594 = vmatmul.mubr.bf16.gmra.mrb[0].mxu0 %v359
      %v595 = vpop.f32.mrb[0].mxu0
      %v596 = vadd.f32 %v247, %v595
      %v597 = vpop.f32.mrb[0].mxu0
      %v598 = vpop.f32.mrb[0].mxu0
      %v599 = vadd.f32 %v247, %v598
      %v600 = vpop.f32.mrb[0].mxu0
      %601 = vmatprep.mubr.bf16.mxu0 %v362
      %602 = vmatmul.mubr.bf16.gmra.mrb[0].mxu0 %v361
      %v603 = vpop.f32.mrb[0].mxu0
      %v604 = vadd.f32 %v247, %v603
      %v605 = vpop.f32.mrb[0].mxu0
      %v606 = vpop.f32.mrb[0].mxu0
      %v607 = vadd.f32 %v247, %v606
      %v608 = vpop.f32.mrb[0].mxu0
      %609 = vmatprep.mubr.bf16.mxu0 %v364
      %610 = vmatmul.mubr.bf16.gmra.mrb[0].mxu0 %v363
      %v611 = vpop.f32.mrb[0].mxu0
      %v612 = vadd.f32 %v247, %v611
      %v613 = vpop.f32.mrb[0].mxu0
      %v614 = vpop.f32.mrb[0].mxu0
      %v615 = vadd.f32 %v247, %v614
      %v616 = vpop.f32.mrb[0].mxu0
      %617 = vmatprep.mubr.bf16.mxu0 %v366
      %618 = vmatmul.mubr.bf16.gmra.mrb[0].mxu0 %v365
      %v619 = vpop.f32.mrb[0].mxu0
      %v620 = vadd.f32 %v247, %v619
      %v621 = vpop.f32.mrb[0].mxu0
      %v622 = vpop.f32.mrb[0].mxu0
      %v623 = vadd.f32 %v247, %v622
      %v624 = vpop.f32.mrb[0].mxu0
      %625 = vmatprep.mubr.bf16.mxu0 %v368
      %626 = vmatmul.mubr.bf16.gmra.mrb[0].mxu0 %v367
      %v627 = vpop.f32.mrb[0].mxu0
      %v628 = vadd.f32 %v247, %v627
      %v629 = vpop.f32.mrb[0].mxu0
      %v630 = vpop.f32.mrb[0].mxu0
      %v631 = vadd.f32 %v247, %v630
      %v632 = vpop.f32.mrb[0].mxu0
      %633 = vmatprep.mubr.bf16.mxu0 %v370
      %634 = vmatmul.mubr.bf16.gmra.mrb[0].mxu0 %v369
      %v635 = vpop.f32.mrb[0].mxu0
      %v636 = vadd.f32 %v247, %v635
      %v637 = vpop.f32.mrb[0].mxu0
      %v638 = vpop.f32.mrb[0].mxu0
      %v639 = vadd.f32 %v247, %v638
      %v640 = vpop.f32.mrb[0].mxu0
      %641 = vmatprep.mubr.bf16.mxu0 %v372
      %642 = vmatmul.mubr.bf16.gmra.mrb[0].mxu0 %v371
      %v643 = vpop.f32.mrb[0].mxu0
      %v644 = vadd.f32 %v247, %v643
      %v645 = vpop.f32.mrb[0].mxu0
      %v646 = vpop.f32.mrb[0].mxu0
      %v647 = vadd.f32 %v247, %v646
      %v648 = vpop.f32.mrb[0].mxu0
      %649 = vmatprep.mubr.bf16.mxu0 %v374
      %650 = vmatmul.mubr.bf16.gmra.mrb[0].mxu0 %v373
      %v651 = vpop.f32.mrb[0].mxu0
      %v652 = vadd.f32 %v247, %v651
      %v653 = vpop.f32.mrb[0].mxu0
      %v654 = vpop.f32.mrb[0].mxu0
      %v655 = vadd.f32 %v247, %v654
      %v656 = vpop.f32.mrb[0].mxu0
      %657 = vmatprep.mubr.bf16.mxu0 %v376
      %658 = vmatmul.mubr.bf16.gmra.mrb[0].mxu0 %v375
      %v659 = vpop.f32.mrb[0].mxu0
      %v660 = vadd.f32 %v247, %v659
      %v661 = vpop.f32.mrb[0].mxu0
      %v662 = vpop.f32.mrb[0].mxu0
      %v663 = vadd.f32 %v247, %v662
      %v664 = vpop.f32.mrb[0].mxu0
      %665 = vdwg.mxu0
      %vm666 = vcmp.gt.f32.partialorder %v540, 0.0
      %vm667 = vcmp.gt.f32.partialorder %v543, 0.0
      %vm668 = vcmp.gt.f32.partialorder %v548, 0.0
      %vm669 = vcmp.gt.f32.partialorder %v551, 0.0
      %vm670 = vcmp.gt.f32.partialorder %v556, 0.0
      %vm671 = vcmp.gt.f32.partialorder %v559, 0.0
      %vm672 = vcmp.gt.f32.partialorder %v564, 0.0
      %vm673 = vcmp.gt.f32.partialorder %v567, 0.0
      %vm674 = vcmp.gt.f32.partialorder %v572, 0.0
      %vm675 = vcmp.gt.f32.partialorder %v575, 0.0
      %vm676 = vcmp.gt.f32.partialorder %v580, 0.0
      %vm677 = vcmp.gt.f32.partialorder %v583, 0.0
      %vm678 = vcmp.gt.f32.partialorder %v588, 0.0
      %vm679 = vcmp.gt.f32.partialorder %v591, 0.0
      %vm680 = vcmp.gt.f32.partialorder %v596, 0.0
      %vm681 = vcmp.gt.f32.partialorder %v599, 0.0
      %vm682 = vcmp.gt.f32.partialorder %v604, 0.0
      %vm683 = vcmp.gt.f32.partialorder %v607, 0.0
      %vm684 = vcmp.gt.f32.partialorder %v612, 0.0
      %vm685 = vcmp.gt.f32.partialorder %v615, 0.0
      %vm686 = vcmp.gt.f32.partialorder %v620, 0.0
      %vm687 = vcmp.gt.f32.partialorder %v623, 0.0
      %vm688 = vcmp.gt.f32.partialorder %v628, 0.0
      %vm689 = vcmp.gt.f32.partialorder %v631, 0.0
      %vm690 = vcmp.gt.f32.partialorder %v636, 0.0
      %vm691 = vcmp.gt.f32.partialorder %v639, 0.0
      %vm692 = vcmp.gt.f32.partialorder %v644, 0.0
      %vm693 = vcmp.gt.f32.partialorder %v647, 0.0
      %vm694 = vcmp.gt.f32.partialorder %v652, 0.0
      %vm695 = vcmp.gt.f32.partialorder %v655, 0.0
      %vm696 = vcmp.gt.f32.partialorder %v660, 0.0
      %vm697 = vcmp.gt.f32.partialorder %v663, 0.0
      %v698 = vmul.f32 %v540, 0.2
      %v699 = vmul.f32 %v543, 0.2
      %v700 = vmul.f32 %v548, 0.2
      %v701 = vmul.f32 %v551, 0.2
      %v702 = vmul.f32 %v556, 0.2
      %v703 = vmul.f32 %v559, 0.2
      %v704 = vmul.f32 %v564, 0.2
      %v705 = vmul.f32 %v567, 0.2
      %v706 = vmul.f32 %v572, 0.2
      %v707 = vmul.f32 %v575, 0.2
      %v708 = vmul.f32 %v580, 0.2
      %v709 = vmul.f32 %v583, 0.2
      %v710 = vmul.f32 %v588, 0.2
      %v711 = vmul.f32 %v591, 0.2
      %v712 = vmul.f32 %v596, 0.2
      %v713 = vmul.f32 %v599, 0.2
      %v714 = vmul.f32 %v604, 0.2
      %v715 = vmul.f32 %v607, 0.2
      %v716 = vmul.f32 %v612, 0.2
      %v717 = vmul.f32 %v615, 0.2
      %v718 = vmul.f32 %v620, 0.2
      %v719 = vmul.f32 %v623, 0.2
      %v720 = vmul.f32 %v628, 0.2
      %v721 = vmul.f32 %v631, 0.2
      %v722 = vmul.f32 %v636, 0.2
      %v723 = vmul.f32 %v639, 0.2
      %v724 = vmul.f32 %v644, 0.2
      %v725 = vmul.f32 %v647, 0.2
      %v726 = vmul.f32 %v652, 0.2
      %v727 = vmul.f32 %v655, 0.2
      %v728 = vmul.f32 %v660, 0.2
      %v729 = vmul.f32 %v663, 0.2
      %v730 = vsel %vm666, %v540, %v698
      %v731 = vsel %vm667, %v543, %v699
      %v732 = vsel %vm668, %v548, %v700
      %v733 = vsel %vm669, %v551, %v701
      %v734 = vsel %vm670, %v556, %v702
      %v735 = vsel %vm671, %v559, %v703
      %v736 = vsel %vm672, %v564, %v704
      %v737 = vsel %vm673, %v567, %v705
      %v738 = vsel %vm674, %v572, %v706
      %v739 = vsel %vm675, %v575, %v707
      %v740 = vsel %vm676, %v580, %v708
      %v741 = vsel %vm677, %v583, %v709
      %v742 = vsel %vm678, %v588, %v710
      %v743 = vsel %vm679, %v591, %v711
      %v744 = vsel %vm680, %v596, %v712
      %v745 = vsel %vm681, %v599, %v713
      %v746 = vsel %vm682, %v604, %v714
      %v747 = vsel %vm683, %v607, %v715
      %v748 = vsel %vm684, %v612, %v716
      %v749 = vsel %vm685, %v615, %v717
      %v750 = vsel %vm686, %v620, %v718
      %v751 = vsel %vm687, %v623, %v719
      %v752 = vsel %vm688, %v628, %v720
      %v753 = vsel %vm689, %v631, %v721
      %v754 = vsel %vm690, %v636, %v722
      %v755 = vsel %vm691, %v639, %v723
      %v756 = vsel %vm692, %v644, %v724
      %v757 = vsel %vm693, %v647, %v725
      %v758 = vsel %vm694, %v652, %v726
      %v759 = vsel %vm695, %v655, %v727
      %v760 = vsel %vm696, %v660, %v728
      %v761 = vsel %vm697, %v663, %v729
      %v762 = vpack.c.bf16 %v731, %v730
      %v763 = vpack.c.bf16 %v733, %v732
      %v764 = vpack.c.bf16 %v735, %v734
      %v765 = vpack.c.bf16 %v737, %v736
      %v766 = vpack.c.bf16 %v739, %v738
      %v767 = vpack.c.bf16 %v741, %v740
      %v768 = vpack.c.bf16 %v743, %v742
      %v769 = vpack.c.bf16 %v745, %v744
      %v770 = vpack.c.bf16 %v747, %v746
      %v771 = vpack.c.bf16 %v749, %v748
      %v772 = vpack.c.bf16 %v751, %v750
      %v773 = vpack.c.bf16 %v753, %v752
      %v774 = vpack.c.bf16 %v755, %v754
      %v775 = vpack.c.bf16 %v757, %v756
      %v776 = vpack.c.bf16 %v759, %v758
      %v777 = vpack.c.bf16 %v761, %v760
      %v794 = vunpack.c.l.b16 %v762
      %v795 = vunpack.c.h.b16 %v762
      %v796 = vunpack.c.l.b16 %v763
      %v797 = vunpack.c.h.b16 %v763
      %v798 = vunpack.c.l.b16 %v764
      %v799 = vunpack.c.h.b16 %v764
      %v800 = vunpack.c.l.b16 %v765
      %v801 = vunpack.c.h.b16 %v765
      %v802 = vunpack.c.l.b16 %v766
      %v803 = vunpack.c.h.b16 %v766
      %v804 = vunpack.c.l.b16 %v767
      %v805 = vunpack.c.h.b16 %v767
      %v806 = vunpack.c.l.b16 %v768
      %v807 = vunpack.c.h.b16 %v768
      %v808 = vunpack.c.l.b16 %v769
      %v809 = vunpack.c.h.b16 %v769
      %v810 = vunpack.c.l.b16 %v770
      %v811 = vunpack.c.h.b16 %v770
      %v812 = vunpack.c.l.b16 %v771
      %v813 = vunpack.c.h.b16 %v771
      %v814 = vunpack.c.l.b16 %v772
      %v815 = vunpack.c.h.b16 %v772
      %v816 = vunpack.c.l.b16 %v773
      %v817 = vunpack.c.h.b16 %v773
      %v818 = vunpack.c.l.b16 %v774
      %v819 = vunpack.c.h.b16 %v774
      %v820 = vunpack.c.l.b16 %v775
      %v821 = vunpack.c.h.b16 %v775
      %v822 = vunpack.c.l.b16 %v776
      %v823 = vunpack.c.h.b16 %v776
      %v824 = vunpack.c.l.b16 %v777
      %v825 = vunpack.c.h.b16 %v777
      %v826 = vpack.c.b16 %v794, %v794
      %v827 = vpack.c.b16 %v795, %v795
      %v828 = vpack.c.b16 %v796, %v796
      %v829 = vpack.c.b16 %v797, %v797
      %v830 = vpack.c.b16 %v798, %v798
      %v831 = vpack.c.b16 %v799, %v799
      %v832 = vpack.c.b16 %v800, %v800
      %v833 = vpack.c.b16 %v801, %v801
      %v834 = vpack.c.b16 %v802, %v802
      %v835 = vpack.c.b16 %v803, %v803
      %v836 = vpack.c.b16 %v804, %v804
      %v837 = vpack.c.b16 %v805, %v805
      %v838 = vpack.c.b16 %v806, %v806
      %v839 = vpack.c.b16 %v807, %v807
      %v840 = vpack.c.b16 %v808, %v808
      %v841 = vpack.c.b16 %v809, %v809
      %v842 = vpack.c.b16 %v810, %v810
      %v843 = vpack.c.b16 %v811, %v811
      %v844 = vpack.c.b16 %v812, %v812
      %v845 = vpack.c.b16 %v813, %v813
      %v846 = vpack.c.b16 %v814, %v814
      %v847 = vpack.c.b16 %v815, %v815
      %v848 = vpack.c.b16 %v816, %v816
      %v849 = vpack.c.b16 %v817, %v817
      %v850 = vpack.c.b16 %v818, %v818
      %v851 = vpack.c.b16 %v819, %v819
      %v852 = vpack.c.b16 %v820, %v820
      %v853 = vpack.c.b16 %v821, %v821
      %v854 = vpack.c.b16 %v822, %v822
      %v855 = vpack.c.b16 %v823, %v823
      %v856 = vpack.c.b16 %v824, %v824
      %v857 = vpack.c.b16 %v825, %v825
      %890 = vst [vmem:[%s175] sm:$0xf] %v826
      %891 = vst [vmem:[%s175 + $0x4] sm:$0xf] %v827
      %892 = vst [vmem:[%s175 + $0x8] sm:$0xf] %v828
      %893 = vst [vmem:[%s175 + $0xc] sm:$0xf] %v829
      %894 = vst [vmem:[%s175 + $0x10] sm:$0xf] %v830
      %895 = vst [vmem:[%s175 + $0x14] sm:$0xf] %v831
      %896 = vst [vmem:[%s175 + $0x18] sm:$0xf] %v832
      %897 = vst [vmem:[%s175 + $0x1c] sm:$0xf] %v833
      %898 = vst [vmem:[%s175 + $0x20] sm:$0xf] %v834
      %899 = vst [vmem:[%s175 + $0x24] sm:$0xf] %v835
      %900 = vst [vmem:[%s175 + $0x28] sm:$0xf] %v836
      %901 = vst [vmem:[%s175 + $0x2c] sm:$0xf] %v837
      %902 = vst [vmem:[%s175 + $0x30] sm:$0xf] %v838
      %903 = vst [vmem:[%s175 + $0x34] sm:$0xf] %v839
      %904 = vst [vmem:[%s175 + $0x38] sm:$0xf] %v840
      %905 = vst [vmem:[%s175 + $0x3c] sm:$0xf] %v841
      %906 = vst [vmem:[%s175 + $0x40] sm:$0xf] %v842
      %907 = vst [vmem:[%s175 + $0x44] sm:$0xf] %v843
      %908 = vst [vmem:[%s175 + $0x48] sm:$0xf] %v844
      %909 = vst [vmem:[%s175 + $0x4c] sm:$0xf] %v845
      %910 = vst [vmem:[%s175 + $0x50] sm:$0xf] %v846
      %911 = vst [vmem:[%s175 + $0x54] sm:$0xf] %v847
      %912 = vst [vmem:[%s175 + $0x58] sm:$0xf] %v848
      %913 = vst [vmem:[%s175 + $0x5c] sm:$0xf] %v849
      %914 = vst [vmem:[%s175 + $0x60] sm:$0xf] %v850
      %915 = vst [vmem:[%s175 + $0x64] sm:$0xf] %v851
      %916 = vst [vmem:[%s175 + $0x68] sm:$0xf] %v852
      %917 = vst [vmem:[%s175 + $0x6c] sm:$0xf] %v853
      %918 = vst [vmem:[%s175 + $0x70] sm:$0xf] %v854
      %919 = vst [vmem:[%s175 + $0x74] sm:$0xf] %v855
      %920 = vst [vmem:[%s175 + $0x78] sm:$0xf] %v856
      %921 = vst [vmem:[%s175 + $0x7c] sm:$0xf] %v857
      %s922 = smul.u32 32, %s14
      %p923 = scmp.lt.s32.totalorder %s922, 63
      %s924 = scalar_select %p923, %s922, 63
      %s925 = smul.addr %s924, 4
      %s926 = scalar_lea.vmem %s3, %s925
      // Predicated region
      $region33: #{_lambda_.7} parent=31 // pred_check
        %p927 = pneg %p100
      $region34: #{_lambda_.7} parent=31 // pred_check_branch
        %929 = sbr.rel (%p927) target = $region36
      $region35: #{_lambda_.7} parent=31 // pred_region
        %s930 = smul.u32 32, %s14
      $region36: #{_lambda_.7} parent=31 // pred_fallthru
        _
    $region32: #{_lambda_.7} parent=5 // pred_fallthru
      _
    %p931 = scmp.le.s32.totalorder 2, %s9
    // Predicated region
    $region37: #{_lambda_.7} parent=5 // pred_check
      %p932 = pneg %p931
    $region38: #{_lambda_.7} parent=5 // pred_check_branch
      %934 = sbr.rel (%p932) target = $region40
    $region39: #{_lambda_.7} parent=5 // pred_region
      %s935 = ssub.s32 %s9, 2
      // Predicated region
      $region41: #{_lambda_.7} parent=39 // pred_check
        %p936 = pneg %p106
      $region42: #{_lambda_.7} parent=39 // pred_check_branch
        %938 = sbr.rel (%p936) target = $region44
      $region43: #{_lambda_.7} parent=39 // pred_region
        %s939 = smul.u32 32, %s15
        %p940 = scmp.lt.s32.totalorder %s939, 63
        %s941 = scalar_select %p940, %s939, 63
        %s942 = smul.addr %s941, 4
        %s943 = scalar_lea.vmem %s3, %s942
      $region44: #{_lambda_.7} parent=39 // pred_fallthru
        _
    $region40: #{_lambda_.7} parent=5 // pred_fallthru
      _
  $region6: #{_lambda_.7} parent=0 // loop_footer
    %s13 = sadd.s32 1, %s9
  $region7: #{_lambda_.7} parent=0 // loop_footer_branch
    %8 = sbr.rel target = $region3
  $region8: #{_lambda_.7} parent=0 // loop_exit
    _

// kernel: _lambda_.8
$region0: #{_lambda_.8}
  #allocation0 [shape = 'u32[]', space=smem, size = 0x4, offset = 0x4, fixed_abs, tag = 'smem constant byte address 0x4 - core index']
  #allocation1 [shape = 'u32[144,128]{1,0:T(1,128)}', space=vmem, size = 0x12000, scoped, tag = 'internal scratch']
  %s0 = inlined_call_operand.vmem [shape: bf16[128,512], index: 0, kind: input, shape index: {}]
  %s1 = inlined_call_operand.vmem [shape: bf16[512,128], index: 1, kind: input, shape index: {}]
  %s2 = inlined_call_operand.vmem [shape: f32[1,128], index: 2, kind: input, shape index: {}]
  %s3 = inlined_call_operand.vmem [shape: bf16[128,128], index: 3, kind: output, shape index: {}]
  %s4 = sld [smem:[#allocation0]]
  $region45: #{_lambda_.8} parent=0
    _
  %s6 = ssub.s32 1, %s4
  %s7 = scalar_select 0, %s6, %s4
  loop: start=0, step=1, limit=4
  $region2: #{_lambda_.8} parent=0 // loop_pre_header
    _
  $region3: #{_lambda_.8} parent=0 // loop_header
    %s9 = sphi 0, %s13
    %p10 = scmp.ge.s32.totalorder %s9, 4
    %s19 = sphi 0, %s21
    %s22 = sphi 0, %s19
    %s23 = sphi 0, %s22
    %s39 = sphi 0, %s23
    %s43 = sphi 0, %s43
    %s45 = sphi 0, %s43
    %s46 = sphi 0, %s45
    %s60 = sphi 0, %s46
    %s64 = sphi 0, %s64
    %s66 = sphi 0, %s64
    %s67 = sphi 0, %s66
    %s81 = sphi 0, %s67
    %s87 = sphi 0, %s89
    %s90 = sphi 0, %s87
    %s91 = sphi 0, %s90
    %s107 = sphi 0, %s91
  $region4: #{_lambda_.8} parent=0 // loop_header_branch
    %12 = sbr.rel (%p10) target = $region8
  $region5: #{_lambda_.8} parent=0 // loop_body
    %s14 = ssub.s32 %s9, 1
    %s15 = ssub.s32 %s9, 2
    %s16 = sadd.s32 %s9, 1
    %s17 = ssub.s32 %s9, %s16
    %p18 = scmp.eq.s32.totalorder %s17, 0
    %s20 = sadd.s32 %s19, 1
    %s21 = scalar_select %p18, %s19, %s20
    %p24 = pneg %p18
    %p25 = scmp.eq.s32.totalorder %s9, 1
    %p26 = por %p24, %p25
    %p27 = scmp.ne.s32.totalorder %s19, %s22
    %p28 = scmp.eq.s32.totalorder %s9, 0
    %p29 = por %p27, %p28
    %p30 = scmp.ne.s32.totalorder %s19, %s22
    %p31 = scmp.eq.s32.totalorder %s14, 1
    %p32 = por %p30, %p31
    %p33 = scmp.ne.s32.totalorder %s22, %s23
    %p34 = scmp.eq.s32.totalorder %s14, 0
    %p35 = por %p33, %p34
    %p36 = scmp.ne.s32.totalorder %s22, %s23
    %p37 = scmp.eq.s32.totalorder %s15, 1
    %p38 = por %p36, %p37
    %p40 = scmp.ne.s32.totalorder %s23, %s39
    %p41 = scmp.eq.s32.totalorder %s15, 0
    %p42 = por %p40, %p41
    %s44 = sadd.s32 %s43, 1
    %p47 = scmp.eq.s32.totalorder %s9, 1
    %p48 = scmp.ne.s32.totalorder %s43, %s45
    %p49 = scmp.eq.s32.totalorder %s9, 0
    %p50 = por %p48, %p49
    %p51 = scmp.ne.s32.totalorder %s43, %s45
    %p52 = scmp.eq.s32.totalorder %s14, 1
    %p53 = por %p51, %p52
    %p54 = scmp.ne.s32.totalorder %s45, %s46
    %p55 = scmp.eq.s32.totalorder %s14, 0
    %p56 = por %p54, %p55
    %p57 = scmp.ne.s32.totalorder %s45, %s46
    %p58 = scmp.eq.s32.totalorder %s15, 1
    %p59 = por %p57, %p58
    %p61 = scmp.ne.s32.totalorder %s46, %s60
    %p62 = scmp.eq.s32.totalorder %s15, 0
    %p63 = por %p61, %p62
    %s65 = sadd.s32 %s64, 1
    %p68 = scmp.eq.s32.totalorder %s9, 1
    %p69 = scmp.ne.s32.totalorder %s64, %s66
    %p70 = scmp.eq.s32.totalorder %s9, 0
    %p71 = por %p69, %p70
    %p72 = scmp.ne.s32.totalorder %s64, %s66
    %p73 = scmp.eq.s32.totalorder %s14, 1
    %p74 = por %p72, %p73
    %p75 = scmp.ne.s32.totalorder %s66, %s67
    %p76 = scmp.eq.s32.totalorder %s14, 0
    %p77 = por %p75, %p76
    %p78 = scmp.ne.s32.totalorder %s66, %s67
    %p79 = scmp.eq.s32.totalorder %s15, 1
    %p80 = por %p78, %p79
    %p82 = scmp.ne.s32.totalorder %s67, %s81
    %p83 = scmp.eq.s32.totalorder %s15, 0
    %p84 = por %p82, %p83
    %s85 = ssub.s32 %s9, %s16
    %p86 = scmp.eq.s32.totalorder %s85, 0
    %s88 = sadd.s32 %s87, 1
    %s89 = scalar_select %p86, %s87, %s88
    %p92 = pneg %p86
    %p93 = scmp.eq.s32.totalorder %s9, 1
    %p94 = por %p92, %p93
    %p95 = scmp.ne.s32.totalorder %s87, %s90
    %p96 = scmp.eq.s32.totalorder %s9, 0
    %p97 = por %p95, %p96
    %p98 = scmp.ne.s32.totalorder %s87, %s90
    %p99 = scmp.eq.s32.totalorder %s14, 1
    %p100 = por %p98, %p99
    %p101 = scmp.ne.s32.totalorder %s90, %s91
    %p102 = scmp.eq.s32.totalorder %s14, 0
    %p103 = por %p101, %p102
    %p104 = scmp.ne.s32.totalorder %s90, %s91
    %p105 = scmp.eq.s32.totalorder %s15, 1
    %p106 = por %p104, %p105
    %p108 = scmp.ne.s32.totalorder %s91, %s107
    %p109 = scmp.eq.s32.totalorder %s15, 0
    %p110 = por %p108, %p109
    %p111 = scmp.le.s32.totalorder 1, %s9
    %p112 = scmp.lt.s32.totalorder %s9, 3
    %p113 = pnand %p111, %p112
    %p114 = pneg %p113
    // Predicated region
    $region9: #{_lambda_.8} parent=5 // pred_check
      _
    $region10: #{_lambda_.8} parent=5 // pred_check_branch
      %116 = sbr.rel (%p113) target = $region12
    $region11: #{_lambda_.8} parent=5 // pred_region
      %s117 = ssub.s32 %s9, 1
      // Predicated region
      $region13: #{_lambda_.8} parent=11 // pred_check
        %p118 = pneg %p56
      $region14: #{_lambda_.8} parent=11 // pred_check_branch
        %120 = sbr.rel (%p118) target = $region16
      $region15: #{_lambda_.8} parent=11 // pred_region
        _
      $region16: #{_lambda_.8} parent=11 // pred_fallthru
        _
      // Predicated region
      $region17: #{_lambda_.8} parent=11 // pred_check
        %p121 = pneg %p77
      $region18: #{_lambda_.8} parent=11 // pred_check_branch
        %123 = sbr.rel (%p121) target = $region20
      $region19: #{_lambda_.8} parent=11 // pred_region
        _
      $region20: #{_lambda_.8} parent=11 // pred_fallthru
        _
    $region12: #{_lambda_.8} parent=5 // pred_fallthru
      _
    %p124 = scmp.lt.s32.totalorder %s9, 2
    // Predicated region
    $region21: #{_lambda_.8} parent=5 // pred_check
      %p125 = pneg %p124
    $region22: #{_lambda_.8} parent=5 // pred_check_branch
      %127 = sbr.rel (%p125) target = $region24
    $region23: #{_lambda_.8} parent=5 // pred_region
      // Predicated region
      $region25: #{_lambda_.8} parent=23 // pred_check
        %p128 = pneg %p29
      $region26: #{_lambda_.8} parent=23 // pred_check_branch
        %130 = sbr.rel (%p128) target = $region28
      $region27: #{_lambda_.8} parent=23 // pred_region
        %s131 = smul.u32 8, %s9
        %p132 = scmp.lt.s32.totalorder %s131, 15
        %s133 = scalar_select %p132, %s131, 15
        %s134 = smul.addr %s133, 4
        %s135 = smul.addr %s134, 4
        %s136 = scalar_lea.vmem %s0, %s135
        %s137 = smul.u32 8, %s9
      $region28: #{_lambda_.8} parent=23 // pred_fallthru
        _
    $region24: #{_lambda_.8} parent=5 // pred_fallthru
      _
    %p138 = scmp.le.s32.totalorder 1, %s9
    %p139 = scmp.lt.s32.totalorder %s9, 3
    %p140 = pnand %p138, %p139
    %p141 = pneg %p140
    // Predicated region
    $region29: #{_lambda_.8} parent=5 // pred_check
      _
    $region30: #{_lambda_.8} parent=5 // pred_check_branch
      %143 = sbr.rel (%p140) target = $region32
    $region31: #{_lambda_.8} parent=5 // pred_region
      %s144 = ssub.s32 %s9, 1
      %s145 = smul.u32 8, %s14
      %p146 = scmp.lt.s32.totalorder %s145, 15
      %s147 = scalar_select %p146, %s145, 15
      %s148 = smul.addr %s147, 4
      %s149 = smul.addr %s148, 4
      %s150 = scalar_lea.vmem %s0, %s149
      %p151 = pneg %p35
      %p152 = pneg %p32
      %p153 = pneg %p56
      %p154 = pneg %p53
      %p155 = pneg %p77
      %p156 = pneg %p74
      %p157 = pneg %p103
      %p158 = pneg %p100
      %s159 = smul.u32 8, %s14
      %p160 = scmp.lt.s32.totalorder %s159, 15
      %s161 = scalar_select %p160, %s159, 15
      %s162 = smul.addr %s161, 4
      %s163 = scalar_lea.vmem %s3, %s162
      %s164 = smul.u32 8, %s14
      %p165 = scmp.lt.s32.totalorder %s164, 15
      %s166 = scalar_select %p165, %s164, 15
      %s167 = smul.addr %s166, 4
      %s168 = smul.addr %s167, 4
      %s169 = scalar_lea.vmem %s0, %s168
      %s170 = smul.u32 8, %s14
      %s171 = smul.u32 8, %s14
      %p172 = scmp.lt.s32.totalorder %s171, 15
      %s173 = scalar_select %p172, %s171, 15
      %s174 = smul.addr %s173, 4
      %s175 = scalar_lea.vmem %s3, %s174
      %s176 = smul.u32 8, %s14
      %v178 = vld [vmem:[%s169] sm:$0xff]
      %v179 = vld [vmem:[%s169 + $0x8] sm:$0xff]
      %v180 = vld [vmem:[%s169 + $0x10] sm:$0xff]
      %v181 = vld [vmem:[%s169 + $0x18] sm:$0xff]
      %v182 = vld [vmem:[%s169 + $0x20] sm:$0xff]
      %v183 = vld [vmem:[%s169 + $0x28] sm:$0xff]
      %v184 = vld [vmem:[%s169 + $0x30] sm:$0xff]
      %v185 = vld [vmem:[%s169 + $0x38] sm:$0xff]
      %v186 = vld [vmem:[%s169 + $0x40] sm:$0xff]
      %v187 = vld [vmem:[%s169 + $0x48] sm:$0xff]
      %v188 = vld [vmem:[%s169 + $0x50] sm:$0xff]
      %v189 = vld [vmem:[%s169 + $0x58] sm:$0xff]
      %v190 = vld [vmem:[%s169 + $0x60] sm:$0xff]
      %v191 = vld [vmem:[%s169 + $0x68] sm:$0xff]
      %v192 = vld [vmem:[%s169 + $0x70] sm:$0xff]
      %v193 = vld [vmem:[%s169 + $0x78] sm:$0xff]
      %v194 = vld [vmem:[%s1] sm:$0xf]
      %v195 = vld [vmem:[%s1 + $0x4] sm:$0xf]
      %v196 = vld [vmem:[%s1 + $0x8] sm:$0xf]
      %v197 = vld [vmem:[%s1 + $0xc] sm:$0xf]
      %v198 = vld [vmem:[%s1 + $0x10] sm:$0xf]
      %v199 = vld [vmem:[%s1 + $0x14] sm:$0xf]
      %v200 = vld [vmem:[%s1 + $0x18] sm:$0xf]
      %v201 = vld [vmem:[%s1 + $0x1c] sm:$0xf]
      %v202 = vld [vmem:[%s1 + $0x20] sm:$0xf]
      %v203 = vld [vmem:[%s1 + $0x24] sm:$0xf]
      %v204 = vld [vmem:[%s1 + $0x28] sm:$0xf]
      %v205 = vld [vmem:[%s1 + $0x2c] sm:$0xf]
      %v206 = vld [vmem:[%s1 + $0x30] sm:$0xf]
      %v207 = vld [vmem:[%s1 + $0x34] sm:$0xf]
      %v208 = vld [vmem:[%s1 + $0x38] sm:$0xf]
      %v209 = vld [vmem:[%s1 + $0x3c] sm:$0xf]
      %v210 = vld [vmem:[%s1 + $0x40] sm:$0xf]
      %v211 = vld [vmem:[%s1 + $0x44] sm:$0xf]
      %v212 = vld [vmem:[%s1 + $0x48] sm:$0xf]
      %v213 = vld [vmem:[%s1 + $0x4c] sm:$0xf]
      %v214 = vld [vmem:[%s1 + $0x50] sm:$0xf]
      %v215 = vld [vmem:[%s1 + $0x54] sm:$0xf]
      %v216 = vld [vmem:[%s1 + $0x58] sm:$0xf]
      %v217 = vld [vmem:[%s1 + $0x5c] sm:$0xf]
      %v218 = vld [vmem:[%s1 + $0x60] sm:$0xf]
      %v219 = vld [vmem:[%s1 + $0x64] sm:$0xf]
      %v220 = vld [vmem:[%s1 + $0x68] sm:$0xf]
      %v221 = vld [vmem:[%s1 + $0x6c] sm:$0xf]
      %v222 = vld [vmem:[%s1 + $0x70] sm:$0xf]
      %v223 = vld [vmem:[%s1 + $0x74] sm:$0xf]
      %v224 = vld [vmem:[%s1 + $0x78] sm:$0xf]
      %v225 = vld [vmem:[%s1 + $0x7c] sm:$0xf]
      %v226 = vld [vmem:[%s1 + $0x80] sm:$0xf]
      %v227 = vld [vmem:[%s1 + $0x84] sm:$0xf]
      %v228 = vld [vmem:[%s1 + $0x88] sm:$0xf]
      %v229 = vld [vmem:[%s1 + $0x8c] sm:$0xf]
      %v230 = vld [vmem:[%s1 + $0x90] sm:$0xf]
      %v231 = vld [vmem:[%s1 + $0x94] sm:$0xf]
      %v232 = vld [vmem:[%s1 + $0x98] sm:$0xf]
      %v233 = vld [vmem:[%s1 + $0x9c] sm:$0xf]
      %v234 = vld [vmem:[%s1 + $0xa0] sm:$0xf]
      %v235 = vld [vmem:[%s1 + $0xa4] sm:$0xf]
      %v236 = vld [vmem:[%s1 + $0xa8] sm:$0xf]
      %v237 = vld [vmem:[%s1 + $0xac] sm:$0xf]
      %v238 = vld [vmem:[%s1 + $0xb0] sm:$0xf]
      %v239 = vld [vmem:[%s1 + $0xb4] sm:$0xf]
      %v240 = vld [vmem:[%s1 + $0xb8] sm:$0xf]
      %v241 = vld [vmem:[%s1 + $0xbc] sm:$0xf]
      %v242 = vld [vmem:[%s1 + $0xc0] sm:$0xf]
      %v243 = vld [vmem:[%s1 + $0xc4] sm:$0xf]
      %v244 = vld [vmem:[%s1 + $0xc8] sm:$0xf]
      %v245 = vld [vmem:[%s1 + $0xcc] sm:$0xf]
      %v246 = vld [vmem:[%s1 + $0xd0] sm:$0xf]
      %v247 = vld [vmem:[%s1 + $0xd4] sm:$0xf]
      %v248 = vld [vmem:[%s1 + $0xd8] sm:$0xf]
      %v249 = vld [vmem:[%s1 + $0xdc] sm:$0xf]
      %v250 = vld [vmem:[%s1 + $0xe0] sm:$0xf]
      %v251 = vld [vmem:[%s1 + $0xe4] sm:$0xf]
      %v252 = vld [vmem:[%s1 + $0xe8] sm:$0xf]
      %v253 = vld [vmem:[%s1 + $0xec] sm:$0xf]
      %v254 = vld [vmem:[%s1 + $0xf0] sm:$0xf]
      %v255 = vld [vmem:[%s1 + $0xf4] sm:$0xf]
      %v256 = vld [vmem:[%s1 + $0xf8] sm:$0xf]
      %v257 = vld [vmem:[%s1 + $0xfc] sm:$0xf]
      %v258 = vld [vmem:[%s2] sm:$0x1]
      %v260 = vlaneseq
      %v261 = vshrl.u32 %v260, 7
      %v262 = vsub.s32 0, %v261
      %v263 = vrot.slane %v258, %v262
      %v281 = vunpack.c.l.b16 %v178
      %v282 = vunpack.c.h.b16 %v178
      %v283 = vunpack.c.l.b16 %v179
      %v284 = vunpack.c.h.b16 %v179
      %v285 = vunpack.c.l.b16 %v180
      %v286 = vunpack.c.h.b16 %v180
      %v287 = vunpack.c.l.b16 %v181
      %v288 = vunpack.c.h.b16 %v181
      %v289 = vunpack.c.l.b16 %v182
      %v290 = vunpack.c.h.b16 %v182
      %v291 = vunpack.c.l.b16 %v183
      %v292 = vunpack.c.h.b16 %v183
      %v293 = vunpack.c.l.b16 %v184
      %v294 = vunpack.c.h.b16 %v184
      %v295 = vunpack.c.l.b16 %v185
      %v296 = vunpack.c.h.b16 %v185
      %v297 = vunpack.c.l.b16 %v186
      %v298 = vunpack.c.h.b16 %v186
      %v299 = vunpack.c.l.b16 %v187
      %v300 = vunpack.c.h.b16 %v187
      %v301 = vunpack.c.l.b16 %v188
      %v302 = vunpack.c.h.b16 %v188
      %v303 = vunpack.c.l.b16 %v189
      %v304 = vunpack.c.h.b16 %v189
      %v305 = vunpack.c.l.b16 %v190
      %v306 = vunpack.c.h.b16 %v190
      %v307 = vunpack.c.l.b16 %v191
      %v308 = vunpack.c.h.b16 %v191
      %v309 = vunpack.c.l.b16 %v192
      %v310 = vunpack.c.h.b16 %v192
      %v311 = vunpack.c.l.b16 %v193
      %v312 = vunpack.c.h.b16 %v193
      %v313 = vpack.c.b16 %v285, %v281
      %v314 = vpack.c.b16 %v286, %v282
      %v315 = vpack.c.b16 %v287, %v283
      %v316 = vpack.c.b16 %v288, %v284
      %v317 = vpack.c.b16 %v293, %v289
      %v318 = vpack.c.b16 %v294, %v290
      %v319 = vpack.c.b16 %v295, %v291
      %v320 = vpack.c.b16 %v296, %v292
      %v321 = vpack.c.b16 %v301, %v297
      %v322 = vpack.c.b16 %v302, %v298
      %v323 = vpack.c.b16 %v303, %v299
      %v324 = vpack.c.b16 %v304, %v300
      %v325 = vpack.c.b16 %v309, %v305
      %v326 = vpack.c.b16 %v310, %v306
      %v327 = vpack.c.b16 %v311, %v307
      %v328 = vpack.c.b16 %v312, %v308
      %v409 = vunpack.c.l.b16 %v194
      %v410 = vunpack.c.l.b16 %v195
      %v411 = vunpack.c.l.b16 %v196
      %v412 = vunpack.c.l.b16 %v197
      %v413 = vunpack.c.l.b16 %v198
      %v414 = vunpack.c.l.b16 %v199
      %v415 = vunpack.c.l.b16 %v200
      %v416 = vunpack.c.l.b16 %v201
      %v417 = vunpack.c.l.b16 %v202
      %v418 = vunpack.c.l.b16 %v203
      %v419 = vunpack.c.l.b16 %v204
      %v420 = vunpack.c.l.b16 %v205
      %v421 = vunpack.c.l.b16 %v206
      %v422 = vunpack.c.l.b16 %v207
      %v423 = vunpack.c.l.b16 %v208
      %v424 = vunpack.c.l.b16 %v209
      %v425 = vunpack.c.l.b16 %v210
      %v426 = vunpack.c.l.b16 %v211
      %v427 = vunpack.c.l.b16 %v212
      %v428 = vunpack.c.l.b16 %v213
      %v429 = vunpack.c.l.b16 %v214
      %v430 = vunpack.c.l.b16 %v215
      %v431 = vunpack.c.l.b16 %v216
      %v432 = vunpack.c.l.b16 %v217
      %v433 = vunpack.c.l.b16 %v218
      %v434 = vunpack.c.l.b16 %v219
      %v435 = vunpack.c.l.b16 %v220
      %v436 = vunpack.c.l.b16 %v221
      %v437 = vunpack.c.l.b16 %v222
      %v438 = vunpack.c.l.b16 %v223
      %v439 = vunpack.c.l.b16 %v224
      %v440 = vunpack.c.l.b16 %v225
      %v441 = vunpack.c.l.b16 %v226
      %v442 = vunpack.c.l.b16 %v227
      %v443 = vunpack.c.l.b16 %v228
      %v444 = vunpack.c.l.b16 %v229
      %v445 = vunpack.c.l.b16 %v230
      %v446 = vunpack.c.l.b16 %v231
      %v447 = vunpack.c.l.b16 %v232
      %v448 = vunpack.c.l.b16 %v233
      %v449 = vunpack.c.l.b16 %v234
      %v450 = vunpack.c.l.b16 %v235
      %v451 = vunpack.c.l.b16 %v236
      %v452 = vunpack.c.l.b16 %v237
      %v453 = vunpack.c.l.b16 %v238
      %v454 = vunpack.c.l.b16 %v239
      %v455 = vunpack.c.l.b16 %v240
      %v456 = vunpack.c.l.b16 %v241
      %v457 = vunpack.c.l.b16 %v242
      %v458 = vunpack.c.l.b16 %v243
      %v459 = vunpack.c.l.b16 %v244
      %v460 = vunpack.c.l.b16 %v245
      %v461 = vunpack.c.l.b16 %v246
      %v462 = vunpack.c.l.b16 %v247
      %v463 = vunpack.c.l.b16 %v248
      %v464 = vunpack.c.l.b16 %v249
      %v465 = vunpack.c.l.b16 %v250
      %v466 = vunpack.c.l.b16 %v251
      %v467 = vunpack.c.l.b16 %v252
      %v468 = vunpack.c.l.b16 %v253
      %v469 = vunpack.c.l.b16 %v254
      %v470 = vunpack.c.l.b16 %v255
      %v471 = vunpack.c.l.b16 %v256
      %v472 = vunpack.c.l.b16 %v257
      %v473 = vpack.c.b16 %v410, %v409
      %v474 = vpack.c.b16 %v412, %v411
      %v475 = vpack.c.b16 %v414, %v413
      %v476 = vpack.c.b16 %v416, %v415
      %v477 = vpack.c.b16 %v418, %v417
      %v478 = vpack.c.b16 %v420, %v419
      %v479 = vpack.c.b16 %v422, %v421
      %v480 = vpack.c.b16 %v424, %v423
      %v481 = vpack.c.b16 %v426, %v425
      %v482 = vpack.c.b16 %v428, %v427
      %v483 = vpack.c.b16 %v430, %v429
      %v484 = vpack.c.b16 %v432, %v431
      %v485 = vpack.c.b16 %v434, %v433
      %v486 = vpack.c.b16 %v436, %v435
      %v487 = vpack.c.b16 %v438, %v437
      %v488 = vpack.c.b16 %v440, %v439
      %v489 = vpack.c.b16 %v442, %v441
      %v490 = vpack.c.b16 %v444, %v443
      %v491 = vpack.c.b16 %v446, %v445
      %v492 = vpack.c.b16 %v448, %v447
      %v493 = vpack.c.b16 %v450, %v449
      %v494 = vpack.c.b16 %v452, %v451
      %v495 = vpack.c.b16 %v454, %v453
      %v496 = vpack.c.b16 %v456, %v455
      %v497 = vpack.c.b16 %v458, %v457
      %v498 = vpack.c.b16 %v460, %v459
      %v499 = vpack.c.b16 %v462, %v461
      %v500 = vpack.c.b16 %v464, %v463
      %v501 = vpack.c.b16 %v466, %v465
      %v502 = vpack.c.b16 %v468, %v467
      %v503 = vpack.c.b16 %v470, %v469
      %v504 = vpack.c.b16 %v472, %v471
      %537 = vmatprep.subr.bf16.mxu0 0
      %538 = vmatpush1.bf16.msra.mxu0 %v473
      %539 = vmatprep.subr.bf16.mxu0 0
      %540 = vmatpush1.bf16.msra.mxu0 %v474
      %541 = vmatprep.subr.bf16.mxu0 0
      %542 = vmatpush1.bf16.msra.mxu0 %v475
      %543 = vmatprep.subr.bf16.mxu0 0
      %544 = vmatpush1.bf16.msra.mxu0 %v476
      %545 = vmatprep.subr.bf16.mxu0 0
      %546 = vmatpush1.bf16.msra.mxu0 %v477
      %547 = vmatprep.subr.bf16.mxu0 0
      %548 = vmatpush1.bf16.msra.mxu0 %v478
      %549 = vmatprep.subr.bf16.mxu0 0
      %550 = vmatpush1.bf16.msra.mxu0 %v479
      %551 = vmatprep.subr.bf16.mxu0 0
      %552 = vmatpush1.bf16.msra.mxu0 %v480
      %553 = vmatprep.subr.bf16.mxu0 0
      %554 = vmatpush1.bf16.msra.mxu0 %v481
      %555 = vmatprep.subr.bf16.mxu0 0
      %556 = vmatpush1.bf16.msra.mxu0 %v482
      %557 = vmatprep.subr.bf16.mxu0 0
      %558 = vmatpush1.bf16.msra.mxu0 %v483
      %559 = vmatprep.subr.bf16.mxu0 0
      %560 = vmatpush1.bf16.msra.mxu0 %v484
      %561 = vmatprep.subr.bf16.mxu0 0
      %562 = vmatpush1.bf16.msra.mxu0 %v485
      %563 = vmatprep.subr.bf16.mxu0 0
      %564 = vmatpush1.bf16.msra.mxu0 %v486
      %565 = vmatprep.subr.bf16.mxu0 0
      %566 = vmatpush1.bf16.msra.mxu0 %v487
      %567 = vmatprep.subr.bf16.mxu0 0
      %568 = vmatpush1.bf16.msra.mxu0 %v488
      %569 = vmatprep.mubr.bf16.mxu0 %v314
      %570 = vmatmul.mubr.bf16.gmra.mrb[0].mxu0 %v313
      %v571 = vpop.f32.mrb[0].mxu0
      %v572 = vadd.f32 %v263, %v571
      %v573 = vpop.f32.mrb[0].mxu0
      %v574 = vpop.f32.mrb[0].mxu0
      %v575 = vadd.f32 %v263, %v574
      %v576 = vpop.f32.mrb[0].mxu0
      %577 = vmatprep.mubr.bf16.mxu0 %v318
      %578 = vmatmul.mubr.bf16.gmra.mrb[0].mxu0 %v317
      %v579 = vpop.f32.mrb[0].mxu0
      %v580 = vadd.f32 %v263, %v579
      %v581 = vpop.f32.mrb[0].mxu0
      %v582 = vpop.f32.mrb[0].mxu0
      %v583 = vadd.f32 %v263, %v582
      %v584 = vpop.f32.mrb[0].mxu0
      %585 = vmatprep.mubr.bf16.mxu0 %v322
      %586 = vmatmul.mubr.bf16.gmra.mrb[0].mxu0 %v321
      %v587 = vpop.f32.mrb[0].mxu0
      %v588 = vadd.f32 %v263, %v587
      %v589 = vpop.f32.mrb[0].mxu0
      %v590 = vpop.f32.mrb[0].mxu0
      %v591 = vadd.f32 %v263, %v590
      %v592 = vpop.f32.mrb[0].mxu0
      %593 = vmatprep.mubr.bf16.mxu0 %v326
      %594 = vmatmul.mubr.bf16.gmra.mrb[0].mxu0 %v325
      %v595 = vpop.f32.mrb[0].mxu0
      %v596 = vadd.f32 %v263, %v595
      %v597 = vpop.f32.mrb[0].mxu0
      %v598 = vpop.f32.mrb[0].mxu0
      %v599 = vadd.f32 %v263, %v598
      %v600 = vpop.f32.mrb[0].mxu0
      %601 = vdwg.mxu0
      %602 = vmatprep.subr.bf16.mxu0 0
      %603 = vmatpush1.bf16.msra.mxu0 %v489
      %604 = vmatprep.subr.bf16.mxu0 0
      %605 = vmatpush1.bf16.msra.mxu0 %v490
      %606 = vmatprep.subr.bf16.mxu0 0
      %607 = vmatpush1.bf16.msra.mxu0 %v491
      %608 = vmatprep.subr.bf16.mxu0 0
      %609 = vmatpush1.bf16.msra.mxu0 %v492
      %610 = vmatprep.subr.bf16.mxu0 0
      %611 = vmatpush1.bf16.msra.mxu0 %v493
      %612 = vmatprep.subr.bf16.mxu0 0
      %613 = vmatpush1.bf16.msra.mxu0 %v494
      %614 = vmatprep.subr.bf16.mxu0 0
      %615 = vmatpush1.bf16.msra.mxu0 %v495
      %616 = vmatprep.subr.bf16.mxu0 0
      %617 = vmatpush1.bf16.msra.mxu0 %v496
      %618 = vmatprep.subr.bf16.mxu0 0
      %619 = vmatpush1.bf16.msra.mxu0 %v497
      %620 = vmatprep.subr.bf16.mxu0 0
      %621 = vmatpush1.bf16.msra.mxu0 %v498
      %622 = vmatprep.subr.bf16.mxu0 0
      %623 = vmatpush1.bf16.msra.mxu0 %v499
      %624 = vmatprep.subr.bf16.mxu0 0
      %625 = vmatpush1.bf16.msra.mxu0 %v500
      %626 = vmatprep.subr.bf16.mxu0 0
      %627 = vmatpush1.bf16.msra.mxu0 %v501
      %628 = vmatprep.subr.bf16.mxu0 0
      %629 = vmatpush1.bf16.msra.mxu0 %v502
      %630 = vmatprep.subr.bf16.mxu0 0
      %631 = vmatpush1.bf16.msra.mxu0 %v503
      %632 = vmatprep.subr.bf16.mxu0 0
      %633 = vmatpush1.bf16.msra.mxu0 %v504
      %634 = vmatprep.mubr.bf16.mxu0 %v316
      %635 = vmatmul.mubr.bf16.gmra.mrb[0].mxu0 %v315
      %v636 = vpop.f32.mrb[0].mxu0
      %v637 = vadd.f32 %v572, %v636
      %v638 = vpop.f32.mrb[0].mxu0
      %v639 = vpop.f32.mrb[0].mxu0
      %v640 = vadd.f32 %v575, %v639
      %v641 = vpop.f32.mrb[0].mxu0
      %642 = vmatprep.mubr.bf16.mxu0 %v320
      %643 = vmatmul.mubr.bf16.gmra.mrb[0].mxu0 %v319
      %v644 = vpop.f32.mrb[0].mxu0
      %v645 = vadd.f32 %v580, %v644
      %v646 = vpop.f32.mrb[0].mxu0
      %v647 = vpop.f32.mrb[0].mxu0
      %v648 = vadd.f32 %v583, %v647
      %v649 = vpop.f32.mrb[0].mxu0
      %650 = vmatprep.mubr.bf16.mxu0 %v324
      %651 = vmatmul.mubr.bf16.gmra.mrb[0].mxu0 %v323
      %v652 = vpop.f32.mrb[0].mxu0
      %v653 = vadd.f32 %v588, %v652
      %v654 = vpop.f32.mrb[0].mxu0
      %v655 = vpop.f32.mrb[0].mxu0
      %v656 = vadd.f32 %v591, %v655
      %v657 = vpop.f32.mrb[0].mxu0
      %658 = vmatprep.mubr.bf16.mxu0 %v328
      %659 = vmatmul.mubr.bf16.gmra.mrb[0].mxu0 %v327
      %v660 = vpop.f32.mrb[0].mxu0
      %v661 = vadd.f32 %v596, %v660
      %v662 = vpop.f32.mrb[0].mxu0
      %v663 = vpop.f32.mrb[0].mxu0
      %v664 = vadd.f32 %v599, %v663
      %v665 = vpop.f32.mrb[0].mxu0
      %666 = vdwg.mxu0
      %vm667 = vcmp.gt.f32.partialorder %v637, 0.0
      %vm668 = vcmp.gt.f32.partialorder %v640, 0.0
      %vm669 = vcmp.gt.f32.partialorder %v645, 0.0
      %vm670 = vcmp.gt.f32.partialorder %v648, 0.0
      %vm671 = vcmp.gt.f32.partialorder %v653, 0.0
      %vm672 = vcmp.gt.f32.partialorder %v656, 0.0
      %vm673 = vcmp.gt.f32.partialorder %v661, 0.0
      %vm674 = vcmp.gt.f32.partialorder %v664, 0.0
      %v675 = vmul.f32 %v637, 0.2
      %v676 = vmul.f32 %v640, 0.2
      %v677 = vmul.f32 %v645, 0.2
      %v678 = vmul.f32 %v648, 0.2
      %v679 = vmul.f32 %v653, 0.2
      %v680 = vmul.f32 %v656, 0.2
      %v681 = vmul.f32 %v661, 0.2
      %v682 = vmul.f32 %v664, 0.2
      %v683 = vsel %vm667, %v637, %v675
      %v684 = vsel %vm668, %v640, %v676
      %v685 = vsel %vm669, %v645, %v677
      %v686 = vsel %vm670, %v648, %v678
      %v687 = vsel %vm671, %v653, %v679
      %v688 = vsel %vm672, %v656, %v680
      %v689 = vsel %vm673, %v661, %v681
      %v690 = vsel %vm674, %v664, %v682
      %v691 = vpack.c.bf16 %v684, %v683
      %v692 = vpack.c.bf16 %v686, %v685
      %v693 = vpack.c.bf16 %v688, %v687
      %v694 = vpack.c.bf16 %v690, %v689
      %v699 = vunpack.c.l.b16 %v691
      %v700 = vunpack.c.h.b16 %v691
      %v701 = vunpack.c.l.b16 %v692
      %v702 = vunpack.c.h.b16 %v692
      %v703 = vunpack.c.l.b16 %v693
      %v704 = vunpack.c.h.b16 %v693
      %v705 = vunpack.c.l.b16 %v694
      %v706 = vunpack.c.h.b16 %v694
      %v707 = vpack.c.b16 %v699, %v699
      %v708 = vpack.c.b16 %v700, %v700
      %v709 = vpack.c.b16 %v701, %v701
      %v710 = vpack.c.b16 %v702, %v702
      %v711 = vpack.c.b16 %v703, %v703
      %v712 = vpack.c.b16 %v704, %v704
      %v713 = vpack.c.b16 %v705, %v705
      %v714 = vpack.c.b16 %v706, %v706
      %723 = vst [vmem:[%s175] sm:$0xf] %v707
      %724 = vst [vmem:[%s175 + $0x4] sm:$0xf] %v708
      %725 = vst [vmem:[%s175 + $0x8] sm:$0xf] %v709
      %726 = vst [vmem:[%s175 + $0xc] sm:$0xf] %v710
      %727 = vst [vmem:[%s175 + $0x10] sm:$0xf] %v711
      %728 = vst [vmem:[%s175 + $0x14] sm:$0xf] %v712
      %729 = vst [vmem:[%s175 + $0x18] sm:$0xf] %v713
      %730 = vst [vmem:[%s175 + $0x1c] sm:$0xf] %v714
      %s731 = smul.u32 8, %s14
      %p732 = scmp.lt.s32.totalorder %s731, 15
      %s733 = scalar_select %p732, %s731, 15
      %s734 = smul.addr %s733, 4
      %s735 = scalar_lea.vmem %s3, %s734
      // Predicated region
      $region33: #{_lambda_.8} parent=31 // pred_check
        %p736 = pneg %p100
      $region34: #{_lambda_.8} parent=31 // pred_check_branch
        %738 = sbr.rel (%p736) target = $region36
      $region35: #{_lambda_.8} parent=31 // pred_region
        %s739 = smul.u32 8, %s14
      $region36: #{_lambda_.8} parent=31 // pred_fallthru
        _
    $region32: #{_lambda_.8} parent=5 // pred_fallthru
      _
    %p740 = scmp.le.s32.totalorder 2, %s9
    // Predicated region
    $region37: #{_lambda_.8} parent=5 // pred_check
      %p741 = pneg %p740
    $region38: #{_lambda_.8} parent=5 // pred_check_branch
      %743 = sbr.rel (%p741) target = $region40
    $region39: #{_lambda_.8} parent=5 // pred_region
      %s744 = ssub.s32 %s9, 2
      // Predicated region
      $region41: #{_lambda_.8} parent=39 // pred_check
        %p745 = pneg %p106
      $region42: #{_lambda_.8} parent=39 // pred_check_branch
        %747 = sbr.rel (%p745) target = $region44
      $region43: #{_lambda_.8} parent=39 // pred_region
        %s748 = smul.u32 8, %s15
        %p749 = scmp.lt.s32.totalorder %s748, 15
        %s750 = scalar_select %p749, %s748, 15
        %s751 = smul.addr %s750, 4
        %s752 = scalar_lea.vmem %s3, %s751
      $region44: #{_lambda_.8} parent=39 // pred_fallthru
        _
    $region40: #{_lambda_.8} parent=5 // pred_fallthru
      _
  $region6: #{_lambda_.8} parent=0 // loop_footer
    %s13 = sadd.s32 1, %s9
  $region7: #{_lambda_.8} parent=0 // loop_footer_branch
    %8 = sbr.rel target = $region3
  $region8: #{_lambda_.8} parent=0 // loop_exit
    _

// kernel: _lambda_.9
$region0: #{_lambda_.9}
  #allocation0 [shape = 'u32[]', space=smem, size = 0x4, offset = 0x4, fixed_abs, tag = 'smem constant byte address 0x4 - core index']
  #allocation1 [shape = 'u32[144,128]{1,0:T(1,128)}', space=vmem, size = 0x12000, scoped, tag = 'internal scratch']
  %s0 = inlined_call_operand.vmem [shape: bf16[32,1024], index: 0, kind: input, shape index: {}]
  %s1 = inlined_call_operand.vmem [shape: bf16[1024,128], index: 1, kind: input, shape index: {}]
  %s2 = inlined_call_operand.vmem [shape: f32[1,128], index: 2, kind: input, shape index: {}]
  %s3 = inlined_call_operand.vmem [shape: f32[16,128,128], index: 3, kind: input, shape index: {}]
  %s4 = inlined_call_operand.vmem [shape: f32[1,128], index: 4, kind: input, shape index: {}]
  %s5 = inlined_call_operand.vmem [shape: f32[128,128], index: 5, kind: input, shape index: {}]
  %s6 = inlined_call_operand.vmem [shape: f32[1,128], index: 6, kind: input, shape index: {}]
  %s7 = inlined_call_operand.hbm [shape: f32[2,128], index: 7, kind: output, shape index: {0}]
  %s8 = inlined_call_operand.vmem [shape: f32[2,128], index: 8, kind: output, shape index: {1}]
  %9 = xla_tuple %s7, %s8
  %s10 = sld [smem:[#allocation0]]
  $region46: #{_lambda_.9} parent=0
    _
  %s12 = ssub.s32 1, %s10
  %s13 = scalar_select 0, %s12, %s10
  $region1: #{_lambda_.9} parent=0
    #allocation2 [shape = 'u8[1024]{0}', space=vmem, size = 0x400, scoped, tag = 'output window, operand 0, single buffered']
    #allocation3 [shape = 's32[1]{0}', space=sflag, size = 0x4, scoped, tag = 'scoped memory for _lambda_.9']
    %14 = vsyncpa [#allocation3], 0
    // Predicated region
    $region2: #{_lambda_.9} parent=1 // pred_check
      _
    $region3: #{_lambda_.9} parent=1 // pred_check_branch
      %16 = sbr.rel (0) target = $region5
    $region4: #{_lambda_.9} parent=1 // pred_region
      _
    $region5: #{_lambda_.9} parent=1 // pred_fallthru
      _
    // Predicated region
    $region6: #{_lambda_.9} parent=1 // pred_check
      _
    $region7: #{_lambda_.9} parent=1 // pred_check_branch
      %18 = sbr.rel (0) target = $region9
    $region8: #{_lambda_.9} parent=1 // pred_region
      _
    $region9: #{_lambda_.9} parent=1 // pred_fallthru
      _
    // Predicated region
    $region10: #{_lambda_.9} parent=1 // pred_check
      _
    $region11: #{_lambda_.9} parent=1 // pred_check_branch
      %20 = sbr.rel (0) target = $region13
    $region12: #{_lambda_.9} parent=1 // pred_region
      _
    $region13: #{_lambda_.9} parent=1 // pred_fallthru
      _
    // Predicated region
    $region14: #{_lambda_.9} parent=1 // pred_check
      _
    $region15: #{_lambda_.9} parent=1 // pred_check_branch
      %22 = sbr.rel (0) target = $region17
    $region16: #{_lambda_.9} parent=1 // pred_region
      _
    $region17: #{_lambda_.9} parent=1 // pred_fallthru
      _
    // Predicated region
    $region18: #{_lambda_.9} parent=1 // pred_check
      _
    $region19: #{_lambda_.9} parent=1 // pred_check_branch
      %24 = sbr.rel (0) target = $region21
    $region20: #{_lambda_.9} parent=1 // pred_region
      _
    $region21: #{_lambda_.9} parent=1 // pred_fallthru
      _
    // Predicated region
    $region22: #{_lambda_.9} parent=1 // pred_check
      _
    $region23: #{_lambda_.9} parent=1 // pred_check_branch
      %26 = sbr.rel (0) target = $region25
    $region24: #{_lambda_.9} parent=1 // pred_region
      _
    $region25: #{_lambda_.9} parent=1 // pred_fallthru
      _
    // Predicated region
    $region26: #{_lambda_.9} parent=1 // pred_check
      _
    $region27: #{_lambda_.9} parent=1 // pred_check_branch
      %28 = sbr.rel (0) target = $region29
    $region28: #{_lambda_.9} parent=1 // pred_region
      _
    $region29: #{_lambda_.9} parent=1 // pred_fallthru
      _
    %v30 = vld [vmem:[%s0] sm:$0xff]
    %v31 = vld [vmem:[%s0 + $0x8] sm:$0xff]
    %v32 = vld [vmem:[%s0 + $0x10] sm:$0xff]
    %v33 = vld [vmem:[%s0 + $0x18] sm:$0xff]
    %v34 = vld [vmem:[%s0 + $0x20] sm:$0xff]
    %v35 = vld [vmem:[%s0 + $0x28] sm:$0xff]
    %v36 = vld [vmem:[%s0 + $0x30] sm:$0xff]
    %v37 = vld [vmem:[%s0 + $0x38] sm:$0xff]
    %v38 = vld [vmem:[%s0 + $0x40] sm:$0xff]
    %v39 = vld [vmem:[%s0 + $0x48] sm:$0xff]
    %v40 = vld [vmem:[%s0 + $0x50] sm:$0xff]
    %v41 = vld [vmem:[%s0 + $0x58] sm:$0xff]
    %v42 = vld [vmem:[%s0 + $0x60] sm:$0xff]
    %v43 = vld [vmem:[%s0 + $0x68] sm:$0xff]
    %v44 = vld [vmem:[%s0 + $0x70] sm:$0xff]
    %v45 = vld [vmem:[%s0 + $0x78] sm:$0xff]
    %v46 = vld [vmem:[%s1] sm:$0xf]
    %v47 = vld [vmem:[%s1 + $0x4] sm:$0xf]
    %v48 = vld [vmem:[%s1 + $0x8] sm:$0xf]
    %v49 = vld [vmem:[%s1 + $0xc] sm:$0xf]
    %v50 = vld [vmem:[%s1 + $0x10] sm:$0xf]
    %v51 = vld [vmem:[%s1 + $0x14] sm:$0xf]
    %v52 = vld [vmem:[%s1 + $0x18] sm:$0xf]
    %v53 = vld [vmem:[%s1 + $0x1c] sm:$0xf]
    %v54 = vld [vmem:[%s1 + $0x20] sm:$0xf]
    %v55 = vld [vmem:[%s1 + $0x24] sm:$0xf]
    %v56 = vld [vmem:[%s1 + $0x28] sm:$0xf]
    %v57 = vld [vmem:[%s1 + $0x2c] sm:$0xf]
    %v58 = vld [vmem:[%s1 + $0x30] sm:$0xf]
    %v59 = vld [vmem:[%s1 + $0x34] sm:$0xf]
    %v60 = vld [vmem:[%s1 + $0x38] sm:$0xf]
    %v61 = vld [vmem:[%s1 + $0x3c] sm:$0xf]
    %v62 = vld [vmem:[%s1 + $0x40] sm:$0xf]
    %v63 = vld [vmem:[%s1 + $0x44] sm:$0xf]
    %v64 = vld [vmem:[%s1 + $0x48] sm:$0xf]
    %v65 = vld [vmem:[%s1 + $0x4c] sm:$0xf]
    %v66 = vld [vmem:[%s1 + $0x50] sm:$0xf]
    %v67 = vld [vmem:[%s1 + $0x54] sm:$0xf]
    %v68 = vld [vmem:[%s1 + $0x58] sm:$0xf]
    %v69 = vld [vmem:[%s1 + $0x5c] sm:$0xf]
    %v70 = vld [vmem:[%s1 + $0x60] sm:$0xf]
    %v71 = vld [vmem:[%s1 + $0x64] sm:$0xf]
    %v72 = vld [vmem:[%s1 + $0x68] sm:$0xf]
    %v73 = vld [vmem:[%s1 + $0x6c] sm:$0xf]
    %v74 = vld [vmem:[%s1 + $0x70] sm:$0xf]
    %v75 = vld [vmem:[%s1 + $0x74] sm:$0xf]
    %v76 = vld [vmem:[%s1 + $0x78] sm:$0xf]
    %v77 = vld [vmem:[%s1 + $0x7c] sm:$0xf]
    %v78 = vld [vmem:[%s1 + $0x80] sm:$0xf]
    %v79 = vld [vmem:[%s1 + $0x84] sm:$0xf]
    %v80 = vld [vmem:[%s1 + $0x88] sm:$0xf]
    %v81 = vld [vmem:[%s1 + $0x8c] sm:$0xf]
    %v82 = vld [vmem:[%s1 + $0x90] sm:$0xf]
    %v83 = vld [vmem:[%s1 + $0x94] sm:$0xf]
    %v84 = vld [vmem:[%s1 + $0x98] sm:$0xf]
    %v85 = vld [vmem:[%s1 + $0x9c] sm:$0xf]
    %v86 = vld [vmem:[%s1 + $0xa0] sm:$0xf]
    %v87 = vld [vmem:[%s1 + $0xa4] sm:$0xf]
    %v88 = vld [vmem:[%s1 + $0xa8] sm:$0xf]
    %v89 = vld [vmem:[%s1 + $0xac] sm:$0xf]
    %v90 = vld [vmem:[%s1 + $0xb0] sm:$0xf]
    %v91 = vld [vmem:[%s1 + $0xb4] sm:$0xf]
    %v92 = vld [vmem:[%s1 + $0xb8] sm:$0xf]
    %v93 = vld [vmem:[%s1 + $0xbc] sm:$0xf]
    %v94 = vld [vmem:[%s1 + $0xc0] sm:$0xf]
    %v95 = vld [vmem:[%s1 + $0xc4] sm:$0xf]
    %v96 = vld [vmem:[%s1 + $0xc8] sm:$0xf]
    %v97 = vld [vmem:[%s1 + $0xcc] sm:$0xf]
    %v98 = vld [vmem:[%s1 + $0xd0] sm:$0xf]
    %v99 = vld [vmem:[%s1 + $0xd4] sm:$0xf]
    %v100 = vld [vmem:[%s1 + $0xd8] sm:$0xf]
    %v101 = vld [vmem:[%s1 + $0xdc] sm:$0xf]
    %v102 = vld [vmem:[%s1 + $0xe0] sm:$0xf]
    %v103 = vld [vmem:[%s1 + $0xe4] sm:$0xf]
    %v104 = vld [vmem:[%s1 + $0xe8] sm:$0xf]
    %v105 = vld [vmem:[%s1 + $0xec] sm:$0xf]
    %v106 = vld [vmem:[%s1 + $0xf0] sm:$0xf]
    %v107 = vld [vmem:[%s1 + $0xf4] sm:$0xf]
    %v108 = vld [vmem:[%s1 + $0xf8] sm:$0xf]
    %v109 = vld [vmem:[%s1 + $0xfc] sm:$0xf]
    %v110 = vld [vmem:[%s1 + $0x100] sm:$0xf]
    %v111 = vld [vmem:[%s1 + $0x104] sm:$0xf]
    %v112 = vld [vmem:[%s1 + $0x108] sm:$0xf]
    %v113 = vld [vmem:[%s1 + $0x10c] sm:$0xf]
    %v114 = vld [vmem:[%s1 + $0x110] sm:$0xf]
    %v115 = vld [vmem:[%s1 + $0x114] sm:$0xf]
    %v116 = vld [vmem:[%s1 + $0x118] sm:$0xf]
    %v117 = vld [vmem:[%s1 + $0x11c] sm:$0xf]
    %v118 = vld [vmem:[%s1 + $0x120] sm:$0xf]
    %v119 = vld [vmem:[%s1 + $0x124] sm:$0xf]
    %v120 = vld [vmem:[%s1 + $0x128] sm:$0xf]
    %v121 = vld [vmem:[%s1 + $0x12c] sm:$0xf]
    %v122 = vld [vmem:[%s1 + $0x130] sm:$0xf]
    %v123 = vld [vmem:[%s1 + $0x134] sm:$0xf]
    %v124 = vld [vmem:[%s1 + $0x138] sm:$0xf]
    %v125 = vld [vmem:[%s1 + $0x13c] sm:$0xf]
    %v126 = vld [vmem:[%s1 + $0x140] sm:$0xf]
    %v127 = vld [vmem:[%s1 + $0x144] sm:$0xf]
    %v128 = vld [vmem:[%s1 + $0x148] sm:$0xf]
    %v129 = vld [vmem:[%s1 + $0x14c] sm:$0xf]
    %v130 = vld [vmem:[%s1 + $0x150] sm:$0xf]
    %v131 = vld [vmem:[%s1 + $0x154] sm:$0xf]
    %v132 = vld [vmem:[%s1 + $0x158] sm:$0xf]
    %v133 = vld [vmem:[%s1 + $0x15c] sm:$0xf]
    %v134 = vld [vmem:[%s1 + $0x160] sm:$0xf]
    %v135 = vld [vmem:[%s1 + $0x164] sm:$0xf]
    %v136 = vld [vmem:[%s1 + $0x168] sm:$0xf]
    %v137 = vld [vmem:[%s1 + $0x16c] sm:$0xf]
    %v138 = vld [vmem:[%s1 + $0x170] sm:$0xf]
    %v139 = vld [vmem:[%s1 + $0x174] sm:$0xf]
    %v140 = vld [vmem:[%s1 + $0x178] sm:$0xf]
    %v141 = vld [vmem:[%s1 + $0x17c] sm:$0xf]
    %v142 = vld [vmem:[%s1 + $0x180] sm:$0xf]
    %v143 = vld [vmem:[%s1 + $0x184] sm:$0xf]
    %v144 = vld [vmem:[%s1 + $0x188] sm:$0xf]
    %v145 = vld [vmem:[%s1 + $0x18c] sm:$0xf]
    %v146 = vld [vmem:[%s1 + $0x190] sm:$0xf]
    %v147 = vld [vmem:[%s1 + $0x194] sm:$0xf]
    %v148 = vld [vmem:[%s1 + $0x198] sm:$0xf]
    %v149 = vld [vmem:[%s1 + $0x19c] sm:$0xf]
    %v150 = vld [vmem:[%s1 + $0x1a0] sm:$0xf]
    %v151 = vld [vmem:[%s1 + $0x1a4] sm:$0xf]
    %v152 = vld [vmem:[%s1 + $0x1a8] sm:$0xf]
    %v153 = vld [vmem:[%s1 + $0x1ac] sm:$0xf]
    %v154 = vld [vmem:[%s1 + $0x1b0] sm:$0xf]
    %v155 = vld [vmem:[%s1 + $0x1b4] sm:$0xf]
    %v156 = vld [vmem:[%s1 + $0x1b8] sm:$0xf]
    %v157 = vld [vmem:[%s1 + $0x1bc] sm:$0xf]
    %v158 = vld [vmem:[%s1 + $0x1c0] sm:$0xf]
    %v159 = vld [vmem:[%s1 + $0x1c4] sm:$0xf]
    %v160 = vld [vmem:[%s1 + $0x1c8] sm:$0xf]
    %v161 = vld [vmem:[%s1 + $0x1cc] sm:$0xf]
    %v162 = vld [vmem:[%s1 + $0x1d0] sm:$0xf]
    %v163 = vld [vmem:[%s1 + $0x1d4] sm:$0xf]
    %v164 = vld [vmem:[%s1 + $0x1d8] sm:$0xf]
    %v165 = vld [vmem:[%s1 + $0x1dc] sm:$0xf]
    %v166 = vld [vmem:[%s1 + $0x1e0] sm:$0xf]
    %v167 = vld [vmem:[%s1 + $0x1e4] sm:$0xf]
    %v168 = vld [vmem:[%s1 + $0x1e8] sm:$0xf]
    %v169 = vld [vmem:[%s1 + $0x1ec] sm:$0xf]
    %v170 = vld [vmem:[%s1 + $0x1f0] sm:$0xf]
    %v171 = vld [vmem:[%s1 + $0x1f4] sm:$0xf]
    %v172 = vld [vmem:[%s1 + $0x1f8] sm:$0xf]
    %v173 = vld [vmem:[%s1 + $0x1fc] sm:$0xf]
    %v174 = vld [vmem:[%s2] sm:$0x1]
    %v176 = vlaneseq
    %v177 = vshrl.u32 %v176, 7
    %v178 = vsub.s32 0, %v177
    %v179 = vrot.slane %v174, %v178
    %v197 = vunpack.c.l.b16 %v30
    %v198 = vunpack.c.h.b16 %v30
    %v199 = vunpack.c.l.b16 %v31
    %v200 = vunpack.c.h.b16 %v31
    %v201 = vunpack.c.l.b16 %v32
    %v202 = vunpack.c.h.b16 %v32
    %v203 = vunpack.c.l.b16 %v33
    %v204 = vunpack.c.h.b16 %v33
    %v205 = vunpack.c.l.b16 %v34
    %v206 = vunpack.c.h.b16 %v34
    %v207 = vunpack.c.l.b16 %v35
    %v208 = vunpack.c.h.b16 %v35
    %v209 = vunpack.c.l.b16 %v36
    %v210 = vunpack.c.h.b16 %v36
    %v211 = vunpack.c.l.b16 %v37
    %v212 = vunpack.c.h.b16 %v37
    %v213 = vunpack.c.l.b16 %v38
    %v214 = vunpack.c.h.b16 %v38
    %v215 = vunpack.c.l.b16 %v39
    %v216 = vunpack.c.h.b16 %v39
    %v217 = vunpack.c.l.b16 %v40
    %v218 = vunpack.c.h.b16 %v40
    %v219 = vunpack.c.l.b16 %v41
    %v220 = vunpack.c.h.b16 %v41
    %v221 = vunpack.c.l.b16 %v42
    %v222 = vunpack.c.h.b16 %v42
    %v223 = vunpack.c.l.b16 %v43
    %v224 = vunpack.c.h.b16 %v43
    %v225 = vunpack.c.l.b16 %v44
    %v226 = vunpack.c.h.b16 %v44
    %v227 = vunpack.c.l.b16 %v45
    %v228 = vunpack.c.h.b16 %v45
    %v229 = vpack.c.b16 %v205, %v197
    %v230 = vpack.c.b16 %v206, %v198
    %v231 = vpack.c.b16 %v207, %v199
    %v232 = vpack.c.b16 %v208, %v200
    %v233 = vpack.c.b16 %v209, %v201
    %v234 = vpack.c.b16 %v210, %v202
    %v235 = vpack.c.b16 %v211, %v203
    %v236 = vpack.c.b16 %v212, %v204
    %v237 = vpack.c.b16 %v221, %v213
    %v238 = vpack.c.b16 %v222, %v214
    %v239 = vpack.c.b16 %v223, %v215
    %v240 = vpack.c.b16 %v224, %v216
    %v241 = vpack.c.b16 %v225, %v217
    %v242 = vpack.c.b16 %v226, %v218
    %v243 = vpack.c.b16 %v227, %v219
    %v244 = vpack.c.b16 %v228, %v220
    %v389 = vunpack.c.l.b16 %v46
    %v390 = vunpack.c.l.b16 %v47
    %v391 = vunpack.c.l.b16 %v48
    %v392 = vunpack.c.l.b16 %v49
    %v393 = vunpack.c.l.b16 %v50
    %v394 = vunpack.c.l.b16 %v51
    %v395 = vunpack.c.l.b16 %v52
    %v396 = vunpack.c.l.b16 %v53
    %v397 = vunpack.c.l.b16 %v54
    %v398 = vunpack.c.l.b16 %v55
    %v399 = vunpack.c.l.b16 %v56
    %v400 = vunpack.c.l.b16 %v57
    %v401 = vunpack.c.l.b16 %v58
    %v402 = vunpack.c.l.b16 %v59
    %v403 = vunpack.c.l.b16 %v60
    %v404 = vunpack.c.l.b16 %v61
    %v405 = vunpack.c.l.b16 %v62
    %v406 = vunpack.c.l.b16 %v63
    %v407 = vunpack.c.l.b16 %v64
    %v408 = vunpack.c.l.b16 %v65
    %v409 = vunpack.c.l.b16 %v66
    %v410 = vunpack.c.l.b16 %v67
    %v411 = vunpack.c.l.b16 %v68
    %v412 = vunpack.c.l.b16 %v69
    %v413 = vunpack.c.l.b16 %v70
    %v414 = vunpack.c.l.b16 %v71
    %v415 = vunpack.c.l.b16 %v72
    %v416 = vunpack.c.l.b16 %v73
    %v417 = vunpack.c.l.b16 %v74
    %v418 = vunpack.c.l.b16 %v75
    %v419 = vunpack.c.l.b16 %v76
    %v420 = vunpack.c.l.b16 %v77
    %v421 = vunpack.c.l.b16 %v78
    %v422 = vunpack.c.l.b16 %v79
    %v423 = vunpack.c.l.b16 %v80
    %v424 = vunpack.c.l.b16 %v81
    %v425 = vunpack.c.l.b16 %v82
    %v426 = vunpack.c.l.b16 %v83
    %v427 = vunpack.c.l.b16 %v84
    %v428 = vunpack.c.l.b16 %v85
    %v429 = vunpack.c.l.b16 %v86
    %v430 = vunpack.c.l.b16 %v87
    %v431 = vunpack.c.l.b16 %v88
    %v432 = vunpack.c.l.b16 %v89
    %v433 = vunpack.c.l.b16 %v90
    %v434 = vunpack.c.l.b16 %v91
    %v435 = vunpack.c.l.b16 %v92
    %v436 = vunpack.c.l.b16 %v93
    %v437 = vunpack.c.l.b16 %v94
    %v438 = vunpack.c.l.b16 %v95
    %v439 = vunpack.c.l.b16 %v96
    %v440 = vunpack.c.l.b16 %v97
    %v441 = vunpack.c.l.b16 %v98
    %v442 = vunpack.c.l.b16 %v99
    %v443 = vunpack.c.l.b16 %v100
    %v444 = vunpack.c.l.b16 %v101
    %v445 = vunpack.c.l.b16 %v102
    %v446 = vunpack.c.l.b16 %v103
    %v447 = vunpack.c.l.b16 %v104
    %v448 = vunpack.c.l.b16 %v105
    %v449 = vunpack.c.l.b16 %v106
    %v450 = vunpack.c.l.b16 %v107
    %v451 = vunpack.c.l.b16 %v108
    %v452 = vunpack.c.l.b16 %v109
    %v453 = vunpack.c.l.b16 %v110
    %v454 = vunpack.c.l.b16 %v111
    %v455 = vunpack.c.l.b16 %v112
    %v456 = vunpack.c.l.b16 %v113
    %v457 = vunpack.c.l.b16 %v114
    %v458 = vunpack.c.l.b16 %v115
    %v459 = vunpack.c.l.b16 %v116
    %v460 = vunpack.c.l.b16 %v117
    %v461 = vunpack.c.l.b16 %v118
    %v462 = vunpack.c.l.b16 %v119
    %v463 = vunpack.c.l.b16 %v120
    %v464 = vunpack.c.l.b16 %v121
    %v465 = vunpack.c.l.b16 %v122
    %v466 = vunpack.c.l.b16 %v123
    %v467 = vunpack.c.l.b16 %v124
    %v468 = vunpack.c.l.b16 %v125
    %v469 = vunpack.c.l.b16 %v126
    %v470 = vunpack.c.l.b16 %v127
    %v471 = vunpack.c.l.b16 %v128
    %v472 = vunpack.c.l.b16 %v129
    %v473 = vunpack.c.l.b16 %v130
    %v474 = vunpack.c.l.b16 %v131
    %v475 = vunpack.c.l.b16 %v132
    %v476 = vunpack.c.l.b16 %v133
    %v477 = vunpack.c.l.b16 %v134
    %v478 = vunpack.c.l.b16 %v135
    %v479 = vunpack.c.l.b16 %v136
    %v480 = vunpack.c.l.b16 %v137
    %v481 = vunpack.c.l.b16 %v138
    %v482 = vunpack.c.l.b16 %v139
    %v483 = vunpack.c.l.b16 %v140
    %v484 = vunpack.c.l.b16 %v141
    %v485 = vunpack.c.l.b16 %v142
    %v486 = vunpack.c.l.b16 %v143
    %v487 = vunpack.c.l.b16 %v144
    %v488 = vunpack.c.l.b16 %v145
    %v489 = vunpack.c.l.b16 %v146
    %v490 = vunpack.c.l.b16 %v147
    %v491 = vunpack.c.l.b16 %v148
    %v492 = vunpack.c.l.b16 %v149
    %v493 = vunpack.c.l.b16 %v150
    %v494 = vunpack.c.l.b16 %v151
    %v495 = vunpack.c.l.b16 %v152
    %v496 = vunpack.c.l.b16 %v153
    %v497 = vunpack.c.l.b16 %v154
    %v498 = vunpack.c.l.b16 %v155
    %v499 = vunpack.c.l.b16 %v156
    %v500 = vunpack.c.l.b16 %v157
    %v501 = vunpack.c.l.b16 %v158
    %v502 = vunpack.c.l.b16 %v159
    %v503 = vunpack.c.l.b16 %v160
    %v504 = vunpack.c.l.b16 %v161
    %v505 = vunpack.c.l.b16 %v162
    %v506 = vunpack.c.l.b16 %v163
    %v507 = vunpack.c.l.b16 %v164
    %v508 = vunpack.c.l.b16 %v165
    %v509 = vunpack.c.l.b16 %v166
    %v510 = vunpack.c.l.b16 %v167
    %v511 = vunpack.c.l.b16 %v168
    %v512 = vunpack.c.l.b16 %v169
    %v513 = vunpack.c.l.b16 %v170
    %v514 = vunpack.c.l.b16 %v171
    %v515 = vunpack.c.l.b16 %v172
    %v516 = vunpack.c.l.b16 %v173
    %v517 = vpack.c.b16 %v390, %v389
    %v518 = vpack.c.b16 %v392, %v391
    %v519 = vpack.c.b16 %v394, %v393
    %v520 = vpack.c.b16 %v396, %v395
    %v521 = vpack.c.b16 %v398, %v397
    %v522 = vpack.c.b16 %v400, %v399
    %v523 = vpack.c.b16 %v402, %v401
    %v524 = vpack.c.b16 %v404, %v403
    %v525 = vpack.c.b16 %v406, %v405
    %v526 = vpack.c.b16 %v408, %v407
    %v527 = vpack.c.b16 %v410, %v409
    %v528 = vpack.c.b16 %v412, %v411
    %v529 = vpack.c.b16 %v414, %v413
    %v530 = vpack.c.b16 %v416, %v415
    %v531 = vpack.c.b16 %v418, %v417
    %v532 = vpack.c.b16 %v420, %v419
    %v533 = vpack.c.b16 %v422, %v421
    %v534 = vpack.c.b16 %v424, %v423
    %v535 = vpack.c.b16 %v426, %v425
    %v536 = vpack.c.b16 %v428, %v427
    %v537 = vpack.c.b16 %v430, %v429
    %v538 = vpack.c.b16 %v432, %v431
    %v539 = vpack.c.b16 %v434, %v433
    %v540 = vpack.c.b16 %v436, %v435
    %v541 = vpack.c.b16 %v438, %v437
    %v542 = vpack.c.b16 %v440, %v439
    %v543 = vpack.c.b16 %v442, %v441
    %v544 = vpack.c.b16 %v444, %v443
    %v545 = vpack.c.b16 %v446, %v445
    %v546 = vpack.c.b16 %v448, %v447
    %v547 = vpack.c.b16 %v450, %v449
    %v548 = vpack.c.b16 %v452, %v451
    %v549 = vpack.c.b16 %v454, %v453
    %v550 = vpack.c.b16 %v456, %v455
    %v551 = vpack.c.b16 %v458, %v457
    %v552 = vpack.c.b16 %v460, %v459
    %v553 = vpack.c.b16 %v462, %v461
    %v554 = vpack.c.b16 %v464, %v463
    %v555 = vpack.c.b16 %v466, %v465
    %v556 = vpack.c.b16 %v468, %v467
    %v557 = vpack.c.b16 %v470, %v469
    %v558 = vpack.c.b16 %v472, %v471
    %v559 = vpack.c.b16 %v474, %v473
    %v560 = vpack.c.b16 %v476, %v475
    %v561 = vpack.c.b16 %v478, %v477
    %v562 = vpack.c.b16 %v480, %v479
    %v563 = vpack.c.b16 %v482, %v481
    %v564 = vpack.c.b16 %v484, %v483
    %v565 = vpack.c.b16 %v486, %v485
    %v566 = vpack.c.b16 %v488, %v487
    %v567 = vpack.c.b16 %v490, %v489
    %v568 = vpack.c.b16 %v492, %v491
    %v569 = vpack.c.b16 %v494, %v493
    %v570 = vpack.c.b16 %v496, %v495
    %v571 = vpack.c.b16 %v498, %v497
    %v572 = vpack.c.b16 %v500, %v499
    %v573 = vpack.c.b16 %v502, %v501
    %v574 = vpack.c.b16 %v504, %v503
    %v575 = vpack.c.b16 %v506, %v505
    %v576 = vpack.c.b16 %v508, %v507
    %v577 = vpack.c.b16 %v510, %v509
    %v578 = vpack.c.b16 %v512, %v511
    %v579 = vpack.c.b16 %v514, %v513
    %v580 = vpack.c.b16 %v516, %v515
    %645 = vmatprep.subr.bf16.mxu0 0
    %646 = vmatpush1.bf16.msra.mxu0 %v517
    %647 = vmatprep.subr.bf16.mxu0 0
    %648 = vmatpush1.bf16.msra.mxu0 %v518
    %649 = vmatprep.subr.bf16.mxu0 0
    %650 = vmatpush1.bf16.msra.mxu0 %v519
    %651 = vmatprep.subr.bf16.mxu0 0
    %652 = vmatpush1.bf16.msra.mxu0 %v520
    %653 = vmatprep.subr.bf16.mxu0 0
    %654 = vmatpush1.bf16.msra.mxu0 %v521
    %655 = vmatprep.subr.bf16.mxu0 0
    %656 = vmatpush1.bf16.msra.mxu0 %v522
    %657 = vmatprep.subr.bf16.mxu0 0
    %658 = vmatpush1.bf16.msra.mxu0 %v523
    %659 = vmatprep.subr.bf16.mxu0 0
    %660 = vmatpush1.bf16.msra.mxu0 %v524
    %661 = vmatprep.subr.bf16.mxu0 0
    %662 = vmatpush1.bf16.msra.mxu0 %v525
    %663 = vmatprep.subr.bf16.mxu0 0
    %664 = vmatpush1.bf16.msra.mxu0 %v526
    %665 = vmatprep.subr.bf16.mxu0 0
    %666 = vmatpush1.bf16.msra.mxu0 %v527
    %667 = vmatprep.subr.bf16.mxu0 0
    %668 = vmatpush1.bf16.msra.mxu0 %v528
    %669 = vmatprep.subr.bf16.mxu0 0
    %670 = vmatpush1.bf16.msra.mxu0 %v529
    %671 = vmatprep.subr.bf16.mxu0 0
    %672 = vmatpush1.bf16.msra.mxu0 %v530
    %673 = vmatprep.subr.bf16.mxu0 0
    %674 = vmatpush1.bf16.msra.mxu0 %v531
    %675 = vmatprep.subr.bf16.mxu0 0
    %676 = vmatpush1.bf16.msra.mxu0 %v532
    %677 = vmatprep.mubr.bf16.mxu0 %v230
    %678 = vmatmul.mubr.bf16.gmra.mrb[0].mxu0 %v229
    %v679 = vpop.f32.mrb[0].mxu0
    %v680 = vadd.f32 %v179, %v679
    %v681 = vpop.f32.mrb[0].mxu0
    %v682 = vpop.f32.mrb[0].mxu0
    %v683 = vadd.f32 %v179, %v682
    %v684 = vpop.f32.mrb[0].mxu0
    %685 = vmatprep.mubr.bf16.mxu0 %v238
    %686 = vmatmul.mubr.bf16.gmra.mrb[0].mxu0 %v237
    %v687 = vpop.f32.mrb[0].mxu0
    %v688 = vadd.f32 %v179, %v687
    %v689 = vpop.f32.mrb[0].mxu0
    %v690 = vpop.f32.mrb[0].mxu0
    %v691 = vadd.f32 %v179, %v690
    %v692 = vpop.f32.mrb[0].mxu0
    %693 = vdwg.mxu0
    %694 = vmatprep.subr.bf16.mxu0 0
    %695 = vmatpush1.bf16.msra.mxu0 %v533
    %696 = vmatprep.subr.bf16.mxu0 0
    %697 = vmatpush1.bf16.msra.mxu0 %v534
    %698 = vmatprep.subr.bf16.mxu0 0
    %699 = vmatpush1.bf16.msra.mxu0 %v535
    %700 = vmatprep.subr.bf16.mxu0 0
    %701 = vmatpush1.bf16.msra.mxu0 %v536
    %702 = vmatprep.subr.bf16.mxu0 0
    %703 = vmatpush1.bf16.msra.mxu0 %v537
    %704 = vmatprep.subr.bf16.mxu0 0
    %705 = vmatpush1.bf16.msra.mxu0 %v538
    %706 = vmatprep.subr.bf16.mxu0 0
    %707 = vmatpush1.bf16.msra.mxu0 %v539
    %708 = vmatprep.subr.bf16.mxu0 0
    %709 = vmatpush1.bf16.msra.mxu0 %v540
    %710 = vmatprep.subr.bf16.mxu0 0
    %711 = vmatpush1.bf16.msra.mxu0 %v541
    %712 = vmatprep.subr.bf16.mxu0 0
    %713 = vmatpush1.bf16.msra.mxu0 %v542
    %714 = vmatprep.subr.bf16.mxu0 0
    %715 = vmatpush1.bf16.msra.mxu0 %v543
    %716 = vmatprep.subr.bf16.mxu0 0
    %717 = vmatpush1.bf16.msra.mxu0 %v544
    %718 = vmatprep.subr.bf16.mxu0 0
    %719 = vmatpush1.bf16.msra.mxu0 %v545
    %720 = vmatprep.subr.bf16.mxu0 0
    %721 = vmatpush1.bf16.msra.mxu0 %v546
    %722 = vmatprep.subr.bf16.mxu0 0
    %723 = vmatpush1.bf16.msra.mxu0 %v547
    %724 = vmatprep.subr.bf16.mxu0 0
    %725 = vmatpush1.bf16.msra.mxu0 %v548
    %726 = vmatprep.mubr.bf16.mxu0 %v232
    %727 = vmatmul.mubr.bf16.gmra.mrb[0].mxu0 %v231
    %v728 = vpop.f32.mrb[0].mxu0
    %v729 = vadd.f32 %v680, %v728
    %v730 = vpop.f32.mrb[0].mxu0
    %v731 = vpop.f32.mrb[0].mxu0
    %v732 = vadd.f32 %v683, %v731
    %v733 = vpop.f32.mrb[0].mxu0
    %734 = vmatprep.mubr.bf16.mxu0 %v240
    %735 = vmatmul.mubr.bf16.gmra.mrb[0].mxu0 %v239
    %v736 = vpop.f32.mrb[0].mxu0
    %v737 = vadd.f32 %v688, %v736
    %v738 = vpop.f32.mrb[0].mxu0
    %v739 = vpop.f32.mrb[0].mxu0
    %v740 = vadd.f32 %v691, %v739
    %v741 = vpop.f32.mrb[0].mxu0
    %742 = vdwg.mxu0
    %743 = vmatprep.subr.bf16.mxu0 0
    %744 = vmatpush1.bf16.msra.mxu0 %v549
    %745 = vmatprep.subr.bf16.mxu0 0
    %746 = vmatpush1.bf16.msra.mxu0 %v550
    %747 = vmatprep.subr.bf16.mxu0 0
    %748 = vmatpush1.bf16.msra.mxu0 %v551
    %749 = vmatprep.subr.bf16.mxu0 0
    %750 = vmatpush1.bf16.msra.mxu0 %v552
    %751 = vmatprep.subr.bf16.mxu0 0
    %752 = vmatpush1.bf16.msra.mxu0 %v553
    %753 = vmatprep.subr.bf16.mxu0 0
    %754 = vmatpush1.bf16.msra.mxu0 %v554
    %755 = vmatprep.subr.bf16.mxu0 0
    %756 = vmatpush1.bf16.msra.mxu0 %v555
    %757 = vmatprep.subr.bf16.mxu0 0
    %758 = vmatpush1.bf16.msra.mxu0 %v556
    %759 = vmatprep.subr.bf16.mxu0 0
    %760 = vmatpush1.bf16.msra.mxu0 %v557
    %761 = vmatprep.subr.bf16.mxu0 0
    %762 = vmatpush1.bf16.msra.mxu0 %v558
    %763 = vmatprep.subr.bf16.mxu0 0
    %764 = vmatpush1.bf16.msra.mxu0 %v559
    %765 = vmatprep.subr.bf16.mxu0 0
    %766 = vmatpush1.bf16.msra.mxu0 %v560
    %767 = vmatprep.subr.bf16.mxu0 0
    %768 = vmatpush1.bf16.msra.mxu0 %v561
    %769 = vmatprep.subr.bf16.mxu0 0
    %770 = vmatpush1.bf16.msra.mxu0 %v562
    %771 = vmatprep.subr.bf16.mxu0 0
    %772 = vmatpush1.bf16.msra.mxu0 %v563
    %773 = vmatprep.subr.bf16.mxu0 0
    %774 = vmatpush1.bf16.msra.mxu0 %v564
    %775 = vmatprep.mubr.bf16.mxu0 %v234
    %776 = vmatmul.mubr.bf16.gmra.mrb[0].mxu0 %v233
    %v777 = vpop.f32.mrb[0].mxu0
    %v778 = vadd.f32 %v729, %v777
    %v779 = vpop.f32.mrb[0].mxu0
    %v780 = vpop.f32.mrb[0].mxu0
    %v781 = vadd.f32 %v732, %v780
    %v782 = vpop.f32.mrb[0].mxu0
    %783 = vmatprep.mubr.bf16.mxu0 %v242
    %784 = vmatmul.mubr.bf16.gmra.mrb[0].mxu0 %v241
    %v785 = vpop.f32.mrb[0].mxu0
    %v786 = vadd.f32 %v737, %v785
    %v787 = vpop.f32.mrb[0].mxu0
    %v788 = vpop.f32.mrb[0].mxu0
    %v789 = vadd.f32 %v740, %v788
    %v790 = vpop.f32.mrb[0].mxu0
    %791 = vdwg.mxu0
    %792 = vmatprep.subr.bf16.mxu0 0
    %793 = vmatpush1.bf16.msra.mxu0 %v565
    %794 = vmatprep.subr.bf16.mxu0 0
    %795 = vmatpush1.bf16.msra.mxu0 %v566
    %796 = vmatprep.subr.bf16.mxu0 0
    %797 = vmatpush1.bf16.msra.mxu0 %v567
    %798 = vmatprep.subr.bf16.mxu0 0
    %799 = vmatpush1.bf16.msra.mxu0 %v568
    %800 = vmatprep.subr.bf16.mxu0 0
    %801 = vmatpush1.bf16.msra.mxu0 %v569
    %802 = vmatprep.subr.bf16.mxu0 0
    %803 = vmatpush1.bf16.msra.mxu0 %v570
    %804 = vmatprep.subr.bf16.mxu0 0
    %805 = vmatpush1.bf16.msra.mxu0 %v571
    %806 = vmatprep.subr.bf16.mxu0 0
    %807 = vmatpush1.bf16.msra.mxu0 %v572
    %808 = vmatprep.subr.bf16.mxu0 0
    %809 = vmatpush1.bf16.msra.mxu0 %v573
    %810 = vmatprep.subr.bf16.mxu0 0
    %811 = vmatpush1.bf16.msra.mxu0 %v574
    %812 = vmatprep.subr.bf16.mxu0 0
    %813 = vmatpush1.bf16.msra.mxu0 %v575
    %814 = vmatprep.subr.bf16.mxu0 0
    %815 = vmatpush1.bf16.msra.mxu0 %v576
    %816 = vmatprep.subr.bf16.mxu0 0
    %817 = vmatpush1.bf16.msra.mxu0 %v577
    %818 = vmatprep.subr.bf16.mxu0 0
    %819 = vmatpush1.bf16.msra.mxu0 %v578
    %820 = vmatprep.subr.bf16.mxu0 0
    %821 = vmatpush1.bf16.msra.mxu0 %v579
    %822 = vmatprep.subr.bf16.mxu0 0
    %823 = vmatpush1.bf16.msra.mxu0 %v580
    %824 = vmatprep.mubr.bf16.mxu0 %v236
    %825 = vmatmul.mubr.bf16.gmra.mrb[0].mxu0 %v235
    %v826 = vpop.f32.mrb[0].mxu0
    %v827 = vadd.f32 %v778, %v826
    %v828 = vpop.f32.mrb[0].mxu0
    %v829 = vpop.f32.mrb[0].mxu0
    %v830 = vadd.f32 %v781, %v829
    %v831 = vpop.f32.mrb[0].mxu0
    %832 = vmatprep.mubr.bf16.mxu0 %v244
    %833 = vmatmul.mubr.bf16.gmra.mrb[0].mxu0 %v243
    %v834 = vpop.f32.mrb[0].mxu0
    %v835 = vadd.f32 %v786, %v834
    %v836 = vpop.f32.mrb[0].mxu0
    %v837 = vpop.f32.mrb[0].mxu0
    %v838 = vadd.f32 %v789, %v837
    %v839 = vpop.f32.mrb[0].mxu0
    %840 = vdwg.mxu0
    %vm841 = vcmp.gt.f32.partialorder %v827, 0.0
    %vm842 = vcmp.gt.f32.partialorder %v830, 0.0
    %vm843 = vcmp.gt.f32.partialorder %v835, 0.0
    %vm844 = vcmp.gt.f32.partialorder %v838, 0.0
    %v845 = vmul.f32 %v827, 0.2
    %v846 = vmul.f32 %v830, 0.2
    %v847 = vmul.f32 %v835, 0.2
    %v848 = vmul.f32 %v838, 0.2
    %v849 = vsel %vm841, %v827, %v845
    %v850 = vsel %vm842, %v830, %v846
    %v851 = vsel %vm843, %v835, %v847
    %v852 = vsel %vm844, %v838, %v848
    %v853 = vld [vmem:[%s3] sm:$0xff]
    %v854 = vld [vmem:[%s3 + $0x8] sm:$0xff]
    %v855 = vld [vmem:[%s3 + $0x10] sm:$0xff]
    %v856 = vld [vmem:[%s3 + $0x18] sm:$0xff]
    %v857 = vld [vmem:[%s3 + $0x20] sm:$0xff]
    %v858 = vld [vmem:[%s3 + $0x28] sm:$0xff]
    %v859 = vld [vmem:[%s3 + $0x30] sm:$0xff]
    %v860 = vld [vmem:[%s3 + $0x38] sm:$0xff]
    %v861 = vld [vmem:[%s3 + $0x40] sm:$0xff]
    %v862 = vld [vmem:[%s3 + $0x48] sm:$0xff]
    %v863 = vld [vmem:[%s3 + $0x50] sm:$0xff]
    %v864 = vld [vmem:[%s3 + $0x58] sm:$0xff]
    %v865 = vld [vmem:[%s3 + $0x60] sm:$0xff]
    %v866 = vld [vmem:[%s3 + $0x68] sm:$0xff]
    %v867 = vld [vmem:[%s3 + $0x70] sm:$0xff]
    %v868 = vld [vmem:[%s3 + $0x78] sm:$0xff]
    %s869 = scalar_lea.vmem %s3, 128
    %v870 = vld [vmem:[%s869] sm:$0xff]
    %v871 = vld [vmem:[%s869 + $0x8] sm:$0xff]
    %v872 = vld [vmem:[%s869 + $0x10] sm:$0xff]
    %v873 = vld [vmem:[%s869 + $0x18] sm:$0xff]
    %v874 = vld [vmem:[%s869 + $0x20] sm:$0xff]
    %v875 = vld [vmem:[%s869 + $0x28] sm:$0xff]
    %v876 = vld [vmem:[%s869 + $0x30] sm:$0xff]
    %v877 = vld [vmem:[%s869 + $0x38] sm:$0xff]
    %v878 = vld [vmem:[%s869 + $0x40] sm:$0xff]
    %v879 = vld [vmem:[%s869 + $0x48] sm:$0xff]
    %v880 = vld [vmem:[%s869 + $0x50] sm:$0xff]
    %v881 = vld [vmem:[%s869 + $0x58] sm:$0xff]
    %v882 = vld [vmem:[%s869 + $0x60] sm:$0xff]
    %v883 = vld [vmem:[%s869 + $0x68] sm:$0xff]
    %v884 = vld [vmem:[%s869 + $0x70] sm:$0xff]
    %v885 = vld [vmem:[%s869 + $0x78] sm:$0xff]
    %v887 = vrot.slane %v849, 2
    %889 = vmatprep.subr.mxu0 0.0
    %890 = vmatpush1.msra.mxu0 %v870
    %891 = vmatprep.subr.mxu0 0.0
    %892 = vmatpush1.msra.mxu0 %v871
    %893 = vmatprep.subr.mxu0 0.0
    %894 = vmatpush1.msra.mxu0 %v872
    %895 = vmatprep.subr.mxu0 0.0
    %896 = vmatpush1.msra.mxu0 %v873
    %897 = vmatprep.subr.mxu0 0.0
    %898 = vmatpush1.msra.mxu0 %v874
    %899 = vmatprep.subr.mxu0 0.0
    %900 = vmatpush1.msra.mxu0 %v875
    %901 = vmatprep.subr.mxu0 0.0
    %902 = vmatpush1.msra.mxu0 %v876
    %903 = vmatprep.subr.mxu0 0.0
    %904 = vmatpush1.msra.mxu0 %v877
    %905 = vmatprep.subr.mxu0 0.0
    %906 = vmatpush1.msra.mxu0 %v878
    %907 = vmatprep.subr.mxu0 0.0
    %908 = vmatpush1.msra.mxu0 %v879
    %909 = vmatprep.subr.mxu0 0.0
    %910 = vmatpush1.msra.mxu0 %v880
    %911 = vmatprep.subr.mxu0 0.0
    %912 = vmatpush1.msra.mxu0 %v881
    %913 = vmatprep.subr.mxu0 0.0
    %914 = vmatpush1.msra.mxu0 %v882
    %915 = vmatprep.subr.mxu0 0.0
    %916 = vmatpush1.msra.mxu0 %v883
    %917 = vmatprep.subr.mxu0 0.0
    %918 = vmatpush1.msra.mxu0 %v884
    %919 = vmatprep.subr.mxu0 0.0
    %920 = vmatpush1.msra.mxu0 %v885
    %921 = vmatprep.subr.mxu0 0.0
    %922 = vmatpush1.msra.mxu0 0.0
    %923 = vmatprep.subr.mxu0 0.0
    %924 = vmatpush1.msra.mxu0 0.0
    %925 = vmatprep.subr.mxu0 0.0
    %926 = vmatpush1.msra.mxu0 0.0
    %927 = vmatprep.subr.mxu0 0.0
    %928 = vmatpush1.msra.mxu0 0.0
    %929 = vmatprep.subr.mxu0 0.0
    %930 = vmatpush1.msra.mxu0 0.0
    %931 = vmatprep.subr.mxu0 0.0
    %932 = vmatpush1.msra.mxu0 0.0
    %933 = vmatprep.subr.mxu0 0.0
    %934 = vmatpush1.msra.mxu0 0.0
    %935 = vmatprep.subr.mxu0 0.0
    %936 = vmatpush1.msra.mxu0 0.0
    %937 = vmatprep.subr.mxu0 0.0
    %938 = vmatpush1.msra.mxu0 0.0
    %939 = vmatprep.subr.mxu0 0.0
    %940 = vmatpush1.msra.mxu0 0.0
    %941 = vmatprep.subr.mxu0 0.0
    %942 = vmatpush1.msra.mxu0 0.0
    %943 = vmatprep.subr.mxu0 0.0
    %944 = vmatpush1.msra.mxu0 0.0
    %945 = vmatprep.subr.mxu0 0.0
    %946 = vmatpush1.msra.mxu0 0.0
    %947 = vmatprep.subr.mxu0 0.0
    %948 = vmatpush1.msra.mxu0 0.0
    %949 = vmatprep.subr.mxu0 0.0
    %950 = vmatpush1.msra.mxu0 0.0
    %951 = vmatprep.subr.mxu0 0.0
    %952 = vmatpush1.msra.mxu0 0.0
    %953 = vmatprep.mubr.f32.mxu0 0.0
    %954 = vmatmul.mubr.f32.gmra.mrb[0].mxu0 %v887
    %v955 = vpop.f32.mrb[0].mxu0
    %v956 = vadd.f32 0.0, %v955
    %v957 = vpop.f32.mrb[0].mxu0
    %958 = vdwg.mxu0
    %959 = vmatprep.subr.mxu0 0.0
    %960 = vmatpush1.msra.mxu0 %v853
    %961 = vmatprep.subr.mxu0 0.0
    %962 = vmatpush1.msra.mxu0 %v854
    %963 = vmatprep.subr.mxu0 0.0
    %964 = vmatpush1.msra.mxu0 %v855
    %965 = vmatprep.subr.mxu0 0.0
    %966 = vmatpush1.msra.mxu0 %v856
    %967 = vmatprep.subr.mxu0 0.0
    %968 = vmatpush1.msra.mxu0 %v857
    %969 = vmatprep.subr.mxu0 0.0
    %970 = vmatpush1.msra.mxu0 %v858
    %971 = vmatprep.subr.mxu0 0.0
    %972 = vmatpush1.msra.mxu0 %v859
    %973 = vmatprep.subr.mxu0 0.0
    %974 = vmatpush1.msra.mxu0 %v860
    %975 = vmatprep.subr.mxu0 0.0
    %976 = vmatpush1.msra.mxu0 %v861
    %977 = vmatprep.subr.mxu0 0.0
    %978 = vmatpush1.msra.mxu0 %v862
    %979 = vmatprep.subr.mxu0 0.0
    %980 = vmatpush1.msra.mxu0 %v863
    %981 = vmatprep.subr.mxu0 0.0
    %982 = vmatpush1.msra.mxu0 %v864
    %983 = vmatprep.subr.mxu0 0.0
    %984 = vmatpush1.msra.mxu0 %v865
    %985 = vmatprep.subr.mxu0 0.0
    %986 = vmatpush1.msra.mxu0 %v866
    %987 = vmatprep.subr.mxu0 0.0
    %988 = vmatpush1.msra.mxu0 %v867
    %989 = vmatprep.subr.mxu0 0.0
    %990 = vmatpush1.msra.mxu0 %v868
    %991 = vmatprep.subr.mxu0 0.0
    %992 = vmatpush1.msra.mxu0 0.0
    %993 = vmatprep.subr.mxu0 0.0
    %994 = vmatpush1.msra.mxu0 0.0
    %995 = vmatprep.subr.mxu0 0.0
    %996 = vmatpush1.msra.mxu0 0.0
    %997 = vmatprep.subr.mxu0 0.0
    %998 = vmatpush1.msra.mxu0 0.0
    %999 = vmatprep.subr.mxu0 0.0
    %1000 = vmatpush1.msra.mxu0 0.0
    %1001 = vmatprep.subr.mxu0 0.0
    %1002 = vmatpush1.msra.mxu0 0.0
    %1003 = vmatprep.subr.mxu0 0.0
    %1004 = vmatpush1.msra.mxu0 0.0
    %1005 = vmatprep.subr.mxu0 0.0
    %1006 = vmatpush1.msra.mxu0 0.0
    %1007 = vmatprep.subr.mxu0 0.0
    %1008 = vmatpush1.msra.mxu0 0.0
    %1009 = vmatprep.subr.mxu0 0.0
    %1010 = vmatpush1.msra.mxu0 0.0
    %1011 = vmatprep.subr.mxu0 0.0
    %1012 = vmatpush1.msra.mxu0 0.0
    %1013 = vmatprep.subr.mxu0 0.0
    %1014 = vmatpush1.msra.mxu0 0.0
    %1015 = vmatprep.subr.mxu0 0.0
    %1016 = vmatpush1.msra.mxu0 0.0
    %1017 = vmatprep.subr.mxu0 0.0
    %1018 = vmatpush1.msra.mxu0 0.0
    %1019 = vmatprep.subr.mxu0 0.0
    %1020 = vmatpush1.msra.mxu0 0.0
    %1021 = vmatprep.subr.mxu0 0.0
    %1022 = vmatpush1.msra.mxu0 0.0
    %1023 = vmatprep.mubr.f32.mxu0 0.0
    %1024 = vmatmul.mubr.f32.gmra.mrb[0].mxu0 %v849
    %v1025 = vpop.f32.mrb[0].mxu0
    %v1026 = vadd.f32 %v956, %v1025
    %v1027 = vpop.f32.mrb[0].mxu0
    %1028 = vdwg.mxu0
    %s1029 = scalar_lea.vmem %s3, 256
    %v1030 = vld [vmem:[%s1029] sm:$0xff]
    %v1031 = vld [vmem:[%s1029 + $0x8] sm:$0xff]
    %v1032 = vld [vmem:[%s1029 + $0x10] sm:$0xff]
    %v1033 = vld [vmem:[%s1029 + $0x18] sm:$0xff]
    %v1034 = vld [vmem:[%s1029 + $0x20] sm:$0xff]
    %v1035 = vld [vmem:[%s1029 + $0x28] sm:$0xff]
    %v1036 = vld [vmem:[%s1029 + $0x30] sm:$0xff]
    %v1037 = vld [vmem:[%s1029 + $0x38] sm:$0xff]
    %v1038 = vld [vmem:[%s1029 + $0x40] sm:$0xff]
    %v1039 = vld [vmem:[%s1029 + $0x48] sm:$0xff]
    %v1040 = vld [vmem:[%s1029 + $0x50] sm:$0xff]
    %v1041 = vld [vmem:[%s1029 + $0x58] sm:$0xff]
    %v1042 = vld [vmem:[%s1029 + $0x60] sm:$0xff]
    %v1043 = vld [vmem:[%s1029 + $0x68] sm:$0xff]
    %v1044 = vld [vmem:[%s1029 + $0x70] sm:$0xff]
    %v1045 = vld [vmem:[%s1029 + $0x78] sm:$0xff]
    %v1046 = vrot.slane %v849, 4
    %1048 = vmatprep.subr.mxu0 0.0
    %1049 = vmatpush1.msra.mxu0 %v1030
    %1050 = vmatprep.subr.mxu0 0.0
    %1051 = vmatpush1.msra.mxu0 %v1031
    %1052 = vmatprep.subr.mxu0 0.0
    %1053 = vmatpush1.msra.mxu0 %v1032
    %1054 = vmatprep.subr.mxu0 0.0
    %1055 = vmatpush1.msra.mxu0 %v1033
    %1056 = vmatprep.subr.mxu0 0.0
    %1057 = vmatpush1.msra.mxu0 %v1034
    %1058 = vmatprep.subr.mxu0 0.0
    %1059 = vmatpush1.msra.mxu0 %v1035
    %1060 = vmatprep.subr.mxu0 0.0
    %1061 = vmatpush1.msra.mxu0 %v1036
    %1062 = vmatprep.subr.mxu0 0.0
    %1063 = vmatpush1.msra.mxu0 %v1037
    %1064 = vmatprep.subr.mxu0 0.0
    %1065 = vmatpush1.msra.mxu0 %v1038
    %1066 = vmatprep.subr.mxu0 0.0
    %1067 = vmatpush1.msra.mxu0 %v1039
    %1068 = vmatprep.subr.mxu0 0.0
    %1069 = vmatpush1.msra.mxu0 %v1040
    %1070 = vmatprep.subr.mxu0 0.0
    %1071 = vmatpush1.msra.mxu0 %v1041
    %1072 = vmatprep.subr.mxu0 0.0
    %1073 = vmatpush1.msra.mxu0 %v1042
    %1074 = vmatprep.subr.mxu0 0.0
    %1075 = vmatpush1.msra.mxu0 %v1043
    %1076 = vmatprep.subr.mxu0 0.0
    %1077 = vmatpush1.msra.mxu0 %v1044
    %1078 = vmatprep.subr.mxu0 0.0
    %1079 = vmatpush1.msra.mxu0 %v1045
    %1080 = vmatprep.subr.mxu0 0.0
    %1081 = vmatpush1.msra.mxu0 0.0
    %1082 = vmatprep.subr.mxu0 0.0
    %1083 = vmatpush1.msra.mxu0 0.0
    %1084 = vmatprep.subr.mxu0 0.0
    %1085 = vmatpush1.msra.mxu0 0.0
    %1086 = vmatprep.subr.mxu0 0.0
    %1087 = vmatpush1.msra.mxu0 0.0
    %1088 = vmatprep.subr.mxu0 0.0
    %1089 = vmatpush1.msra.mxu0 0.0
    %1090 = vmatprep.subr.mxu0 0.0
    %1091 = vmatpush1.msra.mxu0 0.0
    %1092 = vmatprep.subr.mxu0 0.0
    %1093 = vmatpush1.msra.mxu0 0.0
    %1094 = vmatprep.subr.mxu0 0.0
    %1095 = vmatpush1.msra.mxu0 0.0
    %1096 = vmatprep.subr.mxu0 0.0
    %1097 = vmatpush1.msra.mxu0 0.0
    %1098 = vmatprep.subr.mxu0 0.0
    %1099 = vmatpush1.msra.mxu0 0.0
    %1100 = vmatprep.subr.mxu0 0.0
    %1101 = vmatpush1.msra.mxu0 0.0
    %1102 = vmatprep.subr.mxu0 0.0
    %1103 = vmatpush1.msra.mxu0 0.0
    %1104 = vmatprep.subr.mxu0 0.0
    %1105 = vmatpush1.msra.mxu0 0.0
    %1106 = vmatprep.subr.mxu0 0.0
    %1107 = vmatpush1.msra.mxu0 0.0
    %1108 = vmatprep.subr.mxu0 0.0
    %1109 = vmatpush1.msra.mxu0 0.0
    %1110 = vmatprep.subr.mxu0 0.0
    %1111 = vmatpush1.msra.mxu0 0.0
    %1112 = vmatprep.mubr.f32.mxu0 0.0
    %1113 = vmatmul.mubr.f32.gmra.mrb[0].mxu0 %v1046
    %v1114 = vpop.f32.mrb[0].mxu0
    %v1115 = vadd.f32 0.0, %v1114
    %v1116 = vpop.f32.mrb[0].mxu0
    %1117 = vdwg.mxu0
    %v1118 = vadd.f32 %v1026, %v1115
    %s1119 = scalar_lea.vmem %s3, 384
    %v1120 = vld [vmem:[%s1119] sm:$0xff]
    %v1121 = vld [vmem:[%s1119 + $0x8] sm:$0xff]
    %v1122 = vld [vmem:[%s1119 + $0x10] sm:$0xff]
    %v1123 = vld [vmem:[%s1119 + $0x18] sm:$0xff]
    %v1124 = vld [vmem:[%s1119 + $0x20] sm:$0xff]
    %v1125 = vld [vmem:[%s1119 + $0x28] sm:$0xff]
    %v1126 = vld [vmem:[%s1119 + $0x30] sm:$0xff]
    %v1127 = vld [vmem:[%s1119 + $0x38] sm:$0xff]
    %v1128 = vld [vmem:[%s1119 + $0x40] sm:$0xff]
    %v1129 = vld [vmem:[%s1119 + $0x48] sm:$0xff]
    %v1130 = vld [vmem:[%s1119 + $0x50] sm:$0xff]
    %v1131 = vld [vmem:[%s1119 + $0x58] sm:$0xff]
    %v1132 = vld [vmem:[%s1119 + $0x60] sm:$0xff]
    %v1133 = vld [vmem:[%s1119 + $0x68] sm:$0xff]
    %v1134 = vld [vmem:[%s1119 + $0x70] sm:$0xff]
    %v1135 = vld [vmem:[%s1119 + $0x78] sm:$0xff]
    %v1136 = vrot.slane %v849, 6
    %1138 = vmatprep.subr.mxu0 0.0
    %1139 = vmatpush1.msra.mxu0 %v1120
    %1140 = vmatprep.subr.mxu0 0.0
    %1141 = vmatpush1.msra.mxu0 %v1121
    %1142 = vmatprep.subr.mxu0 0.0
    %1143 = vmatpush1.msra.mxu0 %v1122
    %1144 = vmatprep.subr.mxu0 0.0
    %1145 = vmatpush1.msra.mxu0 %v1123
    %1146 = vmatprep.subr.mxu0 0.0
    %1147 = vmatpush1.msra.mxu0 %v1124
    %1148 = vmatprep.subr.mxu0 0.0
    %1149 = vmatpush1.msra.mxu0 %v1125
    %1150 = vmatprep.subr.mxu0 0.0
    %1151 = vmatpush1.msra.mxu0 %v1126
    %1152 = vmatprep.subr.mxu0 0.0
    %1153 = vmatpush1.msra.mxu0 %v1127
    %1154 = vmatprep.subr.mxu0 0.0
    %1155 = vmatpush1.msra.mxu0 %v1128
    %1156 = vmatprep.subr.mxu0 0.0
    %1157 = vmatpush1.msra.mxu0 %v1129
    %1158 = vmatprep.subr.mxu0 0.0
    %1159 = vmatpush1.msra.mxu0 %v1130
    %1160 = vmatprep.subr.mxu0 0.0
    %1161 = vmatpush1.msra.mxu0 %v1131
    %1162 = vmatprep.subr.mxu0 0.0
    %1163 = vmatpush1.msra.mxu0 %v1132
    %1164 = vmatprep.subr.mxu0 0.0
    %1165 = vmatpush1.msra.mxu0 %v1133
    %1166 = vmatprep.subr.mxu0 0.0
    %1167 = vmatpush1.msra.mxu0 %v1134
    %1168 = vmatprep.subr.mxu0 0.0
    %1169 = vmatpush1.msra.mxu0 %v1135
    %1170 = vmatprep.subr.mxu0 0.0
    %1171 = vmatpush1.msra.mxu0 0.0
    %1172 = vmatprep.subr.mxu0 0.0
    %1173 = vmatpush1.msra.mxu0 0.0
    %1174 = vmatprep.subr.mxu0 0.0
    %1175 = vmatpush1.msra.mxu0 0.0
    %1176 = vmatprep.subr.mxu0 0.0
    %1177 = vmatpush1.msra.mxu0 0.0
    %1178 = vmatprep.subr.mxu0 0.0
    %1179 = vmatpush1.msra.mxu0 0.0
    %1180 = vmatprep.subr.mxu0 0.0
    %1181 = vmatpush1.msra.mxu0 0.0
    %1182 = vmatprep.subr.mxu0 0.0
    %1183 = vmatpush1.msra.mxu0 0.0
    %1184 = vmatprep.subr.mxu0 0.0
    %1185 = vmatpush1.msra.mxu0 0.0
    %1186 = vmatprep.subr.mxu0 0.0
    %1187 = vmatpush1.msra.mxu0 0.0
    %1188 = vmatprep.subr.mxu0 0.0
    %1189 = vmatpush1.msra.mxu0 0.0
    %1190 = vmatprep.subr.mxu0 0.0
    %1191 = vmatpush1.msra.mxu0 0.0
    %1192 = vmatprep.subr.mxu0 0.0
    %1193 = vmatpush1.msra.mxu0 0.0
    %1194 = vmatprep.subr.mxu0 0.0
    %1195 = vmatpush1.msra.mxu0 0.0
    %1196 = vmatprep.subr.mxu0 0.0
    %1197 = vmatpush1.msra.mxu0 0.0
    %1198 = vmatprep.subr.mxu0 0.0
    %1199 = vmatpush1.msra.mxu0 0.0
    %1200 = vmatprep.subr.mxu0 0.0
    %1201 = vmatpush1.msra.mxu0 0.0
    %1202 = vmatprep.mubr.f32.mxu0 0.0
    %1203 = vmatmul.mubr.f32.gmra.mrb[0].mxu0 %v1136
    %v1204 = vpop.f32.mrb[0].mxu0
    %v1205 = vadd.f32 0.0, %v1204
    %v1206 = vpop.f32.mrb[0].mxu0
    %1207 = vdwg.mxu0
    %v1208 = vadd.f32 %v1118, %v1205
    %s1209 = scalar_lea.vmem %s3, 512
    %v1210 = vld [vmem:[%s1209] sm:$0xff]
    %v1211 = vld [vmem:[%s1209 + $0x8] sm:$0xff]
    %v1212 = vld [vmem:[%s1209 + $0x10] sm:$0xff]
    %v1213 = vld [vmem:[%s1209 + $0x18] sm:$0xff]
    %v1214 = vld [vmem:[%s1209 + $0x20] sm:$0xff]
    %v1215 = vld [vmem:[%s1209 + $0x28] sm:$0xff]
    %v1216 = vld [vmem:[%s1209 + $0x30] sm:$0xff]
    %v1217 = vld [vmem:[%s1209 + $0x38] sm:$0xff]
    %v1218 = vld [vmem:[%s1209 + $0x40] sm:$0xff]
    %v1219 = vld [vmem:[%s1209 + $0x48] sm:$0xff]
    %v1220 = vld [vmem:[%s1209 + $0x50] sm:$0xff]
    %v1221 = vld [vmem:[%s1209 + $0x58] sm:$0xff]
    %v1222 = vld [vmem:[%s1209 + $0x60] sm:$0xff]
    %v1223 = vld [vmem:[%s1209 + $0x68] sm:$0xff]
    %v1224 = vld [vmem:[%s1209 + $0x70] sm:$0xff]
    %v1225 = vld [vmem:[%s1209 + $0x78] sm:$0xff]
    %1226 = vmatprep.subr.mxu0 0.0
    %1227 = vmatpush1.msra.mxu0 %v1210
    %1228 = vmatprep.subr.mxu0 0.0
    %1229 = vmatpush1.msra.mxu0 %v1211
    %1230 = vmatprep.subr.mxu0 0.0
    %1231 = vmatpush1.msra.mxu0 %v1212
    %1232 = vmatprep.subr.mxu0 0.0
    %1233 = vmatpush1.msra.mxu0 %v1213
    %1234 = vmatprep.subr.mxu0 0.0
    %1235 = vmatpush1.msra.mxu0 %v1214
    %1236 = vmatprep.subr.mxu0 0.0
    %1237 = vmatpush1.msra.mxu0 %v1215
    %1238 = vmatprep.subr.mxu0 0.0
    %1239 = vmatpush1.msra.mxu0 %v1216
    %1240 = vmatprep.subr.mxu0 0.0
    %1241 = vmatpush1.msra.mxu0 %v1217
    %1242 = vmatprep.subr.mxu0 0.0
    %1243 = vmatpush1.msra.mxu0 %v1218
    %1244 = vmatprep.subr.mxu0 0.0
    %1245 = vmatpush1.msra.mxu0 %v1219
    %1246 = vmatprep.subr.mxu0 0.0
    %1247 = vmatpush1.msra.mxu0 %v1220
    %1248 = vmatprep.subr.mxu0 0.0
    %1249 = vmatpush1.msra.mxu0 %v1221
    %1250 = vmatprep.subr.mxu0 0.0
    %1251 = vmatpush1.msra.mxu0 %v1222
    %1252 = vmatprep.subr.mxu0 0.0
    %1253 = vmatpush1.msra.mxu0 %v1223
    %1254 = vmatprep.subr.mxu0 0.0
    %1255 = vmatpush1.msra.mxu0 %v1224
    %1256 = vmatprep.subr.mxu0 0.0
    %1257 = vmatpush1.msra.mxu0 %v1225
    %1258 = vmatprep.subr.mxu0 0.0
    %1259 = vmatpush1.msra.mxu0 0.0
    %1260 = vmatprep.subr.mxu0 0.0
    %1261 = vmatpush1.msra.mxu0 0.0
    %1262 = vmatprep.subr.mxu0 0.0
    %1263 = vmatpush1.msra.mxu0 0.0
    %1264 = vmatprep.subr.mxu0 0.0
    %1265 = vmatpush1.msra.mxu0 0.0
    %1266 = vmatprep.subr.mxu0 0.0
    %1267 = vmatpush1.msra.mxu0 0.0
    %1268 = vmatprep.subr.mxu0 0.0
    %1269 = vmatpush1.msra.mxu0 0.0
    %1270 = vmatprep.subr.mxu0 0.0
    %1271 = vmatpush1.msra.mxu0 0.0
    %1272 = vmatprep.subr.mxu0 0.0
    %1273 = vmatpush1.msra.mxu0 0.0
    %1274 = vmatprep.subr.mxu0 0.0
    %1275 = vmatpush1.msra.mxu0 0.0
    %1276 = vmatprep.subr.mxu0 0.0
    %1277 = vmatpush1.msra.mxu0 0.0
    %1278 = vmatprep.subr.mxu0 0.0
    %1279 = vmatpush1.msra.mxu0 0.0
    %1280 = vmatprep.subr.mxu0 0.0
    %1281 = vmatpush1.msra.mxu0 0.0
    %1282 = vmatprep.subr.mxu0 0.0
    %1283 = vmatpush1.msra.mxu0 0.0
    %1284 = vmatprep.subr.mxu0 0.0
    %1285 = vmatpush1.msra.mxu0 0.0
    %1286 = vmatprep.subr.mxu0 0.0
    %1287 = vmatpush1.msra.mxu0 0.0
    %1288 = vmatprep.subr.mxu0 0.0
    %1289 = vmatpush1.msra.mxu0 0.0
    %1290 = vmatprep.mubr.f32.mxu0 0.0
    %1291 = vmatmul.mubr.f32.gmra.mrb[0].mxu0 %v850
    %v1292 = vpop.f32.mrb[0].mxu0
    %v1293 = vadd.f32 0.0, %v1292
    %v1294 = vpop.f32.mrb[0].mxu0
    %1295 = vdwg.mxu0
    %v1296 = vadd.f32 %v1208, %v1293
    %s1297 = scalar_lea.vmem %s3, 640
    %v1298 = vld [vmem:[%s1297] sm:$0xff]
    %v1299 = vld [vmem:[%s1297 + $0x8] sm:$0xff]
    %v1300 = vld [vmem:[%s1297 + $0x10] sm:$0xff]
    %v1301 = vld [vmem:[%s1297 + $0x18] sm:$0xff]
    %v1302 = vld [vmem:[%s1297 + $0x20] sm:$0xff]
    %v1303 = vld [vmem:[%s1297 + $0x28] sm:$0xff]
    %v1304 = vld [vmem:[%s1297 + $0x30] sm:$0xff]
    %v1305 = vld [vmem:[%s1297 + $0x38] sm:$0xff]
    %v1306 = vld [vmem:[%s1297 + $0x40] sm:$0xff]
    %v1307 = vld [vmem:[%s1297 + $0x48] sm:$0xff]
    %v1308 = vld [vmem:[%s1297 + $0x50] sm:$0xff]
    %v1309 = vld [vmem:[%s1297 + $0x58] sm:$0xff]
    %v1310 = vld [vmem:[%s1297 + $0x60] sm:$0xff]
    %v1311 = vld [vmem:[%s1297 + $0x68] sm:$0xff]
    %v1312 = vld [vmem:[%s1297 + $0x70] sm:$0xff]
    %v1313 = vld [vmem:[%s1297 + $0x78] sm:$0xff]
    %v1315 = vrot.slane %v850, 2
    %1317 = vmatprep.subr.mxu0 0.0
    %1318 = vmatpush1.msra.mxu0 %v1298
    %1319 = vmatprep.subr.mxu0 0.0
    %1320 = vmatpush1.msra.mxu0 %v1299
    %1321 = vmatprep.subr.mxu0 0.0
    %1322 = vmatpush1.msra.mxu0 %v1300
    %1323 = vmatprep.subr.mxu0 0.0
    %1324 = vmatpush1.msra.mxu0 %v1301
    %1325 = vmatprep.subr.mxu0 0.0
    %1326 = vmatpush1.msra.mxu0 %v1302
    %1327 = vmatprep.subr.mxu0 0.0
    %1328 = vmatpush1.msra.mxu0 %v1303
    %1329 = vmatprep.subr.mxu0 0.0
    %1330 = vmatpush1.msra.mxu0 %v1304
    %1331 = vmatprep.subr.mxu0 0.0
    %1332 = vmatpush1.msra.mxu0 %v1305
    %1333 = vmatprep.subr.mxu0 0.0
    %1334 = vmatpush1.msra.mxu0 %v1306
    %1335 = vmatprep.subr.mxu0 0.0
    %1336 = vmatpush1.msra.mxu0 %v1307
    %1337 = vmatprep.subr.mxu0 0.0
    %1338 = vmatpush1.msra.mxu0 %v1308
    %1339 = vmatprep.subr.mxu0 0.0
    %1340 = vmatpush1.msra.mxu0 %v1309
    %1341 = vmatprep.subr.mxu0 0.0
    %1342 = vmatpush1.msra.mxu0 %v1310
    %1343 = vmatprep.subr.mxu0 0.0
    %1344 = vmatpush1.msra.mxu0 %v1311
    %1345 = vmatprep.subr.mxu0 0.0
    %1346 = vmatpush1.msra.mxu0 %v1312
    %1347 = vmatprep.subr.mxu0 0.0
    %1348 = vmatpush1.msra.mxu0 %v1313
    %1349 = vmatprep.subr.mxu0 0.0
    %1350 = vmatpush1.msra.mxu0 0.0
    %1351 = vmatprep.subr.mxu0 0.0
    %1352 = vmatpush1.msra.mxu0 0.0
    %1353 = vmatprep.subr.mxu0 0.0
    %1354 = vmatpush1.msra.mxu0 0.0
    %1355 = vmatprep.subr.mxu0 0.0
    %1356 = vmatpush1.msra.mxu0 0.0
    %1357 = vmatprep.subr.mxu0 0.0
    %1358 = vmatpush1.msra.mxu0 0.0
    %1359 = vmatprep.subr.mxu0 0.0
    %1360 = vmatpush1.msra.mxu0 0.0
    %1361 = vmatprep.subr.mxu0 0.0
    %1362 = vmatpush1.msra.mxu0 0.0
    %1363 = vmatprep.subr.mxu0 0.0
    %1364 = vmatpush1.msra.mxu0 0.0
    %1365 = vmatprep.subr.mxu0 0.0
    %1366 = vmatpush1.msra.mxu0 0.0
    %1367 = vmatprep.subr.mxu0 0.0
    %1368 = vmatpush1.msra.mxu0 0.0
    %1369 = vmatprep.subr.mxu0 0.0
    %1370 = vmatpush1.msra.mxu0 0.0
    %1371 = vmatprep.subr.mxu0 0.0
    %1372 = vmatpush1.msra.mxu0 0.0
    %1373 = vmatprep.subr.mxu0 0.0
    %1374 = vmatpush1.msra.mxu0 0.0
    %1375 = vmatprep.subr.mxu0 0.0
    %1376 = vmatpush1.msra.mxu0 0.0
    %1377 = vmatprep.subr.mxu0 0.0
    %1378 = vmatpush1.msra.mxu0 0.0
    %1379 = vmatprep.subr.mxu0 0.0
    %1380 = vmatpush1.msra.mxu0 0.0
    %1381 = vmatprep.mubr.f32.mxu0 0.0
    %1382 = vmatmul.mubr.f32.gmra.mrb[0].mxu0 %v1315
    %v1383 = vpop.f32.mrb[0].mxu0
    %v1384 = vadd.f32 0.0, %v1383
    %v1385 = vpop.f32.mrb[0].mxu0
    %1386 = vdwg.mxu0
    %v1387 = vadd.f32 %v1296, %v1384
    %s1388 = scalar_lea.vmem %s3, 768
    %v1389 = vld [vmem:[%s1388] sm:$0xff]
    %v1390 = vld [vmem:[%s1388 + $0x8] sm:$0xff]
    %v1391 = vld [vmem:[%s1388 + $0x10] sm:$0xff]
    %v1392 = vld [vmem:[%s1388 + $0x18] sm:$0xff]
    %v1393 = vld [vmem:[%s1388 + $0x20] sm:$0xff]
    %v1394 = vld [vmem:[%s1388 + $0x28] sm:$0xff]
    %v1395 = vld [vmem:[%s1388 + $0x30] sm:$0xff]
    %v1396 = vld [vmem:[%s1388 + $0x38] sm:$0xff]
    %v1397 = vld [vmem:[%s1388 + $0x40] sm:$0xff]
    %v1398 = vld [vmem:[%s1388 + $0x48] sm:$0xff]
    %v1399 = vld [vmem:[%s1388 + $0x50] sm:$0xff]
    %v1400 = vld [vmem:[%s1388 + $0x58] sm:$0xff]
    %v1401 = vld [vmem:[%s1388 + $0x60] sm:$0xff]
    %v1402 = vld [vmem:[%s1388 + $0x68] sm:$0xff]
    %v1403 = vld [vmem:[%s1388 + $0x70] sm:$0xff]
    %v1404 = vld [vmem:[%s1388 + $0x78] sm:$0xff]
    %v1405 = vrot.slane %v850, 4
    %1407 = vmatprep.subr.mxu0 0.0
    %1408 = vmatpush1.msra.mxu0 %v1389
    %1409 = vmatprep.subr.mxu0 0.0
    %1410 = vmatpush1.msra.mxu0 %v1390
    %1411 = vmatprep.subr.mxu0 0.0
    %1412 = vmatpush1.msra.mxu0 %v1391
    %1413 = vmatprep.subr.mxu0 0.0
    %1414 = vmatpush1.msra.mxu0 %v1392
    %1415 = vmatprep.subr.mxu0 0.0
    %1416 = vmatpush1.msra.mxu0 %v1393
    %1417 = vmatprep.subr.mxu0 0.0
    %1418 = vmatpush1.msra.mxu0 %v1394
    %1419 = vmatprep.subr.mxu0 0.0
    %1420 = vmatpush1.msra.mxu0 %v1395
    %1421 = vmatprep.subr.mxu0 0.0
    %1422 = vmatpush1.msra.mxu0 %v1396
    %1423 = vmatprep.subr.mxu0 0.0
    %1424 = vmatpush1.msra.mxu0 %v1397
    %1425 = vmatprep.subr.mxu0 0.0
    %1426 = vmatpush1.msra.mxu0 %v1398
    %1427 = vmatprep.subr.mxu0 0.0
    %1428 = vmatpush1.msra.mxu0 %v1399
    %1429 = vmatprep.subr.mxu0 0.0
    %1430 = vmatpush1.msra.mxu0 %v1400
    %1431 = vmatprep.subr.mxu0 0.0
    %1432 = vmatpush1.msra.mxu0 %v1401
    %1433 = vmatprep.subr.mxu0 0.0
    %1434 = vmatpush1.msra.mxu0 %v1402
    %1435 = vmatprep.subr.mxu0 0.0
    %1436 = vmatpush1.msra.mxu0 %v1403
    %1437 = vmatprep.subr.mxu0 0.0
    %1438 = vmatpush1.msra.mxu0 %v1404
    %1439 = vmatprep.subr.mxu0 0.0
    %1440 = vmatpush1.msra.mxu0 0.0
    %1441 = vmatprep.subr.mxu0 0.0
    %1442 = vmatpush1.msra.mxu0 0.0
    %1443 = vmatprep.subr.mxu0 0.0
    %1444 = vmatpush1.msra.mxu0 0.0
    %1445 = vmatprep.subr.mxu0 0.0
    %1446 = vmatpush1.msra.mxu0 0.0
    %1447 = vmatprep.subr.mxu0 0.0
    %1448 = vmatpush1.msra.mxu0 0.0
    %1449 = vmatprep.subr.mxu0 0.0
    %1450 = vmatpush1.msra.mxu0 0.0
    %1451 = vmatprep.subr.mxu0 0.0
    %1452 = vmatpush1.msra.mxu0 0.0
    %1453 = vmatprep.subr.mxu0 0.0
    %1454 = vmatpush1.msra.mxu0 0.0
    %1455 = vmatprep.subr.mxu0 0.0
    %1456 = vmatpush1.msra.mxu0 0.0
    %1457 = vmatprep.subr.mxu0 0.0
    %1458 = vmatpush1.msra.mxu0 0.0
    %1459 = vmatprep.subr.mxu0 0.0
    %1460 = vmatpush1.msra.mxu0 0.0
    %1461 = vmatprep.subr.mxu0 0.0
    %1462 = vmatpush1.msra.mxu0 0.0
    %1463 = vmatprep.subr.mxu0 0.0
    %1464 = vmatpush1.msra.mxu0 0.0
    %1465 = vmatprep.subr.mxu0 0.0
    %1466 = vmatpush1.msra.mxu0 0.0
    %1467 = vmatprep.subr.mxu0 0.0
    %1468 = vmatpush1.msra.mxu0 0.0
    %1469 = vmatprep.subr.mxu0 0.0
    %1470 = vmatpush1.msra.mxu0 0.0
    %1471 = vmatprep.mubr.f32.mxu0 0.0
    %1472 = vmatmul.mubr.f32.gmra.mrb[0].mxu0 %v1405
    %v1473 = vpop.f32.mrb[0].mxu0
    %v1474 = vadd.f32 0.0, %v1473
    %v1475 = vpop.f32.mrb[0].mxu0
    %1476 = vdwg.mxu0
    %v1477 = vadd.f32 %v1387, %v1474
    %s1478 = scalar_lea.vmem %s3, 896
    %v1479 = vld [vmem:[%s1478] sm:$0xff]
    %v1480 = vld [vmem:[%s1478 + $0x8] sm:$0xff]
    %v1481 = vld [vmem:[%s1478 + $0x10] sm:$0xff]
    %v1482 = vld [vmem:[%s1478 + $0x18] sm:$0xff]
    %v1483 = vld [vmem:[%s1478 + $0x20] sm:$0xff]
    %v1484 = vld [vmem:[%s1478 + $0x28] sm:$0xff]
    %v1485 = vld [vmem:[%s1478 + $0x30] sm:$0xff]
    %v1486 = vld [vmem:[%s1478 + $0x38] sm:$0xff]
    %v1487 = vld [vmem:[%s1478 + $0x40] sm:$0xff]
    %v1488 = vld [vmem:[%s1478 + $0x48] sm:$0xff]
    %v1489 = vld [vmem:[%s1478 + $0x50] sm:$0xff]
    %v1490 = vld [vmem:[%s1478 + $0x58] sm:$0xff]
    %v1491 = vld [vmem:[%s1478 + $0x60] sm:$0xff]
    %v1492 = vld [vmem:[%s1478 + $0x68] sm:$0xff]
    %v1493 = vld [vmem:[%s1478 + $0x70] sm:$0xff]
    %v1494 = vld [vmem:[%s1478 + $0x78] sm:$0xff]
    %v1495 = vrot.slane %v850, 6
    %1497 = vmatprep.subr.mxu0 0.0
    %1498 = vmatpush1.msra.mxu0 %v1479
    %1499 = vmatprep.subr.mxu0 0.0
    %1500 = vmatpush1.msra.mxu0 %v1480
    %1501 = vmatprep.subr.mxu0 0.0
    %1502 = vmatpush1.msra.mxu0 %v1481
    %1503 = vmatprep.subr.mxu0 0.0
    %1504 = vmatpush1.msra.mxu0 %v1482
    %1505 = vmatprep.subr.mxu0 0.0
    %1506 = vmatpush1.msra.mxu0 %v1483
    %1507 = vmatprep.subr.mxu0 0.0
    %1508 = vmatpush1.msra.mxu0 %v1484
    %1509 = vmatprep.subr.mxu0 0.0
    %1510 = vmatpush1.msra.mxu0 %v1485
    %1511 = vmatprep.subr.mxu0 0.0
    %1512 = vmatpush1.msra.mxu0 %v1486
    %1513 = vmatprep.subr.mxu0 0.0
    %1514 = vmatpush1.msra.mxu0 %v1487
    %1515 = vmatprep.subr.mxu0 0.0
    %1516 = vmatpush1.msra.mxu0 %v1488
    %1517 = vmatprep.subr.mxu0 0.0
    %1518 = vmatpush1.msra.mxu0 %v1489
    %1519 = vmatprep.subr.mxu0 0.0
    %1520 = vmatpush1.msra.mxu0 %v1490
    %1521 = vmatprep.subr.mxu0 0.0
    %1522 = vmatpush1.msra.mxu0 %v1491
    %1523 = vmatprep.subr.mxu0 0.0
    %1524 = vmatpush1.msra.mxu0 %v1492
    %1525 = vmatprep.subr.mxu0 0.0
    %1526 = vmatpush1.msra.mxu0 %v1493
    %1527 = vmatprep.subr.mxu0 0.0
    %1528 = vmatpush1.msra.mxu0 %v1494
    %1529 = vmatprep.subr.mxu0 0.0
    %1530 = vmatpush1.msra.mxu0 0.0
    %1531 = vmatprep.subr.mxu0 0.0
    %1532 = vmatpush1.msra.mxu0 0.0
    %1533 = vmatprep.subr.mxu0 0.0
    %1534 = vmatpush1.msra.mxu0 0.0
    %1535 = vmatprep.subr.mxu0 0.0
    %1536 = vmatpush1.msra.mxu0 0.0
    %1537 = vmatprep.subr.mxu0 0.0
    %1538 = vmatpush1.msra.mxu0 0.0
    %1539 = vmatprep.subr.mxu0 0.0
    %1540 = vmatpush1.msra.mxu0 0.0
    %1541 = vmatprep.subr.mxu0 0.0
    %1542 = vmatpush1.msra.mxu0 0.0
    %1543 = vmatprep.subr.mxu0 0.0
    %1544 = vmatpush1.msra.mxu0 0.0
    %1545 = vmatprep.subr.mxu0 0.0
    %1546 = vmatpush1.msra.mxu0 0.0
    %1547 = vmatprep.subr.mxu0 0.0
    %1548 = vmatpush1.msra.mxu0 0.0
    %1549 = vmatprep.subr.mxu0 0.0
    %1550 = vmatpush1.msra.mxu0 0.0
    %1551 = vmatprep.subr.mxu0 0.0
    %1552 = vmatpush1.msra.mxu0 0.0
    %1553 = vmatprep.subr.mxu0 0.0
    %1554 = vmatpush1.msra.mxu0 0.0
    %1555 = vmatprep.subr.mxu0 0.0
    %1556 = vmatpush1.msra.mxu0 0.0
    %1557 = vmatprep.subr.mxu0 0.0
    %1558 = vmatpush1.msra.mxu0 0.0
    %1559 = vmatprep.subr.mxu0 0.0
    %1560 = vmatpush1.msra.mxu0 0.0
    %1561 = vmatprep.mubr.f32.mxu0 0.0
    %1562 = vmatmul.mubr.f32.gmra.mrb[0].mxu0 %v1495
    %v1563 = vpop.f32.mrb[0].mxu0
    %v1564 = vadd.f32 0.0, %v1563
    %v1565 = vpop.f32.mrb[0].mxu0
    %1566 = vdwg.mxu0
    %v1567 = vadd.f32 %v1477, %v1564
    %s1568 = scalar_lea.vmem %s3, 1024
    %v1569 = vld [vmem:[%s1568] sm:$0xff]
    %v1570 = vld [vmem:[%s1568 + $0x8] sm:$0xff]
    %v1571 = vld [vmem:[%s1568 + $0x10] sm:$0xff]
    %v1572 = vld [vmem:[%s1568 + $0x18] sm:$0xff]
    %v1573 = vld [vmem:[%s1568 + $0x20] sm:$0xff]
    %v1574 = vld [vmem:[%s1568 + $0x28] sm:$0xff]
    %v1575 = vld [vmem:[%s1568 + $0x30] sm:$0xff]
    %v1576 = vld [vmem:[%s1568 + $0x38] sm:$0xff]
    %v1577 = vld [vmem:[%s1568 + $0x40] sm:$0xff]
    %v1578 = vld [vmem:[%s1568 + $0x48] sm:$0xff]
    %v1579 = vld [vmem:[%s1568 + $0x50] sm:$0xff]
    %v1580 = vld [vmem:[%s1568 + $0x58] sm:$0xff]
    %v1581 = vld [vmem:[%s1568 + $0x60] sm:$0xff]
    %v1582 = vld [vmem:[%s1568 + $0x68] sm:$0xff]
    %v1583 = vld [vmem:[%s1568 + $0x70] sm:$0xff]
    %v1584 = vld [vmem:[%s1568 + $0x78] sm:$0xff]
    %1585 = vmatprep.subr.mxu0 0.0
    %1586 = vmatpush1.msra.mxu0 %v1569
    %1587 = vmatprep.subr.mxu0 0.0
    %1588 = vmatpush1.msra.mxu0 %v1570
    %1589 = vmatprep.subr.mxu0 0.0
    %1590 = vmatpush1.msra.mxu0 %v1571
    %1591 = vmatprep.subr.mxu0 0.0
    %1592 = vmatpush1.msra.mxu0 %v1572
    %1593 = vmatprep.subr.mxu0 0.0
    %1594 = vmatpush1.msra.mxu0 %v1573
    %1595 = vmatprep.subr.mxu0 0.0
    %1596 = vmatpush1.msra.mxu0 %v1574
    %1597 = vmatprep.subr.mxu0 0.0
    %1598 = vmatpush1.msra.mxu0 %v1575
    %1599 = vmatprep.subr.mxu0 0.0
    %1600 = vmatpush1.msra.mxu0 %v1576
    %1601 = vmatprep.subr.mxu0 0.0
    %1602 = vmatpush1.msra.mxu0 %v1577
    %1603 = vmatprep.subr.mxu0 0.0
    %1604 = vmatpush1.msra.mxu0 %v1578
    %1605 = vmatprep.subr.mxu0 0.0
    %1606 = vmatpush1.msra.mxu0 %v1579
    %1607 = vmatprep.subr.mxu0 0.0
    %1608 = vmatpush1.msra.mxu0 %v1580
    %1609 = vmatprep.subr.mxu0 0.0
    %1610 = vmatpush1.msra.mxu0 %v1581
    %1611 = vmatprep.subr.mxu0 0.0
    %1612 = vmatpush1.msra.mxu0 %v1582
    %1613 = vmatprep.subr.mxu0 0.0
    %1614 = vmatpush1.msra.mxu0 %v1583
    %1615 = vmatprep.subr.mxu0 0.0
    %1616 = vmatpush1.msra.mxu0 %v1584
    %1617 = vmatprep.subr.mxu0 0.0
    %1618 = vmatpush1.msra.mxu0 0.0
    %1619 = vmatprep.subr.mxu0 0.0
    %1620 = vmatpush1.msra.mxu0 0.0
    %1621 = vmatprep.subr.mxu0 0.0
    %1622 = vmatpush1.msra.mxu0 0.0
    %1623 = vmatprep.subr.mxu0 0.0
    %1624 = vmatpush1.msra.mxu0 0.0
    %1625 = vmatprep.subr.mxu0 0.0
    %1626 = vmatpush1.msra.mxu0 0.0
    %1627 = vmatprep.subr.mxu0 0.0
    %1628 = vmatpush1.msra.mxu0 0.0
    %1629 = vmatprep.subr.mxu0 0.0
    %1630 = vmatpush1.msra.mxu0 0.0
    %1631 = vmatprep.subr.mxu0 0.0
    %1632 = vmatpush1.msra.mxu0 0.0
    %1633 = vmatprep.subr.mxu0 0.0
    %1634 = vmatpush1.msra.mxu0 0.0
    %1635 = vmatprep.subr.mxu0 0.0
    %1636 = vmatpush1.msra.mxu0 0.0
    %1637 = vmatprep.subr.mxu0 0.0
    %1638 = vmatpush1.msra.mxu0 0.0
    %1639 = vmatprep.subr.mxu0 0.0
    %1640 = vmatpush1.msra.mxu0 0.0
    %1641 = vmatprep.subr.mxu0 0.0
    %1642 = vmatpush1.msra.mxu0 0.0
    %1643 = vmatprep.subr.mxu0 0.0
    %1644 = vmatpush1.msra.mxu0 0.0
    %1645 = vmatprep.subr.mxu0 0.0
    %1646 = vmatpush1.msra.mxu0 0.0
    %1647 = vmatprep.subr.mxu0 0.0
    %1648 = vmatpush1.msra.mxu0 0.0
    %1649 = vmatprep.mubr.f32.mxu0 0.0
    %1650 = vmatmul.mubr.f32.gmra.mrb[0].mxu0 %v851
    %v1651 = vpop.f32.mrb[0].mxu0
    %v1652 = vadd.f32 0.0, %v1651
    %v1653 = vpop.f32.mrb[0].mxu0
    %1654 = vdwg.mxu0
    %v1655 = vadd.f32 %v1567, %v1652
    %s1656 = scalar_lea.vmem %s3, 1152
    %v1657 = vld [vmem:[%s1656] sm:$0xff]
    %v1658 = vld [vmem:[%s1656 + $0x8] sm:$0xff]
    %v1659 = vld [vmem:[%s1656 + $0x10] sm:$0xff]
    %v1660 = vld [vmem:[%s1656 + $0x18] sm:$0xff]
    %v1661 = vld [vmem:[%s1656 + $0x20] sm:$0xff]
    %v1662 = vld [vmem:[%s1656 + $0x28] sm:$0xff]
    %v1663 = vld [vmem:[%s1656 + $0x30] sm:$0xff]
    %v1664 = vld [vmem:[%s1656 + $0x38] sm:$0xff]
    %v1665 = vld [vmem:[%s1656 + $0x40] sm:$0xff]
    %v1666 = vld [vmem:[%s1656 + $0x48] sm:$0xff]
    %v1667 = vld [vmem:[%s1656 + $0x50] sm:$0xff]
    %v1668 = vld [vmem:[%s1656 + $0x58] sm:$0xff]
    %v1669 = vld [vmem:[%s1656 + $0x60] sm:$0xff]
    %v1670 = vld [vmem:[%s1656 + $0x68] sm:$0xff]
    %v1671 = vld [vmem:[%s1656 + $0x70] sm:$0xff]
    %v1672 = vld [vmem:[%s1656 + $0x78] sm:$0xff]
    %v1674 = vrot.slane %v851, 2
    %1676 = vmatprep.subr.mxu0 0.0
    %1677 = vmatpush1.msra.mxu0 %v1657
    %1678 = vmatprep.subr.mxu0 0.0
    %1679 = vmatpush1.msra.mxu0 %v1658
    %1680 = vmatprep.subr.mxu0 0.0
    %1681 = vmatpush1.msra.mxu0 %v1659
    %1682 = vmatprep.subr.mxu0 0.0
    %1683 = vmatpush1.msra.mxu0 %v1660
    %1684 = vmatprep.subr.mxu0 0.0
    %1685 = vmatpush1.msra.mxu0 %v1661
    %1686 = vmatprep.subr.mxu0 0.0
    %1687 = vmatpush1.msra.mxu0 %v1662
    %1688 = vmatprep.subr.mxu0 0.0
    %1689 = vmatpush1.msra.mxu0 %v1663
    %1690 = vmatprep.subr.mxu0 0.0
    %1691 = vmatpush1.msra.mxu0 %v1664
    %1692 = vmatprep.subr.mxu0 0.0
    %1693 = vmatpush1.msra.mxu0 %v1665
    %1694 = vmatprep.subr.mxu0 0.0
    %1695 = vmatpush1.msra.mxu0 %v1666
    %1696 = vmatprep.subr.mxu0 0.0
    %1697 = vmatpush1.msra.mxu0 %v1667
    %1698 = vmatprep.subr.mxu0 0.0
    %1699 = vmatpush1.msra.mxu0 %v1668
    %1700 = vmatprep.subr.mxu0 0.0
    %1701 = vmatpush1.msra.mxu0 %v1669
    %1702 = vmatprep.subr.mxu0 0.0
    %1703 = vmatpush1.msra.mxu0 %v1670
    %1704 = vmatprep.subr.mxu0 0.0
    %1705 = vmatpush1.msra.mxu0 %v1671
    %1706 = vmatprep.subr.mxu0 0.0
    %1707 = vmatpush1.msra.mxu0 %v1672
    %1708 = vmatprep.subr.mxu0 0.0
    %1709 = vmatpush1.msra.mxu0 0.0
    %1710 = vmatprep.subr.mxu0 0.0
    %1711 = vmatpush1.msra.mxu0 0.0
    %1712 = vmatprep.subr.mxu0 0.0
    %1713 = vmatpush1.msra.mxu0 0.0
    %1714 = vmatprep.subr.mxu0 0.0
    %1715 = vmatpush1.msra.mxu0 0.0
    %1716 = vmatprep.subr.mxu0 0.0
    %1717 = vmatpush1.msra.mxu0 0.0
    %1718 = vmatprep.subr.mxu0 0.0
    %1719 = vmatpush1.msra.mxu0 0.0
    %1720 = vmatprep.subr.mxu0 0.0
    %1721 = vmatpush1.msra.mxu0 0.0
    %1722 = vmatprep.subr.mxu0 0.0
    %1723 = vmatpush1.msra.mxu0 0.0
    %1724 = vmatprep.subr.mxu0 0.0
    %1725 = vmatpush1.msra.mxu0 0.0
    %1726 = vmatprep.subr.mxu0 0.0
    %1727 = vmatpush1.msra.mxu0 0.0
    %1728 = vmatprep.subr.mxu0 0.0
    %1729 = vmatpush1.msra.mxu0 0.0
    %1730 = vmatprep.subr.mxu0 0.0
    %1731 = vmatpush1.msra.mxu0 0.0
    %1732 = vmatprep.subr.mxu0 0.0
    %1733 = vmatpush1.msra.mxu0 0.0
    %1734 = vmatprep.subr.mxu0 0.0
    %1735 = vmatpush1.msra.mxu0 0.0
    %1736 = vmatprep.subr.mxu0 0.0
    %1737 = vmatpush1.msra.mxu0 0.0
    %1738 = vmatprep.subr.mxu0 0.0
    %1739 = vmatpush1.msra.mxu0 0.0
    %1740 = vmatprep.mubr.f32.mxu0 0.0
    %1741 = vmatmul.mubr.f32.gmra.mrb[0].mxu0 %v1674
    %v1742 = vpop.f32.mrb[0].mxu0
    %v1743 = vadd.f32 0.0, %v1742
    %v1744 = vpop.f32.mrb[0].mxu0
    %1745 = vdwg.mxu0
    %v1746 = vadd.f32 %v1655, %v1743
    %s1747 = scalar_lea.vmem %s3, 1280
    %v1748 = vld [vmem:[%s1747] sm:$0xff]
    %v1749 = vld [vmem:[%s1747 + $0x8] sm:$0xff]
    %v1750 = vld [vmem:[%s1747 + $0x10] sm:$0xff]
    %v1751 = vld [vmem:[%s1747 + $0x18] sm:$0xff]
    %v1752 = vld [vmem:[%s1747 + $0x20] sm:$0xff]
    %v1753 = vld [vmem:[%s1747 + $0x28] sm:$0xff]
    %v1754 = vld [vmem:[%s1747 + $0x30] sm:$0xff]
    %v1755 = vld [vmem:[%s1747 + $0x38] sm:$0xff]
    %v1756 = vld [vmem:[%s1747 + $0x40] sm:$0xff]
    %v1757 = vld [vmem:[%s1747 + $0x48] sm:$0xff]
    %v1758 = vld [vmem:[%s1747 + $0x50] sm:$0xff]
    %v1759 = vld [vmem:[%s1747 + $0x58] sm:$0xff]
    %v1760 = vld [vmem:[%s1747 + $0x60] sm:$0xff]
    %v1761 = vld [vmem:[%s1747 + $0x68] sm:$0xff]
    %v1762 = vld [vmem:[%s1747 + $0x70] sm:$0xff]
    %v1763 = vld [vmem:[%s1747 + $0x78] sm:$0xff]
    %v1764 = vrot.slane %v851, 4
    %1766 = vmatprep.subr.mxu0 0.0
    %1767 = vmatpush1.msra.mxu0 %v1748
    %1768 = vmatprep.subr.mxu0 0.0
    %1769 = vmatpush1.msra.mxu0 %v1749
    %1770 = vmatprep.subr.mxu0 0.0
    %1771 = vmatpush1.msra.mxu0 %v1750
    %1772 = vmatprep.subr.mxu0 0.0
    %1773 = vmatpush1.msra.mxu0 %v1751
    %1774 = vmatprep.subr.mxu0 0.0
    %1775 = vmatpush1.msra.mxu0 %v1752
    %1776 = vmatprep.subr.mxu0 0.0
    %1777 = vmatpush1.msra.mxu0 %v1753
    %1778 = vmatprep.subr.mxu0 0.0
    %1779 = vmatpush1.msra.mxu0 %v1754
    %1780 = vmatprep.subr.mxu0 0.0
    %1781 = vmatpush1.msra.mxu0 %v1755
    %1782 = vmatprep.subr.mxu0 0.0
    %1783 = vmatpush1.msra.mxu0 %v1756
    %1784 = vmatprep.subr.mxu0 0.0
    %1785 = vmatpush1.msra.mxu0 %v1757
    %1786 = vmatprep.subr.mxu0 0.0
    %1787 = vmatpush1.msra.mxu0 %v1758
    %1788 = vmatprep.subr.mxu0 0.0
    %1789 = vmatpush1.msra.mxu0 %v1759
    %1790 = vmatprep.subr.mxu0 0.0
    %1791 = vmatpush1.msra.mxu0 %v1760
    %1792 = vmatprep.subr.mxu0 0.0
    %1793 = vmatpush1.msra.mxu0 %v1761
    %1794 = vmatprep.subr.mxu0 0.0
    %1795 = vmatpush1.msra.mxu0 %v1762
    %1796 = vmatprep.subr.mxu0 0.0
    %1797 = vmatpush1.msra.mxu0 %v1763
    %1798 = vmatprep.subr.mxu0 0.0
    %1799 = vmatpush1.msra.mxu0 0.0
    %1800 = vmatprep.subr.mxu0 0.0
    %1801 = vmatpush1.msra.mxu0 0.0
    %1802 = vmatprep.subr.mxu0 0.0
    %1803 = vmatpush1.msra.mxu0 0.0
    %1804 = vmatprep.subr.mxu0 0.0
    %1805 = vmatpush1.msra.mxu0 0.0
    %1806 = vmatprep.subr.mxu0 0.0
    %1807 = vmatpush1.msra.mxu0 0.0
    %1808 = vmatprep.subr.mxu0 0.0
    %1809 = vmatpush1.msra.mxu0 0.0
    %1810 = vmatprep.subr.mxu0 0.0
    %1811 = vmatpush1.msra.mxu0 0.0
    %1812 = vmatprep.subr.mxu0 0.0
    %1813 = vmatpush1.msra.mxu0 0.0
    %1814 = vmatprep.subr.mxu0 0.0
    %1815 = vmatpush1.msra.mxu0 0.0
    %1816 = vmatprep.subr.mxu0 0.0
    %1817 = vmatpush1.msra.mxu0 0.0
    %1818 = vmatprep.subr.mxu0 0.0
    %1819 = vmatpush1.msra.mxu0 0.0
    %1820 = vmatprep.subr.mxu0 0.0
    %1821 = vmatpush1.msra.mxu0 0.0
    %1822 = vmatprep.subr.mxu0 0.0
    %1823 = vmatpush1.msra.mxu0 0.0
    %1824 = vmatprep.subr.mxu0 0.0
    %1825 = vmatpush1.msra.mxu0 0.0
    %1826 = vmatprep.subr.mxu0 0.0
    %1827 = vmatpush1.msra.mxu0 0.0
    %1828 = vmatprep.subr.mxu0 0.0
    %1829 = vmatpush1.msra.mxu0 0.0
    %1830 = vmatprep.mubr.f32.mxu0 0.0
    %1831 = vmatmul.mubr.f32.gmra.mrb[0].mxu0 %v1764
    %v1832 = vpop.f32.mrb[0].mxu0
    %v1833 = vadd.f32 0.0, %v1832
    %v1834 = vpop.f32.mrb[0].mxu0
    %1835 = vdwg.mxu0
    %v1836 = vadd.f32 %v1746, %v1833
    %s1837 = scalar_lea.vmem %s3, 1408
    %v1838 = vld [vmem:[%s1837] sm:$0xff]
    %v1839 = vld [vmem:[%s1837 + $0x8] sm:$0xff]
    %v1840 = vld [vmem:[%s1837 + $0x10] sm:$0xff]
    %v1841 = vld [vmem:[%s1837 + $0x18] sm:$0xff]
    %v1842 = vld [vmem:[%s1837 + $0x20] sm:$0xff]
    %v1843 = vld [vmem:[%s1837 + $0x28] sm:$0xff]
    %v1844 = vld [vmem:[%s1837 + $0x30] sm:$0xff]
    %v1845 = vld [vmem:[%s1837 + $0x38] sm:$0xff]
    %v1846 = vld [vmem:[%s1837 + $0x40] sm:$0xff]
    %v1847 = vld [vmem:[%s1837 + $0x48] sm:$0xff]
    %v1848 = vld [vmem:[%s1837 + $0x50] sm:$0xff]
    %v1849 = vld [vmem:[%s1837 + $0x58] sm:$0xff]
    %v1850 = vld [vmem:[%s1837 + $0x60] sm:$0xff]
    %v1851 = vld [vmem:[%s1837 + $0x68] sm:$0xff]
    %v1852 = vld [vmem:[%s1837 + $0x70] sm:$0xff]
    %v1853 = vld [vmem:[%s1837 + $0x78] sm:$0xff]
    %v1854 = vrot.slane %v851, 6
    %1856 = vmatprep.subr.mxu0 0.0
    %1857 = vmatpush1.msra.mxu0 %v1838
    %1858 = vmatprep.subr.mxu0 0.0
    %1859 = vmatpush1.msra.mxu0 %v1839
    %1860 = vmatprep.subr.mxu0 0.0
    %1861 = vmatpush1.msra.mxu0 %v1840
    %1862 = vmatprep.subr.mxu0 0.0
    %1863 = vmatpush1.msra.mxu0 %v1841
    %1864 = vmatprep.subr.mxu0 0.0
    %1865 = vmatpush1.msra.mxu0 %v1842
    %1866 = vmatprep.subr.mxu0 0.0
    %1867 = vmatpush1.msra.mxu0 %v1843
    %1868 = vmatprep.subr.mxu0 0.0
    %1869 = vmatpush1.msra.mxu0 %v1844
    %1870 = vmatprep.subr.mxu0 0.0
    %1871 = vmatpush1.msra.mxu0 %v1845
    %1872 = vmatprep.subr.mxu0 0.0
    %1873 = vmatpush1.msra.mxu0 %v1846
    %1874 = vmatprep.subr.mxu0 0.0
    %1875 = vmatpush1.msra.mxu0 %v1847
    %1876 = vmatprep.subr.mxu0 0.0
    %1877 = vmatpush1.msra.mxu0 %v1848
    %1878 = vmatprep.subr.mxu0 0.0
    %1879 = vmatpush1.msra.mxu0 %v1849
    %1880 = vmatprep.subr.mxu0 0.0
    %1881 = vmatpush1.msra.mxu0 %v1850
    %1882 = vmatprep.subr.mxu0 0.0
    %1883 = vmatpush1.msra.mxu0 %v1851
    %1884 = vmatprep.subr.mxu0 0.0
    %1885 = vmatpush1.msra.mxu0 %v1852
    %1886 = vmatprep.subr.mxu0 0.0
    %1887 = vmatpush1.msra.mxu0 %v1853
    %1888 = vmatprep.subr.mxu0 0.0
    %1889 = vmatpush1.msra.mxu0 0.0
    %1890 = vmatprep.subr.mxu0 0.0
    %1891 = vmatpush1.msra.mxu0 0.0
    %1892 = vmatprep.subr.mxu0 0.0
    %1893 = vmatpush1.msra.mxu0 0.0
    %1894 = vmatprep.subr.mxu0 0.0
    %1895 = vmatpush1.msra.mxu0 0.0
    %1896 = vmatprep.subr.mxu0 0.0
    %1897 = vmatpush1.msra.mxu0 0.0
    %1898 = vmatprep.subr.mxu0 0.0
    %1899 = vmatpush1.msra.mxu0 0.0
    %1900 = vmatprep.subr.mxu0 0.0
    %1901 = vmatpush1.msra.mxu0 0.0
    %1902 = vmatprep.subr.mxu0 0.0
    %1903 = vmatpush1.msra.mxu0 0.0
    %1904 = vmatprep.subr.mxu0 0.0
    %1905 = vmatpush1.msra.mxu0 0.0
    %1906 = vmatprep.subr.mxu0 0.0
    %1907 = vmatpush1.msra.mxu0 0.0
    %1908 = vmatprep.subr.mxu0 0.0
    %1909 = vmatpush1.msra.mxu0 0.0
    %1910 = vmatprep.subr.mxu0 0.0
    %1911 = vmatpush1.msra.mxu0 0.0
    %1912 = vmatprep.subr.mxu0 0.0
    %1913 = vmatpush1.msra.mxu0 0.0
    %1914 = vmatprep.subr.mxu0 0.0
    %1915 = vmatpush1.msra.mxu0 0.0
    %1916 = vmatprep.subr.mxu0 0.0
    %1917 = vmatpush1.msra.mxu0 0.0
    %1918 = vmatprep.subr.mxu0 0.0
    %1919 = vmatpush1.msra.mxu0 0.0
    %1920 = vmatprep.mubr.f32.mxu0 0.0
    %1921 = vmatmul.mubr.f32.gmra.mrb[0].mxu0 %v1854
    %v1922 = vpop.f32.mrb[0].mxu0
    %v1923 = vadd.f32 0.0, %v1922
    %v1924 = vpop.f32.mrb[0].mxu0
    %1925 = vdwg.mxu0
    %v1926 = vadd.f32 %v1836, %v1923
    %s1927 = scalar_lea.vmem %s3, 1536
    %v1928 = vld [vmem:[%s1927] sm:$0xff]
    %v1929 = vld [vmem:[%s1927 + $0x8] sm:$0xff]
    %v1930 = vld [vmem:[%s1927 + $0x10] sm:$0xff]
    %v1931 = vld [vmem:[%s1927 + $0x18] sm:$0xff]
    %v1932 = vld [vmem:[%s1927 + $0x20] sm:$0xff]
    %v1933 = vld [vmem:[%s1927 + $0x28] sm:$0xff]
    %v1934 = vld [vmem:[%s1927 + $0x30] sm:$0xff]
    %v1935 = vld [vmem:[%s1927 + $0x38] sm:$0xff]
    %v1936 = vld [vmem:[%s1927 + $0x40] sm:$0xff]
    %v1937 = vld [vmem:[%s1927 + $0x48] sm:$0xff]
    %v1938 = vld [vmem:[%s1927 + $0x50] sm:$0xff]
    %v1939 = vld [vmem:[%s1927 + $0x58] sm:$0xff]
    %v1940 = vld [vmem:[%s1927 + $0x60] sm:$0xff]
    %v1941 = vld [vmem:[%s1927 + $0x68] sm:$0xff]
    %v1942 = vld [vmem:[%s1927 + $0x70] sm:$0xff]
    %v1943 = vld [vmem:[%s1927 + $0x78] sm:$0xff]
    %1944 = vmatprep.subr.mxu0 0.0
    %1945 = vmatpush1.msra.mxu0 %v1928
    %1946 = vmatprep.subr.mxu0 0.0
    %1947 = vmatpush1.msra.mxu0 %v1929
    %1948 = vmatprep.subr.mxu0 0.0
    %1949 = vmatpush1.msra.mxu0 %v1930
    %1950 = vmatprep.subr.mxu0 0.0
    %1951 = vmatpush1.msra.mxu0 %v1931
    %1952 = vmatprep.subr.mxu0 0.0
    %1953 = vmatpush1.msra.mxu0 %v1932
    %1954 = vmatprep.subr.mxu0 0.0
    %1955 = vmatpush1.msra.mxu0 %v1933
    %1956 = vmatprep.subr.mxu0 0.0
    %1957 = vmatpush1.msra.mxu0 %v1934
    %1958 = vmatprep.subr.mxu0 0.0
    %1959 = vmatpush1.msra.mxu0 %v1935
    %1960 = vmatprep.subr.mxu0 0.0
    %1961 = vmatpush1.msra.mxu0 %v1936
    %1962 = vmatprep.subr.mxu0 0.0
    %1963 = vmatpush1.msra.mxu0 %v1937
    %1964 = vmatprep.subr.mxu0 0.0
    %1965 = vmatpush1.msra.mxu0 %v1938
    %1966 = vmatprep.subr.mxu0 0.0
    %1967 = vmatpush1.msra.mxu0 %v1939
    %1968 = vmatprep.subr.mxu0 0.0
    %1969 = vmatpush1.msra.mxu0 %v1940
    %1970 = vmatprep.subr.mxu0 0.0
    %1971 = vmatpush1.msra.mxu0 %v1941
    %1972 = vmatprep.subr.mxu0 0.0
    %1973 = vmatpush1.msra.mxu0 %v1942
    %1974 = vmatprep.subr.mxu0 0.0
    %1975 = vmatpush1.msra.mxu0 %v1943
    %1976 = vmatprep.subr.mxu0 0.0
    %1977 = vmatpush1.msra.mxu0 0.0
    %1978 = vmatprep.subr.mxu0 0.0
    %1979 = vmatpush1.msra.mxu0 0.0
    %1980 = vmatprep.subr.mxu0 0.0
    %1981 = vmatpush1.msra.mxu0 0.0
    %1982 = vmatprep.subr.mxu0 0.0
    %1983 = vmatpush1.msra.mxu0 0.0
    %1984 = vmatprep.subr.mxu0 0.0
    %1985 = vmatpush1.msra.mxu0 0.0
    %1986 = vmatprep.subr.mxu0 0.0
    %1987 = vmatpush1.msra.mxu0 0.0
    %1988 = vmatprep.subr.mxu0 0.0
    %1989 = vmatpush1.msra.mxu0 0.0
    %1990 = vmatprep.subr.mxu0 0.0
    %1991 = vmatpush1.msra.mxu0 0.0
    %1992 = vmatprep.subr.mxu0 0.0
    %1993 = vmatpush1.msra.mxu0 0.0
    %1994 = vmatprep.subr.mxu0 0.0
    %1995 = vmatpush1.msra.mxu0 0.0
    %1996 = vmatprep.subr.mxu0 0.0
    %1997 = vmatpush1.msra.mxu0 0.0
    %1998 = vmatprep.subr.mxu0 0.0
    %1999 = vmatpush1.msra.mxu0 0.0
    %2000 = vmatprep.subr.mxu0 0.0
    %2001 = vmatpush1.msra.mxu0 0.0
    %2002 = vmatprep.subr.mxu0 0.0
    %2003 = vmatpush1.msra.mxu0 0.0
    %2004 = vmatprep.subr.mxu0 0.0
    %2005 = vmatpush1.msra.mxu0 0.0
    %2006 = vmatprep.subr.mxu0 0.0
    %2007 = vmatpush1.msra.mxu0 0.0
    %2008 = vmatprep.mubr.f32.mxu0 0.0
    %2009 = vmatmul.mubr.f32.gmra.mrb[0].mxu0 %v852
    %v2010 = vpop.f32.mrb[0].mxu0
    %v2011 = vadd.f32 0.0, %v2010
    %v2012 = vpop.f32.mrb[0].mxu0
    %2013 = vdwg.mxu0
    %v2014 = vadd.f32 %v1926, %v2011
    %s2015 = scalar_lea.vmem %s3, 1664
    %v2016 = vld [vmem:[%s2015] sm:$0xff]
    %v2017 = vld [vmem:[%s2015 + $0x8] sm:$0xff]
    %v2018 = vld [vmem:[%s2015 + $0x10] sm:$0xff]
    %v2019 = vld [vmem:[%s2015 + $0x18] sm:$0xff]
    %v2020 = vld [vmem:[%s2015 + $0x20] sm:$0xff]
    %v2021 = vld [vmem:[%s2015 + $0x28] sm:$0xff]
    %v2022 = vld [vmem:[%s2015 + $0x30] sm:$0xff]
    %v2023 = vld [vmem:[%s2015 + $0x38] sm:$0xff]
    %v2024 = vld [vmem:[%s2015 + $0x40] sm:$0xff]
    %v2025 = vld [vmem:[%s2015 + $0x48] sm:$0xff]
    %v2026 = vld [vmem:[%s2015 + $0x50] sm:$0xff]
    %v2027 = vld [vmem:[%s2015 + $0x58] sm:$0xff]
    %v2028 = vld [vmem:[%s2015 + $0x60] sm:$0xff]
    %v2029 = vld [vmem:[%s2015 + $0x68] sm:$0xff]
    %v2030 = vld [vmem:[%s2015 + $0x70] sm:$0xff]
    %v2031 = vld [vmem:[%s2015 + $0x78] sm:$0xff]
    %v2033 = vrot.slane %v852, 2
    %2035 = vmatprep.subr.mxu0 0.0
    %2036 = vmatpush1.msra.mxu0 %v2016
    %2037 = vmatprep.subr.mxu0 0.0
    %2038 = vmatpush1.msra.mxu0 %v2017
    %2039 = vmatprep.subr.mxu0 0.0
    %2040 = vmatpush1.msra.mxu0 %v2018
    %2041 = vmatprep.subr.mxu0 0.0
    %2042 = vmatpush1.msra.mxu0 %v2019
    %2043 = vmatprep.subr.mxu0 0.0
    %2044 = vmatpush1.msra.mxu0 %v2020
    %2045 = vmatprep.subr.mxu0 0.0
    %2046 = vmatpush1.msra.mxu0 %v2021
    %2047 = vmatprep.subr.mxu0 0.0
    %2048 = vmatpush1.msra.mxu0 %v2022
    %2049 = vmatprep.subr.mxu0 0.0
    %2050 = vmatpush1.msra.mxu0 %v2023
    %2051 = vmatprep.subr.mxu0 0.0
    %2052 = vmatpush1.msra.mxu0 %v2024
    %2053 = vmatprep.subr.mxu0 0.0
    %2054 = vmatpush1.msra.mxu0 %v2025
    %2055 = vmatprep.subr.mxu0 0.0
    %2056 = vmatpush1.msra.mxu0 %v2026
    %2057 = vmatprep.subr.mxu0 0.0
    %2058 = vmatpush1.msra.mxu0 %v2027
    %2059 = vmatprep.subr.mxu0 0.0
    %2060 = vmatpush1.msra.mxu0 %v2028
    %2061 = vmatprep.subr.mxu0 0.0
    %2062 = vmatpush1.msra.mxu0 %v2029
    %2063 = vmatprep.subr.mxu0 0.0
    %2064 = vmatpush1.msra.mxu0 %v2030
    %2065 = vmatprep.subr.mxu0 0.0
    %2066 = vmatpush1.msra.mxu0 %v2031
    %2067 = vmatprep.subr.mxu0 0.0
    %2068 = vmatpush1.msra.mxu0 0.0
    %2069 = vmatprep.subr.mxu0 0.0
    %2070 = vmatpush1.msra.mxu0 0.0
    %2071 = vmatprep.subr.mxu0 0.0
    %2072 = vmatpush1.msra.mxu0 0.0
    %2073 = vmatprep.subr.mxu0 0.0
    %2074 = vmatpush1.msra.mxu0 0.0
    %2075 = vmatprep.subr.mxu0 0.0
    %2076 = vmatpush1.msra.mxu0 0.0
    %2077 = vmatprep.subr.mxu0 0.0
    %2078 = vmatpush1.msra.mxu0 0.0
    %2079 = vmatprep.subr.mxu0 0.0
    %2080 = vmatpush1.msra.mxu0 0.0
    %2081 = vmatprep.subr.mxu0 0.0
    %2082 = vmatpush1.msra.mxu0 0.0
    %2083 = vmatprep.subr.mxu0 0.0
    %2084 = vmatpush1.msra.mxu0 0.0
    %2085 = vmatprep.subr.mxu0 0.0
    %2086 = vmatpush1.msra.mxu0 0.0
    %2087 = vmatprep.subr.mxu0 0.0
    %2088 = vmatpush1.msra.mxu0 0.0
    %2089 = vmatprep.subr.mxu0 0.0
    %2090 = vmatpush1.msra.mxu0 0.0
    %2091 = vmatprep.subr.mxu0 0.0
    %2092 = vmatpush1.msra.mxu0 0.0
    %2093 = vmatprep.subr.mxu0 0.0
    %2094 = vmatpush1.msra.mxu0 0.0
    %2095 = vmatprep.subr.mxu0 0.0
    %2096 = vmatpush1.msra.mxu0 0.0
    %2097 = vmatprep.subr.mxu0 0.0
    %2098 = vmatpush1.msra.mxu0 0.0
    %2099 = vmatprep.mubr.f32.mxu0 0.0
    %2100 = vmatmul.mubr.f32.gmra.mrb[0].mxu0 %v2033
    %v2101 = vpop.f32.mrb[0].mxu0
    %v2102 = vadd.f32 0.0, %v2101
    %v2103 = vpop.f32.mrb[0].mxu0
    %2104 = vdwg.mxu0
    %v2105 = vadd.f32 %v2014, %v2102
    %s2106 = scalar_lea.vmem %s3, 1792
    %v2107 = vld [vmem:[%s2106] sm:$0xff]
    %v2108 = vld [vmem:[%s2106 + $0x8] sm:$0xff]
    %v2109 = vld [vmem:[%s2106 + $0x10] sm:$0xff]
    %v2110 = vld [vmem:[%s2106 + $0x18] sm:$0xff]
    %v2111 = vld [vmem:[%s2106 + $0x20] sm:$0xff]
    %v2112 = vld [vmem:[%s2106 + $0x28] sm:$0xff]
    %v2113 = vld [vmem:[%s2106 + $0x30] sm:$0xff]
    %v2114 = vld [vmem:[%s2106 + $0x38] sm:$0xff]
    %v2115 = vld [vmem:[%s2106 + $0x40] sm:$0xff]
    %v2116 = vld [vmem:[%s2106 + $0x48] sm:$0xff]
    %v2117 = vld [vmem:[%s2106 + $0x50] sm:$0xff]
    %v2118 = vld [vmem:[%s2106 + $0x58] sm:$0xff]
    %v2119 = vld [vmem:[%s2106 + $0x60] sm:$0xff]
    %v2120 = vld [vmem:[%s2106 + $0x68] sm:$0xff]
    %v2121 = vld [vmem:[%s2106 + $0x70] sm:$0xff]
    %v2122 = vld [vmem:[%s2106 + $0x78] sm:$0xff]
    %v2123 = vrot.slane %v852, 4
    %2125 = vmatprep.subr.mxu0 0.0
    %2126 = vmatpush1.msra.mxu0 %v2107
    %2127 = vmatprep.subr.mxu0 0.0
    %2128 = vmatpush1.msra.mxu0 %v2108
    %2129 = vmatprep.subr.mxu0 0.0
    %2130 = vmatpush1.msra.mxu0 %v2109
    %2131 = vmatprep.subr.mxu0 0.0
    %2132 = vmatpush1.msra.mxu0 %v2110
    %2133 = vmatprep.subr.mxu0 0.0
    %2134 = vmatpush1.msra.mxu0 %v2111
    %2135 = vmatprep.subr.mxu0 0.0
    %2136 = vmatpush1.msra.mxu0 %v2112
    %2137 = vmatprep.subr.mxu0 0.0
    %2138 = vmatpush1.msra.mxu0 %v2113
    %2139 = vmatprep.subr.mxu0 0.0
    %2140 = vmatpush1.msra.mxu0 %v2114
    %2141 = vmatprep.subr.mxu0 0.0
    %2142 = vmatpush1.msra.mxu0 %v2115
    %2143 = vmatprep.subr.mxu0 0.0
    %2144 = vmatpush1.msra.mxu0 %v2116
    %2145 = vmatprep.subr.mxu0 0.0
    %2146 = vmatpush1.msra.mxu0 %v2117
    %2147 = vmatprep.subr.mxu0 0.0
    %2148 = vmatpush1.msra.mxu0 %v2118
    %2149 = vmatprep.subr.mxu0 0.0
    %2150 = vmatpush1.msra.mxu0 %v2119
    %2151 = vmatprep.subr.mxu0 0.0
    %2152 = vmatpush1.msra.mxu0 %v2120
    %2153 = vmatprep.subr.mxu0 0.0
    %2154 = vmatpush1.msra.mxu0 %v2121
    %2155 = vmatprep.subr.mxu0 0.0
    %2156 = vmatpush1.msra.mxu0 %v2122
    %2157 = vmatprep.subr.mxu0 0.0
    %2158 = vmatpush1.msra.mxu0 0.0
    %2159 = vmatprep.subr.mxu0 0.0
    %2160 = vmatpush1.msra.mxu0 0.0
    %2161 = vmatprep.subr.mxu0 0.0
    %2162 = vmatpush1.msra.mxu0 0.0
    %2163 = vmatprep.subr.mxu0 0.0
    %2164 = vmatpush1.msra.mxu0 0.0
    %2165 = vmatprep.subr.mxu0 0.0
    %2166 = vmatpush1.msra.mxu0 0.0
    %2167 = vmatprep.subr.mxu0 0.0
    %2168 = vmatpush1.msra.mxu0 0.0
    %2169 = vmatprep.subr.mxu0 0.0
    %2170 = vmatpush1.msra.mxu0 0.0
    %2171 = vmatprep.subr.mxu0 0.0
    %2172 = vmatpush1.msra.mxu0 0.0
    %2173 = vmatprep.subr.mxu0 0.0
    %2174 = vmatpush1.msra.mxu0 0.0
    %2175 = vmatprep.subr.mxu0 0.0
    %2176 = vmatpush1.msra.mxu0 0.0
    %2177 = vmatprep.subr.mxu0 0.0
    %2178 = vmatpush1.msra.mxu0 0.0
    %2179 = vmatprep.subr.mxu0 0.0
    %2180 = vmatpush1.msra.mxu0 0.0
    %2181 = vmatprep.subr.mxu0 0.0
    %2182 = vmatpush1.msra.mxu0 0.0
    %2183 = vmatprep.subr.mxu0 0.0
    %2184 = vmatpush1.msra.mxu0 0.0
    %2185 = vmatprep.subr.mxu0 0.0
    %2186 = vmatpush1.msra.mxu0 0.0
    %2187 = vmatprep.subr.mxu0 0.0
    %2188 = vmatpush1.msra.mxu0 0.0
    %2189 = vmatprep.mubr.f32.mxu0 0.0
    %2190 = vmatmul.mubr.f32.gmra.mrb[0].mxu0 %v2123
    %v2191 = vpop.f32.mrb[0].mxu0
    %v2192 = vadd.f32 0.0, %v2191
    %v2193 = vpop.f32.mrb[0].mxu0
    %2194 = vdwg.mxu0
    %v2195 = vadd.f32 %v2105, %v2192
    %s2196 = scalar_lea.vmem %s3, 1920
    %v2197 = vld [vmem:[%s2196] sm:$0xff]
    %v2198 = vld [vmem:[%s2196 + $0x8] sm:$0xff]
    %v2199 = vld [vmem:[%s2196 + $0x10] sm:$0xff]
    %v2200 = vld [vmem:[%s2196 + $0x18] sm:$0xff]
    %v2201 = vld [vmem:[%s2196 + $0x20] sm:$0xff]
    %v2202 = vld [vmem:[%s2196 + $0x28] sm:$0xff]
    %v2203 = vld [vmem:[%s2196 + $0x30] sm:$0xff]
    %v2204 = vld [vmem:[%s2196 + $0x38] sm:$0xff]
    %v2205 = vld [vmem:[%s2196 + $0x40] sm:$0xff]
    %v2206 = vld [vmem:[%s2196 + $0x48] sm:$0xff]
    %v2207 = vld [vmem:[%s2196 + $0x50] sm:$0xff]
    %v2208 = vld [vmem:[%s2196 + $0x58] sm:$0xff]
    %v2209 = vld [vmem:[%s2196 + $0x60] sm:$0xff]
    %v2210 = vld [vmem:[%s2196 + $0x68] sm:$0xff]
    %v2211 = vld [vmem:[%s2196 + $0x70] sm:$0xff]
    %v2212 = vld [vmem:[%s2196 + $0x78] sm:$0xff]
    %v2213 = vrot.slane %v852, 6
    %2215 = vmatprep.subr.mxu0 0.0
    %2216 = vmatpush1.msra.mxu0 %v2197
    %2217 = vmatprep.subr.mxu0 0.0
    %2218 = vmatpush1.msra.mxu0 %v2198
    %2219 = vmatprep.subr.mxu0 0.0
    %2220 = vmatpush1.msra.mxu0 %v2199
    %2221 = vmatprep.subr.mxu0 0.0
    %2222 = vmatpush1.msra.mxu0 %v2200
    %2223 = vmatprep.subr.mxu0 0.0
    %2224 = vmatpush1.msra.mxu0 %v2201
    %2225 = vmatprep.subr.mxu0 0.0
    %2226 = vmatpush1.msra.mxu0 %v2202
    %2227 = vmatprep.subr.mxu0 0.0
    %2228 = vmatpush1.msra.mxu0 %v2203
    %2229 = vmatprep.subr.mxu0 0.0
    %2230 = vmatpush1.msra.mxu0 %v2204
    %2231 = vmatprep.subr.mxu0 0.0
    %2232 = vmatpush1.msra.mxu0 %v2205
    %2233 = vmatprep.subr.mxu0 0.0
    %2234 = vmatpush1.msra.mxu0 %v2206
    %2235 = vmatprep.subr.mxu0 0.0
    %2236 = vmatpush1.msra.mxu0 %v2207
    %2237 = vmatprep.subr.mxu0 0.0
    %2238 = vmatpush1.msra.mxu0 %v2208
    %2239 = vmatprep.subr.mxu0 0.0
    %2240 = vmatpush1.msra.mxu0 %v2209
    %2241 = vmatprep.subr.mxu0 0.0
    %2242 = vmatpush1.msra.mxu0 %v2210
    %2243 = vmatprep.subr.mxu0 0.0
    %2244 = vmatpush1.msra.mxu0 %v2211
    %2245 = vmatprep.subr.mxu0 0.0
    %2246 = vmatpush1.msra.mxu0 %v2212
    %2247 = vmatprep.subr.mxu0 0.0
    %2248 = vmatpush1.msra.mxu0 0.0
    %2249 = vmatprep.subr.mxu0 0.0
    %2250 = vmatpush1.msra.mxu0 0.0
    %2251 = vmatprep.subr.mxu0 0.0
    %2252 = vmatpush1.msra.mxu0 0.0
    %2253 = vmatprep.subr.mxu0 0.0
    %2254 = vmatpush1.msra.mxu0 0.0
    %2255 = vmatprep.subr.mxu0 0.0
    %2256 = vmatpush1.msra.mxu0 0.0
    %2257 = vmatprep.subr.mxu0 0.0
    %2258 = vmatpush1.msra.mxu0 0.0
    %2259 = vmatprep.subr.mxu0 0.0
    %2260 = vmatpush1.msra.mxu0 0.0
    %2261 = vmatprep.subr.mxu0 0.0
    %2262 = vmatpush1.msra.mxu0 0.0
    %2263 = vmatprep.subr.mxu0 0.0
    %2264 = vmatpush1.msra.mxu0 0.0
    %2265 = vmatprep.subr.mxu0 0.0
    %2266 = vmatpush1.msra.mxu0 0.0
    %2267 = vmatprep.subr.mxu0 0.0
    %2268 = vmatpush1.msra.mxu0 0.0
    %2269 = vmatprep.subr.mxu0 0.0
    %2270 = vmatpush1.msra.mxu0 0.0
    %2271 = vmatprep.subr.mxu0 0.0
    %2272 = vmatpush1.msra.mxu0 0.0
    %2273 = vmatprep.subr.mxu0 0.0
    %2274 = vmatpush1.msra.mxu0 0.0
    %2275 = vmatprep.subr.mxu0 0.0
    %2276 = vmatpush1.msra.mxu0 0.0
    %2277 = vmatprep.subr.mxu0 0.0
    %2278 = vmatpush1.msra.mxu0 0.0
    %2279 = vmatprep.mubr.f32.mxu0 0.0
    %2280 = vmatmul.mubr.f32.gmra.mrb[0].mxu0 %v2213
    %v2281 = vpop.f32.mrb[0].mxu0
    %v2282 = vadd.f32 0.0, %v2281
    %v2283 = vpop.f32.mrb[0].mxu0
    %2284 = vdwg.mxu0
    %v2285 = vadd.f32 %v2195, %v2282
    %v2286 = vld [vmem:[%s4] sm:$0x1]
    %v2288 = vlaneseq
    %v2289 = vshrl.u32 %v2288, 7
    %v2290 = vsub.s32 0, %v2289
    %v2291 = vrot.slane %v2286, %v2290
    %v2293 = vadd.f32 %v2285, %v2291
    %2294 = vst [vmem:[#allocation2] sm:$0x3] %v2293
    %v2295 = vld [vmem:[%s5] sm:$0xff]
    %v2296 = vld [vmem:[%s5 + $0x8] sm:$0xff]
    %v2297 = vld [vmem:[%s5 + $0x10] sm:$0xff]
    %v2298 = vld [vmem:[%s5 + $0x18] sm:$0xff]
    %v2299 = vld [vmem:[%s5 + $0x20] sm:$0xff]
    %v2300 = vld [vmem:[%s5 + $0x28] sm:$0xff]
    %v2301 = vld [vmem:[%s5 + $0x30] sm:$0xff]
    %v2302 = vld [vmem:[%s5 + $0x38] sm:$0xff]
    %v2303 = vld [vmem:[%s5 + $0x40] sm:$0xff]
    %v2304 = vld [vmem:[%s5 + $0x48] sm:$0xff]
    %v2305 = vld [vmem:[%s5 + $0x50] sm:$0xff]
    %v2306 = vld [vmem:[%s5 + $0x58] sm:$0xff]
    %v2307 = vld [vmem:[%s5 + $0x60] sm:$0xff]
    %v2308 = vld [vmem:[%s5 + $0x68] sm:$0xff]
    %v2309 = vld [vmem:[%s5 + $0x70] sm:$0xff]
    %v2310 = vld [vmem:[%s5 + $0x78] sm:$0xff]
    %v2311 = vld [vmem:[%s6] sm:$0x1]
    %v2313 = vlaneseq
    %v2314 = vshrl.u32 %v2313, 7
    %v2315 = vsub.s32 0, %v2314
    %v2316 = vrot.slane %v2311, %v2315
    %2318 = vmatprep.subr.mxu0 0.0
    %2319 = vmatpush1.msra.mxu0 %v2295
    %2320 = vmatprep.subr.mxu0 0.0
    %2321 = vmatpush1.msra.mxu0 %v2296
    %2322 = vmatprep.subr.mxu0 0.0
    %2323 = vmatpush1.msra.mxu0 %v2297
    %2324 = vmatprep.subr.mxu0 0.0
    %2325 = vmatpush1.msra.mxu0 %v2298
    %2326 = vmatprep.subr.mxu0 0.0
    %2327 = vmatpush1.msra.mxu0 %v2299
    %2328 = vmatprep.subr.mxu0 0.0
    %2329 = vmatpush1.msra.mxu0 %v2300
    %2330 = vmatprep.subr.mxu0 0.0
    %2331 = vmatpush1.msra.mxu0 %v2301
    %2332 = vmatprep.subr.mxu0 0.0
    %2333 = vmatpush1.msra.mxu0 %v2302
    %2334 = vmatprep.subr.mxu0 0.0
    %2335 = vmatpush1.msra.mxu0 %v2303
    %2336 = vmatprep.subr.mxu0 0.0
    %2337 = vmatpush1.msra.mxu0 %v2304
    %2338 = vmatprep.subr.mxu0 0.0
    %2339 = vmatpush1.msra.mxu0 %v2305
    %2340 = vmatprep.subr.mxu0 0.0
    %2341 = vmatpush1.msra.mxu0 %v2306
    %2342 = vmatprep.subr.mxu0 0.0
    %2343 = vmatpush1.msra.mxu0 %v2307
    %2344 = vmatprep.subr.mxu0 0.0
    %2345 = vmatpush1.msra.mxu0 %v2308
    %2346 = vmatprep.subr.mxu0 0.0
    %2347 = vmatpush1.msra.mxu0 %v2309
    %2348 = vmatprep.subr.mxu0 0.0
    %2349 = vmatpush1.msra.mxu0 %v2310
    %2350 = vmatprep.subr.mxu0 0.0
    %2351 = vmatpush1.msra.mxu0 0.0
    %2352 = vmatprep.subr.mxu0 0.0
    %2353 = vmatpush1.msra.mxu0 0.0
    %2354 = vmatprep.subr.mxu0 0.0
    %2355 = vmatpush1.msra.mxu0 0.0
    %2356 = vmatprep.subr.mxu0 0.0
    %2357 = vmatpush1.msra.mxu0 0.0
    %2358 = vmatprep.subr.mxu0 0.0
    %2359 = vmatpush1.msra.mxu0 0.0
    %2360 = vmatprep.subr.mxu0 0.0
    %2361 = vmatpush1.msra.mxu0 0.0
    %2362 = vmatprep.subr.mxu0 0.0
    %2363 = vmatpush1.msra.mxu0 0.0
    %2364 = vmatprep.subr.mxu0 0.0
    %2365 = vmatpush1.msra.mxu0 0.0
    %2366 = vmatprep.subr.mxu0 0.0
    %2367 = vmatpush1.msra.mxu0 0.0
    %2368 = vmatprep.subr.mxu0 0.0
    %2369 = vmatpush1.msra.mxu0 0.0
    %2370 = vmatprep.subr.mxu0 0.0
    %2371 = vmatpush1.msra.mxu0 0.0
    %2372 = vmatprep.subr.mxu0 0.0
    %2373 = vmatpush1.msra.mxu0 0.0
    %2374 = vmatprep.subr.mxu0 0.0
    %2375 = vmatpush1.msra.mxu0 0.0
    %2376 = vmatprep.subr.mxu0 0.0
    %2377 = vmatpush1.msra.mxu0 0.0
    %2378 = vmatprep.subr.mxu0 0.0
    %2379 = vmatpush1.msra.mxu0 0.0
    %2380 = vmatprep.subr.mxu0 0.0
    %2381 = vmatpush1.msra.mxu0 0.0
    %2382 = vmatprep.mubr.f32.mxu0 0.0
    %2383 = vmatmul.mubr.f32.gmra.mrb[0].mxu0 %v2293
    %v2384 = vpop.f32.mrb[0].mxu0
    %v2385 = vadd.f32 %v2316, %v2384
    %v2386 = vpop.f32.mrb[0].mxu0
    %2387 = vdwg.mxu0
    %vm2388 = vcmp.gt.f32.partialorder %v2385, 0.0
    %v2389 = vmul.f32 %v2385, 0.01
    %v2390 = vsel %vm2388, %v2385, %v2389
    %v2391 = vsub.f32 0.0, %v2390
    %v2392 = vmul.f32 %v2391, 1.442695
    %v2393 = vpow.pop %v2392
    %v2394 = vadd.f32 %v2393, 1.0
    %v2395 = vrcp.pop %v2394
    %2396 = vst [vmem:[%s8] sm:$0x3] %v2395
    // Predicated region
    $region30: #{_lambda_.9} parent=1 // pred_check
      _
    $region31: #{_lambda_.9} parent=1 // pred_check_branch
      %2398 = sbr.rel (0) target = $region33
    $region32: #{_lambda_.9} parent=1 // pred_region
      %s2400 = ssub.s32 32, 32
      %2401 = vsyncadd [#allocation3], %s2400
      %s2403 = sshll.u32 [#allocation2], 4
      %s2404 = int_to_ptr.vmem [resolvable:$true] %s2403
      %2406 = dma.vmem_to_hbm [thread:$0]  %s2404, 32, %s7, [#allocation3]
    $region33: #{_lambda_.9} parent=1 // pred_fallthru
      _
    // Predicated region
    $region34: #{_lambda_.9} parent=1 // pred_check
      _
    $region35: #{_lambda_.9} parent=1 // pred_check_branch
      %2408 = sbr.rel (0) target = $region37
    $region36: #{_lambda_.9} parent=1 // pred_region
      _
    $region37: #{_lambda_.9} parent=1 // pred_fallthru
      _
    // Predicated region
    $region38: #{_lambda_.9} parent=1 // pred_check
      _
    $region39: #{_lambda_.9} parent=1 // pred_check_branch
      %2410 = sbr.rel (0) target = $region41
    $region40: #{_lambda_.9} parent=1 // pred_region
      %2411 = dma.done [#allocation3], 32
    $region41: #{_lambda_.9} parent=1 // pred_fallthru
      _
    // Predicated region
    $region42: #{_lambda_.9} parent=1 // pred_check
      _
    $region43: #{_lambda_.9} parent=1 // pred_check_branch
      %2413 = sbr.rel (0) target = $region45
    $region44: #{_lambda_.9} parent=1 // pred_region
      _
    $region45: #{_lambda_.9} parent=1 // pred_fallthru
      _
    %2414 = vsyncpa [#allocation3], 1

</llo_original>
